<compile_context>
chip_gen: v6e
topology: v6e:2x2x1
jax: 0.10.0
libtpu: 0.0.40
codegen_flags: <defaults>
</compile_context>

<pallas_src>
import jax
import jax.numpy as jnp
from jax import lax
from jax.experimental import pallas as pl
from jax.experimental.pallas import tpu as pltpu

# ----------------------------- configuration --------------------------------
IMG = 56                 # img_size
PATCH = 4                # patch size -> 14x14 = 196 tokens (module hard-codes 14)
GRID_W = 14
HW = GRID_W * GRID_W     # 196
T = HW + 1               # 197 tokens, cls carried LAST
PATCH_IN = 3 * PATCH * PATCH       # 48
EMBED = 64               # ViT embed dim == prototype channel dim
HEADS = 2
HEAD_DIM = EMBED // HEADS
MLP_HIDDEN = 128
NUM_CLASSES = 4
PROTOS_PER_CLASS = 2
NUM_PROTOS = NUM_CLASSES * PROTOS_PER_CLASS   # 8
N_P = 4                  # prototype_shape[-1] (sub-patches per prototype)
RADIUS = 3
SIG_TEMP = 1.0
PROTOTYPE_SHAPE = (NUM_PROTOS, EMBED, N_P)
OUT_W = 128              # lane-dense packed output width

# ------- packed-weight row/col offsets (shared by the packer & the kernel) ---
R_PATCHW = 0                              # (48, 64)  patch-embed weight
R_FC2 = R_PATCHW + PATCH_IN               # (128, 64) MLP fc2 weight
R_POS = R_FC2 + MLP_HIDDEN                # (197, 64) pos-embed(+patch bias); row HW = cls(+pos)
R_PROTO = 376                             # (32, 64)  L2-normalized prototypes, sub-patch-major
R_PSEL = R_PROTO + N_P * NUM_PROTOS       # (8, 4)    patch_select
R_LASTW = R_PSEL + NUM_PROTOS             # (8, 4)    last_layer.weight^T
MAT64_ROWS = R_LASTW + NUM_PROTOS         # 424

R192_QKV = 0                              # (64, 192) fused [q|k|v] weight
R192_W2 = EMBED                           # (64, 0:128)=fc1 w, (64, 128:192)=attn proj w
MAT192_ROWS = 2 * EMBED                   # 128

(V_LN1G, V_LN1B, V_QKVB, V_PROJB, V_LN2G,
 V_LN2B, V_FC1B, V_FC2B, V_NG, V_NB) = range(10)
VEC_ROWS = 10


# ----------------------------- in-kernel helpers -----------------------------
def _layer_norm(x, g, b, eps=1e-6):
    # TODO(synk): timm ViT/DeiT LayerNorm uses eps=1e-6 (plain torch default is 1e-5).
    mu = jnp.mean(x, axis=-1, keepdims=True)
    var = jnp.mean((x - mu) ** 2, axis=-1, keepdims=True)
    return (x - mu) * lax.rsqrt(var + eps) * g + b


def _erf(x):
    # Abramowitz & Stegun 7.1.26 polynomial (|err| < 1.5e-7): keeps nn.GELU's
    # exact-erf semantics; the divide goes through pl.reciprocal.
    p = 0.3275911
    a1, a2, a3, a4, a5 = 0.254829592, -0.284496736, 1.421413741, -1.453152027, 1.061405429
    ax = jnp.abs(x)
    t = pl.reciprocal(1.0 + p * ax, approx=False)
    poly = ((((a5 * t + a4) * t + a3) * t + a2) * t + a1) * t
    y = 1.0 - poly * jnp.exp(-(ax * ax))
    return jnp.where(x >= 0, y, -y)


def _gelu(x):
    return 0.5 * x * (1.0 + _erf(x * 0.7071067811865476))


def _divmod_const(x, w, max_q):
    """Exact (x // w, x % w) for small non-negative int32 vectors (no vector idiv)."""
    q = jnp.zeros_like(x)
    for r in range(1, max_q + 1):
        q = q + (x >= r * w).astype(x.dtype)
    return q, x - q * w


# ----------------------------- the fused kernel ------------------------------
def _ppnet_fused_kernel(xp_ref, mat64_ref, mat192_ref, vec_ref, out_ref):
    f32 = jnp.float32
    D, DH = EMBED, HEAD_DIM
    scale = 1.0 / float(DH) ** 0.5

    # ---- 1) patch embed: (197,48)@(48,64); the pos table already folds in the
    #         conv bias and carries cls_token(+its pos) at row HW (xp row HW = 0).
    h = (jnp.dot(xp_ref[0], mat64_ref[R_PATCHW:R_PATCHW + PATCH_IN, :],
                 preferred_element_type=f32)
         + mat64_ref[R_POS:R_POS + T, :])                          # (197, 64), cls LAST

    # ---- 2) attention: LN -> fused QKV matmul -> per-head softmax -> fused proj
    y = _layer_norm(h, vec_ref[V_LN1G:V_LN1G + 1, 0:D], vec_ref[V_LN1B:V_LN1B + 1, 0:D])
    qkv = (jnp.dot(y, mat192_ref[R192_QKV:R192_QKV + D, :], preferred_element_type=f32)
           + vec_ref[V_QKVB:V_QKVB + 1, :])                        # (197, 192) = [q|k|v]
    o_heads = []
    for hd in range(HEADS):
        q = qkv[:, hd * DH:(hd + 1) * DH]
        k = qkv[:, D + hd * DH:D + (hd + 1) * DH]
        s = lax.dot_general(q, k, (((1,), (1,)), ((), ())),
                            preferred_element_type=f32) * scale    # (197, 197)
        s = s - jnp.max(s, axis=-1, keepdims=True)
        e = jnp.exp(s)
        pr = e * pl.reciprocal(jnp.sum(e, axis=-1, keepdims=True), approx=True)
        v = qkv[:, 2 * D + hd * DH:2 * D + (hd + 1) * DH]          # V only after softmax
        o_heads.append(jnp.dot(pr, v, preferred_element_type=f32))
    o = jnp.concatenate(o_heads, axis=-1)                          # (197, 64)
    h = h + (jnp.dot(o, mat192_ref[R192_W2:R192_W2 + D, MLP_HIDDEN:MLP_HIDDEN + D],
                     preferred_element_type=f32)
             + vec_ref[V_PROJB:V_PROJB + 1, 0:D])

    # ---- 3) MLP: LN -> fc1 -> GELU(exact erf) -> fc2 -> residual
    y = _layer_norm(h, vec_ref[V_LN2G:V_LN2G + 1, 0:D], vec_ref[V_LN2B:V_LN2B + 1, 0:D])
    m = (jnp.dot(y, mat192_ref[R192_W2:R192_W2 + D, 0:MLP_HIDDEN],
                 preferred_element_type=f32)
         + vec_ref[V_FC1B:V_FC1B + 1, 0:MLP_HIDDEN])
    m = _gelu(m)
    h = h + (jnp.dot(m, mat64_ref[R_FC2:R_FC2 + MLP_HIDDEN, :],
                     preferred_element_type=f32)
             + vec_ref[V_FC2B:V_FC2B + 1, 0:D])

    # ---- 4) final norm + PPNet focal feature: tokens - cls (cls is row HW)
    h = _layer_norm(h, vec_ref[V_NG:V_NG + 1, 0:D], vec_ref[V_NB:V_NB + 1, 0:D])
    feat = h[0:HW, :] - h[HW:HW + 1, :]                            # (196, 64)

    # ---- 5) cosine similarity; feature normalization deferred past the matmul
    proto = mat64_ref[R_PROTO:R_PROTO + N_P * NUM_PROTOS, :]       # (32, 64), pre-normed
    raw = lax.dot_general(proto, feat, (((1,), (1,)), ((), ())),
                          preferred_element_type=f32)              # (32, 196)
    ssq = lax.dot_general(jnp.ones((1, D), f32), feat * feat,
                          (((1,), (1,)), ((), ())),
                          preferred_element_type=f32)              # (1, 196) = ||f_t||^2
    dist = raw * lax.rsqrt(jnp.maximum(ssq, 1e-24))                # == F.normalize(eps=1e-12)

    # ---- 6) greedy matching (fully unrolled, boolean masks)
    d = [dist[i * NUM_PROTOS:(i + 1) * NUM_PROTOS, :] for i in range(N_P)]  # (8,196) each
    iota_hw = lax.broadcasted_iota(jnp.int32, (NUM_PROTOS, HW), 1)
    prow, pcol = _divmod_const(iota_hw, GRID_W, GRID_W - 1)
    iota_f = iota_hw.astype(f32)

    mask_act = jnp.ones((NUM_PROTOS, HW), jnp.bool_)
    adjacent = jnp.ones((NUM_PROTOS, HW), jnp.bool_)
    mask_sub = [jnp.ones((NUM_PROTOS, 1), jnp.bool_) for _ in range(N_P)]
    vals = [jnp.zeros((NUM_PROTOS, 1), f32) for _ in range(N_P)]

    for _ in range(N_P):
        base = mask_act & adjacent
        max_subs, max_ids = [], []
        for i in range(N_P):
            masked = jnp.where(base & mask_sub[i], d[i], d[i] - 100000.0)
            mi = jnp.max(masked, axis=-1, keepdims=True)                       # (8, 1)
            ai = jnp.min(jnp.where(masked == mi, iota_f, float(HW)),
                         axis=-1, keepdims=True)                               # first-index argmax
            max_subs.append(mi)
            max_ids.append(ai.astype(jnp.int32))
        best = max_subs[0]
        for i in range(1, N_P):
            best = jnp.maximum(best, max_subs[i])
        taken = jnp.zeros((NUM_PROTOS, 1), jnp.bool_)
        max_patch_id = jnp.zeros((NUM_PROTOS, 1), jnp.int32)
        for i in range(N_P):
            sel = (max_subs[i] == best) & jnp.logical_not(taken)   # first sub-patch wins ties
            taken = taken | sel
            max_patch_id = max_patch_id + jnp.where(sel, max_ids[i], 0)
            mask_sub[i] = mask_sub[i] & jnp.logical_not(sel)
            vals[i] = vals[i] + jnp.where(sel, best, 0.0)          # value lands at its slot
        # neigboring_mask: +-radius box around the selected patch (clamp never triggers)
        crow, ccol = _divmod_const(max_patch_id, GRID_W, GRID_W - 1)
        adjacent = (jnp.abs(prow - crow) <= RADIUS) & (jnp.abs(pcol - ccol) <= RADIUS)
        mask_act = mask_act & (iota_hw != max_patch_id)

    iota_np = lax.broadcasted_iota(jnp.int32, (NUM_PROTOS, N_P), 1)
    values_reordered = jnp.zeros((NUM_PROTOS, N_P), f32)
    for i in range(N_P):
        values_reordered = values_reordered + jnp.where(iota_np == i, vals[i], 0.0)

    # ---- 7) sigmoid slot weighting + bias-free classifier head
    psel = mat64_ref[R_PSEL:R_PSEL + NUM_PROTOS, 0:N_P]            # (8, 4)
    slots = pl.reciprocal(1.0 + jnp.exp(-psel * SIG_TEMP), approx=False)
    factor = jnp.sum(slots, axis=-1, keepdims=True) + 1e-10
    values_slot = values_reordered * (slots * N_P / factor)
    max_act = jnp.sum(values_slot, axis=-1, keepdims=True)         # (8, 1)
    w_pc = mat64_ref[R_LASTW:R_LASTW + NUM_PROTOS, 0:NUM_CLASSES]  # (8, 4)
    logits_row = jnp.sum(w_pc * max_act, axis=0, keepdims=True)    # (1, 4)

    # ---- 8) one lane-dense (8,128) packed output: [values | min_d | logits | 0]
    out_ref[0] = jnp.concatenate(
        [values_reordered,
         float(N_P) - max_act,
         jnp.broadcast_to(logits_row, (NUM_PROTOS, NUM_CLASSES)),
         jnp.zeros((NUM_PROTOS, OUT_W - (N_P + 1 + NUM_CLASSES)), f32)],
        axis=-1)


# ------------------------ params / packing / forward --------------------------
def init_params(key):
    ks = jax.random.split(key, 10)
    std = 0.02
    D = EMBED
    p = dict(
        patch_w=std * jax.random.normal(ks[0], (PATCH_IN, D), jnp.float32),
        patch_b=jnp.zeros((D,), jnp.float32),
        cls_token=std * jax.random.normal(ks[1], (D,), jnp.float32),
        # row HW holds the cls token's positional embedding (cls carried last)
        pos_embed=std * jax.random.normal(ks[2], (HW + 1, D), jnp.float32),
        ln1_g=jnp.ones((D,), jnp.float32), ln1_b=jnp.zeros((D,), jnp.float32),
        q_w=std * jax.random.normal(ks[3], (D, D), jnp.float32),
        k_w=std * jax.random.normal(ks[4], (D, D), jnp.float32),
        v_w=std * jax.random.normal(ks[5], (D, D), jnp.float32),
        q_b=jnp.zeros((D,), jnp.float32),
        k_b=jnp.zeros((D,), jnp.float32),
        v_b=jnp.zeros((D,), jnp.float32),
        proj_w=std * jax.random.normal(ks[6], (D, D), jnp.float32),
        proj_b=jnp.zeros((D,), jnp.float32),
        ln2_g=jnp.ones((D,), jnp.float32), ln2_b=jnp.zeros((D,), jnp.float32),
        fc1_w=std * jax.random.normal(ks[7], (D, MLP_HIDDEN), jnp.float32),
        fc1_b=jnp.zeros((MLP_HIDDEN,), jnp.float32),
        fc2_w=std * jax.random.normal(ks[8], (MLP_HIDDEN, D), jnp.float32),
        fc2_b=jnp.zeros((D,), jnp.float32),
        norm_g=jnp.ones((D,), jnp.float32), norm_b=jnp.zeros((D,), jnp.float32),
        prototype_vectors=jax.random.uniform(ks[9], PROTOTYPE_SHAPE, jnp.float32),  # torch.rand
        patch_select=0.1 * jnp.ones((1, NUM_PROTOS, N_P), jnp.float32),
    )
    # prototype_class_identity + set_last_layer_incorrect_connection(-0.5)
    proto_classes = jnp.arange(NUM_PROTOS) // PROTOS_PER_CLASS
    identity = (proto_classes[:, None] == jnp.arange(NUM_CLASSES)[None, :]).astype(jnp.float32)
    p["last_w"] = 1.0 * identity.T + (-0.5) * (1.0 - identity.T)   # (C, P)
    return p


def _pack_weights(p):
    """Pack the ~21 logical parameters into 3 arrays (batch-invariant XLA glue)."""
    f32 = jnp.float32
    D = EMBED
    mat64 = jnp.zeros((MAT64_ROWS, D), f32)
    mat64 = mat64.at[R_PATCHW:R_PATCHW + PATCH_IN].set(p["patch_w"])
    mat64 = mat64.at[R_FC2:R_FC2 + MLP_HIDDEN].set(p["fc2_w"])
    mat64 = mat64.at[R_POS:R_POS + HW].set(p["pos_embed"][:HW] + p["patch_b"][None, :])
    mat64 = mat64.at[R_POS + HW].set(p["cls_token"] + p["pos_embed"][HW])
    pv = p["prototype_vectors"]                                    # (P, D, n_p)
    pn = pv / jnp.maximum(jnp.sqrt(jnp.sum(pv * pv, axis=1, keepdims=True)), 1e-12)
    proto_rows = jnp.transpose(pn, (2, 0, 1)).reshape(N_P * NUM_PROTOS, D)  # sub-patch-major
    mat64 = mat64.at[R_PROTO:R_PROTO + N_P * NUM_PROTOS].set(proto_rows)
    mat64 = mat64.at[R_PSEL:R_PSEL + NUM_PROTOS, 0:N_P].set(p["patch_select"][0])
    mat64 = mat64.at[R_LASTW:R_LASTW + NUM_PROTOS, 0:NUM_CLASSES].set(p["last_w"].T)

    mat192 = jnp.zeros((MAT192_ROWS, 3 * D), f32)
    qkv_w = jnp.concatenate([p["q_w"], p["k_w"], p["v_w"]], axis=1)
    mat192 = mat192.at[R192_QKV:R192_QKV + D].set(qkv_w)
    mat192 = mat192.at[R192_W2:R192_W2 + D, 0:MLP_HIDDEN].set(p["fc1_w"])
    mat192 = mat192.at[R192_W2:R192_W2 + D, MLP_HIDDEN:MLP_HIDDEN + D].set(p["proj_w"])

    vec = jnp.zeros((VEC_ROWS, 3 * D), f32)
    vec = vec.at[V_LN1G, 0:D].set(p["ln1_g"])
    vec = vec.at[V_LN1B, 0:D].set(p["ln1_b"])
    vec = vec.at[V_QKVB, 0:3 * D].set(jnp.concatenate([p["q_b"], p["k_b"], p["v_b"]]))
    vec = vec.at[V_PROJB, 0:D].set(p["proj_b"])
    vec = vec.at[V_LN2G, 0:D].set(p["ln2_g"])
    vec = vec.at[V_LN2B, 0:D].set(p["ln2_b"])
    vec = vec.at[V_FC1B, 0:MLP_HIDDEN].set(p["fc1_b"])
    vec = vec.at[V_FC2B, 0:D].set(p["fc2_b"])
    vec = vec.at[V_NG, 0:D].set(p["norm_g"])
    vec = vec.at[V_NB, 0:D].set(p["norm_b"])
    return mat64, mat192, vec


@jax.jit
def ppnet_forward(params, x):
    B = x.shape[0]
    # TODO(synk): the Conv2d->unfold transpose, the zero cls row and the one-time
    # weight packing stay as tiny XLA glue; the per-image hot path is one kernel.
    xp = x.reshape(B, 3, GRID_W, PATCH, GRID_W, PATCH)
    xp = xp.transpose(0, 2, 4, 1, 3, 5).reshape(B, HW, PATCH_IN)
    xp = jnp.concatenate([xp, jnp.zeros((B, 1, PATCH_IN), jnp.float32)], axis=1)
    mat64, mat192, vec = _pack_weights(params)

    out = pl.pallas_call(
        _ppnet_fused_kernel,
        out_shape=jax.ShapeDtypeStruct((B, NUM_PROTOS, OUT_W), jnp.float32),
        grid=(B,),
        in_specs=[pl.BlockSpec((1, T, PATCH_IN), lambda b: (b, 0, 0)),
                  pl.BlockSpec((MAT64_ROWS, EMBED), lambda b: (0, 0)),
                  pl.BlockSpec((MAT192_ROWS, 3 * EMBED), lambda b: (0, 0)),
                  pl.BlockSpec((VEC_ROWS, 3 * EMBED), lambda b: (0, 0))],
        out_specs=pl.BlockSpec((1, NUM_PROTOS, OUT_W), lambda b: (b, 0, 0)),
        compiler_params=pltpu.CompilerParams(dimension_semantics=("parallel",)),
    )(xp, mat64, mat192, vec)

    values = out[:, :, 0:N_P]                              # (B, P, n_p)
    min_d = out[:, :, N_P]                                 # (B, P)
    logits = out[:, 0, N_P + 1:N_P + 1 + NUM_CLASSES]      # (B, C)
    return logits, min_d, values


if __name__ == "__main__":
    root = jax.random.PRNGKey(0)
    k_x, k_p = jax.random.split(root)
    x = jax.random.normal(k_x, (2, 3, IMG, IMG), jnp.float32)   # NCHW like PyTorch
    params = init_params(k_p)
    logits, min_d, values = ppnet_forward(params, x)
    jax.block_until_ready((logits, min_d, values))
    assert logits.shape == (2, NUM_CLASSES)
    assert min_d.shape == (2, NUM_PROTOS)
    assert values.shape == (2, NUM_PROTOS, N_P)
    print("KERNEL_OK")
</pallas_src>

<mosaic_0001>
module attributes {stable_mosaic.version = 11 : i64} {
  func.func @_ppnet_fused_kernel(%arg0: i32, %arg1: memref<1x197x48xf32, #tpu.memory_space<vmem>>, %arg2: memref<424x64xf32, #tpu.memory_space<vmem>>, %arg3: memref<128x192xf32, #tpu.memory_space<vmem>>, %arg4: memref<10x192xf32, #tpu.memory_space<vmem>>, %arg5: memref<1x8x128xf32, #tpu.memory_space<vmem>>) attributes {dimension_semantics = [#tpu.dimension_semantics<parallel>], iteration_bounds = array<i64: 2>, scalar_prefetch = 0 : i64, scratch_operands = 0 : i64, tpu.core_type = #tpu.core_type<tc>, window_params = [{transform_indices = @transform_0, window_bounds = array<i64: 1, 197, 48>}, {pipeline_mode = #tpu.pipeline_mode<synchronous>, transform_indices = @transform_1, window_bounds = array<i64: 424, 64>}, {pipeline_mode = #tpu.pipeline_mode<synchronous>, transform_indices = @transform_2, window_bounds = array<i64: 128, 192>}, {pipeline_mode = #tpu.pipeline_mode<synchronous>, transform_indices = @transform_3, window_bounds = array<i64: 10, 192>}, {transform_indices = @transform_4, window_bounds = array<i64: 1, 8, 128>}]} {
    %c0 = arith.constant 0 : index
    %c0_0 = arith.constant 0 : index
    %c0_1 = arith.constant 0 : index
    %0 = vector.load %arg1[%c0, %c0_0, %c0_1] : memref<1x197x48xf32, #tpu.memory_space<vmem>>, vector<1x197x48xf32>
    %1 = vector.shape_cast %0 : vector<1x197x48xf32> to vector<197x48xf32>
    %c0_2 = arith.constant 0 : index
    %c0_3 = arith.constant 0 : index
    %2 = vector.load %arg2[%c0_2, %c0_3] : memref<424x64xf32, #tpu.memory_space<vmem>>, vector<48x64xf32>
    %cst = arith.constant dense<0.000000e+00> : vector<197x64xf32>
    %3 = tpu.matmul %1, %2, %cst {dimension_numbers = #tpu.dot_dimension_numbers<[1], [0], [0], [1], [0, 0, 1, 1], [], []>} : vector<197x48xf32>, vector<48x64xf32>, vector<197x64xf32> -> vector<197x64xf32>
    %c176 = arith.constant 176 : index
    %c0_4 = arith.constant 0 : index
    %4 = vector.load %arg2[%c176, %c0_4] : memref<424x64xf32, #tpu.memory_space<vmem>>, vector<197x64xf32>
    %5 = arith.addf %3, %4 : vector<197x64xf32>
    %c0_5 = arith.constant 0 : index
    %c0_6 = arith.constant 0 : index
    %6 = vector.load %arg4[%c0_5, %c0_6] : memref<10x192xf32, #tpu.memory_space<vmem>>, vector<1x64xf32>
    %c1 = arith.constant 1 : index
    %c0_7 = arith.constant 0 : index
    %7 = vector.load %arg4[%c1, %c0_7] : memref<10x192xf32, #tpu.memory_space<vmem>>, vector<1x64xf32>
    %cst_8 = arith.constant dense<0.000000e+00> : vector<197xf32>
    %8 = vector.multi_reduction <add>, %5, %cst_8 [1] : vector<197x64xf32> to vector<197xf32>
    %9 = vector.shape_cast %8 : vector<197xf32> to vector<197x1xf32>
    %cst_9 = arith.constant 6.400000e+01 : f32
    %10 = vector.broadcast %cst_9 : f32 to vector<197x1xf32>
    %11 = arith.divf %9, %10 : vector<197x1xf32>
    %12 = vector.broadcast %11 : vector<197x1xf32> to vector<197x64xf32>
    %13 = arith.subf %5, %12 : vector<197x64xf32>
    %14 = arith.mulf %13, %13 : vector<197x64xf32>
    %cst_10 = arith.constant dense<0.000000e+00> : vector<197xf32>
    %15 = vector.multi_reduction <add>, %14, %cst_10 [1] : vector<197x64xf32> to vector<197xf32>
    %16 = vector.shape_cast %15 : vector<197xf32> to vector<197x1xf32>
    %cst_11 = arith.constant 6.400000e+01 : f32
    %17 = vector.broadcast %cst_11 : f32 to vector<197x1xf32>
    %18 = arith.divf %16, %17 : vector<197x1xf32>
    %19 = vector.broadcast %11 : vector<197x1xf32> to vector<197x64xf32>
    %20 = arith.subf %5, %19 : vector<197x64xf32>
    %cst_12 = arith.constant 9.99999997E-7 : f32
    %21 = vector.broadcast %cst_12 : f32 to vector<197x1xf32>
    %22 = arith.addf %18, %21 : vector<197x1xf32>
    %23 = math.rsqrt %22 : vector<197x1xf32>
    %24 = vector.broadcast %23 : vector<197x1xf32> to vector<197x64xf32>
    %25 = arith.mulf %20, %24 : vector<197x64xf32>
    %26 = vector.broadcast %6 : vector<1x64xf32> to vector<197x64xf32>
    %27 = arith.mulf %25, %26 : vector<197x64xf32>
    %28 = vector.broadcast %7 : vector<1x64xf32> to vector<197x64xf32>
    %29 = arith.addf %27, %28 : vector<197x64xf32>
    %c0_13 = arith.constant 0 : index
    %c0_14 = arith.constant 0 : index
    %30 = vector.load %arg3[%c0_13, %c0_14] : memref<128x192xf32, #tpu.memory_space<vmem>>, vector<64x192xf32>
    %cst_15 = arith.constant dense<0.000000e+00> : vector<197x192xf32>
    %31 = tpu.matmul %29, %30, %cst_15 {dimension_numbers = #tpu.dot_dimension_numbers<[1], [0], [0], [1], [0, 0, 1, 1], [], []>} : vector<197x64xf32>, vector<64x192xf32>, vector<197x192xf32> -> vector<197x192xf32>
    %c2 = arith.constant 2 : index
    %c0_16 = arith.constant 0 : index
    %32 = vector.load %arg4[%c2, %c0_16] : memref<10x192xf32, #tpu.memory_space<vmem>>, vector<1x192xf32>
    %33 = vector.broadcast %32 : vector<1x192xf32> to vector<197x192xf32>
    %34 = arith.addf %31, %33 : vector<197x192xf32>
    %35 = vector.extract_strided_slice %34 {offsets = [0, 0], sizes = [197, 32], strides = [1, 1]} : vector<197x192xf32> to vector<197x32xf32>
    %36 = vector.extract_strided_slice %34 {offsets = [0, 64], sizes = [197, 32], strides = [1, 1]} : vector<197x192xf32> to vector<197x32xf32>
    %cst_17 = arith.constant dense<0.000000e+00> : vector<197x197xf32>
    %37 = tpu.matmul %35, %36, %cst_17 {dimension_numbers = #tpu.dot_dimension_numbers<[1], [1], [0], [0], [0, 0, 1, 0], [], []>} : vector<197x32xf32>, vector<197x32xf32>, vector<197x197xf32> -> vector<197x197xf32>
    %cst_18 = arith.constant 0.176776692 : f32
    %38 = vector.broadcast %cst_18 : f32 to vector<197x197xf32>
    %39 = arith.mulf %37, %38 : vector<197x197xf32>
    %cst_19 = arith.constant dense<0xFF800000> : vector<197xf32>
    %40 = vector.multi_reduction <maximumf>, %39, %cst_19 [1] : vector<197x197xf32> to vector<197xf32>
    %41 = vector.shape_cast %40 : vector<197xf32> to vector<197x1xf32>
    %42 = vector.broadcast %41 : vector<197x1xf32> to vector<197x197xf32>
    %43 = arith.subf %39, %42 : vector<197x197xf32>
    %44 = math.exp %43 : vector<197x197xf32>
    %cst_20 = arith.constant dense<0.000000e+00> : vector<197xf32>
    %45 = vector.multi_reduction <add>, %44, %cst_20 [1] : vector<197x197xf32> to vector<197xf32>
    %46 = vector.shape_cast %45 : vector<197xf32> to vector<197x1xf32>
    %47 = tpu.reciprocal %46 {approx = true} : vector<197x1xf32> -> vector<197x1xf32>
    %48 = vector.broadcast %47 : vector<197x1xf32> to vector<197x197xf32>
    %49 = arith.mulf %44, %48 : vector<197x197xf32>
    %50 = vector.extract_strided_slice %34 {offsets = [0, 128], sizes = [197, 32], strides = [1, 1]} : vector<197x192xf32> to vector<197x32xf32>
    %cst_21 = arith.constant dense<0.000000e+00> : vector<197x32xf32>
    %51 = tpu.matmul %49, %50, %cst_21 {dimension_numbers = #tpu.dot_dimension_numbers<[1], [0], [0], [1], [0, 0, 1, 1], [], []>} : vector<197x197xf32>, vector<197x32xf32>, vector<197x32xf32> -> vector<197x32xf32>
    %52 = vector.extract_strided_slice %34 {offsets = [0, 32], sizes = [197, 32], strides = [1, 1]} : vector<197x192xf32> to vector<197x32xf32>
    %53 = vector.extract_strided_slice %34 {offsets = [0, 96], sizes = [197, 32], strides = [1, 1]} : vector<197x192xf32> to vector<197x32xf32>
    %cst_22 = arith.constant dense<0.000000e+00> : vector<197x197xf32>
    %54 = tpu.matmul %52, %53, %cst_22 {dimension_numbers = #tpu.dot_dimension_numbers<[1], [1], [0], [0], [0, 0, 1, 0], [], []>} : vector<197x32xf32>, vector<197x32xf32>, vector<197x197xf32> -> vector<197x197xf32>
    %cst_23 = arith.constant 0.176776692 : f32
    %55 = vector.broadcast %cst_23 : f32 to vector<197x197xf32>
    %56 = arith.mulf %54, %55 : vector<197x197xf32>
    %cst_24 = arith.constant dense<0xFF800000> : vector<197xf32>
    %57 = vector.multi_reduction <maximumf>, %56, %cst_24 [1] : vector<197x197xf32> to vector<197xf32>
    %58 = vector.shape_cast %57 : vector<197xf32> to vector<197x1xf32>
    %59 = vector.broadcast %58 : vector<197x1xf32> to vector<197x197xf32>
    %60 = arith.subf %56, %59 : vector<197x197xf32>
    %61 = math.exp %60 : vector<197x197xf32>
    %cst_25 = arith.constant dense<0.000000e+00> : vector<197xf32>
    %62 = vector.multi_reduction <add>, %61, %cst_25 [1] : vector<197x197xf32> to vector<197xf32>
    %63 = vector.shape_cast %62 : vector<197xf32> to vector<197x1xf32>
    %64 = tpu.reciprocal %63 {approx = true} : vector<197x1xf32> -> vector<197x1xf32>
    %65 = vector.broadcast %64 : vector<197x1xf32> to vector<197x197xf32>
    %66 = arith.mulf %61, %65 : vector<197x197xf32>
    %67 = vector.extract_strided_slice %34 {offsets = [0, 160], sizes = [197, 32], strides = [1, 1]} : vector<197x192xf32> to vector<197x32xf32>
    %cst_26 = arith.constant dense<0.000000e+00> : vector<197x32xf32>
    %68 = tpu.matmul %66, %67, %cst_26 {dimension_numbers = #tpu.dot_dimension_numbers<[1], [0], [0], [1], [0, 0, 1, 1], [], []>} : vector<197x197xf32>, vector<197x32xf32>, vector<197x32xf32> -> vector<197x32xf32>
    %69 = tpu.concatenate %51, %68 in 1 : vector<197x32xf32>, vector<197x32xf32> -> vector<197x64xf32>
    %c64 = arith.constant 64 : index
    %c128 = arith.constant 128 : index
    %70 = vector.load %arg3[%c64, %c128] : memref<128x192xf32, #tpu.memory_space<vmem>>, vector<64x64xf32>
    %cst_27 = arith.constant dense<0.000000e+00> : vector<197x64xf32>
    %71 = tpu.matmul %69, %70, %cst_27 {dimension_numbers = #tpu.dot_dimension_numbers<[1], [0], [0], [1], [0, 0, 1, 1], [], []>} : vector<197x64xf32>, vector<64x64xf32>, vector<197x64xf32> -> vector<197x64xf32>
    %c3 = arith.constant 3 : index
    %c0_28 = arith.constant 0 : index
    %72 = vector.load %arg4[%c3, %c0_28] : memref<10x192xf32, #tpu.memory_space<vmem>>, vector<1x64xf32>
    %73 = vector.broadcast %72 : vector<1x64xf32> to vector<197x64xf32>
    %74 = arith.addf %71, %73 : vector<197x64xf32>
    %75 = arith.addf %5, %74 : vector<197x64xf32>
    %c4 = arith.constant 4 : index
    %c0_29 = arith.constant 0 : index
    %76 = vector.load %arg4[%c4, %c0_29] : memref<10x192xf32, #tpu.memory_space<vmem>>, vector<1x64xf32>
    %c5 = arith.constant 5 : index
    %c0_30 = arith.constant 0 : index
    %77 = vector.load %arg4[%c5, %c0_30] : memref<10x192xf32, #tpu.memory_space<vmem>>, vector<1x64xf32>
    %cst_31 = arith.constant dense<0.000000e+00> : vector<197xf32>
    %78 = vector.multi_reduction <add>, %75, %cst_31 [1] : vector<197x64xf32> to vector<197xf32>
    %79 = vector.shape_cast %78 : vector<197xf32> to vector<197x1xf32>
    %cst_32 = arith.constant 6.400000e+01 : f32
    %80 = vector.broadcast %cst_32 : f32 to vector<197x1xf32>
    %81 = arith.divf %79, %80 : vector<197x1xf32>
    %82 = vector.broadcast %81 : vector<197x1xf32> to vector<197x64xf32>
    %83 = arith.subf %75, %82 : vector<197x64xf32>
    %84 = arith.mulf %83, %83 : vector<197x64xf32>
    %cst_33 = arith.constant dense<0.000000e+00> : vector<197xf32>
    %85 = vector.multi_reduction <add>, %84, %cst_33 [1] : vector<197x64xf32> to vector<197xf32>
    %86 = vector.shape_cast %85 : vector<197xf32> to vector<197x1xf32>
    %cst_34 = arith.constant 6.400000e+01 : f32
    %87 = vector.broadcast %cst_34 : f32 to vector<197x1xf32>
    %88 = arith.divf %86, %87 : vector<197x1xf32>
    %89 = vector.broadcast %81 : vector<197x1xf32> to vector<197x64xf32>
    %90 = arith.subf %75, %89 : vector<197x64xf32>
    %cst_35 = arith.constant 9.99999997E-7 : f32
    %91 = vector.broadcast %cst_35 : f32 to vector<197x1xf32>
    %92 = arith.addf %88, %91 : vector<197x1xf32>
    %93 = math.rsqrt %92 : vector<197x1xf32>
    %94 = vector.broadcast %93 : vector<197x1xf32> to vector<197x64xf32>
    %95 = arith.mulf %90, %94 : vector<197x64xf32>
    %96 = vector.broadcast %76 : vector<1x64xf32> to vector<197x64xf32>
    %97 = arith.mulf %95, %96 : vector<197x64xf32>
    %98 = vector.broadcast %77 : vector<1x64xf32> to vector<197x64xf32>
    %99 = arith.addf %97, %98 : vector<197x64xf32>
    %c64_36 = arith.constant 64 : index
    %c0_37 = arith.constant 0 : index
    %100 = vector.load %arg3[%c64_36, %c0_37] : memref<128x192xf32, #tpu.memory_space<vmem>>, vector<64x128xf32>
    %cst_38 = arith.constant dense<0.000000e+00> : vector<197x128xf32>
    %101 = tpu.matmul %99, %100, %cst_38 {dimension_numbers = #tpu.dot_dimension_numbers<[1], [0], [0], [1], [0, 0, 1, 1], [], []>} : vector<197x64xf32>, vector<64x128xf32>, vector<197x128xf32> -> vector<197x128xf32>
    %c6 = arith.constant 6 : index
    %c0_39 = arith.constant 0 : index
    %102 = vector.load %arg4[%c6, %c0_39] : memref<10x192xf32, #tpu.memory_space<vmem>>, vector<1x128xf32>
    %103 = vector.broadcast %102 : vector<1x128xf32> to vector<197x128xf32>
    %104 = arith.addf %101, %103 : vector<197x128xf32>
    %cst_40 = arith.constant 5.000000e-01 : f32
    %105 = vector.broadcast %cst_40 : f32 to vector<197x128xf32>
    %106 = arith.mulf %105, %104 : vector<197x128xf32>
    %cst_41 = arith.constant 0.707106769 : f32
    %107 = vector.broadcast %cst_41 : f32 to vector<197x128xf32>
    %108 = arith.mulf %104, %107 : vector<197x128xf32>
    %109 = math.absf %108 : vector<197x128xf32>
    %cst_42 = arith.constant 0.327591091 : f32
    %110 = vector.broadcast %cst_42 : f32 to vector<197x128xf32>
    %111 = arith.mulf %110, %109 : vector<197x128xf32>
    %cst_43 = arith.constant 1.000000e+00 : f32
    %112 = vector.broadcast %cst_43 : f32 to vector<197x128xf32>
    %113 = arith.addf %112, %111 : vector<197x128xf32>
    %114 = tpu.reciprocal %113 : vector<197x128xf32> -> vector<197x128xf32>
    %cst_44 = arith.constant 1.06140542 : f32
    %115 = vector.broadcast %cst_44 : f32 to vector<197x128xf32>
    %116 = arith.mulf %115, %114 : vector<197x128xf32>
    %cst_45 = arith.constant -1.45315206 : f32
    %117 = vector.broadcast %cst_45 : f32 to vector<197x128xf32>
    %118 = arith.addf %116, %117 : vector<197x128xf32>
    %119 = arith.mulf %118, %114 : vector<197x128xf32>
    %cst_46 = arith.constant 1.42141378 : f32
    %120 = vector.broadcast %cst_46 : f32 to vector<197x128xf32>
    %121 = arith.addf %119, %120 : vector<197x128xf32>
    %122 = arith.mulf %121, %114 : vector<197x128xf32>
    %cst_47 = arith.constant -0.284496725 : f32
    %123 = vector.broadcast %cst_47 : f32 to vector<197x128xf32>
    %124 = arith.addf %122, %123 : vector<197x128xf32>
    %125 = arith.mulf %124, %114 : vector<197x128xf32>
    %cst_48 = arith.constant 0.254829586 : f32
    %126 = vector.broadcast %cst_48 : f32 to vector<197x128xf32>
    %127 = arith.addf %125, %126 : vector<197x128xf32>
    %128 = arith.mulf %127, %114 : vector<197x128xf32>
    %129 = arith.mulf %109, %109 : vector<197x128xf32>
    %cst_49 = arith.constant 0.000000e+00 : f32
    %130 = vector.broadcast %cst_49 : f32 to vector<197x128xf32>
    %131 = arith.subf %130, %129 : vector<197x128xf32>
    %132 = math.exp %131 : vector<197x128xf32>
    %133 = arith.mulf %128, %132 : vector<197x128xf32>
    %cst_50 = arith.constant 1.000000e+00 : f32
    %134 = vector.broadcast %cst_50 : f32 to vector<197x128xf32>
    %135 = arith.subf %134, %133 : vector<197x128xf32>
    %cst_51 = arith.constant 0.000000e+00 : f32
    %136 = vector.broadcast %cst_51 : f32 to vector<197x128xf32>
    %137 = arith.cmpf oge, %108, %136 : vector<197x128xf32>
    %cst_52 = arith.constant 0.000000e+00 : f32
    %138 = vector.broadcast %cst_52 : f32 to vector<197x128xf32>
    %139 = arith.subf %138, %135 : vector<197x128xf32>
    %140 = arith.select %137, %135, %139 : vector<197x128xi1>, vector<197x128xf32>
    %cst_53 = arith.constant 1.000000e+00 : f32
    %141 = vector.broadcast %cst_53 : f32 to vector<197x128xf32>
    %142 = arith.addf %141, %140 : vector<197x128xf32>
    %143 = arith.mulf %106, %142 : vector<197x128xf32>
    %c48 = arith.constant 48 : index
    %c0_54 = arith.constant 0 : index
    %144 = vector.load %arg2[%c48, %c0_54] : memref<424x64xf32, #tpu.memory_space<vmem>>, vector<128x64xf32>
    %cst_55 = arith.constant dense<0.000000e+00> : vector<197x64xf32>
    %145 = tpu.matmul %143, %144, %cst_55 {dimension_numbers = #tpu.dot_dimension_numbers<[1], [0], [0], [1], [0, 0, 1, 1], [], []>} : vector<197x128xf32>, vector<128x64xf32>, vector<197x64xf32> -> vector<197x64xf32>
    %c7 = arith.constant 7 : index
    %c0_56 = arith.constant 0 : index
    %146 = vector.load %arg4[%c7, %c0_56] : memref<10x192xf32, #tpu.memory_space<vmem>>, vector<1x64xf32>
    %147 = vector.broadcast %146 : vector<1x64xf32> to vector<197x64xf32>
    %148 = arith.addf %145, %147 : vector<197x64xf32>
    %149 = arith.addf %75, %148 : vector<197x64xf32>
    %c8 = arith.constant 8 : index
    %c0_57 = arith.constant 0 : index
    %150 = vector.load %arg4[%c8, %c0_57] : memref<10x192xf32, #tpu.memory_space<vmem>>, vector<1x64xf32>
    %c9 = arith.constant 9 : index
    %c0_58 = arith.constant 0 : index
    %151 = vector.load %arg4[%c9, %c0_58] : memref<10x192xf32, #tpu.memory_space<vmem>>, vector<1x64xf32>
    %cst_59 = arith.constant dense<0.000000e+00> : vector<197xf32>
    %152 = vector.multi_reduction <add>, %149, %cst_59 [1] : vector<197x64xf32> to vector<197xf32>
    %153 = vector.shape_cast %152 : vector<197xf32> to vector<197x1xf32>
    %cst_60 = arith.constant 6.400000e+01 : f32
    %154 = vector.broadcast %cst_60 : f32 to vector<197x1xf32>
    %155 = arith.divf %153, %154 : vector<197x1xf32>
    %156 = vector.broadcast %155 : vector<197x1xf32> to vector<197x64xf32>
    %157 = arith.subf %149, %156 : vector<197x64xf32>
    %158 = arith.mulf %157, %157 : vector<197x64xf32>
    %cst_61 = arith.constant dense<0.000000e+00> : vector<197xf32>
    %159 = vector.multi_reduction <add>, %158, %cst_61 [1] : vector<197x64xf32> to vector<197xf32>
    %160 = vector.shape_cast %159 : vector<197xf32> to vector<197x1xf32>
    %cst_62 = arith.constant 6.400000e+01 : f32
    %161 = vector.broadcast %cst_62 : f32 to vector<197x1xf32>
    %162 = arith.divf %160, %161 : vector<197x1xf32>
    %163 = vector.broadcast %155 : vector<197x1xf32> to vector<197x64xf32>
    %164 = arith.subf %149, %163 : vector<197x64xf32>
    %cst_63 = arith.constant 9.99999997E-7 : f32
    %165 = vector.broadcast %cst_63 : f32 to vector<197x1xf32>
    %166 = arith.addf %162, %165 : vector<197x1xf32>
    %167 = math.rsqrt %166 : vector<197x1xf32>
    %168 = vector.broadcast %167 : vector<197x1xf32> to vector<197x64xf32>
    %169 = arith.mulf %164, %168 : vector<197x64xf32>
    %170 = vector.broadcast %150 : vector<1x64xf32> to vector<197x64xf32>
    %171 = arith.mulf %169, %170 : vector<197x64xf32>
    %172 = vector.broadcast %151 : vector<1x64xf32> to vector<197x64xf32>
    %173 = arith.addf %171, %172 : vector<197x64xf32>
    %174 = vector.extract_strided_slice %173 {offsets = [0, 0], sizes = [196, 64], strides = [1, 1]} : vector<197x64xf32> to vector<196x64xf32>
    %175 = vector.extract_strided_slice %173 {offsets = [196, 0], sizes = [1, 64], strides = [1, 1]} : vector<197x64xf32> to vector<1x64xf32>
    %176 = vector.broadcast %175 : vector<1x64xf32> to vector<196x64xf32>
    %177 = arith.subf %174, %176 : vector<196x64xf32>
    %c376 = arith.constant 376 : index
    %c0_64 = arith.constant 0 : index
    %178 = vector.load %arg2[%c376, %c0_64] : memref<424x64xf32, #tpu.memory_space<vmem>>, vector<32x64xf32>
    %cst_65 = arith.constant dense<0.000000e+00> : vector<32x196xf32>
    %179 = tpu.matmul %178, %177, %cst_65 {dimension_numbers = #tpu.dot_dimension_numbers<[1], [1], [0], [0], [0, 0, 1, 0], [], []>} : vector<32x64xf32>, vector<196x64xf32>, vector<32x196xf32> -> vector<32x196xf32>
    %cst_66 = arith.constant 1.000000e+00 : f32
    %180 = vector.broadcast %cst_66 : f32 to vector<1x64xf32>
    %181 = arith.mulf %177, %177 : vector<196x64xf32>
    %cst_67 = arith.constant dense<0.000000e+00> : vector<1x196xf32>
    %182 = tpu.matmul %180, %181, %cst_67 {dimension_numbers = #tpu.dot_dimension_numbers<[1], [1], [0], [0], [0, 0, 1, 0], [], []>} : vector<1x64xf32>, vector<196x64xf32>, vector<1x196xf32> -> vector<1x196xf32>
    %cst_68 = arith.constant 1.000000e-24 : f32
    %183 = vector.broadcast %cst_68 : f32 to vector<1x196xf32>
    %184 = arith.maximumf %182, %183 : vector<1x196xf32>
    %185 = math.rsqrt %184 : vector<1x196xf32>
    %186 = vector.broadcast %185 : vector<1x196xf32> to vector<32x196xf32>
    %187 = arith.mulf %179, %186 : vector<32x196xf32>
    %188 = vector.extract_strided_slice %187 {offsets = [0, 0], sizes = [8, 196], strides = [1, 1]} : vector<32x196xf32> to vector<8x196xf32>
    %189 = vector.extract_strided_slice %187 {offsets = [8, 0], sizes = [8, 196], strides = [1, 1]} : vector<32x196xf32> to vector<8x196xf32>
    %190 = vector.extract_strided_slice %187 {offsets = [16, 0], sizes = [8, 196], strides = [1, 1]} : vector<32x196xf32> to vector<8x196xf32>
    %191 = vector.extract_strided_slice %187 {offsets = [24, 0], sizes = [8, 196], strides = [1, 1]} : vector<32x196xf32> to vector<8x196xf32>
    %192 = tpu.iota {dimensions = array<i32: 1>} : vector<8x196xi32>
    %c0_i32 = arith.constant 0 : i32
    %193 = vector.broadcast %c0_i32 : i32 to vector<8x196xi32>
    %c14_i32 = arith.constant 14 : i32
    %194 = vector.broadcast %c14_i32 : i32 to vector<8x196xi32>
    %195 = arith.cmpi sge, %192, %194 : vector<8x196xi32>
    %196 = arith.extui %195 : vector<8x196xi1> to vector<8x196xi32>
    %197 = arith.addi %193, %196 : vector<8x196xi32>
    %c28_i32 = arith.constant 28 : i32
    %198 = vector.broadcast %c28_i32 : i32 to vector<8x196xi32>
    %199 = arith.cmpi sge, %192, %198 : vector<8x196xi32>
    %200 = arith.extui %199 : vector<8x196xi1> to vector<8x196xi32>
    %201 = arith.addi %197, %200 : vector<8x196xi32>
    %c42_i32 = arith.constant 42 : i32
    %202 = vector.broadcast %c42_i32 : i32 to vector<8x196xi32>
    %203 = arith.cmpi sge, %192, %202 : vector<8x196xi32>
    %204 = arith.extui %203 : vector<8x196xi1> to vector<8x196xi32>
    %205 = arith.addi %201, %204 : vector<8x196xi32>
    %c56_i32 = arith.constant 56 : i32
    %206 = vector.broadcast %c56_i32 : i32 to vector<8x196xi32>
    %207 = arith.cmpi sge, %192, %206 : vector<8x196xi32>
    %208 = arith.extui %207 : vector<8x196xi1> to vector<8x196xi32>
    %209 = arith.addi %205, %208 : vector<8x196xi32>
    %c70_i32 = arith.constant 70 : i32
    %210 = vector.broadcast %c70_i32 : i32 to vector<8x196xi32>
    %211 = arith.cmpi sge, %192, %210 : vector<8x196xi32>
    %212 = arith.extui %211 : vector<8x196xi1> to vector<8x196xi32>
    %213 = arith.addi %209, %212 : vector<8x196xi32>
    %c84_i32 = arith.constant 84 : i32
    %214 = vector.broadcast %c84_i32 : i32 to vector<8x196xi32>
    %215 = arith.cmpi sge, %192, %214 : vector<8x196xi32>
    %216 = arith.extui %215 : vector<8x196xi1> to vector<8x196xi32>
    %217 = arith.addi %213, %216 : vector<8x196xi32>
    %c98_i32 = arith.constant 98 : i32
    %218 = vector.broadcast %c98_i32 : i32 to vector<8x196xi32>
    %219 = arith.cmpi sge, %192, %218 : vector<8x196xi32>
    %220 = arith.extui %219 : vector<8x196xi1> to vector<8x196xi32>
    %221 = arith.addi %217, %220 : vector<8x196xi32>
    %c112_i32 = arith.constant 112 : i32
    %222 = vector.broadcast %c112_i32 : i32 to vector<8x196xi32>
    %223 = arith.cmpi sge, %192, %222 : vector<8x196xi32>
    %224 = arith.extui %223 : vector<8x196xi1> to vector<8x196xi32>
    %225 = arith.addi %221, %224 : vector<8x196xi32>
    %c126_i32 = arith.constant 126 : i32
    %226 = vector.broadcast %c126_i32 : i32 to vector<8x196xi32>
    %227 = arith.cmpi sge, %192, %226 : vector<8x196xi32>
    %228 = arith.extui %227 : vector<8x196xi1> to vector<8x196xi32>
    %229 = arith.addi %225, %228 : vector<8x196xi32>
    %c140_i32 = arith.constant 140 : i32
    %230 = vector.broadcast %c140_i32 : i32 to vector<8x196xi32>
    %231 = arith.cmpi sge, %192, %230 : vector<8x196xi32>
    %232 = arith.extui %231 : vector<8x196xi1> to vector<8x196xi32>
    %233 = arith.addi %229, %232 : vector<8x196xi32>
    %c154_i32 = arith.constant 154 : i32
    %234 = vector.broadcast %c154_i32 : i32 to vector<8x196xi32>
    %235 = arith.cmpi sge, %192, %234 : vector<8x196xi32>
    %236 = arith.extui %235 : vector<8x196xi1> to vector<8x196xi32>
    %237 = arith.addi %233, %236 : vector<8x196xi32>
    %c168_i32 = arith.constant 168 : i32
    %238 = vector.broadcast %c168_i32 : i32 to vector<8x196xi32>
    %239 = arith.cmpi sge, %192, %238 : vector<8x196xi32>
    %240 = arith.extui %239 : vector<8x196xi1> to vector<8x196xi32>
    %241 = arith.addi %237, %240 : vector<8x196xi32>
    %c182_i32 = arith.constant 182 : i32
    %242 = vector.broadcast %c182_i32 : i32 to vector<8x196xi32>
    %243 = arith.cmpi sge, %192, %242 : vector<8x196xi32>
    %244 = arith.extui %243 : vector<8x196xi1> to vector<8x196xi32>
    %245 = arith.addi %241, %244 : vector<8x196xi32>
    %c14_i32_69 = arith.constant 14 : i32
    %246 = vector.broadcast %c14_i32_69 : i32 to vector<8x196xi32>
    %247 = arith.muli %245, %246 : vector<8x196xi32>
    %248 = arith.subi %192, %247 : vector<8x196xi32>
    %249 = arith.sitofp %192 : vector<8x196xi32> to vector<8x196xf32>
    %true = arith.constant true
    %250 = vector.broadcast %true : i1 to vector<8x196xi1>
    %true_70 = arith.constant true
    %251 = vector.broadcast %true_70 : i1 to vector<8x196xi1>
    %true_71 = arith.constant true
    %252 = vector.broadcast %true_71 : i1 to vector<8x1xi1>
    %true_72 = arith.constant true
    %253 = vector.broadcast %true_72 : i1 to vector<8x1xi1>
    %true_73 = arith.constant true
    %254 = vector.broadcast %true_73 : i1 to vector<8x1xi1>
    %true_74 = arith.constant true
    %255 = vector.broadcast %true_74 : i1 to vector<8x1xi1>
    %cst_75 = arith.constant 0.000000e+00 : f32
    %256 = vector.broadcast %cst_75 : f32 to vector<8x1xf32>
    %cst_76 = arith.constant 0.000000e+00 : f32
    %257 = vector.broadcast %cst_76 : f32 to vector<8x1xf32>
    %cst_77 = arith.constant 0.000000e+00 : f32
    %258 = vector.broadcast %cst_77 : f32 to vector<8x1xf32>
    %cst_78 = arith.constant 0.000000e+00 : f32
    %259 = vector.broadcast %cst_78 : f32 to vector<8x1xf32>
    %260 = arith.andi %250, %251 : vector<8x196xi1>
    %261 = vector.broadcast %252 : vector<8x1xi1> to vector<8x196xi1>
    %262 = arith.andi %260, %261 : vector<8x196xi1>
    %cst_79 = arith.constant 1.000000e+05 : f32
    %263 = vector.broadcast %cst_79 : f32 to vector<8x196xf32>
    %264 = arith.subf %188, %263 : vector<8x196xf32>
    %265 = arith.select %262, %188, %264 : vector<8x196xi1>, vector<8x196xf32>
    %cst_80 = arith.constant dense<0xFF800000> : vector<8xf32>
    %266 = vector.multi_reduction <maximumf>, %265, %cst_80 [1] : vector<8x196xf32> to vector<8xf32>
    %267 = vector.shape_cast %266 : vector<8xf32> to vector<8x1xf32>
    %268 = vector.broadcast %267 : vector<8x1xf32> to vector<8x196xf32>
    %269 = arith.cmpf oeq, %265, %268 : vector<8x196xf32>
    %cst_81 = arith.constant 1.960000e+02 : f32
    %270 = vector.broadcast %cst_81 : f32 to vector<8x196xf32>
    %271 = arith.select %269, %249, %270 : vector<8x196xi1>, vector<8x196xf32>
    %cst_82 = arith.constant dense<0x7F800000> : vector<8xf32>
    %272 = vector.multi_reduction <minimumf>, %271, %cst_82 [1] : vector<8x196xf32> to vector<8xf32>
    %273 = vector.shape_cast %272 : vector<8xf32> to vector<8x1xf32>
    %274 = arith.fptosi %273 : vector<8x1xf32> to vector<8x1xi32>
    %275 = vector.broadcast %253 : vector<8x1xi1> to vector<8x196xi1>
    %276 = arith.andi %260, %275 : vector<8x196xi1>
    %cst_83 = arith.constant 1.000000e+05 : f32
    %277 = vector.broadcast %cst_83 : f32 to vector<8x196xf32>
    %278 = arith.subf %189, %277 : vector<8x196xf32>
    %279 = arith.select %276, %189, %278 : vector<8x196xi1>, vector<8x196xf32>
    %cst_84 = arith.constant dense<0xFF800000> : vector<8xf32>
    %280 = vector.multi_reduction <maximumf>, %279, %cst_84 [1] : vector<8x196xf32> to vector<8xf32>
    %281 = vector.shape_cast %280 : vector<8xf32> to vector<8x1xf32>
    %282 = vector.broadcast %281 : vector<8x1xf32> to vector<8x196xf32>
    %283 = arith.cmpf oeq, %279, %282 : vector<8x196xf32>
    %cst_85 = arith.constant 1.960000e+02 : f32
    %284 = vector.broadcast %cst_85 : f32 to vector<8x196xf32>
    %285 = arith.select %283, %249, %284 : vector<8x196xi1>, vector<8x196xf32>
    %cst_86 = arith.constant dense<0x7F800000> : vector<8xf32>
    %286 = vector.multi_reduction <minimumf>, %285, %cst_86 [1] : vector<8x196xf32> to vector<8xf32>
    %287 = vector.shape_cast %286 : vector<8xf32> to vector<8x1xf32>
    %288 = arith.fptosi %287 : vector<8x1xf32> to vector<8x1xi32>
    %289 = vector.broadcast %254 : vector<8x1xi1> to vector<8x196xi1>
    %290 = arith.andi %260, %289 : vector<8x196xi1>
    %cst_87 = arith.constant 1.000000e+05 : f32
    %291 = vector.broadcast %cst_87 : f32 to vector<8x196xf32>
    %292 = arith.subf %190, %291 : vector<8x196xf32>
    %293 = arith.select %290, %190, %292 : vector<8x196xi1>, vector<8x196xf32>
    %cst_88 = arith.constant dense<0xFF800000> : vector<8xf32>
    %294 = vector.multi_reduction <maximumf>, %293, %cst_88 [1] : vector<8x196xf32> to vector<8xf32>
    %295 = vector.shape_cast %294 : vector<8xf32> to vector<8x1xf32>
    %296 = vector.broadcast %295 : vector<8x1xf32> to vector<8x196xf32>
    %297 = arith.cmpf oeq, %293, %296 : vector<8x196xf32>
    %cst_89 = arith.constant 1.960000e+02 : f32
    %298 = vector.broadcast %cst_89 : f32 to vector<8x196xf32>
    %299 = arith.select %297, %249, %298 : vector<8x196xi1>, vector<8x196xf32>
    %cst_90 = arith.constant dense<0x7F800000> : vector<8xf32>
    %300 = vector.multi_reduction <minimumf>, %299, %cst_90 [1] : vector<8x196xf32> to vector<8xf32>
    %301 = vector.shape_cast %300 : vector<8xf32> to vector<8x1xf32>
    %302 = arith.fptosi %301 : vector<8x1xf32> to vector<8x1xi32>
    %303 = vector.broadcast %255 : vector<8x1xi1> to vector<8x196xi1>
    %304 = arith.andi %260, %303 : vector<8x196xi1>
    %cst_91 = arith.constant 1.000000e+05 : f32
    %305 = vector.broadcast %cst_91 : f32 to vector<8x196xf32>
    %306 = arith.subf %191, %305 : vector<8x196xf32>
    %307 = arith.select %304, %191, %306 : vector<8x196xi1>, vector<8x196xf32>
    %cst_92 = arith.constant dense<0xFF800000> : vector<8xf32>
    %308 = vector.multi_reduction <maximumf>, %307, %cst_92 [1] : vector<8x196xf32> to vector<8xf32>
    %309 = vector.shape_cast %308 : vector<8xf32> to vector<8x1xf32>
    %310 = vector.broadcast %309 : vector<8x1xf32> to vector<8x196xf32>
    %311 = arith.cmpf oeq, %307, %310 : vector<8x196xf32>
    %cst_93 = arith.constant 1.960000e+02 : f32
    %312 = vector.broadcast %cst_93 : f32 to vector<8x196xf32>
    %313 = arith.select %311, %249, %312 : vector<8x196xi1>, vector<8x196xf32>
    %cst_94 = arith.constant dense<0x7F800000> : vector<8xf32>
    %314 = vector.multi_reduction <minimumf>, %313, %cst_94 [1] : vector<8x196xf32> to vector<8xf32>
    %315 = vector.shape_cast %314 : vector<8xf32> to vector<8x1xf32>
    %316 = arith.fptosi %315 : vector<8x1xf32> to vector<8x1xi32>
    %317 = arith.maximumf %267, %281 : vector<8x1xf32>
    %318 = arith.maximumf %317, %295 : vector<8x1xf32>
    %319 = arith.maximumf %318, %309 : vector<8x1xf32>
    %false = arith.constant false
    %320 = vector.broadcast %false : i1 to vector<8x1xi1>
    %c0_i32_95 = arith.constant 0 : i32
    %321 = vector.broadcast %c0_i32_95 : i32 to vector<8x1xi32>
    %322 = arith.cmpf oeq, %267, %319 : vector<8x1xf32>
    %cst_96 = arith.constant dense<true> : vector<8x1xi1>
    %323 = arith.xori %320, %cst_96 : vector<8x1xi1>
    %324 = arith.andi %322, %323 : vector<8x1xi1>
    %325 = arith.ori %320, %324 : vector<8x1xi1>
    %c0_i32_97 = arith.constant 0 : i32
    %326 = vector.broadcast %c0_i32_97 : i32 to vector<8x1xi32>
    %327 = arith.select %324, %274, %326 : vector<8x1xi1>, vector<8x1xi32>
    %328 = arith.addi %321, %327 : vector<8x1xi32>
    %cst_98 = arith.constant dense<true> : vector<8x1xi1>
    %329 = arith.xori %324, %cst_98 : vector<8x1xi1>
    %330 = arith.andi %252, %329 : vector<8x1xi1>
    %cst_99 = arith.constant 0.000000e+00 : f32
    %331 = vector.broadcast %cst_99 : f32 to vector<8x1xf32>
    %332 = arith.select %324, %319, %331 : vector<8x1xi1>, vector<8x1xf32>
    %333 = arith.addf %256, %332 : vector<8x1xf32>
    %334 = arith.cmpf oeq, %281, %319 : vector<8x1xf32>
    %cst_100 = arith.constant dense<true> : vector<8x1xi1>
    %335 = arith.xori %325, %cst_100 : vector<8x1xi1>
    %336 = arith.andi %334, %335 : vector<8x1xi1>
    %337 = arith.ori %325, %336 : vector<8x1xi1>
    %c0_i32_101 = arith.constant 0 : i32
    %338 = vector.broadcast %c0_i32_101 : i32 to vector<8x1xi32>
    %339 = arith.select %336, %288, %338 : vector<8x1xi1>, vector<8x1xi32>
    %340 = arith.addi %328, %339 : vector<8x1xi32>
    %cst_102 = arith.constant dense<true> : vector<8x1xi1>
    %341 = arith.xori %336, %cst_102 : vector<8x1xi1>
    %342 = arith.andi %253, %341 : vector<8x1xi1>
    %cst_103 = arith.constant 0.000000e+00 : f32
    %343 = vector.broadcast %cst_103 : f32 to vector<8x1xf32>
    %344 = arith.select %336, %319, %343 : vector<8x1xi1>, vector<8x1xf32>
    %345 = arith.addf %257, %344 : vector<8x1xf32>
    %346 = arith.cmpf oeq, %295, %319 : vector<8x1xf32>
    %cst_104 = arith.constant dense<true> : vector<8x1xi1>
    %347 = arith.xori %337, %cst_104 : vector<8x1xi1>
    %348 = arith.andi %346, %347 : vector<8x1xi1>
    %349 = arith.ori %337, %348 : vector<8x1xi1>
    %c0_i32_105 = arith.constant 0 : i32
    %350 = vector.broadcast %c0_i32_105 : i32 to vector<8x1xi32>
    %351 = arith.select %348, %302, %350 : vector<8x1xi1>, vector<8x1xi32>
    %352 = arith.addi %340, %351 : vector<8x1xi32>
    %cst_106 = arith.constant dense<true> : vector<8x1xi1>
    %353 = arith.xori %348, %cst_106 : vector<8x1xi1>
    %354 = arith.andi %254, %353 : vector<8x1xi1>
    %cst_107 = arith.constant 0.000000e+00 : f32
    %355 = vector.broadcast %cst_107 : f32 to vector<8x1xf32>
    %356 = arith.select %348, %319, %355 : vector<8x1xi1>, vector<8x1xf32>
    %357 = arith.addf %258, %356 : vector<8x1xf32>
    %358 = arith.cmpf oeq, %309, %319 : vector<8x1xf32>
    %cst_108 = arith.constant dense<true> : vector<8x1xi1>
    %359 = arith.xori %349, %cst_108 : vector<8x1xi1>
    %360 = arith.andi %358, %359 : vector<8x1xi1>
    %c0_i32_109 = arith.constant 0 : i32
    %361 = vector.broadcast %c0_i32_109 : i32 to vector<8x1xi32>
    %362 = arith.select %360, %316, %361 : vector<8x1xi1>, vector<8x1xi32>
    %363 = arith.addi %352, %362 : vector<8x1xi32>
    %cst_110 = arith.constant dense<true> : vector<8x1xi1>
    %364 = arith.xori %360, %cst_110 : vector<8x1xi1>
    %365 = arith.andi %255, %364 : vector<8x1xi1>
    %cst_111 = arith.constant 0.000000e+00 : f32
    %366 = vector.broadcast %cst_111 : f32 to vector<8x1xf32>
    %367 = arith.select %360, %319, %366 : vector<8x1xi1>, vector<8x1xf32>
    %368 = arith.addf %259, %367 : vector<8x1xf32>
    %c0_i32_112 = arith.constant 0 : i32
    %369 = vector.broadcast %c0_i32_112 : i32 to vector<8x1xi32>
    %c14_i32_113 = arith.constant 14 : i32
    %370 = vector.broadcast %c14_i32_113 : i32 to vector<8x1xi32>
    %371 = arith.cmpi sge, %363, %370 : vector<8x1xi32>
    %372 = arith.extui %371 : vector<8x1xi1> to vector<8x1xi32>
    %373 = arith.addi %369, %372 : vector<8x1xi32>
    %c28_i32_114 = arith.constant 28 : i32
    %374 = vector.broadcast %c28_i32_114 : i32 to vector<8x1xi32>
    %375 = arith.cmpi sge, %363, %374 : vector<8x1xi32>
    %376 = arith.extui %375 : vector<8x1xi1> to vector<8x1xi32>
    %377 = arith.addi %373, %376 : vector<8x1xi32>
    %c42_i32_115 = arith.constant 42 : i32
    %378 = vector.broadcast %c42_i32_115 : i32 to vector<8x1xi32>
    %379 = arith.cmpi sge, %363, %378 : vector<8x1xi32>
    %380 = arith.extui %379 : vector<8x1xi1> to vector<8x1xi32>
    %381 = arith.addi %377, %380 : vector<8x1xi32>
    %c56_i32_116 = arith.constant 56 : i32
    %382 = vector.broadcast %c56_i32_116 : i32 to vector<8x1xi32>
    %383 = arith.cmpi sge, %363, %382 : vector<8x1xi32>
    %384 = arith.extui %383 : vector<8x1xi1> to vector<8x1xi32>
    %385 = arith.addi %381, %384 : vector<8x1xi32>
    %c70_i32_117 = arith.constant 70 : i32
    %386 = vector.broadcast %c70_i32_117 : i32 to vector<8x1xi32>
    %387 = arith.cmpi sge, %363, %386 : vector<8x1xi32>
    %388 = arith.extui %387 : vector<8x1xi1> to vector<8x1xi32>
    %389 = arith.addi %385, %388 : vector<8x1xi32>
    %c84_i32_118 = arith.constant 84 : i32
    %390 = vector.broadcast %c84_i32_118 : i32 to vector<8x1xi32>
    %391 = arith.cmpi sge, %363, %390 : vector<8x1xi32>
    %392 = arith.extui %391 : vector<8x1xi1> to vector<8x1xi32>
    %393 = arith.addi %389, %392 : vector<8x1xi32>
    %c98_i32_119 = arith.constant 98 : i32
    %394 = vector.broadcast %c98_i32_119 : i32 to vector<8x1xi32>
    %395 = arith.cmpi sge, %363, %394 : vector<8x1xi32>
    %396 = arith.extui %395 : vector<8x1xi1> to vector<8x1xi32>
    %397 = arith.addi %393, %396 : vector<8x1xi32>
    %c112_i32_120 = arith.constant 112 : i32
    %398 = vector.broadcast %c112_i32_120 : i32 to vector<8x1xi32>
    %399 = arith.cmpi sge, %363, %398 : vector<8x1xi32>
    %400 = arith.extui %399 : vector<8x1xi1> to vector<8x1xi32>
    %401 = arith.addi %397, %400 : vector<8x1xi32>
    %c126_i32_121 = arith.constant 126 : i32
    %402 = vector.broadcast %c126_i32_121 : i32 to vector<8x1xi32>
    %403 = arith.cmpi sge, %363, %402 : vector<8x1xi32>
    %404 = arith.extui %403 : vector<8x1xi1> to vector<8x1xi32>
    %405 = arith.addi %401, %404 : vector<8x1xi32>
    %c140_i32_122 = arith.constant 140 : i32
    %406 = vector.broadcast %c140_i32_122 : i32 to vector<8x1xi32>
    %407 = arith.cmpi sge, %363, %406 : vector<8x1xi32>
    %408 = arith.extui %407 : vector<8x1xi1> to vector<8x1xi32>
    %409 = arith.addi %405, %408 : vector<8x1xi32>
    %c154_i32_123 = arith.constant 154 : i32
    %410 = vector.broadcast %c154_i32_123 : i32 to vector<8x1xi32>
    %411 = arith.cmpi sge, %363, %410 : vector<8x1xi32>
    %412 = arith.extui %411 : vector<8x1xi1> to vector<8x1xi32>
    %413 = arith.addi %409, %412 : vector<8x1xi32>
    %c168_i32_124 = arith.constant 168 : i32
    %414 = vector.broadcast %c168_i32_124 : i32 to vector<8x1xi32>
    %415 = arith.cmpi sge, %363, %414 : vector<8x1xi32>
    %416 = arith.extui %415 : vector<8x1xi1> to vector<8x1xi32>
    %417 = arith.addi %413, %416 : vector<8x1xi32>
    %c182_i32_125 = arith.constant 182 : i32
    %418 = vector.broadcast %c182_i32_125 : i32 to vector<8x1xi32>
    %419 = arith.cmpi sge, %363, %418 : vector<8x1xi32>
    %420 = arith.extui %419 : vector<8x1xi1> to vector<8x1xi32>
    %421 = arith.addi %417, %420 : vector<8x1xi32>
    %c14_i32_126 = arith.constant 14 : i32
    %422 = vector.broadcast %c14_i32_126 : i32 to vector<8x1xi32>
    %423 = arith.muli %421, %422 : vector<8x1xi32>
    %424 = arith.subi %363, %423 : vector<8x1xi32>
    %425 = vector.broadcast %421 : vector<8x1xi32> to vector<8x196xi32>
    %426 = arith.subi %245, %425 : vector<8x196xi32>
    %427 = math.absi %426 : vector<8x196xi32>
    %c3_i32 = arith.constant 3 : i32
    %428 = vector.broadcast %c3_i32 : i32 to vector<8x196xi32>
    %429 = arith.cmpi sle, %427, %428 : vector<8x196xi32>
    %430 = vector.broadcast %424 : vector<8x1xi32> to vector<8x196xi32>
    %431 = arith.subi %248, %430 : vector<8x196xi32>
    %432 = math.absi %431 : vector<8x196xi32>
    %c3_i32_127 = arith.constant 3 : i32
    %433 = vector.broadcast %c3_i32_127 : i32 to vector<8x196xi32>
    %434 = arith.cmpi sle, %432, %433 : vector<8x196xi32>
    %435 = arith.andi %429, %434 : vector<8x196xi1>
    %436 = vector.broadcast %363 : vector<8x1xi32> to vector<8x196xi32>
    %437 = arith.cmpi ne, %192, %436 : vector<8x196xi32>
    %438 = arith.andi %250, %437 : vector<8x196xi1>
    %439 = arith.andi %438, %435 : vector<8x196xi1>
    %440 = vector.broadcast %330 : vector<8x1xi1> to vector<8x196xi1>
    %441 = arith.andi %439, %440 : vector<8x196xi1>
    %cst_128 = arith.constant 1.000000e+05 : f32
    %442 = vector.broadcast %cst_128 : f32 to vector<8x196xf32>
    %443 = arith.subf %188, %442 : vector<8x196xf32>
    %444 = arith.select %441, %188, %443 : vector<8x196xi1>, vector<8x196xf32>
    %cst_129 = arith.constant dense<0xFF800000> : vector<8xf32>
    %445 = vector.multi_reduction <maximumf>, %444, %cst_129 [1] : vector<8x196xf32> to vector<8xf32>
    %446 = vector.shape_cast %445 : vector<8xf32> to vector<8x1xf32>
    %447 = vector.broadcast %446 : vector<8x1xf32> to vector<8x196xf32>
    %448 = arith.cmpf oeq, %444, %447 : vector<8x196xf32>
    %cst_130 = arith.constant 1.960000e+02 : f32
    %449 = vector.broadcast %cst_130 : f32 to vector<8x196xf32>
    %450 = arith.select %448, %249, %449 : vector<8x196xi1>, vector<8x196xf32>
    %cst_131 = arith.constant dense<0x7F800000> : vector<8xf32>
    %451 = vector.multi_reduction <minimumf>, %450, %cst_131 [1] : vector<8x196xf32> to vector<8xf32>
    %452 = vector.shape_cast %451 : vector<8xf32> to vector<8x1xf32>
    %453 = arith.fptosi %452 : vector<8x1xf32> to vector<8x1xi32>
    %454 = vector.broadcast %342 : vector<8x1xi1> to vector<8x196xi1>
    %455 = arith.andi %439, %454 : vector<8x196xi1>
    %cst_132 = arith.constant 1.000000e+05 : f32
    %456 = vector.broadcast %cst_132 : f32 to vector<8x196xf32>
    %457 = arith.subf %189, %456 : vector<8x196xf32>
    %458 = arith.select %455, %189, %457 : vector<8x196xi1>, vector<8x196xf32>
    %cst_133 = arith.constant dense<0xFF800000> : vector<8xf32>
    %459 = vector.multi_reduction <maximumf>, %458, %cst_133 [1] : vector<8x196xf32> to vector<8xf32>
    %460 = vector.shape_cast %459 : vector<8xf32> to vector<8x1xf32>
    %461 = vector.broadcast %460 : vector<8x1xf32> to vector<8x196xf32>
    %462 = arith.cmpf oeq, %458, %461 : vector<8x196xf32>
    %cst_134 = arith.constant 1.960000e+02 : f32
    %463 = vector.broadcast %cst_134 : f32 to vector<8x196xf32>
    %464 = arith.select %462, %249, %463 : vector<8x196xi1>, vector<8x196xf32>
    %cst_135 = arith.constant dense<0x7F800000> : vector<8xf32>
    %465 = vector.multi_reduction <minimumf>, %464, %cst_135 [1] : vector<8x196xf32> to vector<8xf32>
    %466 = vector.shape_cast %465 : vector<8xf32> to vector<8x1xf32>
    %467 = arith.fptosi %466 : vector<8x1xf32> to vector<8x1xi32>
    %468 = vector.broadcast %354 : vector<8x1xi1> to vector<8x196xi1>
    %469 = arith.andi %439, %468 : vector<8x196xi1>
    %cst_136 = arith.constant 1.000000e+05 : f32
    %470 = vector.broadcast %cst_136 : f32 to vector<8x196xf32>
    %471 = arith.subf %190, %470 : vector<8x196xf32>
    %472 = arith.select %469, %190, %471 : vector<8x196xi1>, vector<8x196xf32>
    %cst_137 = arith.constant dense<0xFF800000> : vector<8xf32>
    %473 = vector.multi_reduction <maximumf>, %472, %cst_137 [1] : vector<8x196xf32> to vector<8xf32>
    %474 = vector.shape_cast %473 : vector<8xf32> to vector<8x1xf32>
    %475 = vector.broadcast %474 : vector<8x1xf32> to vector<8x196xf32>
    %476 = arith.cmpf oeq, %472, %475 : vector<8x196xf32>
    %cst_138 = arith.constant 1.960000e+02 : f32
    %477 = vector.broadcast %cst_138 : f32 to vector<8x196xf32>
    %478 = arith.select %476, %249, %477 : vector<8x196xi1>, vector<8x196xf32>
    %cst_139 = arith.constant dense<0x7F800000> : vector<8xf32>
    %479 = vector.multi_reduction <minimumf>, %478, %cst_139 [1] : vector<8x196xf32> to vector<8xf32>
    %480 = vector.shape_cast %479 : vector<8xf32> to vector<8x1xf32>
    %481 = arith.fptosi %480 : vector<8x1xf32> to vector<8x1xi32>
    %482 = vector.broadcast %365 : vector<8x1xi1> to vector<8x196xi1>
    %483 = arith.andi %439, %482 : vector<8x196xi1>
    %cst_140 = arith.constant 1.000000e+05 : f32
    %484 = vector.broadcast %cst_140 : f32 to vector<8x196xf32>
    %485 = arith.subf %191, %484 : vector<8x196xf32>
    %486 = arith.select %483, %191, %485 : vector<8x196xi1>, vector<8x196xf32>
    %cst_141 = arith.constant dense<0xFF800000> : vector<8xf32>
    %487 = vector.multi_reduction <maximumf>, %486, %cst_141 [1] : vector<8x196xf32> to vector<8xf32>
    %488 = vector.shape_cast %487 : vector<8xf32> to vector<8x1xf32>
    %489 = vector.broadcast %488 : vector<8x1xf32> to vector<8x196xf32>
    %490 = arith.cmpf oeq, %486, %489 : vector<8x196xf32>
    %cst_142 = arith.constant 1.960000e+02 : f32
    %491 = vector.broadcast %cst_142 : f32 to vector<8x196xf32>
    %492 = arith.select %490, %249, %491 : vector<8x196xi1>, vector<8x196xf32>
    %cst_143 = arith.constant dense<0x7F800000> : vector<8xf32>
    %493 = vector.multi_reduction <minimumf>, %492, %cst_143 [1] : vector<8x196xf32> to vector<8xf32>
    %494 = vector.shape_cast %493 : vector<8xf32> to vector<8x1xf32>
    %495 = arith.fptosi %494 : vector<8x1xf32> to vector<8x1xi32>
    %496 = arith.maximumf %446, %460 : vector<8x1xf32>
    %497 = arith.maximumf %496, %474 : vector<8x1xf32>
    %498 = arith.maximumf %497, %488 : vector<8x1xf32>
    %false_144 = arith.constant false
    %499 = vector.broadcast %false_144 : i1 to vector<8x1xi1>
    %c0_i32_145 = arith.constant 0 : i32
    %500 = vector.broadcast %c0_i32_145 : i32 to vector<8x1xi32>
    %501 = arith.cmpf oeq, %446, %498 : vector<8x1xf32>
    %cst_146 = arith.constant dense<true> : vector<8x1xi1>
    %502 = arith.xori %499, %cst_146 : vector<8x1xi1>
    %503 = arith.andi %501, %502 : vector<8x1xi1>
    %504 = arith.ori %499, %503 : vector<8x1xi1>
    %c0_i32_147 = arith.constant 0 : i32
    %505 = vector.broadcast %c0_i32_147 : i32 to vector<8x1xi32>
    %506 = arith.select %503, %453, %505 : vector<8x1xi1>, vector<8x1xi32>
    %507 = arith.addi %500, %506 : vector<8x1xi32>
    %cst_148 = arith.constant dense<true> : vector<8x1xi1>
    %508 = arith.xori %503, %cst_148 : vector<8x1xi1>
    %509 = arith.andi %330, %508 : vector<8x1xi1>
    %cst_149 = arith.constant 0.000000e+00 : f32
    %510 = vector.broadcast %cst_149 : f32 to vector<8x1xf32>
    %511 = arith.select %503, %498, %510 : vector<8x1xi1>, vector<8x1xf32>
    %512 = arith.addf %333, %511 : vector<8x1xf32>
    %513 = arith.cmpf oeq, %460, %498 : vector<8x1xf32>
    %cst_150 = arith.constant dense<true> : vector<8x1xi1>
    %514 = arith.xori %504, %cst_150 : vector<8x1xi1>
    %515 = arith.andi %513, %514 : vector<8x1xi1>
    %516 = arith.ori %504, %515 : vector<8x1xi1>
    %c0_i32_151 = arith.constant 0 : i32
    %517 = vector.broadcast %c0_i32_151 : i32 to vector<8x1xi32>
    %518 = arith.select %515, %467, %517 : vector<8x1xi1>, vector<8x1xi32>
    %519 = arith.addi %507, %518 : vector<8x1xi32>
    %cst_152 = arith.constant dense<true> : vector<8x1xi1>
    %520 = arith.xori %515, %cst_152 : vector<8x1xi1>
    %521 = arith.andi %342, %520 : vector<8x1xi1>
    %cst_153 = arith.constant 0.000000e+00 : f32
    %522 = vector.broadcast %cst_153 : f32 to vector<8x1xf32>
    %523 = arith.select %515, %498, %522 : vector<8x1xi1>, vector<8x1xf32>
    %524 = arith.addf %345, %523 : vector<8x1xf32>
    %525 = arith.cmpf oeq, %474, %498 : vector<8x1xf32>
    %cst_154 = arith.constant dense<true> : vector<8x1xi1>
    %526 = arith.xori %516, %cst_154 : vector<8x1xi1>
    %527 = arith.andi %525, %526 : vector<8x1xi1>
    %528 = arith.ori %516, %527 : vector<8x1xi1>
    %c0_i32_155 = arith.constant 0 : i32
    %529 = vector.broadcast %c0_i32_155 : i32 to vector<8x1xi32>
    %530 = arith.select %527, %481, %529 : vector<8x1xi1>, vector<8x1xi32>
    %531 = arith.addi %519, %530 : vector<8x1xi32>
    %cst_156 = arith.constant dense<true> : vector<8x1xi1>
    %532 = arith.xori %527, %cst_156 : vector<8x1xi1>
    %533 = arith.andi %354, %532 : vector<8x1xi1>
    %cst_157 = arith.constant 0.000000e+00 : f32
    %534 = vector.broadcast %cst_157 : f32 to vector<8x1xf32>
    %535 = arith.select %527, %498, %534 : vector<8x1xi1>, vector<8x1xf32>
    %536 = arith.addf %357, %535 : vector<8x1xf32>
    %537 = arith.cmpf oeq, %488, %498 : vector<8x1xf32>
    %cst_158 = arith.constant dense<true> : vector<8x1xi1>
    %538 = arith.xori %528, %cst_158 : vector<8x1xi1>
    %539 = arith.andi %537, %538 : vector<8x1xi1>
    %c0_i32_159 = arith.constant 0 : i32
    %540 = vector.broadcast %c0_i32_159 : i32 to vector<8x1xi32>
    %541 = arith.select %539, %495, %540 : vector<8x1xi1>, vector<8x1xi32>
    %542 = arith.addi %531, %541 : vector<8x1xi32>
    %cst_160 = arith.constant dense<true> : vector<8x1xi1>
    %543 = arith.xori %539, %cst_160 : vector<8x1xi1>
    %544 = arith.andi %365, %543 : vector<8x1xi1>
    %cst_161 = arith.constant 0.000000e+00 : f32
    %545 = vector.broadcast %cst_161 : f32 to vector<8x1xf32>
    %546 = arith.select %539, %498, %545 : vector<8x1xi1>, vector<8x1xf32>
    %547 = arith.addf %368, %546 : vector<8x1xf32>
    %c0_i32_162 = arith.constant 0 : i32
    %548 = vector.broadcast %c0_i32_162 : i32 to vector<8x1xi32>
    %c14_i32_163 = arith.constant 14 : i32
    %549 = vector.broadcast %c14_i32_163 : i32 to vector<8x1xi32>
    %550 = arith.cmpi sge, %542, %549 : vector<8x1xi32>
    %551 = arith.extui %550 : vector<8x1xi1> to vector<8x1xi32>
    %552 = arith.addi %548, %551 : vector<8x1xi32>
    %c28_i32_164 = arith.constant 28 : i32
    %553 = vector.broadcast %c28_i32_164 : i32 to vector<8x1xi32>
    %554 = arith.cmpi sge, %542, %553 : vector<8x1xi32>
    %555 = arith.extui %554 : vector<8x1xi1> to vector<8x1xi32>
    %556 = arith.addi %552, %555 : vector<8x1xi32>
    %c42_i32_165 = arith.constant 42 : i32
    %557 = vector.broadcast %c42_i32_165 : i32 to vector<8x1xi32>
    %558 = arith.cmpi sge, %542, %557 : vector<8x1xi32>
    %559 = arith.extui %558 : vector<8x1xi1> to vector<8x1xi32>
    %560 = arith.addi %556, %559 : vector<8x1xi32>
    %c56_i32_166 = arith.constant 56 : i32
    %561 = vector.broadcast %c56_i32_166 : i32 to vector<8x1xi32>
    %562 = arith.cmpi sge, %542, %561 : vector<8x1xi32>
    %563 = arith.extui %562 : vector<8x1xi1> to vector<8x1xi32>
    %564 = arith.addi %560, %563 : vector<8x1xi32>
    %c70_i32_167 = arith.constant 70 : i32
    %565 = vector.broadcast %c70_i32_167 : i32 to vector<8x1xi32>
    %566 = arith.cmpi sge, %542, %565 : vector<8x1xi32>
    %567 = arith.extui %566 : vector<8x1xi1> to vector<8x1xi32>
    %568 = arith.addi %564, %567 : vector<8x1xi32>
    %c84_i32_168 = arith.constant 84 : i32
    %569 = vector.broadcast %c84_i32_168 : i32 to vector<8x1xi32>
    %570 = arith.cmpi sge, %542, %569 : vector<8x1xi32>
    %571 = arith.extui %570 : vector<8x1xi1> to vector<8x1xi32>
    %572 = arith.addi %568, %571 : vector<8x1xi32>
    %c98_i32_169 = arith.constant 98 : i32
    %573 = vector.broadcast %c98_i32_169 : i32 to vector<8x1xi32>
    %574 = arith.cmpi sge, %542, %573 : vector<8x1xi32>
    %575 = arith.extui %574 : vector<8x1xi1> to vector<8x1xi32>
    %576 = arith.addi %572, %575 : vector<8x1xi32>
    %c112_i32_170 = arith.constant 112 : i32
    %577 = vector.broadcast %c112_i32_170 : i32 to vector<8x1xi32>
    %578 = arith.cmpi sge, %542, %577 : vector<8x1xi32>
    %579 = arith.extui %578 : vector<8x1xi1> to vector<8x1xi32>
    %580 = arith.addi %576, %579 : vector<8x1xi32>
    %c126_i32_171 = arith.constant 126 : i32
    %581 = vector.broadcast %c126_i32_171 : i32 to vector<8x1xi32>
    %582 = arith.cmpi sge, %542, %581 : vector<8x1xi32>
    %583 = arith.extui %582 : vector<8x1xi1> to vector<8x1xi32>
    %584 = arith.addi %580, %583 : vector<8x1xi32>
    %c140_i32_172 = arith.constant 140 : i32
    %585 = vector.broadcast %c140_i32_172 : i32 to vector<8x1xi32>
    %586 = arith.cmpi sge, %542, %585 : vector<8x1xi32>
    %587 = arith.extui %586 : vector<8x1xi1> to vector<8x1xi32>
    %588 = arith.addi %584, %587 : vector<8x1xi32>
    %c154_i32_173 = arith.constant 154 : i32
    %589 = vector.broadcast %c154_i32_173 : i32 to vector<8x1xi32>
    %590 = arith.cmpi sge, %542, %589 : vector<8x1xi32>
    %591 = arith.extui %590 : vector<8x1xi1> to vector<8x1xi32>
    %592 = arith.addi %588, %591 : vector<8x1xi32>
    %c168_i32_174 = arith.constant 168 : i32
    %593 = vector.broadcast %c168_i32_174 : i32 to vector<8x1xi32>
    %594 = arith.cmpi sge, %542, %593 : vector<8x1xi32>
    %595 = arith.extui %594 : vector<8x1xi1> to vector<8x1xi32>
    %596 = arith.addi %592, %595 : vector<8x1xi32>
    %c182_i32_175 = arith.constant 182 : i32
    %597 = vector.broadcast %c182_i32_175 : i32 to vector<8x1xi32>
    %598 = arith.cmpi sge, %542, %597 : vector<8x1xi32>
    %599 = arith.extui %598 : vector<8x1xi1> to vector<8x1xi32>
    %600 = arith.addi %596, %599 : vector<8x1xi32>
    %c14_i32_176 = arith.constant 14 : i32
    %601 = vector.broadcast %c14_i32_176 : i32 to vector<8x1xi32>
    %602 = arith.muli %600, %601 : vector<8x1xi32>
    %603 = arith.subi %542, %602 : vector<8x1xi32>
    %604 = vector.broadcast %600 : vector<8x1xi32> to vector<8x196xi32>
    %605 = arith.subi %245, %604 : vector<8x196xi32>
    %606 = math.absi %605 : vector<8x196xi32>
    %c3_i32_177 = arith.constant 3 : i32
    %607 = vector.broadcast %c3_i32_177 : i32 to vector<8x196xi32>
    %608 = arith.cmpi sle, %606, %607 : vector<8x196xi32>
    %609 = vector.broadcast %603 : vector<8x1xi32> to vector<8x196xi32>
    %610 = arith.subi %248, %609 : vector<8x196xi32>
    %611 = math.absi %610 : vector<8x196xi32>
    %c3_i32_178 = arith.constant 3 : i32
    %612 = vector.broadcast %c3_i32_178 : i32 to vector<8x196xi32>
    %613 = arith.cmpi sle, %611, %612 : vector<8x196xi32>
    %614 = arith.andi %608, %613 : vector<8x196xi1>
    %615 = vector.broadcast %542 : vector<8x1xi32> to vector<8x196xi32>
    %616 = arith.cmpi ne, %192, %615 : vector<8x196xi32>
    %617 = arith.andi %438, %616 : vector<8x196xi1>
    %618 = arith.andi %617, %614 : vector<8x196xi1>
    %619 = vector.broadcast %509 : vector<8x1xi1> to vector<8x196xi1>
    %620 = arith.andi %618, %619 : vector<8x196xi1>
    %cst_179 = arith.constant 1.000000e+05 : f32
    %621 = vector.broadcast %cst_179 : f32 to vector<8x196xf32>
    %622 = arith.subf %188, %621 : vector<8x196xf32>
    %623 = arith.select %620, %188, %622 : vector<8x196xi1>, vector<8x196xf32>
    %cst_180 = arith.constant dense<0xFF800000> : vector<8xf32>
    %624 = vector.multi_reduction <maximumf>, %623, %cst_180 [1] : vector<8x196xf32> to vector<8xf32>
    %625 = vector.shape_cast %624 : vector<8xf32> to vector<8x1xf32>
    %626 = vector.broadcast %625 : vector<8x1xf32> to vector<8x196xf32>
    %627 = arith.cmpf oeq, %623, %626 : vector<8x196xf32>
    %cst_181 = arith.constant 1.960000e+02 : f32
    %628 = vector.broadcast %cst_181 : f32 to vector<8x196xf32>
    %629 = arith.select %627, %249, %628 : vector<8x196xi1>, vector<8x196xf32>
    %cst_182 = arith.constant dense<0x7F800000> : vector<8xf32>
    %630 = vector.multi_reduction <minimumf>, %629, %cst_182 [1] : vector<8x196xf32> to vector<8xf32>
    %631 = vector.shape_cast %630 : vector<8xf32> to vector<8x1xf32>
    %632 = arith.fptosi %631 : vector<8x1xf32> to vector<8x1xi32>
    %633 = vector.broadcast %521 : vector<8x1xi1> to vector<8x196xi1>
    %634 = arith.andi %618, %633 : vector<8x196xi1>
    %cst_183 = arith.constant 1.000000e+05 : f32
    %635 = vector.broadcast %cst_183 : f32 to vector<8x196xf32>
    %636 = arith.subf %189, %635 : vector<8x196xf32>
    %637 = arith.select %634, %189, %636 : vector<8x196xi1>, vector<8x196xf32>
    %cst_184 = arith.constant dense<0xFF800000> : vector<8xf32>
    %638 = vector.multi_reduction <maximumf>, %637, %cst_184 [1] : vector<8x196xf32> to vector<8xf32>
    %639 = vector.shape_cast %638 : vector<8xf32> to vector<8x1xf32>
    %640 = vector.broadcast %639 : vector<8x1xf32> to vector<8x196xf32>
    %641 = arith.cmpf oeq, %637, %640 : vector<8x196xf32>
    %cst_185 = arith.constant 1.960000e+02 : f32
    %642 = vector.broadcast %cst_185 : f32 to vector<8x196xf32>
    %643 = arith.select %641, %249, %642 : vector<8x196xi1>, vector<8x196xf32>
    %cst_186 = arith.constant dense<0x7F800000> : vector<8xf32>
    %644 = vector.multi_reduction <minimumf>, %643, %cst_186 [1] : vector<8x196xf32> to vector<8xf32>
    %645 = vector.shape_cast %644 : vector<8xf32> to vector<8x1xf32>
    %646 = arith.fptosi %645 : vector<8x1xf32> to vector<8x1xi32>
    %647 = vector.broadcast %533 : vector<8x1xi1> to vector<8x196xi1>
    %648 = arith.andi %618, %647 : vector<8x196xi1>
    %cst_187 = arith.constant 1.000000e+05 : f32
    %649 = vector.broadcast %cst_187 : f32 to vector<8x196xf32>
    %650 = arith.subf %190, %649 : vector<8x196xf32>
    %651 = arith.select %648, %190, %650 : vector<8x196xi1>, vector<8x196xf32>
    %cst_188 = arith.constant dense<0xFF800000> : vector<8xf32>
    %652 = vector.multi_reduction <maximumf>, %651, %cst_188 [1] : vector<8x196xf32> to vector<8xf32>
    %653 = vector.shape_cast %652 : vector<8xf32> to vector<8x1xf32>
    %654 = vector.broadcast %653 : vector<8x1xf32> to vector<8x196xf32>
    %655 = arith.cmpf oeq, %651, %654 : vector<8x196xf32>
    %cst_189 = arith.constant 1.960000e+02 : f32
    %656 = vector.broadcast %cst_189 : f32 to vector<8x196xf32>
    %657 = arith.select %655, %249, %656 : vector<8x196xi1>, vector<8x196xf32>
    %cst_190 = arith.constant dense<0x7F800000> : vector<8xf32>
    %658 = vector.multi_reduction <minimumf>, %657, %cst_190 [1] : vector<8x196xf32> to vector<8xf32>
    %659 = vector.shape_cast %658 : vector<8xf32> to vector<8x1xf32>
    %660 = arith.fptosi %659 : vector<8x1xf32> to vector<8x1xi32>
    %661 = vector.broadcast %544 : vector<8x1xi1> to vector<8x196xi1>
    %662 = arith.andi %618, %661 : vector<8x196xi1>
    %cst_191 = arith.constant 1.000000e+05 : f32
    %663 = vector.broadcast %cst_191 : f32 to vector<8x196xf32>
    %664 = arith.subf %191, %663 : vector<8x196xf32>
    %665 = arith.select %662, %191, %664 : vector<8x196xi1>, vector<8x196xf32>
    %cst_192 = arith.constant dense<0xFF800000> : vector<8xf32>
    %666 = vector.multi_reduction <maximumf>, %665, %cst_192 [1] : vector<8x196xf32> to vector<8xf32>
    %667 = vector.shape_cast %666 : vector<8xf32> to vector<8x1xf32>
    %668 = vector.broadcast %667 : vector<8x1xf32> to vector<8x196xf32>
    %669 = arith.cmpf oeq, %665, %668 : vector<8x196xf32>
    %cst_193 = arith.constant 1.960000e+02 : f32
    %670 = vector.broadcast %cst_193 : f32 to vector<8x196xf32>
    %671 = arith.select %669, %249, %670 : vector<8x196xi1>, vector<8x196xf32>
    %cst_194 = arith.constant dense<0x7F800000> : vector<8xf32>
    %672 = vector.multi_reduction <minimumf>, %671, %cst_194 [1] : vector<8x196xf32> to vector<8xf32>
    %673 = vector.shape_cast %672 : vector<8xf32> to vector<8x1xf32>
    %674 = arith.fptosi %673 : vector<8x1xf32> to vector<8x1xi32>
    %675 = arith.maximumf %625, %639 : vector<8x1xf32>
    %676 = arith.maximumf %675, %653 : vector<8x1xf32>
    %677 = arith.maximumf %676, %667 : vector<8x1xf32>
    %false_195 = arith.constant false
    %678 = vector.broadcast %false_195 : i1 to vector<8x1xi1>
    %c0_i32_196 = arith.constant 0 : i32
    %679 = vector.broadcast %c0_i32_196 : i32 to vector<8x1xi32>
    %680 = arith.cmpf oeq, %625, %677 : vector<8x1xf32>
    %cst_197 = arith.constant dense<true> : vector<8x1xi1>
    %681 = arith.xori %678, %cst_197 : vector<8x1xi1>
    %682 = arith.andi %680, %681 : vector<8x1xi1>
    %683 = arith.ori %678, %682 : vector<8x1xi1>
    %c0_i32_198 = arith.constant 0 : i32
    %684 = vector.broadcast %c0_i32_198 : i32 to vector<8x1xi32>
    %685 = arith.select %682, %632, %684 : vector<8x1xi1>, vector<8x1xi32>
    %686 = arith.addi %679, %685 : vector<8x1xi32>
    %cst_199 = arith.constant dense<true> : vector<8x1xi1>
    %687 = arith.xori %682, %cst_199 : vector<8x1xi1>
    %688 = arith.andi %509, %687 : vector<8x1xi1>
    %cst_200 = arith.constant 0.000000e+00 : f32
    %689 = vector.broadcast %cst_200 : f32 to vector<8x1xf32>
    %690 = arith.select %682, %677, %689 : vector<8x1xi1>, vector<8x1xf32>
    %691 = arith.addf %512, %690 : vector<8x1xf32>
    %692 = arith.cmpf oeq, %639, %677 : vector<8x1xf32>
    %cst_201 = arith.constant dense<true> : vector<8x1xi1>
    %693 = arith.xori %683, %cst_201 : vector<8x1xi1>
    %694 = arith.andi %692, %693 : vector<8x1xi1>
    %695 = arith.ori %683, %694 : vector<8x1xi1>
    %c0_i32_202 = arith.constant 0 : i32
    %696 = vector.broadcast %c0_i32_202 : i32 to vector<8x1xi32>
    %697 = arith.select %694, %646, %696 : vector<8x1xi1>, vector<8x1xi32>
    %698 = arith.addi %686, %697 : vector<8x1xi32>
    %cst_203 = arith.constant dense<true> : vector<8x1xi1>
    %699 = arith.xori %694, %cst_203 : vector<8x1xi1>
    %700 = arith.andi %521, %699 : vector<8x1xi1>
    %cst_204 = arith.constant 0.000000e+00 : f32
    %701 = vector.broadcast %cst_204 : f32 to vector<8x1xf32>
    %702 = arith.select %694, %677, %701 : vector<8x1xi1>, vector<8x1xf32>
    %703 = arith.addf %524, %702 : vector<8x1xf32>
    %704 = arith.cmpf oeq, %653, %677 : vector<8x1xf32>
    %cst_205 = arith.constant dense<true> : vector<8x1xi1>
    %705 = arith.xori %695, %cst_205 : vector<8x1xi1>
    %706 = arith.andi %704, %705 : vector<8x1xi1>
    %707 = arith.ori %695, %706 : vector<8x1xi1>
    %c0_i32_206 = arith.constant 0 : i32
    %708 = vector.broadcast %c0_i32_206 : i32 to vector<8x1xi32>
    %709 = arith.select %706, %660, %708 : vector<8x1xi1>, vector<8x1xi32>
    %710 = arith.addi %698, %709 : vector<8x1xi32>
    %cst_207 = arith.constant dense<true> : vector<8x1xi1>
    %711 = arith.xori %706, %cst_207 : vector<8x1xi1>
    %712 = arith.andi %533, %711 : vector<8x1xi1>
    %cst_208 = arith.constant 0.000000e+00 : f32
    %713 = vector.broadcast %cst_208 : f32 to vector<8x1xf32>
    %714 = arith.select %706, %677, %713 : vector<8x1xi1>, vector<8x1xf32>
    %715 = arith.addf %536, %714 : vector<8x1xf32>
    %716 = arith.cmpf oeq, %667, %677 : vector<8x1xf32>
    %cst_209 = arith.constant dense<true> : vector<8x1xi1>
    %717 = arith.xori %707, %cst_209 : vector<8x1xi1>
    %718 = arith.andi %716, %717 : vector<8x1xi1>
    %c0_i32_210 = arith.constant 0 : i32
    %719 = vector.broadcast %c0_i32_210 : i32 to vector<8x1xi32>
    %720 = arith.select %718, %674, %719 : vector<8x1xi1>, vector<8x1xi32>
    %721 = arith.addi %710, %720 : vector<8x1xi32>
    %cst_211 = arith.constant dense<true> : vector<8x1xi1>
    %722 = arith.xori %718, %cst_211 : vector<8x1xi1>
    %723 = arith.andi %544, %722 : vector<8x1xi1>
    %cst_212 = arith.constant 0.000000e+00 : f32
    %724 = vector.broadcast %cst_212 : f32 to vector<8x1xf32>
    %725 = arith.select %718, %677, %724 : vector<8x1xi1>, vector<8x1xf32>
    %726 = arith.addf %547, %725 : vector<8x1xf32>
    %c0_i32_213 = arith.constant 0 : i32
    %727 = vector.broadcast %c0_i32_213 : i32 to vector<8x1xi32>
    %c14_i32_214 = arith.constant 14 : i32
    %728 = vector.broadcast %c14_i32_214 : i32 to vector<8x1xi32>
    %729 = arith.cmpi sge, %721, %728 : vector<8x1xi32>
    %730 = arith.extui %729 : vector<8x1xi1> to vector<8x1xi32>
    %731 = arith.addi %727, %730 : vector<8x1xi32>
    %c28_i32_215 = arith.constant 28 : i32
    %732 = vector.broadcast %c28_i32_215 : i32 to vector<8x1xi32>
    %733 = arith.cmpi sge, %721, %732 : vector<8x1xi32>
    %734 = arith.extui %733 : vector<8x1xi1> to vector<8x1xi32>
    %735 = arith.addi %731, %734 : vector<8x1xi32>
    %c42_i32_216 = arith.constant 42 : i32
    %736 = vector.broadcast %c42_i32_216 : i32 to vector<8x1xi32>
    %737 = arith.cmpi sge, %721, %736 : vector<8x1xi32>
    %738 = arith.extui %737 : vector<8x1xi1> to vector<8x1xi32>
    %739 = arith.addi %735, %738 : vector<8x1xi32>
    %c56_i32_217 = arith.constant 56 : i32
    %740 = vector.broadcast %c56_i32_217 : i32 to vector<8x1xi32>
    %741 = arith.cmpi sge, %721, %740 : vector<8x1xi32>
    %742 = arith.extui %741 : vector<8x1xi1> to vector<8x1xi32>
    %743 = arith.addi %739, %742 : vector<8x1xi32>
    %c70_i32_218 = arith.constant 70 : i32
    %744 = vector.broadcast %c70_i32_218 : i32 to vector<8x1xi32>
    %745 = arith.cmpi sge, %721, %744 : vector<8x1xi32>
    %746 = arith.extui %745 : vector<8x1xi1> to vector<8x1xi32>
    %747 = arith.addi %743, %746 : vector<8x1xi32>
    %c84_i32_219 = arith.constant 84 : i32
    %748 = vector.broadcast %c84_i32_219 : i32 to vector<8x1xi32>
    %749 = arith.cmpi sge, %721, %748 : vector<8x1xi32>
    %750 = arith.extui %749 : vector<8x1xi1> to vector<8x1xi32>
    %751 = arith.addi %747, %750 : vector<8x1xi32>
    %c98_i32_220 = arith.constant 98 : i32
    %752 = vector.broadcast %c98_i32_220 : i32 to vector<8x1xi32>
    %753 = arith.cmpi sge, %721, %752 : vector<8x1xi32>
    %754 = arith.extui %753 : vector<8x1xi1> to vector<8x1xi32>
    %755 = arith.addi %751, %754 : vector<8x1xi32>
    %c112_i32_221 = arith.constant 112 : i32
    %756 = vector.broadcast %c112_i32_221 : i32 to vector<8x1xi32>
    %757 = arith.cmpi sge, %721, %756 : vector<8x1xi32>
    %758 = arith.extui %757 : vector<8x1xi1> to vector<8x1xi32>
    %759 = arith.addi %755, %758 : vector<8x1xi32>
    %c126_i32_222 = arith.constant 126 : i32
    %760 = vector.broadcast %c126_i32_222 : i32 to vector<8x1xi32>
    %761 = arith.cmpi sge, %721, %760 : vector<8x1xi32>
    %762 = arith.extui %761 : vector<8x1xi1> to vector<8x1xi32>
    %763 = arith.addi %759, %762 : vector<8x1xi32>
    %c140_i32_223 = arith.constant 140 : i32
    %764 = vector.broadcast %c140_i32_223 : i32 to vector<8x1xi32>
    %765 = arith.cmpi sge, %721, %764 : vector<8x1xi32>
    %766 = arith.extui %765 : vector<8x1xi1> to vector<8x1xi32>
    %767 = arith.addi %763, %766 : vector<8x1xi32>
    %c154_i32_224 = arith.constant 154 : i32
    %768 = vector.broadcast %c154_i32_224 : i32 to vector<8x1xi32>
    %769 = arith.cmpi sge, %721, %768 : vector<8x1xi32>
    %770 = arith.extui %769 : vector<8x1xi1> to vector<8x1xi32>
    %771 = arith.addi %767, %770 : vector<8x1xi32>
    %c168_i32_225 = arith.constant 168 : i32
    %772 = vector.broadcast %c168_i32_225 : i32 to vector<8x1xi32>
    %773 = arith.cmpi sge, %721, %772 : vector<8x1xi32>
    %774 = arith.extui %773 : vector<8x1xi1> to vector<8x1xi32>
    %775 = arith.addi %771, %774 : vector<8x1xi32>
    %c182_i32_226 = arith.constant 182 : i32
    %776 = vector.broadcast %c182_i32_226 : i32 to vector<8x1xi32>
    %777 = arith.cmpi sge, %721, %776 : vector<8x1xi32>
    %778 = arith.extui %777 : vector<8x1xi1> to vector<8x1xi32>
    %779 = arith.addi %775, %778 : vector<8x1xi32>
    %c14_i32_227 = arith.constant 14 : i32
    %780 = vector.broadcast %c14_i32_227 : i32 to vector<8x1xi32>
    %781 = arith.muli %779, %780 : vector<8x1xi32>
    %782 = arith.subi %721, %781 : vector<8x1xi32>
    %783 = vector.broadcast %779 : vector<8x1xi32> to vector<8x196xi32>
    %784 = arith.subi %245, %783 : vector<8x196xi32>
    %785 = math.absi %784 : vector<8x196xi32>
    %c3_i32_228 = arith.constant 3 : i32
    %786 = vector.broadcast %c3_i32_228 : i32 to vector<8x196xi32>
    %787 = arith.cmpi sle, %785, %786 : vector<8x196xi32>
    %788 = vector.broadcast %782 : vector<8x1xi32> to vector<8x196xi32>
    %789 = arith.subi %248, %788 : vector<8x196xi32>
    %790 = math.absi %789 : vector<8x196xi32>
    %c3_i32_229 = arith.constant 3 : i32
    %791 = vector.broadcast %c3_i32_229 : i32 to vector<8x196xi32>
    %792 = arith.cmpi sle, %790, %791 : vector<8x196xi32>
    %793 = arith.andi %787, %792 : vector<8x196xi1>
    %794 = vector.broadcast %721 : vector<8x1xi32> to vector<8x196xi32>
    %795 = arith.cmpi ne, %192, %794 : vector<8x196xi32>
    %796 = arith.andi %617, %795 : vector<8x196xi1>
    %797 = arith.andi %796, %793 : vector<8x196xi1>
    %798 = vector.broadcast %688 : vector<8x1xi1> to vector<8x196xi1>
    %799 = arith.andi %797, %798 : vector<8x196xi1>
    %cst_230 = arith.constant 1.000000e+05 : f32
    %800 = vector.broadcast %cst_230 : f32 to vector<8x196xf32>
    %801 = arith.subf %188, %800 : vector<8x196xf32>
    %802 = arith.select %799, %188, %801 : vector<8x196xi1>, vector<8x196xf32>
    %cst_231 = arith.constant dense<0xFF800000> : vector<8xf32>
    %803 = vector.multi_reduction <maximumf>, %802, %cst_231 [1] : vector<8x196xf32> to vector<8xf32>
    %804 = vector.shape_cast %803 : vector<8xf32> to vector<8x1xf32>
    %805 = vector.broadcast %700 : vector<8x1xi1> to vector<8x196xi1>
    %806 = arith.andi %797, %805 : vector<8x196xi1>
    %cst_232 = arith.constant 1.000000e+05 : f32
    %807 = vector.broadcast %cst_232 : f32 to vector<8x196xf32>
    %808 = arith.subf %189, %807 : vector<8x196xf32>
    %809 = arith.select %806, %189, %808 : vector<8x196xi1>, vector<8x196xf32>
    %cst_233 = arith.constant dense<0xFF800000> : vector<8xf32>
    %810 = vector.multi_reduction <maximumf>, %809, %cst_233 [1] : vector<8x196xf32> to vector<8xf32>
    %811 = vector.shape_cast %810 : vector<8xf32> to vector<8x1xf32>
    %812 = vector.broadcast %712 : vector<8x1xi1> to vector<8x196xi1>
    %813 = arith.andi %797, %812 : vector<8x196xi1>
    %cst_234 = arith.constant 1.000000e+05 : f32
    %814 = vector.broadcast %cst_234 : f32 to vector<8x196xf32>
    %815 = arith.subf %190, %814 : vector<8x196xf32>
    %816 = arith.select %813, %190, %815 : vector<8x196xi1>, vector<8x196xf32>
    %cst_235 = arith.constant dense<0xFF800000> : vector<8xf32>
    %817 = vector.multi_reduction <maximumf>, %816, %cst_235 [1] : vector<8x196xf32> to vector<8xf32>
    %818 = vector.shape_cast %817 : vector<8xf32> to vector<8x1xf32>
    %819 = vector.broadcast %723 : vector<8x1xi1> to vector<8x196xi1>
    %820 = arith.andi %797, %819 : vector<8x196xi1>
    %cst_236 = arith.constant 1.000000e+05 : f32
    %821 = vector.broadcast %cst_236 : f32 to vector<8x196xf32>
    %822 = arith.subf %191, %821 : vector<8x196xf32>
    %823 = arith.select %820, %191, %822 : vector<8x196xi1>, vector<8x196xf32>
    %cst_237 = arith.constant dense<0xFF800000> : vector<8xf32>
    %824 = vector.multi_reduction <maximumf>, %823, %cst_237 [1] : vector<8x196xf32> to vector<8xf32>
    %825 = vector.shape_cast %824 : vector<8xf32> to vector<8x1xf32>
    %826 = arith.maximumf %804, %811 : vector<8x1xf32>
    %827 = arith.maximumf %826, %818 : vector<8x1xf32>
    %828 = arith.maximumf %827, %825 : vector<8x1xf32>
    %false_238 = arith.constant false
    %829 = vector.broadcast %false_238 : i1 to vector<8x1xi1>
    %830 = arith.cmpf oeq, %804, %828 : vector<8x1xf32>
    %cst_239 = arith.constant dense<true> : vector<8x1xi1>
    %831 = arith.xori %829, %cst_239 : vector<8x1xi1>
    %832 = arith.andi %830, %831 : vector<8x1xi1>
    %833 = arith.ori %829, %832 : vector<8x1xi1>
    %cst_240 = arith.constant 0.000000e+00 : f32
    %834 = vector.broadcast %cst_240 : f32 to vector<8x1xf32>
    %835 = arith.select %832, %828, %834 : vector<8x1xi1>, vector<8x1xf32>
    %836 = arith.addf %691, %835 : vector<8x1xf32>
    %837 = arith.cmpf oeq, %811, %828 : vector<8x1xf32>
    %cst_241 = arith.constant dense<true> : vector<8x1xi1>
    %838 = arith.xori %833, %cst_241 : vector<8x1xi1>
    %839 = arith.andi %837, %838 : vector<8x1xi1>
    %840 = arith.ori %833, %839 : vector<8x1xi1>
    %cst_242 = arith.constant 0.000000e+00 : f32
    %841 = vector.broadcast %cst_242 : f32 to vector<8x1xf32>
    %842 = arith.select %839, %828, %841 : vector<8x1xi1>, vector<8x1xf32>
    %843 = arith.addf %703, %842 : vector<8x1xf32>
    %844 = arith.cmpf oeq, %818, %828 : vector<8x1xf32>
    %cst_243 = arith.constant dense<true> : vector<8x1xi1>
    %845 = arith.xori %840, %cst_243 : vector<8x1xi1>
    %846 = arith.andi %844, %845 : vector<8x1xi1>
    %847 = arith.ori %840, %846 : vector<8x1xi1>
    %cst_244 = arith.constant 0.000000e+00 : f32
    %848 = vector.broadcast %cst_244 : f32 to vector<8x1xf32>
    %849 = arith.select %846, %828, %848 : vector<8x1xi1>, vector<8x1xf32>
    %850 = arith.addf %715, %849 : vector<8x1xf32>
    %851 = arith.cmpf oeq, %825, %828 : vector<8x1xf32>
    %cst_245 = arith.constant dense<true> : vector<8x1xi1>
    %852 = arith.xori %847, %cst_245 : vector<8x1xi1>
    %853 = arith.andi %851, %852 : vector<8x1xi1>
    %cst_246 = arith.constant 0.000000e+00 : f32
    %854 = vector.broadcast %cst_246 : f32 to vector<8x1xf32>
    %855 = arith.select %853, %828, %854 : vector<8x1xi1>, vector<8x1xf32>
    %856 = arith.addf %726, %855 : vector<8x1xf32>
    %857 = tpu.iota {dimensions = array<i32: 1>} : vector<8x4xi32>
    %cst_247 = arith.constant 0.000000e+00 : f32
    %858 = vector.broadcast %cst_247 : f32 to vector<8x4xf32>
    %c0_i32_248 = arith.constant 0 : i32
    %859 = vector.broadcast %c0_i32_248 : i32 to vector<8x4xi32>
    %860 = arith.cmpi eq, %857, %859 : vector<8x4xi32>
    %cst_249 = arith.constant 0.000000e+00 : f32
    %861 = vector.shape_cast %836 : vector<8x1xf32> to vector<8x1xf32>
    %862 = vector.broadcast %861 : vector<8x1xf32> to vector<8x4xf32>
    %863 = vector.broadcast %cst_249 : f32 to vector<8x4xf32>
    %864 = arith.select %860, %862, %863 : vector<8x4xi1>, vector<8x4xf32>
    %865 = arith.addf %858, %864 : vector<8x4xf32>
    %c1_i32 = arith.constant 1 : i32
    %866 = vector.broadcast %c1_i32 : i32 to vector<8x4xi32>
    %867 = arith.cmpi eq, %857, %866 : vector<8x4xi32>
    %cst_250 = arith.constant 0.000000e+00 : f32
    %868 = vector.shape_cast %843 : vector<8x1xf32> to vector<8x1xf32>
    %869 = vector.broadcast %868 : vector<8x1xf32> to vector<8x4xf32>
    %870 = vector.broadcast %cst_250 : f32 to vector<8x4xf32>
    %871 = arith.select %867, %869, %870 : vector<8x4xi1>, vector<8x4xf32>
    %872 = arith.addf %865, %871 : vector<8x4xf32>
    %c2_i32 = arith.constant 2 : i32
    %873 = vector.broadcast %c2_i32 : i32 to vector<8x4xi32>
    %874 = arith.cmpi eq, %857, %873 : vector<8x4xi32>
    %cst_251 = arith.constant 0.000000e+00 : f32
    %875 = vector.shape_cast %850 : vector<8x1xf32> to vector<8x1xf32>
    %876 = vector.broadcast %875 : vector<8x1xf32> to vector<8x4xf32>
    %877 = vector.broadcast %cst_251 : f32 to vector<8x4xf32>
    %878 = arith.select %874, %876, %877 : vector<8x4xi1>, vector<8x4xf32>
    %879 = arith.addf %872, %878 : vector<8x4xf32>
    %c3_i32_252 = arith.constant 3 : i32
    %880 = vector.broadcast %c3_i32_252 : i32 to vector<8x4xi32>
    %881 = arith.cmpi eq, %857, %880 : vector<8x4xi32>
    %cst_253 = arith.constant 0.000000e+00 : f32
    %882 = vector.shape_cast %856 : vector<8x1xf32> to vector<8x1xf32>
    %883 = vector.broadcast %882 : vector<8x1xf32> to vector<8x4xf32>
    %884 = vector.broadcast %cst_253 : f32 to vector<8x4xf32>
    %885 = arith.select %881, %883, %884 : vector<8x4xi1>, vector<8x4xf32>
    %886 = arith.addf %879, %885 : vector<8x4xf32>
    %c408 = arith.constant 408 : index
    %c0_254 = arith.constant 0 : index
    %887 = vector.load %arg2[%c408, %c0_254] : memref<424x64xf32, #tpu.memory_space<vmem>>, vector<8x4xf32>
    %cst_255 = arith.constant 0.000000e+00 : f32
    %888 = vector.broadcast %cst_255 : f32 to vector<8x4xf32>
    %889 = arith.subf %888, %887 : vector<8x4xf32>
    %cst_256 = arith.constant 1.000000e+00 : f32
    %890 = vector.broadcast %cst_256 : f32 to vector<8x4xf32>
    %891 = arith.mulf %889, %890 : vector<8x4xf32>
    %892 = math.exp %891 : vector<8x4xf32>
    %cst_257 = arith.constant 1.000000e+00 : f32
    %893 = vector.broadcast %cst_257 : f32 to vector<8x4xf32>
    %894 = arith.addf %893, %892 : vector<8x4xf32>
    %895 = tpu.reciprocal %894 : vector<8x4xf32> -> vector<8x4xf32>
    %cst_258 = arith.constant dense<0.000000e+00> : vector<8xf32>
    %896 = vector.multi_reduction <add>, %895, %cst_258 [1] : vector<8x4xf32> to vector<8xf32>
    %897 = vector.shape_cast %896 : vector<8xf32> to vector<8x1xf32>
    %cst_259 = arith.constant 1.000000e-10 : f32
    %898 = vector.broadcast %cst_259 : f32 to vector<8x1xf32>
    %899 = arith.addf %897, %898 : vector<8x1xf32>
    %cst_260 = arith.constant 4.000000e+00 : f32
    %900 = vector.broadcast %cst_260 : f32 to vector<8x4xf32>
    %901 = arith.mulf %895, %900 : vector<8x4xf32>
    %902 = vector.broadcast %899 : vector<8x1xf32> to vector<8x4xf32>
    %903 = arith.divf %901, %902 : vector<8x4xf32>
    %904 = arith.mulf %886, %903 : vector<8x4xf32>
    %cst_261 = arith.constant dense<0.000000e+00> : vector<8xf32>
    %905 = vector.multi_reduction <add>, %904, %cst_261 [1] : vector<8x4xf32> to vector<8xf32>
    %906 = vector.shape_cast %905 : vector<8xf32> to vector<8x1xf32>
    %c416 = arith.constant 416 : index
    %c0_262 = arith.constant 0 : index
    %907 = vector.load %arg2[%c416, %c0_262] : memref<424x64xf32, #tpu.memory_space<vmem>>, vector<8x4xf32>
    %908 = vector.broadcast %906 : vector<8x1xf32> to vector<8x4xf32>
    %909 = arith.mulf %907, %908 : vector<8x4xf32>
    %cst_263 = arith.constant dense<0.000000e+00> : vector<4xf32>
    %910 = vector.multi_reduction <add>, %909, %cst_263 [0] : vector<8x4xf32> to vector<4xf32>
    %911 = vector.shape_cast %910 : vector<4xf32> to vector<1x4xf32>
    %cst_264 = arith.constant 4.000000e+00 : f32
    %912 = vector.broadcast %cst_264 : f32 to vector<8x1xf32>
    %913 = arith.subf %912, %906 : vector<8x1xf32>
    %914 = vector.shape_cast %911 : vector<1x4xf32> to vector<1x4xf32>
    %915 = vector.broadcast %914 : vector<1x4xf32> to vector<8x4xf32>
    %cst_265 = arith.constant 0.000000e+00 : f32
    %916 = vector.broadcast %cst_265 : f32 to vector<8x119xf32>
    %917 = tpu.concatenate %886, %913, %915, %916 in 1 : vector<8x4xf32>, vector<8x1xf32>, vector<8x4xf32>, vector<8x119xf32> -> vector<8x128xf32>
    %c0_266 = arith.constant 0 : index
    %c0_267 = arith.constant 0 : index
    %c0_268 = arith.constant 0 : index
    %918 = vector.load %arg5[%c0_266, %c0_267, %c0_268] : memref<1x8x128xf32, #tpu.memory_space<vmem>>, vector<1x8x128xf32>
    %919 = vector.shape_cast %918 : vector<1x8x128xf32> to vector<8x128xf32>
    %920 = vector.shape_cast %917 : vector<8x128xf32> to vector<1x8x128xf32>
    tpu.vector_store %arg5[%c0_266, %c0_267, %c0_268], %920 {strides = array<i32>} : memref<1x8x128xf32, #tpu.memory_space<vmem>>, vector<1x8x128xf32>,
    return
  }
  func.func @transform_0(%arg0: i32) -> (i32, i32, i32) {
    %c0_i32 = arith.constant 0 : i32
    %c0_i32_0 = arith.constant 0 : i32
    %c0_i32_1 = arith.constant 0 : i32
    return %arg0, %c0_i32, %c0_i32_0 : i32, i32, i32
  }
  func.func @transform_1(%arg0: i32) -> (i32, i32) {
    %c0_i32 = arith.constant 0 : i32
    %c0_i32_0 = arith.constant 0 : i32
    %c0_i32_1 = arith.constant 0 : i32
    return %c0_i32, %c0_i32_0 : i32, i32
  }
  func.func @transform_2(%arg0: i32) -> (i32, i32) {
    %c0_i32 = arith.constant 0 : i32
    %c0_i32_0 = arith.constant 0 : i32
    %c0_i32_1 = arith.constant 0 : i32
    return %c0_i32, %c0_i32_0 : i32, i32
  }
  func.func @transform_3(%arg0: i32) -> (i32, i32) {
    %c0_i32 = arith.constant 0 : i32
    %c0_i32_0 = arith.constant 0 : i32
    %c0_i32_1 = arith.constant 0 : i32
    return %c0_i32, %c0_i32_0 : i32, i32
  }
  func.func @transform_4(%arg0: i32) -> (i32, i32, i32) {
    %c0_i32 = arith.constant 0 : i32
    %c0_i32_0 = arith.constant 0 : i32
    %c0_i32_1 = arith.constant 0 : i32
    return %arg0, %c0_i32, %c0_i32_0 : i32, i32, i32
  }
}

</mosaic_0001>

<llo_original>
// kernel: ppnet_forward.1
$region0: #{ppnet_forward.1}
  #allocation0 [shape = 'u32[]', space=smem, size = 0x4, offset = 0x4, fixed_abs, tag = 'smem constant byte address 0x4 - core index']
  #allocation1 [shape = 'u32[144,128]{1,0:T(1,128)}', space=vmem, size = 0x12000, scoped, tag = 'internal scratch']
  %s0 = inlined_call_operand.vmem [shape: f32[2,197,48], index: 0, kind: input, shape index: {}]
  %s1 = inlined_call_operand.vmem [shape: f32[424,64], index: 1, kind: input, shape index: {}]
  %s2 = inlined_call_operand.vmem [shape: f32[128,192], index: 2, kind: input, shape index: {}]
  %s3 = inlined_call_operand.vmem [shape: f32[10,192], index: 3, kind: input, shape index: {}]
  %s4 = inlined_call_operand.vmem [shape: f32[2,8,128], index: 4, kind: output, shape index: {}]
  %s5 = sld [smem:[#allocation0]]
  $region49: #{ppnet_forward.1} parent=0
    _
  %s7 = ssub.s32 1, %s5
  %s8 = scalar_select 0, %s7, %s5
  loop: start=0, step=1, limit=4
  $region2: #{ppnet_forward.1} parent=0 // loop_pre_header
    _
  $region3: #{ppnet_forward.1} parent=0 // loop_header
    %s10 = sphi 0, %s14
    %p11 = scmp.ge.s32.totalorder %s10, 4
    %s20 = sphi 0, %s22
    %s23 = sphi 0, %s20
    %s24 = sphi 0, %s23
    %s40 = sphi 0, %s24
    %s44 = sphi 0, %s44
    %s46 = sphi 0, %s44
    %s47 = sphi 0, %s46
    %s61 = sphi 0, %s47
    %s65 = sphi 0, %s65
    %s67 = sphi 0, %s65
    %s68 = sphi 0, %s67
    %s82 = sphi 0, %s68
    %s86 = sphi 0, %s86
    %s88 = sphi 0, %s86
    %s89 = sphi 0, %s88
    %s103 = sphi 0, %s89
    %s109 = sphi 0, %s111
    %s112 = sphi 0, %s109
    %s113 = sphi 0, %s112
    %s129 = sphi 0, %s113
  $region4: #{ppnet_forward.1} parent=0 // loop_header_branch
    %13 = sbr.rel (%p11) target = $region8
  $region5: #{ppnet_forward.1} parent=0 // loop_body
    %s15 = ssub.s32 %s10, 1
    %s16 = ssub.s32 %s10, 2
    %s17 = sadd.s32 %s10, 1
    %s18 = ssub.s32 %s10, %s17
    %p19 = scmp.eq.s32.totalorder %s18, 0
    %s21 = sadd.s32 %s20, 1
    %s22 = scalar_select %p19, %s20, %s21
    %p25 = pneg %p19
    %p26 = scmp.eq.s32.totalorder %s10, 1
    %p27 = por %p25, %p26
    %p28 = scmp.ne.s32.totalorder %s20, %s23
    %p29 = scmp.eq.s32.totalorder %s10, 0
    %p30 = por %p28, %p29
    %p31 = scmp.ne.s32.totalorder %s20, %s23
    %p32 = scmp.eq.s32.totalorder %s15, 1
    %p33 = por %p31, %p32
    %p34 = scmp.ne.s32.totalorder %s23, %s24
    %p35 = scmp.eq.s32.totalorder %s15, 0
    %p36 = por %p34, %p35
    %p37 = scmp.ne.s32.totalorder %s23, %s24
    %p38 = scmp.eq.s32.totalorder %s16, 1
    %p39 = por %p37, %p38
    %p41 = scmp.ne.s32.totalorder %s24, %s40
    %p42 = scmp.eq.s32.totalorder %s16, 0
    %p43 = por %p41, %p42
    %s45 = sadd.s32 %s44, 1
    %p48 = scmp.eq.s32.totalorder %s10, 1
    %p49 = scmp.ne.s32.totalorder %s44, %s46
    %p50 = scmp.eq.s32.totalorder %s10, 0
    %p51 = por %p49, %p50
    %p52 = scmp.ne.s32.totalorder %s44, %s46
    %p53 = scmp.eq.s32.totalorder %s15, 1
    %p54 = por %p52, %p53
    %p55 = scmp.ne.s32.totalorder %s46, %s47
    %p56 = scmp.eq.s32.totalorder %s15, 0
    %p57 = por %p55, %p56
    %p58 = scmp.ne.s32.totalorder %s46, %s47
    %p59 = scmp.eq.s32.totalorder %s16, 1
    %p60 = por %p58, %p59
    %p62 = scmp.ne.s32.totalorder %s47, %s61
    %p63 = scmp.eq.s32.totalorder %s16, 0
    %p64 = por %p62, %p63
    %s66 = sadd.s32 %s65, 1
    %p69 = scmp.eq.s32.totalorder %s10, 1
    %p70 = scmp.ne.s32.totalorder %s65, %s67
    %p71 = scmp.eq.s32.totalorder %s10, 0
    %p72 = por %p70, %p71
    %p73 = scmp.ne.s32.totalorder %s65, %s67
    %p74 = scmp.eq.s32.totalorder %s15, 1
    %p75 = por %p73, %p74
    %p76 = scmp.ne.s32.totalorder %s67, %s68
    %p77 = scmp.eq.s32.totalorder %s15, 0
    %p78 = por %p76, %p77
    %p79 = scmp.ne.s32.totalorder %s67, %s68
    %p80 = scmp.eq.s32.totalorder %s16, 1
    %p81 = por %p79, %p80
    %p83 = scmp.ne.s32.totalorder %s68, %s82
    %p84 = scmp.eq.s32.totalorder %s16, 0
    %p85 = por %p83, %p84
    %s87 = sadd.s32 %s86, 1
    %p90 = scmp.eq.s32.totalorder %s10, 1
    %p91 = scmp.ne.s32.totalorder %s86, %s88
    %p92 = scmp.eq.s32.totalorder %s10, 0
    %p93 = por %p91, %p92
    %p94 = scmp.ne.s32.totalorder %s86, %s88
    %p95 = scmp.eq.s32.totalorder %s15, 1
    %p96 = por %p94, %p95
    %p97 = scmp.ne.s32.totalorder %s88, %s89
    %p98 = scmp.eq.s32.totalorder %s15, 0
    %p99 = por %p97, %p98
    %p100 = scmp.ne.s32.totalorder %s88, %s89
    %p101 = scmp.eq.s32.totalorder %s16, 1
    %p102 = por %p100, %p101
    %p104 = scmp.ne.s32.totalorder %s89, %s103
    %p105 = scmp.eq.s32.totalorder %s16, 0
    %p106 = por %p104, %p105
    %s107 = ssub.s32 %s10, %s17
    %p108 = scmp.eq.s32.totalorder %s107, 0
    %s110 = sadd.s32 %s109, 1
    %s111 = scalar_select %p108, %s109, %s110
    %p114 = pneg %p108
    %p115 = scmp.eq.s32.totalorder %s10, 1
    %p116 = por %p114, %p115
    %p117 = scmp.ne.s32.totalorder %s109, %s112
    %p118 = scmp.eq.s32.totalorder %s10, 0
    %p119 = por %p117, %p118
    %p120 = scmp.ne.s32.totalorder %s109, %s112
    %p121 = scmp.eq.s32.totalorder %s15, 1
    %p122 = por %p120, %p121
    %p123 = scmp.ne.s32.totalorder %s112, %s113
    %p124 = scmp.eq.s32.totalorder %s15, 0
    %p125 = por %p123, %p124
    %p126 = scmp.ne.s32.totalorder %s112, %s113
    %p127 = scmp.eq.s32.totalorder %s16, 1
    %p128 = por %p126, %p127
    %p130 = scmp.ne.s32.totalorder %s113, %s129
    %p131 = scmp.eq.s32.totalorder %s16, 0
    %p132 = por %p130, %p131
    %p133 = scmp.le.s32.totalorder 1, %s10
    %p134 = scmp.lt.s32.totalorder %s10, 3
    %p135 = pnand %p133, %p134
    %p136 = pneg %p135
    // Predicated region
    $region9: #{ppnet_forward.1} parent=5 // pred_check
      _
    $region10: #{ppnet_forward.1} parent=5 // pred_check_branch
      %138 = sbr.rel (%p135) target = $region12
    $region11: #{ppnet_forward.1} parent=5 // pred_region
      %s139 = ssub.s32 %s10, 1
      // Predicated region
      $region13: #{ppnet_forward.1} parent=11 // pred_check
        %p140 = pneg %p57
      $region14: #{ppnet_forward.1} parent=11 // pred_check_branch
        %142 = sbr.rel (%p140) target = $region16
      $region15: #{ppnet_forward.1} parent=11 // pred_region
        _
      $region16: #{ppnet_forward.1} parent=11 // pred_fallthru
        _
      // Predicated region
      $region17: #{ppnet_forward.1} parent=11 // pred_check
        %p143 = pneg %p78
      $region18: #{ppnet_forward.1} parent=11 // pred_check_branch
        %145 = sbr.rel (%p143) target = $region20
      $region19: #{ppnet_forward.1} parent=11 // pred_region
        _
      $region20: #{ppnet_forward.1} parent=11 // pred_fallthru
        _
      // Predicated region
      $region21: #{ppnet_forward.1} parent=11 // pred_check
        %p146 = pneg %p99
      $region22: #{ppnet_forward.1} parent=11 // pred_check_branch
        %148 = sbr.rel (%p146) target = $region24
      $region23: #{ppnet_forward.1} parent=11 // pred_region
        _
      $region24: #{ppnet_forward.1} parent=11 // pred_fallthru
        _
    $region12: #{ppnet_forward.1} parent=5 // pred_fallthru
      _
    %p149 = scmp.lt.s32.totalorder %s10, 2
    // Predicated region
    $region25: #{ppnet_forward.1} parent=5 // pred_check
      %p150 = pneg %p149
    $region26: #{ppnet_forward.1} parent=5 // pred_check_branch
      %152 = sbr.rel (%p150) target = $region28
    $region27: #{ppnet_forward.1} parent=5 // pred_region
      // Predicated region
      $region29: #{ppnet_forward.1} parent=27 // pred_check
        %p153 = pneg %p30
      $region30: #{ppnet_forward.1} parent=27 // pred_check_branch
        %155 = sbr.rel (%p153) target = $region32
      $region31: #{ppnet_forward.1} parent=27 // pred_region
        %p156 = scmp.lt.s32.totalorder %s10, 1
        %s157 = scalar_select %p156, %s10, 1
        %s158 = smul.addr %s157, 25
        %s159 = smul.addr %s158, 8
        %s160 = scalar_lea.vmem %s0, %s159
      $region32: #{ppnet_forward.1} parent=27 // pred_fallthru
        _
    $region28: #{ppnet_forward.1} parent=5 // pred_fallthru
      _
    %p161 = scmp.le.s32.totalorder 1, %s10
    %p162 = scmp.lt.s32.totalorder %s10, 3
    %p163 = pnand %p161, %p162
    %p164 = pneg %p163
    // Predicated region
    $region33: #{ppnet_forward.1} parent=5 // pred_check
      _
    $region34: #{ppnet_forward.1} parent=5 // pred_check_branch
      %166 = sbr.rel (%p163) target = $region36
    $region35: #{ppnet_forward.1} parent=5 // pred_region
      %s167 = ssub.s32 %s10, 1
      %p168 = scmp.lt.s32.totalorder %s15, 1
      %s169 = scalar_select %p168, %s15, 1
      %s170 = smul.addr %s169, 25
      %s171 = smul.addr %s170, 8
      %s172 = scalar_lea.vmem %s0, %s171
      %p173 = pneg %p36
      %p174 = pneg %p33
      %p175 = pneg %p57
      %p176 = pneg %p54
      %p177 = pneg %p78
      %p178 = pneg %p75
      %p179 = pneg %p99
      %p180 = pneg %p96
      %p181 = pneg %p125
      %p182 = pneg %p122
      %p183 = scmp.lt.s32.totalorder %s15, 1
      %s184 = scalar_select %p183, %s15, 1
      %s185 = smul.addr %s184, 8
      %s186 = scalar_lea.vmem %s4, %s185
      %p187 = scmp.lt.s32.totalorder %s15, 1
      %s188 = scalar_select %p187, %s15, 1
      %s189 = smul.addr %s188, 25
      %s190 = smul.addr %s189, 8
      %s191 = scalar_lea.vmem %s0, %s190
      %p192 = scmp.lt.s32.totalorder %s15, 1
      %s193 = scalar_select %p192, %s15, 1
      %s194 = smul.addr %s193, 8
      %s195 = scalar_lea.vmem %s4, %s194
      %v196 = vld [vmem:[%s191] sm:$0xff]
      %v197 = vld [vmem:[%s191 + $0x8] sm:$0xff]
      %v198 = vld [vmem:[%s191 + $0x10] sm:$0xff]
      %v199 = vld [vmem:[%s191 + $0x18] sm:$0xff]
      %v200 = vld [vmem:[%s191 + $0x20] sm:$0xff]
      %v201 = vld [vmem:[%s191 + $0x28] sm:$0xff]
      %v202 = vld [vmem:[%s191 + $0x30] sm:$0xff]
      %v203 = vld [vmem:[%s191 + $0x38] sm:$0xff]
      %v204 = vld [vmem:[%s191 + $0x40] sm:$0xff]
      %v205 = vld [vmem:[%s191 + $0x48] sm:$0xff]
      %v206 = vld [vmem:[%s191 + $0x50] sm:$0xff]
      %v207 = vld [vmem:[%s191 + $0x58] sm:$0xff]
      %v208 = vld [vmem:[%s191 + $0x60] sm:$0xff]
      %v209 = vld [vmem:[%s191 + $0x68] sm:$0xff]
      %v210 = vld [vmem:[%s191 + $0x70] sm:$0xff]
      %v211 = vld [vmem:[%s191 + $0x78] sm:$0xff]
      %v212 = vld [vmem:[%s191 + $0x80] sm:$0xff]
      %v213 = vld [vmem:[%s191 + $0x88] sm:$0xff]
      %v214 = vld [vmem:[%s191 + $0x90] sm:$0xff]
      %v215 = vld [vmem:[%s191 + $0x98] sm:$0xff]
      %v216 = vld [vmem:[%s191 + $0xa0] sm:$0xff]
      %v217 = vld [vmem:[%s191 + $0xa8] sm:$0xff]
      %v218 = vld [vmem:[%s191 + $0xb0] sm:$0xff]
      %v219 = vld [vmem:[%s191 + $0xb8] sm:$0xff]
      %v220 = vld [vmem:[%s191 + $0xc0] sm:$0x1f]
      %v221 = vld [vmem:[%s1] sm:$0xff]
      %v222 = vld [vmem:[%s1 + $0x8] sm:$0xff]
      %v223 = vld [vmem:[%s1 + $0x10] sm:$0xff]
      %v224 = vld [vmem:[%s1 + $0x18] sm:$0xff]
      %v225 = vld [vmem:[%s1 + $0x20] sm:$0xff]
      %v226 = vld [vmem:[%s1 + $0x28] sm:$0xff]
      %v227 = vld [vmem:[%s1 + $0xb0] sm:$0xff]
      %v228 = vld [vmem:[%s1 + $0xb8] sm:$0xff]
      %v229 = vld [vmem:[%s1 + $0xc0] sm:$0xff]
      %v230 = vld [vmem:[%s1 + $0xc8] sm:$0xff]
      %v231 = vld [vmem:[%s1 + $0xd0] sm:$0xff]
      %v232 = vld [vmem:[%s1 + $0xd8] sm:$0xff]
      %v233 = vld [vmem:[%s1 + $0xe0] sm:$0xff]
      %v234 = vld [vmem:[%s1 + $0xe8] sm:$0xff]
      %v235 = vld [vmem:[%s1 + $0xf0] sm:$0xff]
      %v236 = vld [vmem:[%s1 + $0xf8] sm:$0xff]
      %v237 = vld [vmem:[%s1 + $0x100] sm:$0xff]
      %v238 = vld [vmem:[%s1 + $0x108] sm:$0xff]
      %v239 = vld [vmem:[%s1 + $0x110] sm:$0xff]
      %v240 = vld [vmem:[%s1 + $0x118] sm:$0xff]
      %v241 = vld [vmem:[%s1 + $0x120] sm:$0xff]
      %v242 = vld [vmem:[%s1 + $0x128] sm:$0xff]
      %v243 = vld [vmem:[%s1 + $0x130] sm:$0xff]
      %v244 = vld [vmem:[%s1 + $0x138] sm:$0xff]
      %v245 = vld [vmem:[%s1 + $0x140] sm:$0xff]
      %v246 = vld [vmem:[%s1 + $0x148] sm:$0xff]
      %v247 = vld [vmem:[%s1 + $0x150] sm:$0xff]
      %v248 = vld [vmem:[%s1 + $0x158] sm:$0xff]
      %v249 = vld [vmem:[%s1 + $0x160] sm:$0xff]
      %v250 = vld [vmem:[%s1 + $0x168] sm:$0xff]
      %v251 = vld [vmem:[%s1 + $0x170] sm:$0x1f]
      %vm252 = vcmask 392192
      %v254 = vsel %vm252, %v196, 0
      %v257 = vsel %vm252, %v197, 0
      %v260 = vsel %vm252, %v198, 0
      %v263 = vsel %vm252, %v199, 0
      %v266 = vsel %vm252, %v200, 0
      %v269 = vsel %vm252, %v201, 0
      %v272 = vsel %vm252, %v202, 0
      %v275 = vsel %vm252, %v203, 0
      %v278 = vsel %vm252, %v204, 0
      %v281 = vsel %vm252, %v205, 0
      %v284 = vsel %vm252, %v206, 0
      %v287 = vsel %vm252, %v207, 0
      %v290 = vsel %vm252, %v208, 0
      %v293 = vsel %vm252, %v209, 0
      %v296 = vsel %vm252, %v210, 0
      %v299 = vsel %vm252, %v211, 0
      %v302 = vsel %vm252, %v212, 0
      %v305 = vsel %vm252, %v213, 0
      %v308 = vsel %vm252, %v214, 0
      %v311 = vsel %vm252, %v215, 0
      %v314 = vsel %vm252, %v216, 0
      %v317 = vsel %vm252, %v217, 0
      %v320 = vsel %vm252, %v218, 0
      %v323 = vsel %vm252, %v219, 0
      %v326 = vsel %vm252, %v220, 0
      %328 = vmatprep.subr.mxu0 0.0
      %329 = vmatpush1.msra.mxu0 0.0
      %330 = vmatprep.subr.mxu0 0.0
      %331 = vmatpush1.msra.mxu0 0.0
      %332 = vmatprep.subr.mxu0 0.0
      %333 = vmatpush1.msra.mxu0 0.0
      %334 = vmatprep.subr.mxu0 0.0
      %335 = vmatpush1.msra.mxu0 0.0
      %336 = vmatprep.subr.mxu0 0.0
      %337 = vmatpush1.msra.mxu0 0.0
      %338 = vmatprep.subr.mxu0 0.0
      %339 = vmatpush1.msra.mxu0 0.0
      %340 = vmatprep.subr.mxu0 0.0
      %341 = vmatpush1.msra.mxu0 0.0
      %342 = vmatprep.subr.mxu0 0.0
      %343 = vmatpush1.msra.mxu0 0.0
      %344 = vmatprep.subr.mxu0 0.0
      %345 = vmatpush1.msra.mxu0 0.0
      %346 = vmatprep.subr.mxu0 0.0
      %347 = vmatpush1.msra.mxu0 0.0
      %348 = vmatprep.subr.mxu0 0.0
      %349 = vmatpush1.msra.mxu0 %v226
      %350 = vmatprep.subr.mxu0 0.0
      %351 = vmatpush1.msra.mxu0 %v225
      %352 = vmatprep.subr.mxu0 0.0
      %353 = vmatpush1.msra.mxu0 %v224
      %354 = vmatprep.subr.mxu0 0.0
      %355 = vmatpush1.msra.mxu0 %v223
      %356 = vmatprep.subr.mxu0 0.0
      %357 = vmatpush1.msra.mxu0 %v222
      %358 = vmatprep.subr.mxu0 0.0
      %359 = vmatpush1.msra.mxu0 %v221
      %360 = vmatprep.subr.mxu0 0.0
      %361 = vmatpush2.msra.mxu0 0.0
      %362 = vmatprep.subr.mxu0 0.0
      %363 = vmatpush2.msra.mxu0 0.0
      %364 = vmatprep.subr.mxu0 0.0
      %365 = vmatpush2.msra.mxu0 0.0
      %366 = vmatprep.subr.mxu0 0.0
      %367 = vmatpush2.msra.mxu0 0.0
      %368 = vmatprep.subr.mxu0 0.0
      %369 = vmatpush2.msra.mxu0 0.0
      %370 = vmatprep.subr.mxu0 0.0
      %371 = vmatpush2.msra.mxu0 0.0
      %372 = vmatprep.subr.mxu0 0.0
      %373 = vmatpush2.msra.mxu0 0.0
      %374 = vmatprep.subr.mxu0 0.0
      %375 = vmatpush2.msra.mxu0 0.0
      %376 = vmatprep.subr.mxu0 0.0
      %377 = vmatpush2.msra.mxu0 0.0
      %378 = vmatprep.subr.mxu0 0.0
      %379 = vmatpush2.msra.mxu0 0.0
      %380 = vmatprep.subr.mxu0 0.0
      %381 = vmatpush2.msra.mxu0 0.0
      %382 = vmatprep.subr.mxu0 0.0
      %383 = vmatpush2.msra.mxu0 0.0
      %384 = vmatprep.subr.mxu0 0.0
      %385 = vmatpush2.msra.mxu0 0.0
      %386 = vmatprep.subr.mxu0 0.0
      %387 = vmatpush2.msra.mxu0 0.0
      %388 = vmatprep.subr.mxu0 0.0
      %389 = vmatpush2.msra.mxu0 0.0
      %390 = vmatprep.subr.mxu0 0.0
      %391 = vmatpush2.msra.mxu0 0.0
      %392 = vmatprep.mubr.f32.mxu0 0.0
      %393 = vmatmul.mubr.f32.gmra.mxu0 %v254
      %v394 = vpop.f32.mrf.mxu0
      %v395 = vadd.f32 %v227, %v394
      %v396 = vpop.f32.mrf.mxu0
      %397 = vmatprep.mubr.f32.mxu0 0.0
      %398 = vmatmul.mubr.f32.gmra.mxu0 %v257
      %v399 = vpop.f32.mrf.mxu0
      %v400 = vadd.f32 %v228, %v399
      %v401 = vpop.f32.mrf.mxu0
      %402 = vmatprep.mubr.f32.mxu0 0.0
      %403 = vmatmul.mubr.f32.gmra.mxu0 %v260
      %v404 = vpop.f32.mrf.mxu0
      %v405 = vadd.f32 %v229, %v404
      %v406 = vpop.f32.mrf.mxu0
      %407 = vmatprep.mubr.f32.mxu0 0.0
      %408 = vmatmul.mubr.f32.gmra.mxu0 %v263
      %v409 = vpop.f32.mrf.mxu0
      %v410 = vadd.f32 %v230, %v409
      %v411 = vpop.f32.mrf.mxu0
      %412 = vmatprep.mubr.f32.mxu0 0.0
      %413 = vmatmul.mubr.f32.gmra.mxu0 %v266
      %v414 = vpop.f32.mrf.mxu0
      %v415 = vadd.f32 %v231, %v414
      %v416 = vpop.f32.mrf.mxu0
      %417 = vmatprep.mubr.f32.mxu0 0.0
      %418 = vmatmul.mubr.f32.gmra.mxu0 %v269
      %v419 = vpop.f32.mrf.mxu0
      %v420 = vadd.f32 %v232, %v419
      %v421 = vpop.f32.mrf.mxu0
      %422 = vmatprep.mubr.f32.mxu0 0.0
      %423 = vmatmul.mubr.f32.gmra.mxu0 %v272
      %v424 = vpop.f32.mrf.mxu0
      %v425 = vadd.f32 %v233, %v424
      %v426 = vpop.f32.mrf.mxu0
      %427 = vmatprep.mubr.f32.mxu0 0.0
      %428 = vmatmul.mubr.f32.gmra.mxu0 %v275
      %v429 = vpop.f32.mrf.mxu0
      %v430 = vadd.f32 %v234, %v429
      %v431 = vpop.f32.mrf.mxu0
      %432 = vmatprep.mubr.f32.mxu0 0.0
      %433 = vmatmul.mubr.f32.gmra.mxu0 %v278
      %v434 = vpop.f32.mrf.mxu0
      %v435 = vadd.f32 %v235, %v434
      %v436 = vpop.f32.mrf.mxu0
      %437 = vmatprep.mubr.f32.mxu0 0.0
      %438 = vmatmul.mubr.f32.gmra.mxu0 %v281
      %v439 = vpop.f32.mrf.mxu0
      %v440 = vadd.f32 %v236, %v439
      %v441 = vpop.f32.mrf.mxu0
      %442 = vmatprep.mubr.f32.mxu0 0.0
      %443 = vmatmul.mubr.f32.gmra.mxu0 %v284
      %v444 = vpop.f32.mrf.mxu0
      %v445 = vadd.f32 %v237, %v444
      %v446 = vpop.f32.mrf.mxu0
      %447 = vmatprep.mubr.f32.mxu0 0.0
      %448 = vmatmul.mubr.f32.gmra.mxu0 %v287
      %v449 = vpop.f32.mrf.mxu0
      %v450 = vadd.f32 %v238, %v449
      %v451 = vpop.f32.mrf.mxu0
      %452 = vmatprep.mubr.f32.mxu0 0.0
      %453 = vmatmul.mubr.f32.gmra.mxu0 %v290
      %v454 = vpop.f32.mrf.mxu0
      %v455 = vadd.f32 %v239, %v454
      %v456 = vpop.f32.mrf.mxu0
      %457 = vmatprep.mubr.f32.mxu0 0.0
      %458 = vmatmul.mubr.f32.gmra.mxu0 %v293
      %v459 = vpop.f32.mrf.mxu0
      %v460 = vadd.f32 %v240, %v459
      %v461 = vpop.f32.mrf.mxu0
      %462 = vmatprep.mubr.f32.mxu0 0.0
      %463 = vmatmul.mubr.f32.gmra.mxu0 %v296
      %v464 = vpop.f32.mrf.mxu0
      %v465 = vadd.f32 %v241, %v464
      %v466 = vpop.f32.mrf.mxu0
      %467 = vmatprep.mubr.f32.mxu0 0.0
      %468 = vmatmul.mubr.f32.gmra.mxu0 %v299
      %v469 = vpop.f32.mrf.mxu0
      %v470 = vadd.f32 %v242, %v469
      %v471 = vpop.f32.mrf.mxu0
      %472 = vmatprep.mubr.f32.mxu0 0.0
      %473 = vmatmul.mubr.f32.gmra.mxu0 %v302
      %v474 = vpop.f32.mrf.mxu0
      %v475 = vadd.f32 %v243, %v474
      %v476 = vpop.f32.mrf.mxu0
      %477 = vmatprep.mubr.f32.mxu0 0.0
      %478 = vmatmul.mubr.f32.gmra.mxu0 %v305
      %v479 = vpop.f32.mrf.mxu0
      %v480 = vadd.f32 %v244, %v479
      %v481 = vpop.f32.mrf.mxu0
      %482 = vmatprep.mubr.f32.mxu0 0.0
      %483 = vmatmul.mubr.f32.gmra.mxu0 %v308
      %v484 = vpop.f32.mrf.mxu0
      %v485 = vadd.f32 %v245, %v484
      %v486 = vpop.f32.mrf.mxu0
      %487 = vmatprep.mubr.f32.mxu0 0.0
      %488 = vmatmul.mubr.f32.gmra.mxu0 %v311
      %v489 = vpop.f32.mrf.mxu0
      %v490 = vadd.f32 %v246, %v489
      %v491 = vpop.f32.mrf.mxu0
      %492 = vmatprep.mubr.f32.mxu0 0.0
      %493 = vmatmul.mubr.f32.gmra.mxu0 %v314
      %v494 = vpop.f32.mrf.mxu0
      %v495 = vadd.f32 %v247, %v494
      %v496 = vpop.f32.mrf.mxu0
      %497 = vmatprep.mubr.f32.mxu0 0.0
      %498 = vmatmul.mubr.f32.gmra.mxu0 %v317
      %v499 = vpop.f32.mrf.mxu0
      %v500 = vadd.f32 %v248, %v499
      %v501 = vpop.f32.mrf.mxu0
      %502 = vmatprep.mubr.f32.mxu0 0.0
      %503 = vmatmul.mubr.f32.gmra.mxu0 %v320
      %v504 = vpop.f32.mrf.mxu0
      %v505 = vadd.f32 %v249, %v504
      %v506 = vpop.f32.mrf.mxu0
      %507 = vmatprep.mubr.f32.mxu0 0.0
      %508 = vmatmul.mubr.f32.gmra.mxu0 %v323
      %v509 = vpop.f32.mrf.mxu0
      %v510 = vadd.f32 %v250, %v509
      %v511 = vpop.f32.mrf.mxu0
      %512 = vmatprep.mubr.f32.mxu0 0.0
      %513 = vmatmul.mubr.f32.gmra.mxu0 %v326
      %v514 = vpop.f32.mrf.mxu0
      %v515 = vadd.f32 %v251, %v514
      %v516 = vpop.f32.mrf.mxu0
      %517 = vdwg.mxu0
      %v518 = vld [vmem:[%s3] ss:$0 sm:$0xff]
      %v519 = vld [vmem:[%s3 + $0x1] ss:$0 sm:$0xff]
      %vm520 = vcmask 523264
      %v521 = vsel %vm520, %v395, 0.0
      %522 = vadd.xlane.f32.xlu0 %v521
      %v523 = vpop.xlane.xlu0 %522
      %v524 = vsel %vm520, %v400, 0.0
      %525 = vadd.xlane.f32.xlu0 %v524
      %v526 = vpop.xlane.xlu0 %525
      %v527 = vsel %vm520, %v405, 0.0
      %528 = vadd.xlane.f32.xlu0 %v527
      %v529 = vpop.xlane.xlu0 %528
      %v530 = vsel %vm520, %v410, 0.0
      %531 = vadd.xlane.f32.xlu0 %v530
      %v532 = vpop.xlane.xlu0 %531
      %v533 = vsel %vm520, %v415, 0.0
      %534 = vadd.xlane.f32.xlu0 %v533
      %v535 = vpop.xlane.xlu0 %534
      %v536 = vsel %vm520, %v420, 0.0
      %537 = vadd.xlane.f32.xlu0 %v536
      %v538 = vpop.xlane.xlu0 %537
      %v539 = vsel %vm520, %v425, 0.0
      %540 = vadd.xlane.f32.xlu0 %v539
      %v541 = vpop.xlane.xlu0 %540
      %v542 = vsel %vm520, %v430, 0.0
      %543 = vadd.xlane.f32.xlu0 %v542
      %v544 = vpop.xlane.xlu0 %543
      %v545 = vsel %vm520, %v435, 0.0
      %546 = vadd.xlane.f32.xlu0 %v545
      %v547 = vpop.xlane.xlu0 %546
      %v548 = vsel %vm520, %v440, 0.0
      %549 = vadd.xlane.f32.xlu0 %v548
      %v550 = vpop.xlane.xlu0 %549
      %v551 = vsel %vm520, %v445, 0.0
      %552 = vadd.xlane.f32.xlu0 %v551
      %v553 = vpop.xlane.xlu0 %552
      %v554 = vsel %vm520, %v450, 0.0
      %555 = vadd.xlane.f32.xlu0 %v554
      %v556 = vpop.xlane.xlu0 %555
      %v557 = vsel %vm520, %v455, 0.0
      %558 = vadd.xlane.f32.xlu0 %v557
      %v559 = vpop.xlane.xlu0 %558
      %v560 = vsel %vm520, %v460, 0.0
      %561 = vadd.xlane.f32.xlu0 %v560
      %v562 = vpop.xlane.xlu0 %561
      %v563 = vsel %vm520, %v465, 0.0
      %564 = vadd.xlane.f32.xlu0 %v563
      %v565 = vpop.xlane.xlu0 %564
      %v566 = vsel %vm520, %v470, 0.0
      %567 = vadd.xlane.f32.xlu0 %v566
      %v568 = vpop.xlane.xlu0 %567
      %v569 = vsel %vm520, %v475, 0.0
      %570 = vadd.xlane.f32.xlu0 %v569
      %v571 = vpop.xlane.xlu0 %570
      %v572 = vsel %vm520, %v480, 0.0
      %573 = vadd.xlane.f32.xlu0 %v572
      %v574 = vpop.xlane.xlu0 %573
      %v575 = vsel %vm520, %v485, 0.0
      %576 = vadd.xlane.f32.xlu0 %v575
      %v577 = vpop.xlane.xlu0 %576
      %v578 = vsel %vm520, %v490, 0.0
      %579 = vadd.xlane.f32.xlu0 %v578
      %v580 = vpop.xlane.xlu0 %579
      %v581 = vsel %vm520, %v495, 0.0
      %582 = vadd.xlane.f32.xlu0 %v581
      %v583 = vpop.xlane.xlu0 %582
      %v584 = vsel %vm520, %v500, 0.0
      %585 = vadd.xlane.f32.xlu0 %v584
      %v586 = vpop.xlane.xlu0 %585
      %v587 = vsel %vm520, %v505, 0.0
      %588 = vadd.xlane.f32.xlu0 %v587
      %v589 = vpop.xlane.xlu0 %588
      %v590 = vsel %vm520, %v510, 0.0
      %591 = vadd.xlane.f32.xlu0 %v590
      %v592 = vpop.xlane.xlu0 %591
      %vm593 = vcmask 520192
      %v594 = vsel %vm593, %v515, 0.0
      %595 = vadd.xlane.f32.xlu0 %v594
      %v596 = vpop.xlane.xlu0 %595
      %v597 = vrcp.pop 64.0
      %v598 = vmul.f32 %v523, %v597
      %v599 = vmul.f32 %v526, %v597
      %v600 = vmul.f32 %v529, %v597
      %v601 = vmul.f32 %v532, %v597
      %v602 = vmul.f32 %v535, %v597
      %v603 = vmul.f32 %v538, %v597
      %v604 = vmul.f32 %v541, %v597
      %v605 = vmul.f32 %v544, %v597
      %v606 = vmul.f32 %v547, %v597
      %v607 = vmul.f32 %v550, %v597
      %v608 = vmul.f32 %v553, %v597
      %v609 = vmul.f32 %v556, %v597
      %v610 = vmul.f32 %v559, %v597
      %v611 = vmul.f32 %v562, %v597
      %v612 = vmul.f32 %v565, %v597
      %v613 = vmul.f32 %v568, %v597
      %v614 = vmul.f32 %v571, %v597
      %v615 = vmul.f32 %v574, %v597
      %v616 = vmul.f32 %v577, %v597
      %v617 = vmul.f32 %v580, %v597
      %v618 = vmul.f32 %v583, %v597
      %v619 = vmul.f32 %v586, %v597
      %v620 = vmul.f32 %v589, %v597
      %v621 = vmul.f32 %v592, %v597
      %v622 = vmul.f32 %v596, %v597
      %v623 = vsub.f32 %v395, %v598
      %v624 = vsub.f32 %v400, %v599
      %v625 = vsub.f32 %v405, %v600
      %v626 = vsub.f32 %v410, %v601
      %v627 = vsub.f32 %v415, %v602
      %v628 = vsub.f32 %v420, %v603
      %v629 = vsub.f32 %v425, %v604
      %v630 = vsub.f32 %v430, %v605
      %v631 = vsub.f32 %v435, %v606
      %v632 = vsub.f32 %v440, %v607
      %v633 = vsub.f32 %v445, %v608
      %v634 = vsub.f32 %v450, %v609
      %v635 = vsub.f32 %v455, %v610
      %v636 = vsub.f32 %v460, %v611
      %v637 = vsub.f32 %v465, %v612
      %v638 = vsub.f32 %v470, %v613
      %v639 = vsub.f32 %v475, %v614
      %v640 = vsub.f32 %v480, %v615
      %v641 = vsub.f32 %v485, %v616
      %v642 = vsub.f32 %v490, %v617
      %v643 = vsub.f32 %v495, %v618
      %v644 = vsub.f32 %v500, %v619
      %v645 = vsub.f32 %v505, %v620
      %v646 = vsub.f32 %v510, %v621
      %v647 = vsub.f32 %v515, %v622
      %v648 = vmul.f32 %v623, %v623
      %v649 = vmul.f32 %v624, %v624
      %v650 = vmul.f32 %v625, %v625
      %v651 = vmul.f32 %v626, %v626
      %v652 = vmul.f32 %v627, %v627
      %v653 = vmul.f32 %v628, %v628
      %v654 = vmul.f32 %v629, %v629
      %v655 = vmul.f32 %v630, %v630
      %v656 = vmul.f32 %v631, %v631
      %v657 = vmul.f32 %v632, %v632
      %v658 = vmul.f32 %v633, %v633
      %v659 = vmul.f32 %v634, %v634
      %v660 = vmul.f32 %v635, %v635
      %v661 = vmul.f32 %v636, %v636
      %v662 = vmul.f32 %v637, %v637
      %v663 = vmul.f32 %v638, %v638
      %v664 = vmul.f32 %v639, %v639
      %v665 = vmul.f32 %v640, %v640
      %v666 = vmul.f32 %v641, %v641
      %v667 = vmul.f32 %v642, %v642
      %v668 = vmul.f32 %v643, %v643
      %v669 = vmul.f32 %v644, %v644
      %v670 = vmul.f32 %v645, %v645
      %v671 = vmul.f32 %v646, %v646
      %v672 = vmul.f32 %v647, %v647
      %v673 = vsel %vm520, %v648, 0.0
      %674 = vadd.xlane.f32.xlu0 %v673
      %v675 = vpop.xlane.xlu0 %674
      %v676 = vsel %vm520, %v649, 0.0
      %677 = vadd.xlane.f32.xlu0 %v676
      %v678 = vpop.xlane.xlu0 %677
      %v679 = vsel %vm520, %v650, 0.0
      %680 = vadd.xlane.f32.xlu0 %v679
      %v681 = vpop.xlane.xlu0 %680
      %v682 = vsel %vm520, %v651, 0.0
      %683 = vadd.xlane.f32.xlu0 %v682
      %v684 = vpop.xlane.xlu0 %683
      %v685 = vsel %vm520, %v652, 0.0
      %686 = vadd.xlane.f32.xlu0 %v685
      %v687 = vpop.xlane.xlu0 %686
      %v688 = vsel %vm520, %v653, 0.0
      %689 = vadd.xlane.f32.xlu0 %v688
      %v690 = vpop.xlane.xlu0 %689
      %v691 = vsel %vm520, %v654, 0.0
      %692 = vadd.xlane.f32.xlu0 %v691
      %v693 = vpop.xlane.xlu0 %692
      %v694 = vsel %vm520, %v655, 0.0
      %695 = vadd.xlane.f32.xlu0 %v694
      %v696 = vpop.xlane.xlu0 %695
      %v697 = vsel %vm520, %v656, 0.0
      %698 = vadd.xlane.f32.xlu0 %v697
      %v699 = vpop.xlane.xlu0 %698
      %v700 = vsel %vm520, %v657, 0.0
      %701 = vadd.xlane.f32.xlu0 %v700
      %v702 = vpop.xlane.xlu0 %701
      %v703 = vsel %vm520, %v658, 0.0
      %704 = vadd.xlane.f32.xlu0 %v703
      %v705 = vpop.xlane.xlu0 %704
      %v706 = vsel %vm520, %v659, 0.0
      %707 = vadd.xlane.f32.xlu0 %v706
      %v708 = vpop.xlane.xlu0 %707
      %v709 = vsel %vm520, %v660, 0.0
      %710 = vadd.xlane.f32.xlu0 %v709
      %v711 = vpop.xlane.xlu0 %710
      %v712 = vsel %vm520, %v661, 0.0
      %713 = vadd.xlane.f32.xlu0 %v712
      %v714 = vpop.xlane.xlu0 %713
      %v715 = vsel %vm520, %v662, 0.0
      %716 = vadd.xlane.f32.xlu0 %v715
      %v717 = vpop.xlane.xlu0 %716
      %v718 = vsel %vm520, %v663, 0.0
      %719 = vadd.xlane.f32.xlu0 %v718
      %v720 = vpop.xlane.xlu0 %719
      %v721 = vsel %vm520, %v664, 0.0
      %722 = vadd.xlane.f32.xlu0 %v721
      %v723 = vpop.xlane.xlu0 %722
      %v724 = vsel %vm520, %v665, 0.0
      %725 = vadd.xlane.f32.xlu0 %v724
      %v726 = vpop.xlane.xlu0 %725
      %v727 = vsel %vm520, %v666, 0.0
      %728 = vadd.xlane.f32.xlu0 %v727
      %v729 = vpop.xlane.xlu0 %728
      %v730 = vsel %vm520, %v667, 0.0
      %731 = vadd.xlane.f32.xlu0 %v730
      %v732 = vpop.xlane.xlu0 %731
      %v733 = vsel %vm520, %v668, 0.0
      %734 = vadd.xlane.f32.xlu0 %v733
      %v735 = vpop.xlane.xlu0 %734
      %v736 = vsel %vm520, %v669, 0.0
      %737 = vadd.xlane.f32.xlu0 %v736
      %v738 = vpop.xlane.xlu0 %737
      %v739 = vsel %vm520, %v670, 0.0
      %740 = vadd.xlane.f32.xlu0 %v739
      %v741 = vpop.xlane.xlu0 %740
      %v742 = vsel %vm520, %v671, 0.0
      %743 = vadd.xlane.f32.xlu0 %v742
      %v744 = vpop.xlane.xlu0 %743
      %v745 = vsel %vm593, %v672, 0.0
      %746 = vadd.xlane.f32.xlu0 %v745
      %v747 = vpop.xlane.xlu0 %746
      %v748 = vmul.f32 %v675, %v597
      %v749 = vmul.f32 %v678, %v597
      %v750 = vmul.f32 %v681, %v597
      %v751 = vmul.f32 %v684, %v597
      %v752 = vmul.f32 %v687, %v597
      %v753 = vmul.f32 %v690, %v597
      %v754 = vmul.f32 %v693, %v597
      %v755 = vmul.f32 %v696, %v597
      %v756 = vmul.f32 %v699, %v597
      %v757 = vmul.f32 %v702, %v597
      %v758 = vmul.f32 %v705, %v597
      %v759 = vmul.f32 %v708, %v597
      %v760 = vmul.f32 %v711, %v597
      %v761 = vmul.f32 %v714, %v597
      %v762 = vmul.f32 %v717, %v597
      %v763 = vmul.f32 %v720, %v597
      %v764 = vmul.f32 %v723, %v597
      %v765 = vmul.f32 %v726, %v597
      %v766 = vmul.f32 %v729, %v597
      %v767 = vmul.f32 %v732, %v597
      %v768 = vmul.f32 %v735, %v597
      %v769 = vmul.f32 %v738, %v597
      %v770 = vmul.f32 %v741, %v597
      %v771 = vmul.f32 %v744, %v597
      %v772 = vmul.f32 %v747, %v597
      %v773 = vadd.f32 %v748, 1e-06
      %v774 = vadd.f32 %v749, 1e-06
      %v775 = vadd.f32 %v750, 1e-06
      %v776 = vadd.f32 %v751, 1e-06
      %v777 = vadd.f32 %v752, 1e-06
      %v778 = vadd.f32 %v753, 1e-06
      %v779 = vadd.f32 %v754, 1e-06
      %v780 = vadd.f32 %v755, 1e-06
      %v781 = vadd.f32 %v756, 1e-06
      %v782 = vadd.f32 %v757, 1e-06
      %v783 = vadd.f32 %v758, 1e-06
      %v784 = vadd.f32 %v759, 1e-06
      %v785 = vadd.f32 %v760, 1e-06
      %v786 = vadd.f32 %v761, 1e-06
      %v787 = vadd.f32 %v762, 1e-06
      %v788 = vadd.f32 %v763, 1e-06
      %v789 = vadd.f32 %v764, 1e-06
      %v790 = vadd.f32 %v765, 1e-06
      %v791 = vadd.f32 %v766, 1e-06
      %v792 = vadd.f32 %v767, 1e-06
      %v793 = vadd.f32 %v768, 1e-06
      %v794 = vadd.f32 %v769, 1e-06
      %v795 = vadd.f32 %v770, 1e-06
      %v796 = vadd.f32 %v771, 1e-06
      %v797 = vadd.f32 %v772, 1e-06
      %v798 = vrsqrt.pop %v773
      %v799 = vrsqrt.pop %v774
      %v800 = vrsqrt.pop %v775
      %v801 = vrsqrt.pop %v776
      %v802 = vrsqrt.pop %v777
      %v803 = vrsqrt.pop %v778
      %v804 = vrsqrt.pop %v779
      %v805 = vrsqrt.pop %v780
      %v806 = vrsqrt.pop %v781
      %v807 = vrsqrt.pop %v782
      %v808 = vrsqrt.pop %v783
      %v809 = vrsqrt.pop %v784
      %v810 = vrsqrt.pop %v785
      %v811 = vrsqrt.pop %v786
      %v812 = vrsqrt.pop %v787
      %v813 = vrsqrt.pop %v788
      %v814 = vrsqrt.pop %v789
      %v815 = vrsqrt.pop %v790
      %v816 = vrsqrt.pop %v791
      %v817 = vrsqrt.pop %v792
      %v818 = vrsqrt.pop %v793
      %v819 = vrsqrt.pop %v794
      %v820 = vrsqrt.pop %v795
      %v821 = vrsqrt.pop %v796
      %v822 = vrsqrt.pop %v797
      %v823 = vmul.f32 %v623, %v798
      %v824 = vmul.f32 %v624, %v799
      %v825 = vmul.f32 %v625, %v800
      %v826 = vmul.f32 %v626, %v801
      %v827 = vmul.f32 %v627, %v802
      %v828 = vmul.f32 %v628, %v803
      %v829 = vmul.f32 %v629, %v804
      %v830 = vmul.f32 %v630, %v805
      %v831 = vmul.f32 %v631, %v806
      %v832 = vmul.f32 %v632, %v807
      %v833 = vmul.f32 %v633, %v808
      %v834 = vmul.f32 %v634, %v809
      %v835 = vmul.f32 %v635, %v810
      %v836 = vmul.f32 %v636, %v811
      %v837 = vmul.f32 %v637, %v812
      %v838 = vmul.f32 %v638, %v813
      %v839 = vmul.f32 %v639, %v814
      %v840 = vmul.f32 %v640, %v815
      %v841 = vmul.f32 %v641, %v816
      %v842 = vmul.f32 %v642, %v817
      %v843 = vmul.f32 %v643, %v818
      %v844 = vmul.f32 %v644, %v819
      %v845 = vmul.f32 %v645, %v820
      %v846 = vmul.f32 %v646, %v821
      %v847 = vmul.f32 %v647, %v822
      %v848 = vmul.f32 %v823, %v518
      %v849 = vmul.f32 %v824, %v518
      %v850 = vmul.f32 %v825, %v518
      %v851 = vmul.f32 %v826, %v518
      %v852 = vmul.f32 %v827, %v518
      %v853 = vmul.f32 %v828, %v518
      %v854 = vmul.f32 %v829, %v518
      %v855 = vmul.f32 %v830, %v518
      %v856 = vmul.f32 %v831, %v518
      %v857 = vmul.f32 %v832, %v518
      %v858 = vmul.f32 %v833, %v518
      %v859 = vmul.f32 %v834, %v518
      %v860 = vmul.f32 %v835, %v518
      %v861 = vmul.f32 %v836, %v518
      %v862 = vmul.f32 %v837, %v518
      %v863 = vmul.f32 %v838, %v518
      %v864 = vmul.f32 %v839, %v518
      %v865 = vmul.f32 %v840, %v518
      %v866 = vmul.f32 %v841, %v518
      %v867 = vmul.f32 %v842, %v518
      %v868 = vmul.f32 %v843, %v518
      %v869 = vmul.f32 %v844, %v518
      %v870 = vmul.f32 %v845, %v518
      %v871 = vmul.f32 %v846, %v518
      %v872 = vmul.f32 %v847, %v518
      %v873 = vadd.f32 %v848, %v519
      %v874 = vadd.f32 %v849, %v519
      %v875 = vadd.f32 %v850, %v519
      %v876 = vadd.f32 %v851, %v519
      %v877 = vadd.f32 %v852, %v519
      %v878 = vadd.f32 %v853, %v519
      %v879 = vadd.f32 %v854, %v519
      %v880 = vadd.f32 %v855, %v519
      %v881 = vadd.f32 %v856, %v519
      %v882 = vadd.f32 %v857, %v519
      %v883 = vadd.f32 %v858, %v519
      %v884 = vadd.f32 %v859, %v519
      %v885 = vadd.f32 %v860, %v519
      %v886 = vadd.f32 %v861, %v519
      %v887 = vadd.f32 %v862, %v519
      %v888 = vadd.f32 %v863, %v519
      %v889 = vadd.f32 %v864, %v519
      %v890 = vadd.f32 %v865, %v519
      %v891 = vadd.f32 %v866, %v519
      %v892 = vadd.f32 %v867, %v519
      %v893 = vadd.f32 %v868, %v519
      %v894 = vadd.f32 %v869, %v519
      %v895 = vadd.f32 %v870, %v519
      %v896 = vadd.f32 %v871, %v519
      %v897 = vadd.f32 %v872, %v519
      %v898 = vld [vmem:[%s2] sm:$0xff]
      %v899 = vld [vmem:[%s2 + $0x8] sm:$0xff]
      %v900 = vld [vmem:[%s2 + $0x10] sm:$0xff]
      %v901 = vld [vmem:[%s2 + $0x18] sm:$0xff]
      %v902 = vld [vmem:[%s2 + $0x20] sm:$0xff]
      %v903 = vld [vmem:[%s2 + $0x28] sm:$0xff]
      %v904 = vld [vmem:[%s2 + $0x30] sm:$0xff]
      %v905 = vld [vmem:[%s2 + $0x38] sm:$0xff]
      %v906 = vld [vmem:[%s2 + $0x40] sm:$0xff]
      %v907 = vld [vmem:[%s2 + $0x48] sm:$0xff]
      %v908 = vld [vmem:[%s2 + $0x50] sm:$0xff]
      %v909 = vld [vmem:[%s2 + $0x58] sm:$0xff]
      %v910 = vld [vmem:[%s2 + $0x60] sm:$0xff]
      %v911 = vld [vmem:[%s2 + $0x68] sm:$0xff]
      %v912 = vld [vmem:[%s2 + $0x70] sm:$0xff]
      %v913 = vld [vmem:[%s2 + $0x78] sm:$0xff]
      %s914 = scalar_lea.vmem %s3, 2
      %v915 = vld [vmem:[%s914] ss:$8 sm:$0x3]
      %v917 = vlaneseq
      %v918 = vshrl.u32 %v917, 7
      %v919 = vsub.s32 0, %v918
      %v920 = vrot.slane %v915, %v919
      %v921 = vlaneseq
      %v922 = vshrl.u32 %v921, 7
      %v923 = vsub.s32 1, %v922
      %v924 = vrot.slane %v915, %v923
      %v928 = vsel %vm520, %v873, 0
      %v931 = vsel %vm520, %v874, 0
      %v934 = vsel %vm520, %v875, 0
      %v937 = vsel %vm520, %v876, 0
      %v940 = vsel %vm520, %v877, 0
      %v943 = vsel %vm520, %v878, 0
      %v946 = vsel %vm520, %v879, 0
      %v949 = vsel %vm520, %v880, 0
      %v952 = vsel %vm520, %v881, 0
      %v955 = vsel %vm520, %v882, 0
      %v958 = vsel %vm520, %v883, 0
      %v961 = vsel %vm520, %v884, 0
      %v964 = vsel %vm520, %v885, 0
      %v967 = vsel %vm520, %v886, 0
      %v970 = vsel %vm520, %v887, 0
      %v973 = vsel %vm520, %v888, 0
      %v976 = vsel %vm520, %v889, 0
      %v979 = vsel %vm520, %v890, 0
      %v982 = vsel %vm520, %v891, 0
      %v985 = vsel %vm520, %v892, 0
      %v988 = vsel %vm520, %v893, 0
      %v991 = vsel %vm520, %v894, 0
      %v994 = vsel %vm520, %v895, 0
      %v997 = vsel %vm520, %v896, 0
      %v1000 = vsel %vm520, %v897, 0
      %1002 = vmatprep.subr.mxu0 0.0
      %1003 = vmatpush1.msra.mxu0 0.0
      %1004 = vmatprep.subr.mxu0 0.0
      %1005 = vmatpush1.msra.mxu0 0.0
      %1006 = vmatprep.subr.mxu0 0.0
      %1007 = vmatpush1.msra.mxu0 0.0
      %1008 = vmatprep.subr.mxu0 0.0
      %1009 = vmatpush1.msra.mxu0 0.0
      %1010 = vmatprep.subr.mxu0 0.0
      %1011 = vmatpush1.msra.mxu0 0.0
      %1012 = vmatprep.subr.mxu0 0.0
      %1013 = vmatpush1.msra.mxu0 0.0
      %1014 = vmatprep.subr.mxu0 0.0
      %1015 = vmatpush1.msra.mxu0 0.0
      %1016 = vmatprep.subr.mxu0 0.0
      %1017 = vmatpush1.msra.mxu0 0.0
      %1018 = vmatprep.subr.mxu0 %v913
      %1019 = vmatpush1.msra.mxu0 %v912
      %1020 = vmatprep.subr.mxu0 %v911
      %1021 = vmatpush1.msra.mxu0 %v910
      %1022 = vmatprep.subr.mxu0 %v909
      %1023 = vmatpush1.msra.mxu0 %v908
      %1024 = vmatprep.subr.mxu0 %v907
      %1025 = vmatpush1.msra.mxu0 %v906
      %1026 = vmatprep.subr.mxu0 %v905
      %1027 = vmatpush1.msra.mxu0 %v904
      %1028 = vmatprep.subr.mxu0 %v903
      %1029 = vmatpush1.msra.mxu0 %v902
      %1030 = vmatprep.subr.mxu0 %v901
      %1031 = vmatpush1.msra.mxu0 %v900
      %1032 = vmatprep.subr.mxu0 %v899
      %1033 = vmatpush1.msra.mxu0 %v898
      %1034 = vmatprep.subr.mxu0 0.0
      %1035 = vmatpush2.msra.mxu0 0.0
      %1036 = vmatprep.subr.mxu0 0.0
      %1037 = vmatpush2.msra.mxu0 0.0
      %1038 = vmatprep.subr.mxu0 0.0
      %1039 = vmatpush2.msra.mxu0 0.0
      %1040 = vmatprep.subr.mxu0 0.0
      %1041 = vmatpush2.msra.mxu0 0.0
      %1042 = vmatprep.subr.mxu0 0.0
      %1043 = vmatpush2.msra.mxu0 0.0
      %1044 = vmatprep.subr.mxu0 0.0
      %1045 = vmatpush2.msra.mxu0 0.0
      %1046 = vmatprep.subr.mxu0 0.0
      %1047 = vmatpush2.msra.mxu0 0.0
      %1048 = vmatprep.subr.mxu0 0.0
      %1049 = vmatpush2.msra.mxu0 0.0
      %1050 = vmatprep.subr.mxu0 0.0
      %1051 = vmatpush2.msra.mxu0 0.0
      %1052 = vmatprep.subr.mxu0 0.0
      %1053 = vmatpush2.msra.mxu0 0.0
      %1054 = vmatprep.subr.mxu0 0.0
      %1055 = vmatpush2.msra.mxu0 0.0
      %1056 = vmatprep.subr.mxu0 0.0
      %1057 = vmatpush2.msra.mxu0 0.0
      %1058 = vmatprep.subr.mxu0 0.0
      %1059 = vmatpush2.msra.mxu0 0.0
      %1060 = vmatprep.subr.mxu0 0.0
      %1061 = vmatpush2.msra.mxu0 0.0
      %1062 = vmatprep.subr.mxu0 0.0
      %1063 = vmatpush2.msra.mxu0 0.0
      %1064 = vmatprep.subr.mxu0 0.0
      %1065 = vmatpush2.msra.mxu0 0.0
      %1066 = vmatprep.mubr.f32.mxu0 0.0
      %1067 = vmatmul.mubr.f32.gmra.mxu0 %v928
      %v1068 = vpop.f32.mrf.mxu0
      %v1069 = vadd.f32 %v920, %v1068
      %v1070 = vpop.f32.mrf.mxu0
      %v1071 = vadd.f32 %v924, %v1070
      %1072 = vmatprep.mubr.f32.mxu0 0.0
      %1073 = vmatmul.mubr.f32.gmra.mxu0 %v931
      %v1074 = vpop.f32.mrf.mxu0
      %v1075 = vadd.f32 %v920, %v1074
      %v1076 = vpop.f32.mrf.mxu0
      %v1077 = vadd.f32 %v924, %v1076
      %1078 = vmatprep.mubr.f32.mxu0 0.0
      %1079 = vmatmul.mubr.f32.gmra.mxu0 %v934
      %v1080 = vpop.f32.mrf.mxu0
      %v1081 = vadd.f32 %v920, %v1080
      %v1082 = vpop.f32.mrf.mxu0
      %v1083 = vadd.f32 %v924, %v1082
      %1084 = vmatprep.mubr.f32.mxu0 0.0
      %1085 = vmatmul.mubr.f32.gmra.mxu0 %v937
      %v1086 = vpop.f32.mrf.mxu0
      %v1087 = vadd.f32 %v920, %v1086
      %v1088 = vpop.f32.mrf.mxu0
      %v1089 = vadd.f32 %v924, %v1088
      %1090 = vmatprep.mubr.f32.mxu0 0.0
      %1091 = vmatmul.mubr.f32.gmra.mxu0 %v940
      %v1092 = vpop.f32.mrf.mxu0
      %v1093 = vadd.f32 %v920, %v1092
      %v1094 = vpop.f32.mrf.mxu0
      %v1095 = vadd.f32 %v924, %v1094
      %1096 = vmatprep.mubr.f32.mxu0 0.0
      %1097 = vmatmul.mubr.f32.gmra.mxu0 %v943
      %v1098 = vpop.f32.mrf.mxu0
      %v1099 = vadd.f32 %v920, %v1098
      %v1100 = vpop.f32.mrf.mxu0
      %v1101 = vadd.f32 %v924, %v1100
      %1102 = vmatprep.mubr.f32.mxu0 0.0
      %1103 = vmatmul.mubr.f32.gmra.mxu0 %v946
      %v1104 = vpop.f32.mrf.mxu0
      %v1105 = vadd.f32 %v920, %v1104
      %v1106 = vpop.f32.mrf.mxu0
      %v1107 = vadd.f32 %v924, %v1106
      %1108 = vmatprep.mubr.f32.mxu0 0.0
      %1109 = vmatmul.mubr.f32.gmra.mxu0 %v949
      %v1110 = vpop.f32.mrf.mxu0
      %v1111 = vadd.f32 %v920, %v1110
      %v1112 = vpop.f32.mrf.mxu0
      %v1113 = vadd.f32 %v924, %v1112
      %1114 = vmatprep.mubr.f32.mxu0 0.0
      %1115 = vmatmul.mubr.f32.gmra.mxu0 %v952
      %v1116 = vpop.f32.mrf.mxu0
      %v1117 = vadd.f32 %v920, %v1116
      %v1118 = vpop.f32.mrf.mxu0
      %v1119 = vadd.f32 %v924, %v1118
      %1120 = vmatprep.mubr.f32.mxu0 0.0
      %1121 = vmatmul.mubr.f32.gmra.mxu0 %v955
      %v1122 = vpop.f32.mrf.mxu0
      %v1123 = vadd.f32 %v920, %v1122
      %v1124 = vpop.f32.mrf.mxu0
      %v1125 = vadd.f32 %v924, %v1124
      %1126 = vmatprep.mubr.f32.mxu0 0.0
      %1127 = vmatmul.mubr.f32.gmra.mxu0 %v958
      %v1128 = vpop.f32.mrf.mxu0
      %v1129 = vadd.f32 %v920, %v1128
      %v1130 = vpop.f32.mrf.mxu0
      %v1131 = vadd.f32 %v924, %v1130
      %1132 = vmatprep.mubr.f32.mxu0 0.0
      %1133 = vmatmul.mubr.f32.gmra.mxu0 %v961
      %v1134 = vpop.f32.mrf.mxu0
      %v1135 = vadd.f32 %v920, %v1134
      %v1136 = vpop.f32.mrf.mxu0
      %v1137 = vadd.f32 %v924, %v1136
      %1138 = vmatprep.mubr.f32.mxu0 0.0
      %1139 = vmatmul.mubr.f32.gmra.mxu0 %v964
      %v1140 = vpop.f32.mrf.mxu0
      %v1141 = vadd.f32 %v920, %v1140
      %v1142 = vpop.f32.mrf.mxu0
      %v1143 = vadd.f32 %v924, %v1142
      %1144 = vmatprep.mubr.f32.mxu0 0.0
      %1145 = vmatmul.mubr.f32.gmra.mxu0 %v967
      %v1146 = vpop.f32.mrf.mxu0
      %v1147 = vadd.f32 %v920, %v1146
      %v1148 = vpop.f32.mrf.mxu0
      %v1149 = vadd.f32 %v924, %v1148
      %1150 = vmatprep.mubr.f32.mxu0 0.0
      %1151 = vmatmul.mubr.f32.gmra.mxu0 %v970
      %v1152 = vpop.f32.mrf.mxu0
      %v1153 = vadd.f32 %v920, %v1152
      %v1154 = vpop.f32.mrf.mxu0
      %v1155 = vadd.f32 %v924, %v1154
      %1156 = vmatprep.mubr.f32.mxu0 0.0
      %1157 = vmatmul.mubr.f32.gmra.mxu0 %v973
      %v1158 = vpop.f32.mrf.mxu0
      %v1159 = vadd.f32 %v920, %v1158
      %v1160 = vpop.f32.mrf.mxu0
      %v1161 = vadd.f32 %v924, %v1160
      %1162 = vmatprep.mubr.f32.mxu0 0.0
      %1163 = vmatmul.mubr.f32.gmra.mxu0 %v976
      %v1164 = vpop.f32.mrf.mxu0
      %v1165 = vadd.f32 %v920, %v1164
      %v1166 = vpop.f32.mrf.mxu0
      %v1167 = vadd.f32 %v924, %v1166
      %1168 = vmatprep.mubr.f32.mxu0 0.0
      %1169 = vmatmul.mubr.f32.gmra.mxu0 %v979
      %v1170 = vpop.f32.mrf.mxu0
      %v1171 = vadd.f32 %v920, %v1170
      %v1172 = vpop.f32.mrf.mxu0
      %v1173 = vadd.f32 %v924, %v1172
      %1174 = vmatprep.mubr.f32.mxu0 0.0
      %1175 = vmatmul.mubr.f32.gmra.mxu0 %v982
      %v1176 = vpop.f32.mrf.mxu0
      %v1177 = vadd.f32 %v920, %v1176
      %v1178 = vpop.f32.mrf.mxu0
      %v1179 = vadd.f32 %v924, %v1178
      %1180 = vmatprep.mubr.f32.mxu0 0.0
      %1181 = vmatmul.mubr.f32.gmra.mxu0 %v985
      %v1182 = vpop.f32.mrf.mxu0
      %v1183 = vadd.f32 %v920, %v1182
      %v1184 = vpop.f32.mrf.mxu0
      %v1185 = vadd.f32 %v924, %v1184
      %1186 = vmatprep.mubr.f32.mxu0 0.0
      %1187 = vmatmul.mubr.f32.gmra.mxu0 %v988
      %v1188 = vpop.f32.mrf.mxu0
      %v1189 = vadd.f32 %v920, %v1188
      %v1190 = vpop.f32.mrf.mxu0
      %v1191 = vadd.f32 %v924, %v1190
      %1192 = vmatprep.mubr.f32.mxu0 0.0
      %1193 = vmatmul.mubr.f32.gmra.mxu0 %v991
      %v1194 = vpop.f32.mrf.mxu0
      %v1195 = vadd.f32 %v920, %v1194
      %v1196 = vpop.f32.mrf.mxu0
      %v1197 = vadd.f32 %v924, %v1196
      %1198 = vmatprep.mubr.f32.mxu0 0.0
      %1199 = vmatmul.mubr.f32.gmra.mxu0 %v994
      %v1200 = vpop.f32.mrf.mxu0
      %v1201 = vadd.f32 %v920, %v1200
      %v1202 = vpop.f32.mrf.mxu0
      %v1203 = vadd.f32 %v924, %v1202
      %1204 = vmatprep.mubr.f32.mxu0 0.0
      %1205 = vmatmul.mubr.f32.gmra.mxu0 %v997
      %v1206 = vpop.f32.mrf.mxu0
      %v1207 = vadd.f32 %v920, %v1206
      %v1208 = vpop.f32.mrf.mxu0
      %v1209 = vadd.f32 %v924, %v1208
      %1210 = vmatprep.mubr.f32.mxu0 0.0
      %1211 = vmatmul.mubr.f32.gmra.mxu0 %v1000
      %v1212 = vpop.f32.mrf.mxu0
      %v1213 = vadd.f32 %v920, %v1212
      %v1214 = vpop.f32.mrf.mxu0
      %v1215 = vadd.f32 %v924, %v1214
      %1216 = vdwg.mxu0
      %1242 = vrot.lane.b32.xlu0 %v1069, 64
      %v1243 = vpop.permute.xlu0 %1242
      %1244 = vrot.lane.b32.xlu0 %v1075, 64
      %v1245 = vpop.permute.xlu0 %1244
      %1246 = vrot.lane.b32.xlu0 %v1081, 64
      %v1247 = vpop.permute.xlu0 %1246
      %1248 = vrot.lane.b32.xlu0 %v1087, 64
      %v1249 = vpop.permute.xlu0 %1248
      %1250 = vrot.lane.b32.xlu0 %v1093, 64
      %v1251 = vpop.permute.xlu0 %1250
      %1252 = vrot.lane.b32.xlu0 %v1099, 64
      %v1253 = vpop.permute.xlu0 %1252
      %1254 = vrot.lane.b32.xlu0 %v1105, 64
      %v1255 = vpop.permute.xlu0 %1254
      %1256 = vrot.lane.b32.xlu0 %v1111, 64
      %v1257 = vpop.permute.xlu0 %1256
      %1258 = vrot.lane.b32.xlu0 %v1117, 64
      %v1259 = vpop.permute.xlu0 %1258
      %1260 = vrot.lane.b32.xlu0 %v1123, 64
      %v1261 = vpop.permute.xlu0 %1260
      %1262 = vrot.lane.b32.xlu0 %v1129, 64
      %v1263 = vpop.permute.xlu0 %1262
      %1264 = vrot.lane.b32.xlu0 %v1135, 64
      %v1265 = vpop.permute.xlu0 %1264
      %1266 = vrot.lane.b32.xlu0 %v1141, 64
      %v1267 = vpop.permute.xlu0 %1266
      %1268 = vrot.lane.b32.xlu0 %v1147, 64
      %v1269 = vpop.permute.xlu0 %1268
      %1270 = vrot.lane.b32.xlu0 %v1153, 64
      %v1271 = vpop.permute.xlu0 %1270
      %1272 = vrot.lane.b32.xlu0 %v1159, 64
      %v1273 = vpop.permute.xlu0 %1272
      %1274 = vrot.lane.b32.xlu0 %v1165, 64
      %v1275 = vpop.permute.xlu0 %1274
      %1276 = vrot.lane.b32.xlu0 %v1171, 64
      %v1277 = vpop.permute.xlu0 %1276
      %1278 = vrot.lane.b32.xlu0 %v1177, 64
      %v1279 = vpop.permute.xlu0 %1278
      %1280 = vrot.lane.b32.xlu0 %v1183, 64
      %v1281 = vpop.permute.xlu0 %1280
      %1282 = vrot.lane.b32.xlu0 %v1189, 64
      %v1283 = vpop.permute.xlu0 %1282
      %1284 = vrot.lane.b32.xlu0 %v1195, 64
      %v1285 = vpop.permute.xlu0 %1284
      %1286 = vrot.lane.b32.xlu0 %v1201, 64
      %v1287 = vpop.permute.xlu0 %1286
      %1288 = vrot.lane.b32.xlu0 %v1207, 64
      %v1289 = vpop.permute.xlu0 %1288
      %1290 = vrot.lane.b32.xlu0 %v1213, 64
      %v1291 = vpop.permute.xlu0 %1290
      %vm1292 = vcmask 261120
      %v1293 = vsel %vm1292, %v1069, 0
      %v1295 = vsel %vm1292, %v1075, 0
      %v1297 = vsel %vm1292, %v1081, 0
      %v1299 = vsel %vm1292, %v1087, 0
      %v1301 = vsel %vm1292, %v1093, 0
      %v1303 = vsel %vm1292, %v1099, 0
      %v1305 = vsel %vm1292, %v1105, 0
      %v1307 = vsel %vm1292, %v1111, 0
      %v1309 = vsel %vm1292, %v1117, 0
      %v1311 = vsel %vm1292, %v1123, 0
      %v1313 = vsel %vm1292, %v1129, 0
      %v1315 = vsel %vm1292, %v1135, 0
      %v1317 = vsel %vm1292, %v1141, 0
      %v1319 = vsel %vm1292, %v1147, 0
      %v1321 = vsel %vm1292, %v1153, 0
      %v1323 = vsel %vm1292, %v1159, 0
      %v1325 = vsel %vm1292, %v1165, 0
      %v1327 = vsel %vm1292, %v1171, 0
      %v1329 = vsel %vm1292, %v1177, 0
      %v1331 = vsel %vm1292, %v1183, 0
      %v1333 = vsel %vm1292, %v1189, 0
      %v1335 = vsel %vm1292, %v1195, 0
      %v1337 = vsel %vm1292, %v1201, 0
      %v1339 = vsel %vm1292, %v1207, 0
      %v1341 = vsel %vm1292, %v1213, 0
      %v1343 = vsel %vm1292, %v1243, 0
      %v1345 = vsel %vm1292, %v1245, 0
      %v1347 = vsel %vm1292, %v1247, 0
      %v1349 = vsel %vm1292, %v1249, 0
      %v1351 = vsel %vm1292, %v1251, 0
      %v1353 = vsel %vm1292, %v1253, 0
      %v1355 = vsel %vm1292, %v1255, 0
      %v1357 = vsel %vm1292, %v1257, 0
      %v1359 = vsel %vm1292, %v1259, 0
      %v1361 = vsel %vm1292, %v1261, 0
      %v1363 = vsel %vm1292, %v1263, 0
      %v1365 = vsel %vm1292, %v1265, 0
      %v1367 = vsel %vm1292, %v1267, 0
      %v1369 = vsel %vm1292, %v1269, 0
      %v1371 = vsel %vm1292, %v1271, 0
      %v1373 = vsel %vm1292, %v1273, 0
      %v1375 = vsel %vm1292, %v1275, 0
      %v1377 = vsel %vm1292, %v1277, 0
      %v1379 = vsel %vm1292, %v1279, 0
      %v1381 = vsel %vm1292, %v1281, 0
      %v1383 = vsel %vm1292, %v1283, 0
      %v1385 = vsel %vm1292, %v1285, 0
      %v1387 = vsel %vm1292, %v1287, 0
      %v1389 = vsel %vm1292, %v1289, 0
      %v1391 = vsel %vm1292, %v1291, 0
      %1393 = vmatprep.subr.mxu0 0.0
      %1394 = vmatpush1.xpose.msra.mxu0 %v1373
      %1395 = vmatprep.subr.mxu0 0.0
      %1396 = vmatpush1.xpose.msra.mxu0 %v1371
      %1397 = vmatprep.subr.mxu0 0.0
      %1398 = vmatpush1.xpose.msra.mxu0 %v1369
      %1399 = vmatprep.subr.mxu0 0.0
      %1400 = vmatpush1.xpose.msra.mxu0 %v1367
      %1401 = vmatprep.subr.mxu0 0.0
      %1402 = vmatpush1.xpose.msra.mxu0 %v1365
      %1403 = vmatprep.subr.mxu0 0.0
      %1404 = vmatpush1.xpose.msra.mxu0 %v1363
      %1405 = vmatprep.subr.mxu0 0.0
      %1406 = vmatpush1.xpose.msra.mxu0 %v1361
      %1407 = vmatprep.subr.mxu0 0.0
      %1408 = vmatpush1.xpose.msra.mxu0 %v1359
      %1409 = vmatprep.subr.mxu0 0.0
      %1410 = vmatpush1.xpose.msra.mxu0 %v1357
      %1411 = vmatprep.subr.mxu0 0.0
      %1412 = vmatpush1.xpose.msra.mxu0 %v1355
      %1413 = vmatprep.subr.mxu0 0.0
      %1414 = vmatpush1.xpose.msra.mxu0 %v1353
      %1415 = vmatprep.subr.mxu0 0.0
      %1416 = vmatpush1.xpose.msra.mxu0 %v1351
      %1417 = vmatprep.subr.mxu0 0.0
      %1418 = vmatpush1.xpose.msra.mxu0 %v1349
      %1419 = vmatprep.subr.mxu0 0.0
      %1420 = vmatpush1.xpose.msra.mxu0 %v1347
      %1421 = vmatprep.subr.mxu0 0.0
      %1422 = vmatpush1.xpose.msra.mxu0 %v1345
      %1423 = vmatprep.subr.mxu0 0.0
      %1424 = vmatpush1.xpose.msra.mxu0 %v1343
      %1425 = vmatprep.subr.mxu0 0.0
      %1426 = vmatpush2.xpose.msra.mxu0 0.0
      %1427 = vmatprep.subr.mxu0 0.0
      %1428 = vmatpush2.xpose.msra.mxu0 0.0
      %1429 = vmatprep.subr.mxu0 0.0
      %1430 = vmatpush2.xpose.msra.mxu0 0.0
      %1431 = vmatprep.subr.mxu0 0.0
      %1432 = vmatpush2.xpose.msra.mxu0 0.0
      %1433 = vmatprep.subr.mxu0 0.0
      %1434 = vmatpush2.xpose.msra.mxu0 0.0
      %1435 = vmatprep.subr.mxu0 0.0
      %1436 = vmatpush2.xpose.msra.mxu0 0.0
      %1437 = vmatprep.subr.mxu0 0.0
      %1438 = vmatpush2.xpose.msra.mxu0 0.0
      %1439 = vmatprep.subr.mxu0 0.0
      %1440 = vmatpush2.xpose.msra.mxu0 %v1391
      %1441 = vmatprep.subr.mxu0 0.0
      %1442 = vmatpush2.xpose.msra.mxu0 %v1389
      %1443 = vmatprep.subr.mxu0 0.0
      %1444 = vmatpush2.xpose.msra.mxu0 %v1387
      %1445 = vmatprep.subr.mxu0 0.0
      %1446 = vmatpush2.xpose.msra.mxu0 %v1385
      %1447 = vmatprep.subr.mxu0 0.0
      %1448 = vmatpush2.xpose.msra.mxu0 %v1383
      %1449 = vmatprep.subr.mxu0 0.0
      %1450 = vmatpush2.xpose.msra.mxu0 %v1381
      %1451 = vmatprep.subr.mxu0 0.0
      %1452 = vmatpush2.xpose.msra.mxu0 %v1379
      %1453 = vmatprep.subr.mxu0 0.0
      %1454 = vmatpush2.xpose.msra.mxu0 %v1377
      %1455 = vmatprep.subr.mxu0 0.0
      %1456 = vmatpush2.xpose.msra.mxu0 %v1375
      %1457 = vmatprep.mubr.f32.mxu0 0.0
      %1458 = vmatmul.mubr.f32.gmra.mxu0 %v1293
      %v1459 = vpop.f32.mrf.mxu0
      %v1460 = vadd.f32 0.0, %v1459
      %v1461 = vpop.f32.mrf.mxu0
      %v1462 = vadd.f32 0.0, %v1461
      %1463 = vmatprep.mubr.f32.mxu0 0.0
      %1464 = vmatmul.mubr.f32.gmra.mxu0 %v1295
      %v1465 = vpop.f32.mrf.mxu0
      %v1466 = vadd.f32 0.0, %v1465
      %v1467 = vpop.f32.mrf.mxu0
      %v1468 = vadd.f32 0.0, %v1467
      %1469 = vmatprep.mubr.f32.mxu0 0.0
      %1470 = vmatmul.mubr.f32.gmra.mxu0 %v1297
      %v1471 = vpop.f32.mrf.mxu0
      %v1472 = vadd.f32 0.0, %v1471
      %v1473 = vpop.f32.mrf.mxu0
      %v1474 = vadd.f32 0.0, %v1473
      %1475 = vmatprep.mubr.f32.mxu0 0.0
      %1476 = vmatmul.mubr.f32.gmra.mxu0 %v1299
      %v1477 = vpop.f32.mrf.mxu0
      %v1478 = vadd.f32 0.0, %v1477
      %v1479 = vpop.f32.mrf.mxu0
      %v1480 = vadd.f32 0.0, %v1479
      %1481 = vmatprep.mubr.f32.mxu0 0.0
      %1482 = vmatmul.mubr.f32.gmra.mxu0 %v1301
      %v1483 = vpop.f32.mrf.mxu0
      %v1484 = vadd.f32 0.0, %v1483
      %v1485 = vpop.f32.mrf.mxu0
      %v1486 = vadd.f32 0.0, %v1485
      %1487 = vmatprep.mubr.f32.mxu0 0.0
      %1488 = vmatmul.mubr.f32.gmra.mxu0 %v1303
      %v1489 = vpop.f32.mrf.mxu0
      %v1490 = vadd.f32 0.0, %v1489
      %v1491 = vpop.f32.mrf.mxu0
      %v1492 = vadd.f32 0.0, %v1491
      %1493 = vmatprep.mubr.f32.mxu0 0.0
      %1494 = vmatmul.mubr.f32.gmra.mxu0 %v1305
      %v1495 = vpop.f32.mrf.mxu0
      %v1496 = vadd.f32 0.0, %v1495
      %v1497 = vpop.f32.mrf.mxu0
      %v1498 = vadd.f32 0.0, %v1497
      %1499 = vmatprep.mubr.f32.mxu0 0.0
      %1500 = vmatmul.mubr.f32.gmra.mxu0 %v1307
      %v1501 = vpop.f32.mrf.mxu0
      %v1502 = vadd.f32 0.0, %v1501
      %v1503 = vpop.f32.mrf.mxu0
      %v1504 = vadd.f32 0.0, %v1503
      %1505 = vmatprep.mubr.f32.mxu0 0.0
      %1506 = vmatmul.mubr.f32.gmra.mxu0 %v1309
      %v1507 = vpop.f32.mrf.mxu0
      %v1508 = vadd.f32 0.0, %v1507
      %v1509 = vpop.f32.mrf.mxu0
      %v1510 = vadd.f32 0.0, %v1509
      %1511 = vmatprep.mubr.f32.mxu0 0.0
      %1512 = vmatmul.mubr.f32.gmra.mxu0 %v1311
      %v1513 = vpop.f32.mrf.mxu0
      %v1514 = vadd.f32 0.0, %v1513
      %v1515 = vpop.f32.mrf.mxu0
      %v1516 = vadd.f32 0.0, %v1515
      %1517 = vmatprep.mubr.f32.mxu0 0.0
      %1518 = vmatmul.mubr.f32.gmra.mxu0 %v1313
      %v1519 = vpop.f32.mrf.mxu0
      %v1520 = vadd.f32 0.0, %v1519
      %v1521 = vpop.f32.mrf.mxu0
      %v1522 = vadd.f32 0.0, %v1521
      %1523 = vmatprep.mubr.f32.mxu0 0.0
      %1524 = vmatmul.mubr.f32.gmra.mxu0 %v1315
      %v1525 = vpop.f32.mrf.mxu0
      %v1526 = vadd.f32 0.0, %v1525
      %v1527 = vpop.f32.mrf.mxu0
      %v1528 = vadd.f32 0.0, %v1527
      %1529 = vmatprep.mubr.f32.mxu0 0.0
      %1530 = vmatmul.mubr.f32.gmra.mxu0 %v1317
      %v1531 = vpop.f32.mrf.mxu0
      %v1532 = vadd.f32 0.0, %v1531
      %v1533 = vpop.f32.mrf.mxu0
      %v1534 = vadd.f32 0.0, %v1533
      %1535 = vmatprep.mubr.f32.mxu0 0.0
      %1536 = vmatmul.mubr.f32.gmra.mxu0 %v1319
      %v1537 = vpop.f32.mrf.mxu0
      %v1538 = vadd.f32 0.0, %v1537
      %v1539 = vpop.f32.mrf.mxu0
      %v1540 = vadd.f32 0.0, %v1539
      %1541 = vmatprep.mubr.f32.mxu0 0.0
      %1542 = vmatmul.mubr.f32.gmra.mxu0 %v1321
      %v1543 = vpop.f32.mrf.mxu0
      %v1544 = vadd.f32 0.0, %v1543
      %v1545 = vpop.f32.mrf.mxu0
      %v1546 = vadd.f32 0.0, %v1545
      %1547 = vmatprep.mubr.f32.mxu0 0.0
      %1548 = vmatmul.mubr.f32.gmra.mxu0 %v1323
      %v1549 = vpop.f32.mrf.mxu0
      %v1550 = vadd.f32 0.0, %v1549
      %v1551 = vpop.f32.mrf.mxu0
      %v1552 = vadd.f32 0.0, %v1551
      %1553 = vmatprep.mubr.f32.mxu0 0.0
      %1554 = vmatmul.mubr.f32.gmra.mxu0 %v1325
      %v1555 = vpop.f32.mrf.mxu0
      %v1556 = vadd.f32 0.0, %v1555
      %v1557 = vpop.f32.mrf.mxu0
      %v1558 = vadd.f32 0.0, %v1557
      %1559 = vmatprep.mubr.f32.mxu0 0.0
      %1560 = vmatmul.mubr.f32.gmra.mxu0 %v1327
      %v1561 = vpop.f32.mrf.mxu0
      %v1562 = vadd.f32 0.0, %v1561
      %v1563 = vpop.f32.mrf.mxu0
      %v1564 = vadd.f32 0.0, %v1563
      %1565 = vmatprep.mubr.f32.mxu0 0.0
      %1566 = vmatmul.mubr.f32.gmra.mxu0 %v1329
      %v1567 = vpop.f32.mrf.mxu0
      %v1568 = vadd.f32 0.0, %v1567
      %v1569 = vpop.f32.mrf.mxu0
      %v1570 = vadd.f32 0.0, %v1569
      %1571 = vmatprep.mubr.f32.mxu0 0.0
      %1572 = vmatmul.mubr.f32.gmra.mxu0 %v1331
      %v1573 = vpop.f32.mrf.mxu0
      %v1574 = vadd.f32 0.0, %v1573
      %v1575 = vpop.f32.mrf.mxu0
      %v1576 = vadd.f32 0.0, %v1575
      %1577 = vmatprep.mubr.f32.mxu0 0.0
      %1578 = vmatmul.mubr.f32.gmra.mxu0 %v1333
      %v1579 = vpop.f32.mrf.mxu0
      %v1580 = vadd.f32 0.0, %v1579
      %v1581 = vpop.f32.mrf.mxu0
      %v1582 = vadd.f32 0.0, %v1581
      %1583 = vmatprep.mubr.f32.mxu0 0.0
      %1584 = vmatmul.mubr.f32.gmra.mxu0 %v1335
      %v1585 = vpop.f32.mrf.mxu0
      %v1586 = vadd.f32 0.0, %v1585
      %v1587 = vpop.f32.mrf.mxu0
      %v1588 = vadd.f32 0.0, %v1587
      %1589 = vmatprep.mubr.f32.mxu0 0.0
      %1590 = vmatmul.mubr.f32.gmra.mxu0 %v1337
      %v1591 = vpop.f32.mrf.mxu0
      %v1592 = vadd.f32 0.0, %v1591
      %v1593 = vpop.f32.mrf.mxu0
      %v1594 = vadd.f32 0.0, %v1593
      %1595 = vmatprep.mubr.f32.mxu0 0.0
      %1596 = vmatmul.mubr.f32.gmra.mxu0 %v1339
      %v1597 = vpop.f32.mrf.mxu0
      %v1598 = vadd.f32 0.0, %v1597
      %v1599 = vpop.f32.mrf.mxu0
      %v1600 = vadd.f32 0.0, %v1599
      %1601 = vmatprep.mubr.f32.mxu0 0.0
      %1602 = vmatmul.mubr.f32.gmra.mxu0 %v1341
      %v1603 = vpop.f32.mrf.mxu0
      %v1604 = vadd.f32 0.0, %v1603
      %v1605 = vpop.f32.mrf.mxu0
      %v1606 = vadd.f32 0.0, %v1605
      %1607 = vdwg.mxu0
      %v1608 = vmul.f32 %v1460, 0.17677669
      %v1609 = vmul.f32 %v1462, 0.17677669
      %v1610 = vmul.f32 %v1466, 0.17677669
      %v1611 = vmul.f32 %v1468, 0.17677669
      %v1612 = vmul.f32 %v1472, 0.17677669
      %v1613 = vmul.f32 %v1474, 0.17677669
      %v1614 = vmul.f32 %v1478, 0.17677669
      %v1615 = vmul.f32 %v1480, 0.17677669
      %v1616 = vmul.f32 %v1484, 0.17677669
      %v1617 = vmul.f32 %v1486, 0.17677669
      %v1618 = vmul.f32 %v1490, 0.17677669
      %v1619 = vmul.f32 %v1492, 0.17677669
      %v1620 = vmul.f32 %v1496, 0.17677669
      %v1621 = vmul.f32 %v1498, 0.17677669
      %v1622 = vmul.f32 %v1502, 0.17677669
      %v1623 = vmul.f32 %v1504, 0.17677669
      %v1624 = vmul.f32 %v1508, 0.17677669
      %v1625 = vmul.f32 %v1510, 0.17677669
      %v1626 = vmul.f32 %v1514, 0.17677669
      %v1627 = vmul.f32 %v1516, 0.17677669
      %v1628 = vmul.f32 %v1520, 0.17677669
      %v1629 = vmul.f32 %v1522, 0.17677669
      %v1630 = vmul.f32 %v1526, 0.17677669
      %v1631 = vmul.f32 %v1528, 0.17677669
      %v1632 = vmul.f32 %v1532, 0.17677669
      %v1633 = vmul.f32 %v1534, 0.17677669
      %v1634 = vmul.f32 %v1538, 0.17677669
      %v1635 = vmul.f32 %v1540, 0.17677669
      %v1636 = vmul.f32 %v1544, 0.17677669
      %v1637 = vmul.f32 %v1546, 0.17677669
      %v1638 = vmul.f32 %v1550, 0.17677669
      %v1639 = vmul.f32 %v1552, 0.17677669
      %v1640 = vmul.f32 %v1556, 0.17677669
      %v1641 = vmul.f32 %v1558, 0.17677669
      %v1642 = vmul.f32 %v1562, 0.17677669
      %v1643 = vmul.f32 %v1564, 0.17677669
      %v1644 = vmul.f32 %v1568, 0.17677669
      %v1645 = vmul.f32 %v1570, 0.17677669
      %v1646 = vmul.f32 %v1574, 0.17677669
      %v1647 = vmul.f32 %v1576, 0.17677669
      %v1648 = vmul.f32 %v1580, 0.17677669
      %v1649 = vmul.f32 %v1582, 0.17677669
      %v1650 = vmul.f32 %v1586, 0.17677669
      %v1651 = vmul.f32 %v1588, 0.17677669
      %v1652 = vmul.f32 %v1592, 0.17677669
      %v1653 = vmul.f32 %v1594, 0.17677669
      %v1654 = vmul.f32 %v1598, 0.17677669
      %v1655 = vmul.f32 %v1600, 0.17677669
      %v1656 = vmul.f32 %v1604, 0.17677669
      %v1657 = vmul.f32 %v1606, 0.17677669
      %vm1658 = vcmask 564224
      %v1659 = vsel %vm1658, %v1609, -inf
      %v1660 = vmax.f32 %v1608, %v1659
      %1661 = vmax.xlane.f32.xlu0 %v1660
      %v1662 = vpop.xlane.xlu0 %1661
      %v1663 = vsel %vm1658, %v1611, -inf
      %v1664 = vmax.f32 %v1610, %v1663
      %1665 = vmax.xlane.f32.xlu0 %v1664
      %v1666 = vpop.xlane.xlu0 %1665
      %v1667 = vsel %vm1658, %v1613, -inf
      %v1668 = vmax.f32 %v1612, %v1667
      %1669 = vmax.xlane.f32.xlu0 %v1668
      %v1670 = vpop.xlane.xlu0 %1669
      %v1671 = vsel %vm1658, %v1615, -inf
      %v1672 = vmax.f32 %v1614, %v1671
      %1673 = vmax.xlane.f32.xlu0 %v1672
      %v1674 = vpop.xlane.xlu0 %1673
      %v1675 = vsel %vm1658, %v1617, -inf
      %v1676 = vmax.f32 %v1616, %v1675
      %1677 = vmax.xlane.f32.xlu0 %v1676
      %v1678 = vpop.xlane.xlu0 %1677
      %v1679 = vsel %vm1658, %v1619, -inf
      %v1680 = vmax.f32 %v1618, %v1679
      %1681 = vmax.xlane.f32.xlu0 %v1680
      %v1682 = vpop.xlane.xlu0 %1681
      %v1683 = vsel %vm1658, %v1621, -inf
      %v1684 = vmax.f32 %v1620, %v1683
      %1685 = vmax.xlane.f32.xlu0 %v1684
      %v1686 = vpop.xlane.xlu0 %1685
      %v1687 = vsel %vm1658, %v1623, -inf
      %v1688 = vmax.f32 %v1622, %v1687
      %1689 = vmax.xlane.f32.xlu0 %v1688
      %v1690 = vpop.xlane.xlu0 %1689
      %v1691 = vsel %vm1658, %v1625, -inf
      %v1692 = vmax.f32 %v1624, %v1691
      %1693 = vmax.xlane.f32.xlu0 %v1692
      %v1694 = vpop.xlane.xlu0 %1693
      %v1695 = vsel %vm1658, %v1627, -inf
      %v1696 = vmax.f32 %v1626, %v1695
      %1697 = vmax.xlane.f32.xlu0 %v1696
      %v1698 = vpop.xlane.xlu0 %1697
      %v1699 = vsel %vm1658, %v1629, -inf
      %v1700 = vmax.f32 %v1628, %v1699
      %1701 = vmax.xlane.f32.xlu0 %v1700
      %v1702 = vpop.xlane.xlu0 %1701
      %v1703 = vsel %vm1658, %v1631, -inf
      %v1704 = vmax.f32 %v1630, %v1703
      %1705 = vmax.xlane.f32.xlu0 %v1704
      %v1706 = vpop.xlane.xlu0 %1705
      %v1707 = vsel %vm1658, %v1633, -inf
      %v1708 = vmax.f32 %v1632, %v1707
      %1709 = vmax.xlane.f32.xlu0 %v1708
      %v1710 = vpop.xlane.xlu0 %1709
      %v1711 = vsel %vm1658, %v1635, -inf
      %v1712 = vmax.f32 %v1634, %v1711
      %1713 = vmax.xlane.f32.xlu0 %v1712
      %v1714 = vpop.xlane.xlu0 %1713
      %v1715 = vsel %vm1658, %v1637, -inf
      %v1716 = vmax.f32 %v1636, %v1715
      %1717 = vmax.xlane.f32.xlu0 %v1716
      %v1718 = vpop.xlane.xlu0 %1717
      %v1719 = vsel %vm1658, %v1639, -inf
      %v1720 = vmax.f32 %v1638, %v1719
      %1721 = vmax.xlane.f32.xlu0 %v1720
      %v1722 = vpop.xlane.xlu0 %1721
      %v1723 = vsel %vm1658, %v1641, -inf
      %v1724 = vmax.f32 %v1640, %v1723
      %1725 = vmax.xlane.f32.xlu0 %v1724
      %v1726 = vpop.xlane.xlu0 %1725
      %v1727 = vsel %vm1658, %v1643, -inf
      %v1728 = vmax.f32 %v1642, %v1727
      %1729 = vmax.xlane.f32.xlu0 %v1728
      %v1730 = vpop.xlane.xlu0 %1729
      %v1731 = vsel %vm1658, %v1645, -inf
      %v1732 = vmax.f32 %v1644, %v1731
      %1733 = vmax.xlane.f32.xlu0 %v1732
      %v1734 = vpop.xlane.xlu0 %1733
      %v1735 = vsel %vm1658, %v1647, -inf
      %v1736 = vmax.f32 %v1646, %v1735
      %1737 = vmax.xlane.f32.xlu0 %v1736
      %v1738 = vpop.xlane.xlu0 %1737
      %v1739 = vsel %vm1658, %v1649, -inf
      %v1740 = vmax.f32 %v1648, %v1739
      %1741 = vmax.xlane.f32.xlu0 %v1740
      %v1742 = vpop.xlane.xlu0 %1741
      %v1743 = vsel %vm1658, %v1651, -inf
      %v1744 = vmax.f32 %v1650, %v1743
      %1745 = vmax.xlane.f32.xlu0 %v1744
      %v1746 = vpop.xlane.xlu0 %1745
      %v1747 = vsel %vm1658, %v1653, -inf
      %v1748 = vmax.f32 %v1652, %v1747
      %1749 = vmax.xlane.f32.xlu0 %v1748
      %v1750 = vpop.xlane.xlu0 %1749
      %v1751 = vsel %vm1658, %v1655, -inf
      %v1752 = vmax.f32 %v1654, %v1751
      %1753 = vmax.xlane.f32.xlu0 %v1752
      %v1754 = vpop.xlane.xlu0 %1753
      %vm1755 = vcmask 1044480
      %v1756 = vsel %vm1755, %v1656, -inf
      %vm1757 = vcmask 561152
      %v1758 = vsel %vm1757, %v1657, -inf
      %v1759 = vmax.f32 %v1756, %v1758
      %1760 = vmax.xlane.f32.xlu0 %v1759
      %v1761 = vpop.xlane.xlu0 %1760
      %v1762 = vsub.f32 %v1608, %v1662
      %v1763 = vsub.f32 %v1609, %v1662
      %v1764 = vsub.f32 %v1610, %v1666
      %v1765 = vsub.f32 %v1611, %v1666
      %v1766 = vsub.f32 %v1612, %v1670
      %v1767 = vsub.f32 %v1613, %v1670
      %v1768 = vsub.f32 %v1614, %v1674
      %v1769 = vsub.f32 %v1615, %v1674
      %v1770 = vsub.f32 %v1616, %v1678
      %v1771 = vsub.f32 %v1617, %v1678
      %v1772 = vsub.f32 %v1618, %v1682
      %v1773 = vsub.f32 %v1619, %v1682
      %v1774 = vsub.f32 %v1620, %v1686
      %v1775 = vsub.f32 %v1621, %v1686
      %v1776 = vsub.f32 %v1622, %v1690
      %v1777 = vsub.f32 %v1623, %v1690
      %v1778 = vsub.f32 %v1624, %v1694
      %v1779 = vsub.f32 %v1625, %v1694
      %v1780 = vsub.f32 %v1626, %v1698
      %v1781 = vsub.f32 %v1627, %v1698
      %v1782 = vsub.f32 %v1628, %v1702
      %v1783 = vsub.f32 %v1629, %v1702
      %v1784 = vsub.f32 %v1630, %v1706
      %v1785 = vsub.f32 %v1631, %v1706
      %v1786 = vsub.f32 %v1632, %v1710
      %v1787 = vsub.f32 %v1633, %v1710
      %v1788 = vsub.f32 %v1634, %v1714
      %v1789 = vsub.f32 %v1635, %v1714
      %v1790 = vsub.f32 %v1636, %v1718
      %v1791 = vsub.f32 %v1637, %v1718
      %v1792 = vsub.f32 %v1638, %v1722
      %v1793 = vsub.f32 %v1639, %v1722
      %v1794 = vsub.f32 %v1640, %v1726
      %v1795 = vsub.f32 %v1641, %v1726
      %v1796 = vsub.f32 %v1642, %v1730
      %v1797 = vsub.f32 %v1643, %v1730
      %v1798 = vsub.f32 %v1644, %v1734
      %v1799 = vsub.f32 %v1645, %v1734
      %v1800 = vsub.f32 %v1646, %v1738
      %v1801 = vsub.f32 %v1647, %v1738
      %v1802 = vsub.f32 %v1648, %v1742
      %v1803 = vsub.f32 %v1649, %v1742
      %v1804 = vsub.f32 %v1650, %v1746
      %v1805 = vsub.f32 %v1651, %v1746
      %v1806 = vsub.f32 %v1652, %v1750
      %v1807 = vsub.f32 %v1653, %v1750
      %v1808 = vsub.f32 %v1654, %v1754
      %v1809 = vsub.f32 %v1655, %v1754
      %v1810 = vsub.f32 %v1656, %v1761
      %v1811 = vsub.f32 %v1657, %v1761
      %v1812 = vmul.f32 %v1762, 1.442695
      %v1813 = vpow.pop %v1812
      %v1814 = vmul.f32 %v1763, 1.442695
      %v1815 = vpow.pop %v1814
      %v1816 = vmul.f32 %v1764, 1.442695
      %v1817 = vpow.pop %v1816
      %v1818 = vmul.f32 %v1765, 1.442695
      %v1819 = vpow.pop %v1818
      %v1820 = vmul.f32 %v1766, 1.442695
      %v1821 = vpow.pop %v1820
      %v1822 = vmul.f32 %v1767, 1.442695
      %v1823 = vpow.pop %v1822
      %v1824 = vmul.f32 %v1768, 1.442695
      %v1825 = vpow.pop %v1824
      %v1826 = vmul.f32 %v1769, 1.442695
      %v1827 = vpow.pop %v1826
      %v1828 = vmul.f32 %v1770, 1.442695
      %v1829 = vpow.pop %v1828
      %v1830 = vmul.f32 %v1771, 1.442695
      %v1831 = vpow.pop %v1830
      %v1832 = vmul.f32 %v1772, 1.442695
      %v1833 = vpow.pop %v1832
      %v1834 = vmul.f32 %v1773, 1.442695
      %v1835 = vpow.pop %v1834
      %v1836 = vmul.f32 %v1774, 1.442695
      %v1837 = vpow.pop %v1836
      %v1838 = vmul.f32 %v1775, 1.442695
      %v1839 = vpow.pop %v1838
      %v1840 = vmul.f32 %v1776, 1.442695
      %v1841 = vpow.pop %v1840
      %v1842 = vmul.f32 %v1777, 1.442695
      %v1843 = vpow.pop %v1842
      %v1844 = vmul.f32 %v1778, 1.442695
      %v1845 = vpow.pop %v1844
      %v1846 = vmul.f32 %v1779, 1.442695
      %v1847 = vpow.pop %v1846
      %v1848 = vmul.f32 %v1780, 1.442695
      %v1849 = vpow.pop %v1848
      %v1850 = vmul.f32 %v1781, 1.442695
      %v1851 = vpow.pop %v1850
      %v1852 = vmul.f32 %v1782, 1.442695
      %v1853 = vpow.pop %v1852
      %v1854 = vmul.f32 %v1783, 1.442695
      %v1855 = vpow.pop %v1854
      %v1856 = vmul.f32 %v1784, 1.442695
      %v1857 = vpow.pop %v1856
      %v1858 = vmul.f32 %v1785, 1.442695
      %v1859 = vpow.pop %v1858
      %v1860 = vmul.f32 %v1786, 1.442695
      %v1861 = vpow.pop %v1860
      %v1862 = vmul.f32 %v1787, 1.442695
      %v1863 = vpow.pop %v1862
      %v1864 = vmul.f32 %v1788, 1.442695
      %v1865 = vpow.pop %v1864
      %v1866 = vmul.f32 %v1789, 1.442695
      %v1867 = vpow.pop %v1866
      %v1868 = vmul.f32 %v1790, 1.442695
      %v1869 = vpow.pop %v1868
      %v1870 = vmul.f32 %v1791, 1.442695
      %v1871 = vpow.pop %v1870
      %v1872 = vmul.f32 %v1792, 1.442695
      %v1873 = vpow.pop %v1872
      %v1874 = vmul.f32 %v1793, 1.442695
      %v1875 = vpow.pop %v1874
      %v1876 = vmul.f32 %v1794, 1.442695
      %v1877 = vpow.pop %v1876
      %v1878 = vmul.f32 %v1795, 1.442695
      %v1879 = vpow.pop %v1878
      %v1880 = vmul.f32 %v1796, 1.442695
      %v1881 = vpow.pop %v1880
      %v1882 = vmul.f32 %v1797, 1.442695
      %v1883 = vpow.pop %v1882
      %v1884 = vmul.f32 %v1798, 1.442695
      %v1885 = vpow.pop %v1884
      %v1886 = vmul.f32 %v1799, 1.442695
      %v1887 = vpow.pop %v1886
      %v1888 = vmul.f32 %v1800, 1.442695
      %v1889 = vpow.pop %v1888
      %v1890 = vmul.f32 %v1801, 1.442695
      %v1891 = vpow.pop %v1890
      %v1892 = vmul.f32 %v1802, 1.442695
      %v1893 = vpow.pop %v1892
      %v1894 = vmul.f32 %v1803, 1.442695
      %v1895 = vpow.pop %v1894
      %v1896 = vmul.f32 %v1804, 1.442695
      %v1897 = vpow.pop %v1896
      %v1898 = vmul.f32 %v1805, 1.442695
      %v1899 = vpow.pop %v1898
      %v1900 = vmul.f32 %v1806, 1.442695
      %v1901 = vpow.pop %v1900
      %v1902 = vmul.f32 %v1807, 1.442695
      %v1903 = vpow.pop %v1902
      %v1904 = vmul.f32 %v1808, 1.442695
      %v1905 = vpow.pop %v1904
      %v1906 = vmul.f32 %v1809, 1.442695
      %v1907 = vpow.pop %v1906
      %v1908 = vmul.f32 %v1810, 1.442695
      %v1909 = vpow.pop %v1908
      %v1910 = vmul.f32 %v1811, 1.442695
      %v1911 = vpow.pop %v1910
      %v1912 = vsel %vm1658, %v1815, 0.0
      %v1913 = vadd.f32 %v1813, %v1912
      %1914 = vadd.xlane.f32.xlu0 %v1913
      %v1915 = vpop.xlane.xlu0 %1914
      %v1916 = vsel %vm1658, %v1819, 0.0
      %v1917 = vadd.f32 %v1817, %v1916
      %1918 = vadd.xlane.f32.xlu0 %v1917
      %v1919 = vpop.xlane.xlu0 %1918
      %v1920 = vsel %vm1658, %v1823, 0.0
      %v1921 = vadd.f32 %v1821, %v1920
      %1922 = vadd.xlane.f32.xlu0 %v1921
      %v1923 = vpop.xlane.xlu0 %1922
      %v1924 = vsel %vm1658, %v1827, 0.0
      %v1925 = vadd.f32 %v1825, %v1924
      %1926 = vadd.xlane.f32.xlu0 %v1925
      %v1927 = vpop.xlane.xlu0 %1926
      %v1928 = vsel %vm1658, %v1831, 0.0
      %v1929 = vadd.f32 %v1829, %v1928
      %1930 = vadd.xlane.f32.xlu0 %v1929
      %v1931 = vpop.xlane.xlu0 %1930
      %v1932 = vsel %vm1658, %v1835, 0.0
      %v1933 = vadd.f32 %v1833, %v1932
      %1934 = vadd.xlane.f32.xlu0 %v1933
      %v1935 = vpop.xlane.xlu0 %1934
      %v1936 = vsel %vm1658, %v1839, 0.0
      %v1937 = vadd.f32 %v1837, %v1936
      %1938 = vadd.xlane.f32.xlu0 %v1937
      %v1939 = vpop.xlane.xlu0 %1938
      %v1940 = vsel %vm1658, %v1843, 0.0
      %v1941 = vadd.f32 %v1841, %v1940
      %1942 = vadd.xlane.f32.xlu0 %v1941
      %v1943 = vpop.xlane.xlu0 %1942
      %v1944 = vsel %vm1658, %v1847, 0.0
      %v1945 = vadd.f32 %v1845, %v1944
      %1946 = vadd.xlane.f32.xlu0 %v1945
      %v1947 = vpop.xlane.xlu0 %1946
      %v1948 = vsel %vm1658, %v1851, 0.0
      %v1949 = vadd.f32 %v1849, %v1948
      %1950 = vadd.xlane.f32.xlu0 %v1949
      %v1951 = vpop.xlane.xlu0 %1950
      %v1952 = vsel %vm1658, %v1855, 0.0
      %v1953 = vadd.f32 %v1853, %v1952
      %1954 = vadd.xlane.f32.xlu0 %v1953
      %v1955 = vpop.xlane.xlu0 %1954
      %v1956 = vsel %vm1658, %v1859, 0.0
      %v1957 = vadd.f32 %v1857, %v1956
      %1958 = vadd.xlane.f32.xlu0 %v1957
      %v1959 = vpop.xlane.xlu0 %1958
      %v1960 = vsel %vm1658, %v1863, 0.0
      %v1961 = vadd.f32 %v1861, %v1960
      %1962 = vadd.xlane.f32.xlu0 %v1961
      %v1963 = vpop.xlane.xlu0 %1962
      %v1964 = vsel %vm1658, %v1867, 0.0
      %v1965 = vadd.f32 %v1865, %v1964
      %1966 = vadd.xlane.f32.xlu0 %v1965
      %v1967 = vpop.xlane.xlu0 %1966
      %v1968 = vsel %vm1658, %v1871, 0.0
      %v1969 = vadd.f32 %v1869, %v1968
      %1970 = vadd.xlane.f32.xlu0 %v1969
      %v1971 = vpop.xlane.xlu0 %1970
      %v1972 = vsel %vm1658, %v1875, 0.0
      %v1973 = vadd.f32 %v1873, %v1972
      %1974 = vadd.xlane.f32.xlu0 %v1973
      %v1975 = vpop.xlane.xlu0 %1974
      %v1976 = vsel %vm1658, %v1879, 0.0
      %v1977 = vadd.f32 %v1877, %v1976
      %1978 = vadd.xlane.f32.xlu0 %v1977
      %v1979 = vpop.xlane.xlu0 %1978
      %v1980 = vsel %vm1658, %v1883, 0.0
      %v1981 = vadd.f32 %v1881, %v1980
      %1982 = vadd.xlane.f32.xlu0 %v1981
      %v1983 = vpop.xlane.xlu0 %1982
      %v1984 = vsel %vm1658, %v1887, 0.0
      %v1985 = vadd.f32 %v1885, %v1984
      %1986 = vadd.xlane.f32.xlu0 %v1985
      %v1987 = vpop.xlane.xlu0 %1986
      %v1988 = vsel %vm1658, %v1891, 0.0
      %v1989 = vadd.f32 %v1889, %v1988
      %1990 = vadd.xlane.f32.xlu0 %v1989
      %v1991 = vpop.xlane.xlu0 %1990
      %v1992 = vsel %vm1658, %v1895, 0.0
      %v1993 = vadd.f32 %v1893, %v1992
      %1994 = vadd.xlane.f32.xlu0 %v1993
      %v1995 = vpop.xlane.xlu0 %1994
      %v1996 = vsel %vm1658, %v1899, 0.0
      %v1997 = vadd.f32 %v1897, %v1996
      %1998 = vadd.xlane.f32.xlu0 %v1997
      %v1999 = vpop.xlane.xlu0 %1998
      %v2000 = vsel %vm1658, %v1903, 0.0
      %v2001 = vadd.f32 %v1901, %v2000
      %2002 = vadd.xlane.f32.xlu0 %v2001
      %v2003 = vpop.xlane.xlu0 %2002
      %v2004 = vsel %vm1658, %v1907, 0.0
      %v2005 = vadd.f32 %v1905, %v2004
      %2006 = vadd.xlane.f32.xlu0 %v2005
      %v2007 = vpop.xlane.xlu0 %2006
      %v2008 = vsel %vm1755, %v1909, 0.0
      %v2009 = vsel %vm1757, %v1911, 0.0
      %v2010 = vadd.f32 %v2008, %v2009
      %2011 = vadd.xlane.f32.xlu0 %v2010
      %v2012 = vpop.xlane.xlu0 %2011
      %v2013 = vrcp.pop %v1915
      %v2014 = vrcp.pop %v1919
      %v2015 = vrcp.pop %v1923
      %v2016 = vrcp.pop %v1927
      %v2017 = vrcp.pop %v1931
      %v2018 = vrcp.pop %v1935
      %v2019 = vrcp.pop %v1939
      %v2020 = vrcp.pop %v1943
      %v2021 = vrcp.pop %v1947
      %v2022 = vrcp.pop %v1951
      %v2023 = vrcp.pop %v1955
      %v2024 = vrcp.pop %v1959
      %v2025 = vrcp.pop %v1963
      %v2026 = vrcp.pop %v1967
      %v2027 = vrcp.pop %v1971
      %v2028 = vrcp.pop %v1975
      %v2029 = vrcp.pop %v1979
      %v2030 = vrcp.pop %v1983
      %v2031 = vrcp.pop %v1987
      %v2032 = vrcp.pop %v1991
      %v2033 = vrcp.pop %v1995
      %v2034 = vrcp.pop %v1999
      %v2035 = vrcp.pop %v2003
      %v2036 = vrcp.pop %v2007
      %v2037 = vrcp.pop %v2012
      %v2038 = vmul.f32 %v1813, %v2013
      %v2039 = vmul.f32 %v1815, %v2013
      %v2040 = vmul.f32 %v1817, %v2014
      %v2041 = vmul.f32 %v1819, %v2014
      %v2042 = vmul.f32 %v1821, %v2015
      %v2043 = vmul.f32 %v1823, %v2015
      %v2044 = vmul.f32 %v1825, %v2016
      %v2045 = vmul.f32 %v1827, %v2016
      %v2046 = vmul.f32 %v1829, %v2017
      %v2047 = vmul.f32 %v1831, %v2017
      %v2048 = vmul.f32 %v1833, %v2018
      %v2049 = vmul.f32 %v1835, %v2018
      %v2050 = vmul.f32 %v1837, %v2019
      %v2051 = vmul.f32 %v1839, %v2019
      %v2052 = vmul.f32 %v1841, %v2020
      %v2053 = vmul.f32 %v1843, %v2020
      %v2054 = vmul.f32 %v1845, %v2021
      %v2055 = vmul.f32 %v1847, %v2021
      %v2056 = vmul.f32 %v1849, %v2022
      %v2057 = vmul.f32 %v1851, %v2022
      %v2058 = vmul.f32 %v1853, %v2023
      %v2059 = vmul.f32 %v1855, %v2023
      %v2060 = vmul.f32 %v1857, %v2024
      %v2061 = vmul.f32 %v1859, %v2024
      %v2062 = vmul.f32 %v1861, %v2025
      %v2063 = vmul.f32 %v1863, %v2025
      %v2064 = vmul.f32 %v1865, %v2026
      %v2065 = vmul.f32 %v1867, %v2026
      %v2066 = vmul.f32 %v1869, %v2027
      %v2067 = vmul.f32 %v1871, %v2027
      %v2068 = vmul.f32 %v1873, %v2028
      %v2069 = vmul.f32 %v1875, %v2028
      %v2070 = vmul.f32 %v1877, %v2029
      %v2071 = vmul.f32 %v1879, %v2029
      %v2072 = vmul.f32 %v1881, %v2030
      %v2073 = vmul.f32 %v1883, %v2030
      %v2074 = vmul.f32 %v1885, %v2031
      %v2075 = vmul.f32 %v1887, %v2031
      %v2076 = vmul.f32 %v1889, %v2032
      %v2077 = vmul.f32 %v1891, %v2032
      %v2078 = vmul.f32 %v1893, %v2033
      %v2079 = vmul.f32 %v1895, %v2033
      %v2080 = vmul.f32 %v1897, %v2034
      %v2081 = vmul.f32 %v1899, %v2034
      %v2082 = vmul.f32 %v1901, %v2035
      %v2083 = vmul.f32 %v1903, %v2035
      %v2084 = vmul.f32 %v1905, %v2036
      %v2085 = vmul.f32 %v1907, %v2036
      %v2086 = vmul.f32 %v1909, %v2037
      %v2087 = vmul.f32 %v1911, %v2037
      %v2089 = vsel %vm1658, %v2039, 0
      %v2092 = vsel %vm1658, %v2041, 0
      %v2095 = vsel %vm1658, %v2043, 0
      %v2098 = vsel %vm1658, %v2045, 0
      %v2101 = vsel %vm1658, %v2047, 0
      %v2104 = vsel %vm1658, %v2049, 0
      %v2107 = vsel %vm1658, %v2051, 0
      %v2110 = vsel %vm1658, %v2053, 0
      %v2113 = vsel %vm1658, %v2055, 0
      %v2116 = vsel %vm1658, %v2057, 0
      %v2119 = vsel %vm1658, %v2059, 0
      %v2122 = vsel %vm1658, %v2061, 0
      %v2125 = vsel %vm1658, %v2063, 0
      %v2128 = vsel %vm1658, %v2065, 0
      %v2131 = vsel %vm1658, %v2067, 0
      %v2134 = vsel %vm1658, %v2069, 0
      %v2137 = vsel %vm1658, %v2071, 0
      %v2140 = vsel %vm1658, %v2073, 0
      %v2143 = vsel %vm1658, %v2075, 0
      %v2146 = vsel %vm1658, %v2077, 0
      %v2149 = vsel %vm1658, %v2079, 0
      %v2152 = vsel %vm1658, %v2081, 0
      %v2155 = vsel %vm1658, %v2083, 0
      %v2158 = vsel %vm1658, %v2085, 0
      %v2161 = vsel %vm1658, %v2087, 0
      %v2164 = vsel %vm1755, %v1215, 0
      %2166 = vmatprep.subr.mxu0 0.0
      %2167 = vmatpush1.msra.mxu0 %v1161
      %2168 = vmatprep.subr.mxu0 0.0
      %2169 = vmatpush1.msra.mxu0 %v1155
      %2170 = vmatprep.subr.mxu0 0.0
      %2171 = vmatpush1.msra.mxu0 %v1149
      %2172 = vmatprep.subr.mxu0 0.0
      %2173 = vmatpush1.msra.mxu0 %v1143
      %2174 = vmatprep.subr.mxu0 0.0
      %2175 = vmatpush1.msra.mxu0 %v1137
      %2176 = vmatprep.subr.mxu0 0.0
      %2177 = vmatpush1.msra.mxu0 %v1131
      %2178 = vmatprep.subr.mxu0 0.0
      %2179 = vmatpush1.msra.mxu0 %v1125
      %2180 = vmatprep.subr.mxu0 0.0
      %2181 = vmatpush1.msra.mxu0 %v1119
      %2182 = vmatprep.subr.mxu0 0.0
      %2183 = vmatpush1.msra.mxu0 %v1113
      %2184 = vmatprep.subr.mxu0 0.0
      %2185 = vmatpush1.msra.mxu0 %v1107
      %2186 = vmatprep.subr.mxu0 0.0
      %2187 = vmatpush1.msra.mxu0 %v1101
      %2188 = vmatprep.subr.mxu0 0.0
      %2189 = vmatpush1.msra.mxu0 %v1095
      %2190 = vmatprep.subr.mxu0 0.0
      %2191 = vmatpush1.msra.mxu0 %v1089
      %2192 = vmatprep.subr.mxu0 0.0
      %2193 = vmatpush1.msra.mxu0 %v1083
      %2194 = vmatprep.subr.mxu0 0.0
      %2195 = vmatpush1.msra.mxu0 %v1077
      %2196 = vmatprep.subr.mxu0 0.0
      %2197 = vmatpush1.msra.mxu0 %v1071
      %2198 = vmatprep.subr.mxu0 0.0
      %2199 = vmatpush2.msra.mxu0 0.0
      %2200 = vmatprep.subr.mxu0 0.0
      %2201 = vmatpush2.msra.mxu0 0.0
      %2202 = vmatprep.subr.mxu0 0.0
      %2203 = vmatpush2.msra.mxu0 0.0
      %2204 = vmatprep.subr.mxu0 0.0
      %2205 = vmatpush2.msra.mxu0 0.0
      %2206 = vmatprep.subr.mxu0 0.0
      %2207 = vmatpush2.msra.mxu0 0.0
      %2208 = vmatprep.subr.mxu0 0.0
      %2209 = vmatpush2.msra.mxu0 0.0
      %2210 = vmatprep.subr.mxu0 0.0
      %2211 = vmatpush2.msra.mxu0 0.0
      %2212 = vmatprep.subr.mxu0 0.0
      %2213 = vmatpush2.msra.mxu0 %v2164
      %2214 = vmatprep.subr.mxu0 0.0
      %2215 = vmatpush2.msra.mxu0 %v1209
      %2216 = vmatprep.subr.mxu0 0.0
      %2217 = vmatpush2.msra.mxu0 %v1203
      %2218 = vmatprep.subr.mxu0 0.0
      %2219 = vmatpush2.msra.mxu0 %v1197
      %2220 = vmatprep.subr.mxu0 0.0
      %2221 = vmatpush2.msra.mxu0 %v1191
      %2222 = vmatprep.subr.mxu0 0.0
      %2223 = vmatpush2.msra.mxu0 %v1185
      %2224 = vmatprep.subr.mxu0 0.0
      %2225 = vmatpush2.msra.mxu0 %v1179
      %2226 = vmatprep.subr.mxu0 0.0
      %2227 = vmatpush2.msra.mxu0 %v1173
      %2228 = vmatprep.subr.mxu0 0.0
      %2229 = vmatpush2.msra.mxu0 %v1167
      %2230 = vmatprep.mubr.f32.mxu0 %v2089
      %2231 = vmatmul.mubr.f32.gmra.mxu0 %v2038
      %v2232 = vpop.f32.mrf.mxu0
      %v2233 = vadd.f32 0.0, %v2232
      %v2234 = vpop.f32.mrf.mxu0
      %2235 = vmatprep.mubr.f32.mxu0 %v2092
      %2236 = vmatmul.mubr.f32.gmra.mxu0 %v2040
      %v2237 = vpop.f32.mrf.mxu0
      %v2238 = vadd.f32 0.0, %v2237
      %v2239 = vpop.f32.mrf.mxu0
      %2240 = vmatprep.mubr.f32.mxu0 %v2095
      %2241 = vmatmul.mubr.f32.gmra.mxu0 %v2042
      %v2242 = vpop.f32.mrf.mxu0
      %v2243 = vadd.f32 0.0, %v2242
      %v2244 = vpop.f32.mrf.mxu0
      %2245 = vmatprep.mubr.f32.mxu0 %v2098
      %2246 = vmatmul.mubr.f32.gmra.mxu0 %v2044
      %v2247 = vpop.f32.mrf.mxu0
      %v2248 = vadd.f32 0.0, %v2247
      %v2249 = vpop.f32.mrf.mxu0
      %2250 = vmatprep.mubr.f32.mxu0 %v2101
      %2251 = vmatmul.mubr.f32.gmra.mxu0 %v2046
      %v2252 = vpop.f32.mrf.mxu0
      %v2253 = vadd.f32 0.0, %v2252
      %v2254 = vpop.f32.mrf.mxu0
      %2255 = vmatprep.mubr.f32.mxu0 %v2104
      %2256 = vmatmul.mubr.f32.gmra.mxu0 %v2048
      %v2257 = vpop.f32.mrf.mxu0
      %v2258 = vadd.f32 0.0, %v2257
      %v2259 = vpop.f32.mrf.mxu0
      %2260 = vmatprep.mubr.f32.mxu0 %v2107
      %2261 = vmatmul.mubr.f32.gmra.mxu0 %v2050
      %v2262 = vpop.f32.mrf.mxu0
      %v2263 = vadd.f32 0.0, %v2262
      %v2264 = vpop.f32.mrf.mxu0
      %2265 = vmatprep.mubr.f32.mxu0 %v2110
      %2266 = vmatmul.mubr.f32.gmra.mxu0 %v2052
      %v2267 = vpop.f32.mrf.mxu0
      %v2268 = vadd.f32 0.0, %v2267
      %v2269 = vpop.f32.mrf.mxu0
      %2270 = vmatprep.mubr.f32.mxu0 %v2113
      %2271 = vmatmul.mubr.f32.gmra.mxu0 %v2054
      %v2272 = vpop.f32.mrf.mxu0
      %v2273 = vadd.f32 0.0, %v2272
      %v2274 = vpop.f32.mrf.mxu0
      %2275 = vmatprep.mubr.f32.mxu0 %v2116
      %2276 = vmatmul.mubr.f32.gmra.mxu0 %v2056
      %v2277 = vpop.f32.mrf.mxu0
      %v2278 = vadd.f32 0.0, %v2277
      %v2279 = vpop.f32.mrf.mxu0
      %2280 = vmatprep.mubr.f32.mxu0 %v2119
      %2281 = vmatmul.mubr.f32.gmra.mxu0 %v2058
      %v2282 = vpop.f32.mrf.mxu0
      %v2283 = vadd.f32 0.0, %v2282
      %v2284 = vpop.f32.mrf.mxu0
      %2285 = vmatprep.mubr.f32.mxu0 %v2122
      %2286 = vmatmul.mubr.f32.gmra.mxu0 %v2060
      %v2287 = vpop.f32.mrf.mxu0
      %v2288 = vadd.f32 0.0, %v2287
      %v2289 = vpop.f32.mrf.mxu0
      %2290 = vmatprep.mubr.f32.mxu0 %v2125
      %2291 = vmatmul.mubr.f32.gmra.mxu0 %v2062
      %v2292 = vpop.f32.mrf.mxu0
      %v2293 = vadd.f32 0.0, %v2292
      %v2294 = vpop.f32.mrf.mxu0
      %2295 = vmatprep.mubr.f32.mxu0 %v2128
      %2296 = vmatmul.mubr.f32.gmra.mxu0 %v2064
      %v2297 = vpop.f32.mrf.mxu0
      %v2298 = vadd.f32 0.0, %v2297
      %v2299 = vpop.f32.mrf.mxu0
      %2300 = vmatprep.mubr.f32.mxu0 %v2131
      %2301 = vmatmul.mubr.f32.gmra.mxu0 %v2066
      %v2302 = vpop.f32.mrf.mxu0
      %v2303 = vadd.f32 0.0, %v2302
      %v2304 = vpop.f32.mrf.mxu0
      %2305 = vmatprep.mubr.f32.mxu0 %v2134
      %2306 = vmatmul.mubr.f32.gmra.mxu0 %v2068
      %v2307 = vpop.f32.mrf.mxu0
      %v2308 = vadd.f32 0.0, %v2307
      %v2309 = vpop.f32.mrf.mxu0
      %2310 = vmatprep.mubr.f32.mxu0 %v2137
      %2311 = vmatmul.mubr.f32.gmra.mxu0 %v2070
      %v2312 = vpop.f32.mrf.mxu0
      %v2313 = vadd.f32 0.0, %v2312
      %v2314 = vpop.f32.mrf.mxu0
      %2315 = vmatprep.mubr.f32.mxu0 %v2140
      %2316 = vmatmul.mubr.f32.gmra.mxu0 %v2072
      %v2317 = vpop.f32.mrf.mxu0
      %v2318 = vadd.f32 0.0, %v2317
      %v2319 = vpop.f32.mrf.mxu0
      %2320 = vmatprep.mubr.f32.mxu0 %v2143
      %2321 = vmatmul.mubr.f32.gmra.mxu0 %v2074
      %v2322 = vpop.f32.mrf.mxu0
      %v2323 = vadd.f32 0.0, %v2322
      %v2324 = vpop.f32.mrf.mxu0
      %2325 = vmatprep.mubr.f32.mxu0 %v2146
      %2326 = vmatmul.mubr.f32.gmra.mxu0 %v2076
      %v2327 = vpop.f32.mrf.mxu0
      %v2328 = vadd.f32 0.0, %v2327
      %v2329 = vpop.f32.mrf.mxu0
      %2330 = vmatprep.mubr.f32.mxu0 %v2149
      %2331 = vmatmul.mubr.f32.gmra.mxu0 %v2078
      %v2332 = vpop.f32.mrf.mxu0
      %v2333 = vadd.f32 0.0, %v2332
      %v2334 = vpop.f32.mrf.mxu0
      %2335 = vmatprep.mubr.f32.mxu0 %v2152
      %2336 = vmatmul.mubr.f32.gmra.mxu0 %v2080
      %v2337 = vpop.f32.mrf.mxu0
      %v2338 = vadd.f32 0.0, %v2337
      %v2339 = vpop.f32.mrf.mxu0
      %2340 = vmatprep.mubr.f32.mxu0 %v2155
      %2341 = vmatmul.mubr.f32.gmra.mxu0 %v2082
      %v2342 = vpop.f32.mrf.mxu0
      %v2343 = vadd.f32 0.0, %v2342
      %v2344 = vpop.f32.mrf.mxu0
      %2345 = vmatprep.mubr.f32.mxu0 %v2158
      %2346 = vmatmul.mubr.f32.gmra.mxu0 %v2084
      %v2347 = vpop.f32.mrf.mxu0
      %v2348 = vadd.f32 0.0, %v2347
      %v2349 = vpop.f32.mrf.mxu0
      %2350 = vmatprep.mubr.f32.mxu0 %v2161
      %2351 = vmatmul.mubr.f32.gmra.mxu0 %v2086
      %v2352 = vpop.f32.mrf.mxu0
      %v2353 = vadd.f32 0.0, %v2352
      %v2354 = vpop.f32.mrf.mxu0
      %2355 = vdwg.mxu0
      %2356 = vrot.lane.b32.xlu0 %v1069, 96
      %v2357 = vpop.permute.xlu0 %2356
      %2358 = vrot.lane.b32.xlu0 %v1075, 96
      %v2359 = vpop.permute.xlu0 %2358
      %2360 = vrot.lane.b32.xlu0 %v1081, 96
      %v2361 = vpop.permute.xlu0 %2360
      %2362 = vrot.lane.b32.xlu0 %v1087, 96
      %v2363 = vpop.permute.xlu0 %2362
      %2364 = vrot.lane.b32.xlu0 %v1093, 96
      %v2365 = vpop.permute.xlu0 %2364
      %2366 = vrot.lane.b32.xlu0 %v1099, 96
      %v2367 = vpop.permute.xlu0 %2366
      %2368 = vrot.lane.b32.xlu0 %v1105, 96
      %v2369 = vpop.permute.xlu0 %2368
      %2370 = vrot.lane.b32.xlu0 %v1111, 96
      %v2371 = vpop.permute.xlu0 %2370
      %2372 = vrot.lane.b32.xlu0 %v1117, 96
      %v2373 = vpop.permute.xlu0 %2372
      %2374 = vrot.lane.b32.xlu0 %v1123, 96
      %v2375 = vpop.permute.xlu0 %2374
      %2376 = vrot.lane.b32.xlu0 %v1129, 96
      %v2377 = vpop.permute.xlu0 %2376
      %2378 = vrot.lane.b32.xlu0 %v1135, 96
      %v2379 = vpop.permute.xlu0 %2378
      %2380 = vrot.lane.b32.xlu0 %v1141, 96
      %v2381 = vpop.permute.xlu0 %2380
      %2382 = vrot.lane.b32.xlu0 %v1147, 96
      %v2383 = vpop.permute.xlu0 %2382
      %2384 = vrot.lane.b32.xlu0 %v1153, 96
      %v2385 = vpop.permute.xlu0 %2384
      %2386 = vrot.lane.b32.xlu0 %v1159, 96
      %v2387 = vpop.permute.xlu0 %2386
      %2388 = vrot.lane.b32.xlu0 %v1165, 96
      %v2389 = vpop.permute.xlu0 %2388
      %2390 = vrot.lane.b32.xlu0 %v1171, 96
      %v2391 = vpop.permute.xlu0 %2390
      %2392 = vrot.lane.b32.xlu0 %v1177, 96
      %v2393 = vpop.permute.xlu0 %2392
      %2394 = vrot.lane.b32.xlu0 %v1183, 96
      %v2395 = vpop.permute.xlu0 %2394
      %2396 = vrot.lane.b32.xlu0 %v1189, 96
      %v2397 = vpop.permute.xlu0 %2396
      %2398 = vrot.lane.b32.xlu0 %v1195, 96
      %v2399 = vpop.permute.xlu0 %2398
      %2400 = vrot.lane.b32.xlu0 %v1201, 96
      %v2401 = vpop.permute.xlu0 %2400
      %2402 = vrot.lane.b32.xlu0 %v1207, 96
      %v2403 = vpop.permute.xlu0 %2402
      %2404 = vrot.lane.b32.xlu0 %v1213, 96
      %v2405 = vpop.permute.xlu0 %2404
      %2406 = vrot.lane.b32.xlu0 %v1069, 32
      %v2407 = vpop.permute.xlu0 %2406
      %2408 = vrot.lane.b32.xlu0 %v1075, 32
      %v2409 = vpop.permute.xlu0 %2408
      %2410 = vrot.lane.b32.xlu0 %v1081, 32
      %v2411 = vpop.permute.xlu0 %2410
      %2412 = vrot.lane.b32.xlu0 %v1087, 32
      %v2413 = vpop.permute.xlu0 %2412
      %2414 = vrot.lane.b32.xlu0 %v1093, 32
      %v2415 = vpop.permute.xlu0 %2414
      %2416 = vrot.lane.b32.xlu0 %v1099, 32
      %v2417 = vpop.permute.xlu0 %2416
      %2418 = vrot.lane.b32.xlu0 %v1105, 32
      %v2419 = vpop.permute.xlu0 %2418
      %2420 = vrot.lane.b32.xlu0 %v1111, 32
      %v2421 = vpop.permute.xlu0 %2420
      %2422 = vrot.lane.b32.xlu0 %v1117, 32
      %v2423 = vpop.permute.xlu0 %2422
      %2424 = vrot.lane.b32.xlu0 %v1123, 32
      %v2425 = vpop.permute.xlu0 %2424
      %2426 = vrot.lane.b32.xlu0 %v1129, 32
      %v2427 = vpop.permute.xlu0 %2426
      %2428 = vrot.lane.b32.xlu0 %v1135, 32
      %v2429 = vpop.permute.xlu0 %2428
      %2430 = vrot.lane.b32.xlu0 %v1141, 32
      %v2431 = vpop.permute.xlu0 %2430
      %2432 = vrot.lane.b32.xlu0 %v1147, 32
      %v2433 = vpop.permute.xlu0 %2432
      %2434 = vrot.lane.b32.xlu0 %v1153, 32
      %v2435 = vpop.permute.xlu0 %2434
      %2436 = vrot.lane.b32.xlu0 %v1159, 32
      %v2437 = vpop.permute.xlu0 %2436
      %2438 = vrot.lane.b32.xlu0 %v1165, 32
      %v2439 = vpop.permute.xlu0 %2438
      %2440 = vrot.lane.b32.xlu0 %v1171, 32
      %v2441 = vpop.permute.xlu0 %2440
      %2442 = vrot.lane.b32.xlu0 %v1177, 32
      %v2443 = vpop.permute.xlu0 %2442
      %2444 = vrot.lane.b32.xlu0 %v1183, 32
      %v2445 = vpop.permute.xlu0 %2444
      %2446 = vrot.lane.b32.xlu0 %v1189, 32
      %v2447 = vpop.permute.xlu0 %2446
      %2448 = vrot.lane.b32.xlu0 %v1195, 32
      %v2449 = vpop.permute.xlu0 %2448
      %2450 = vrot.lane.b32.xlu0 %v1201, 32
      %v2451 = vpop.permute.xlu0 %2450
      %2452 = vrot.lane.b32.xlu0 %v1207, 32
      %v2453 = vpop.permute.xlu0 %2452
      %2454 = vrot.lane.b32.xlu0 %v1213, 32
      %v2455 = vpop.permute.xlu0 %2454
      %v2456 = vsel %vm1292, %v2357, 0
      %v2458 = vsel %vm1292, %v2359, 0
      %v2460 = vsel %vm1292, %v2361, 0
      %v2462 = vsel %vm1292, %v2363, 0
      %v2464 = vsel %vm1292, %v2365, 0
      %v2466 = vsel %vm1292, %v2367, 0
      %v2468 = vsel %vm1292, %v2369, 0
      %v2470 = vsel %vm1292, %v2371, 0
      %v2472 = vsel %vm1292, %v2373, 0
      %v2474 = vsel %vm1292, %v2375, 0
      %v2476 = vsel %vm1292, %v2377, 0
      %v2478 = vsel %vm1292, %v2379, 0
      %v2480 = vsel %vm1292, %v2381, 0
      %v2482 = vsel %vm1292, %v2383, 0
      %v2484 = vsel %vm1292, %v2385, 0
      %v2486 = vsel %vm1292, %v2387, 0
      %v2488 = vsel %vm1292, %v2389, 0
      %v2490 = vsel %vm1292, %v2391, 0
      %v2492 = vsel %vm1292, %v2393, 0
      %v2494 = vsel %vm1292, %v2395, 0
      %v2496 = vsel %vm1292, %v2397, 0
      %v2498 = vsel %vm1292, %v2399, 0
      %v2500 = vsel %vm1292, %v2401, 0
      %v2502 = vsel %vm1292, %v2403, 0
      %v2504 = vsel %vm1292, %v2405, 0
      %v2506 = vsel %vm1292, %v2407, 0
      %v2508 = vsel %vm1292, %v2409, 0
      %v2510 = vsel %vm1292, %v2411, 0
      %v2512 = vsel %vm1292, %v2413, 0
      %v2514 = vsel %vm1292, %v2415, 0
      %v2516 = vsel %vm1292, %v2417, 0
      %v2518 = vsel %vm1292, %v2419, 0
      %v2520 = vsel %vm1292, %v2421, 0
      %v2522 = vsel %vm1292, %v2423, 0
      %v2524 = vsel %vm1292, %v2425, 0
      %v2526 = vsel %vm1292, %v2427, 0
      %v2528 = vsel %vm1292, %v2429, 0
      %v2530 = vsel %vm1292, %v2431, 0
      %v2532 = vsel %vm1292, %v2433, 0
      %v2534 = vsel %vm1292, %v2435, 0
      %v2536 = vsel %vm1292, %v2437, 0
      %v2538 = vsel %vm1292, %v2439, 0
      %v2540 = vsel %vm1292, %v2441, 0
      %v2542 = vsel %vm1292, %v2443, 0
      %v2544 = vsel %vm1292, %v2445, 0
      %v2546 = vsel %vm1292, %v2447, 0
      %v2548 = vsel %vm1292, %v2449, 0
      %v2550 = vsel %vm1292, %v2451, 0
      %v2552 = vsel %vm1292, %v2453, 0
      %v2554 = vsel %vm1292, %v2455, 0
      %2556 = vmatprep.subr.mxu0 0.0
      %2557 = vmatpush1.xpose.msra.mxu0 %v2536
      %2558 = vmatprep.subr.mxu0 0.0
      %2559 = vmatpush1.xpose.msra.mxu0 %v2534
      %2560 = vmatprep.subr.mxu0 0.0
      %2561 = vmatpush1.xpose.msra.mxu0 %v2532
      %2562 = vmatprep.subr.mxu0 0.0
      %2563 = vmatpush1.xpose.msra.mxu0 %v2530
      %2564 = vmatprep.subr.mxu0 0.0
      %2565 = vmatpush1.xpose.msra.mxu0 %v2528
      %2566 = vmatprep.subr.mxu0 0.0
      %2567 = vmatpush1.xpose.msra.mxu0 %v2526
      %2568 = vmatprep.subr.mxu0 0.0
      %2569 = vmatpush1.xpose.msra.mxu0 %v2524
      %2570 = vmatprep.subr.mxu0 0.0
      %2571 = vmatpush1.xpose.msra.mxu0 %v2522
      %2572 = vmatprep.subr.mxu0 0.0
      %2573 = vmatpush1.xpose.msra.mxu0 %v2520
      %2574 = vmatprep.subr.mxu0 0.0
      %2575 = vmatpush1.xpose.msra.mxu0 %v2518
      %2576 = vmatprep.subr.mxu0 0.0
      %2577 = vmatpush1.xpose.msra.mxu0 %v2516
      %2578 = vmatprep.subr.mxu0 0.0
      %2579 = vmatpush1.xpose.msra.mxu0 %v2514
      %2580 = vmatprep.subr.mxu0 0.0
      %2581 = vmatpush1.xpose.msra.mxu0 %v2512
      %2582 = vmatprep.subr.mxu0 0.0
      %2583 = vmatpush1.xpose.msra.mxu0 %v2510
      %2584 = vmatprep.subr.mxu0 0.0
      %2585 = vmatpush1.xpose.msra.mxu0 %v2508
      %2586 = vmatprep.subr.mxu0 0.0
      %2587 = vmatpush1.xpose.msra.mxu0 %v2506
      %2588 = vmatprep.subr.mxu0 0.0
      %2589 = vmatpush2.xpose.msra.mxu0 0.0
      %2590 = vmatprep.subr.mxu0 0.0
      %2591 = vmatpush2.xpose.msra.mxu0 0.0
      %2592 = vmatprep.subr.mxu0 0.0
      %2593 = vmatpush2.xpose.msra.mxu0 0.0
      %2594 = vmatprep.subr.mxu0 0.0
      %2595 = vmatpush2.xpose.msra.mxu0 0.0
      %2596 = vmatprep.subr.mxu0 0.0
      %2597 = vmatpush2.xpose.msra.mxu0 0.0
      %2598 = vmatprep.subr.mxu0 0.0
      %2599 = vmatpush2.xpose.msra.mxu0 0.0
      %2600 = vmatprep.subr.mxu0 0.0
      %2601 = vmatpush2.xpose.msra.mxu0 0.0
      %2602 = vmatprep.subr.mxu0 0.0
      %2603 = vmatpush2.xpose.msra.mxu0 %v2554
      %2604 = vmatprep.subr.mxu0 0.0
      %2605 = vmatpush2.xpose.msra.mxu0 %v2552
      %2606 = vmatprep.subr.mxu0 0.0
      %2607 = vmatpush2.xpose.msra.mxu0 %v2550
      %2608 = vmatprep.subr.mxu0 0.0
      %2609 = vmatpush2.xpose.msra.mxu0 %v2548
      %2610 = vmatprep.subr.mxu0 0.0
      %2611 = vmatpush2.xpose.msra.mxu0 %v2546
      %2612 = vmatprep.subr.mxu0 0.0
      %2613 = vmatpush2.xpose.msra.mxu0 %v2544
      %2614 = vmatprep.subr.mxu0 0.0
      %2615 = vmatpush2.xpose.msra.mxu0 %v2542
      %2616 = vmatprep.subr.mxu0 0.0
      %2617 = vmatpush2.xpose.msra.mxu0 %v2540
      %2618 = vmatprep.subr.mxu0 0.0
      %2619 = vmatpush2.xpose.msra.mxu0 %v2538
      %2620 = vmatprep.mubr.f32.mxu0 0.0
      %2621 = vmatmul.mubr.f32.gmra.mxu0 %v2456
      %v2622 = vpop.f32.mrf.mxu0
      %v2623 = vadd.f32 0.0, %v2622
      %v2624 = vpop.f32.mrf.mxu0
      %v2625 = vadd.f32 0.0, %v2624
      %2626 = vmatprep.mubr.f32.mxu0 0.0
      %2627 = vmatmul.mubr.f32.gmra.mxu0 %v2458
      %v2628 = vpop.f32.mrf.mxu0
      %v2629 = vadd.f32 0.0, %v2628
      %v2630 = vpop.f32.mrf.mxu0
      %v2631 = vadd.f32 0.0, %v2630
      %2632 = vmatprep.mubr.f32.mxu0 0.0
      %2633 = vmatmul.mubr.f32.gmra.mxu0 %v2460
      %v2634 = vpop.f32.mrf.mxu0
      %v2635 = vadd.f32 0.0, %v2634
      %v2636 = vpop.f32.mrf.mxu0
      %v2637 = vadd.f32 0.0, %v2636
      %2638 = vmatprep.mubr.f32.mxu0 0.0
      %2639 = vmatmul.mubr.f32.gmra.mxu0 %v2462
      %v2640 = vpop.f32.mrf.mxu0
      %v2641 = vadd.f32 0.0, %v2640
      %v2642 = vpop.f32.mrf.mxu0
      %v2643 = vadd.f32 0.0, %v2642
      %2644 = vmatprep.mubr.f32.mxu0 0.0
      %2645 = vmatmul.mubr.f32.gmra.mxu0 %v2464
      %v2646 = vpop.f32.mrf.mxu0
      %v2647 = vadd.f32 0.0, %v2646
      %v2648 = vpop.f32.mrf.mxu0
      %v2649 = vadd.f32 0.0, %v2648
      %2650 = vmatprep.mubr.f32.mxu0 0.0
      %2651 = vmatmul.mubr.f32.gmra.mxu0 %v2466
      %v2652 = vpop.f32.mrf.mxu0
      %v2653 = vadd.f32 0.0, %v2652
      %v2654 = vpop.f32.mrf.mxu0
      %v2655 = vadd.f32 0.0, %v2654
      %2656 = vmatprep.mubr.f32.mxu0 0.0
      %2657 = vmatmul.mubr.f32.gmra.mxu0 %v2468
      %v2658 = vpop.f32.mrf.mxu0
      %v2659 = vadd.f32 0.0, %v2658
      %v2660 = vpop.f32.mrf.mxu0
      %v2661 = vadd.f32 0.0, %v2660
      %2662 = vmatprep.mubr.f32.mxu0 0.0
      %2663 = vmatmul.mubr.f32.gmra.mxu0 %v2470
      %v2664 = vpop.f32.mrf.mxu0
      %v2665 = vadd.f32 0.0, %v2664
      %v2666 = vpop.f32.mrf.mxu0
      %v2667 = vadd.f32 0.0, %v2666
      %2668 = vmatprep.mubr.f32.mxu0 0.0
      %2669 = vmatmul.mubr.f32.gmra.mxu0 %v2472
      %v2670 = vpop.f32.mrf.mxu0
      %v2671 = vadd.f32 0.0, %v2670
      %v2672 = vpop.f32.mrf.mxu0
      %v2673 = vadd.f32 0.0, %v2672
      %2674 = vmatprep.mubr.f32.mxu0 0.0
      %2675 = vmatmul.mubr.f32.gmra.mxu0 %v2474
      %v2676 = vpop.f32.mrf.mxu0
      %v2677 = vadd.f32 0.0, %v2676
      %v2678 = vpop.f32.mrf.mxu0
      %v2679 = vadd.f32 0.0, %v2678
      %2680 = vmatprep.mubr.f32.mxu0 0.0
      %2681 = vmatmul.mubr.f32.gmra.mxu0 %v2476
      %v2682 = vpop.f32.mrf.mxu0
      %v2683 = vadd.f32 0.0, %v2682
      %v2684 = vpop.f32.mrf.mxu0
      %v2685 = vadd.f32 0.0, %v2684
      %2686 = vmatprep.mubr.f32.mxu0 0.0
      %2687 = vmatmul.mubr.f32.gmra.mxu0 %v2478
      %v2688 = vpop.f32.mrf.mxu0
      %v2689 = vadd.f32 0.0, %v2688
      %v2690 = vpop.f32.mrf.mxu0
      %v2691 = vadd.f32 0.0, %v2690
      %2692 = vmatprep.mubr.f32.mxu0 0.0
      %2693 = vmatmul.mubr.f32.gmra.mxu0 %v2480
      %v2694 = vpop.f32.mrf.mxu0
      %v2695 = vadd.f32 0.0, %v2694
      %v2696 = vpop.f32.mrf.mxu0
      %v2697 = vadd.f32 0.0, %v2696
      %2698 = vmatprep.mubr.f32.mxu0 0.0
      %2699 = vmatmul.mubr.f32.gmra.mxu0 %v2482
      %v2700 = vpop.f32.mrf.mxu0
      %v2701 = vadd.f32 0.0, %v2700
      %v2702 = vpop.f32.mrf.mxu0
      %v2703 = vadd.f32 0.0, %v2702
      %2704 = vmatprep.mubr.f32.mxu0 0.0
      %2705 = vmatmul.mubr.f32.gmra.mxu0 %v2484
      %v2706 = vpop.f32.mrf.mxu0
      %v2707 = vadd.f32 0.0, %v2706
      %v2708 = vpop.f32.mrf.mxu0
      %v2709 = vadd.f32 0.0, %v2708
      %2710 = vmatprep.mubr.f32.mxu0 0.0
      %2711 = vmatmul.mubr.f32.gmra.mxu0 %v2486
      %v2712 = vpop.f32.mrf.mxu0
      %v2713 = vadd.f32 0.0, %v2712
      %v2714 = vpop.f32.mrf.mxu0
      %v2715 = vadd.f32 0.0, %v2714
      %2716 = vmatprep.mubr.f32.mxu0 0.0
      %2717 = vmatmul.mubr.f32.gmra.mxu0 %v2488
      %v2718 = vpop.f32.mrf.mxu0
      %v2719 = vadd.f32 0.0, %v2718
      %v2720 = vpop.f32.mrf.mxu0
      %v2721 = vadd.f32 0.0, %v2720
      %2722 = vmatprep.mubr.f32.mxu0 0.0
      %2723 = vmatmul.mubr.f32.gmra.mxu0 %v2490
      %v2724 = vpop.f32.mrf.mxu0
      %v2725 = vadd.f32 0.0, %v2724
      %v2726 = vpop.f32.mrf.mxu0
      %v2727 = vadd.f32 0.0, %v2726
      %2728 = vmatprep.mubr.f32.mxu0 0.0
      %2729 = vmatmul.mubr.f32.gmra.mxu0 %v2492
      %v2730 = vpop.f32.mrf.mxu0
      %v2731 = vadd.f32 0.0, %v2730
      %v2732 = vpop.f32.mrf.mxu0
      %v2733 = vadd.f32 0.0, %v2732
      %2734 = vmatprep.mubr.f32.mxu0 0.0
      %2735 = vmatmul.mubr.f32.gmra.mxu0 %v2494
      %v2736 = vpop.f32.mrf.mxu0
      %v2737 = vadd.f32 0.0, %v2736
      %v2738 = vpop.f32.mrf.mxu0
      %v2739 = vadd.f32 0.0, %v2738
      %2740 = vmatprep.mubr.f32.mxu0 0.0
      %2741 = vmatmul.mubr.f32.gmra.mxu0 %v2496
      %v2742 = vpop.f32.mrf.mxu0
      %v2743 = vadd.f32 0.0, %v2742
      %v2744 = vpop.f32.mrf.mxu0
      %v2745 = vadd.f32 0.0, %v2744
      %2746 = vmatprep.mubr.f32.mxu0 0.0
      %2747 = vmatmul.mubr.f32.gmra.mxu0 %v2498
      %v2748 = vpop.f32.mrf.mxu0
      %v2749 = vadd.f32 0.0, %v2748
      %v2750 = vpop.f32.mrf.mxu0
      %v2751 = vadd.f32 0.0, %v2750
      %2752 = vmatprep.mubr.f32.mxu0 0.0
      %2753 = vmatmul.mubr.f32.gmra.mxu0 %v2500
      %v2754 = vpop.f32.mrf.mxu0
      %v2755 = vadd.f32 0.0, %v2754
      %v2756 = vpop.f32.mrf.mxu0
      %v2757 = vadd.f32 0.0, %v2756
      %2758 = vmatprep.mubr.f32.mxu0 0.0
      %2759 = vmatmul.mubr.f32.gmra.mxu0 %v2502
      %v2760 = vpop.f32.mrf.mxu0
      %v2761 = vadd.f32 0.0, %v2760
      %v2762 = vpop.f32.mrf.mxu0
      %v2763 = vadd.f32 0.0, %v2762
      %2764 = vmatprep.mubr.f32.mxu0 0.0
      %2765 = vmatmul.mubr.f32.gmra.mxu0 %v2504
      %v2766 = vpop.f32.mrf.mxu0
      %v2767 = vadd.f32 0.0, %v2766
      %v2768 = vpop.f32.mrf.mxu0
      %v2769 = vadd.f32 0.0, %v2768
      %2770 = vdwg.mxu0
      %v2771 = vmul.f32 %v2623, 0.17677669
      %v2772 = vmul.f32 %v2625, 0.17677669
      %v2773 = vmul.f32 %v2629, 0.17677669
      %v2774 = vmul.f32 %v2631, 0.17677669
      %v2775 = vmul.f32 %v2635, 0.17677669
      %v2776 = vmul.f32 %v2637, 0.17677669
      %v2777 = vmul.f32 %v2641, 0.17677669
      %v2778 = vmul.f32 %v2643, 0.17677669
      %v2779 = vmul.f32 %v2647, 0.17677669
      %v2780 = vmul.f32 %v2649, 0.17677669
      %v2781 = vmul.f32 %v2653, 0.17677669
      %v2782 = vmul.f32 %v2655, 0.17677669
      %v2783 = vmul.f32 %v2659, 0.17677669
      %v2784 = vmul.f32 %v2661, 0.17677669
      %v2785 = vmul.f32 %v2665, 0.17677669
      %v2786 = vmul.f32 %v2667, 0.17677669
      %v2787 = vmul.f32 %v2671, 0.17677669
      %v2788 = vmul.f32 %v2673, 0.17677669
      %v2789 = vmul.f32 %v2677, 0.17677669
      %v2790 = vmul.f32 %v2679, 0.17677669
      %v2791 = vmul.f32 %v2683, 0.17677669
      %v2792 = vmul.f32 %v2685, 0.17677669
      %v2793 = vmul.f32 %v2689, 0.17677669
      %v2794 = vmul.f32 %v2691, 0.17677669
      %v2795 = vmul.f32 %v2695, 0.17677669
      %v2796 = vmul.f32 %v2697, 0.17677669
      %v2797 = vmul.f32 %v2701, 0.17677669
      %v2798 = vmul.f32 %v2703, 0.17677669
      %v2799 = vmul.f32 %v2707, 0.17677669
      %v2800 = vmul.f32 %v2709, 0.17677669
      %v2801 = vmul.f32 %v2713, 0.17677669
      %v2802 = vmul.f32 %v2715, 0.17677669
      %v2803 = vmul.f32 %v2719, 0.17677669
      %v2804 = vmul.f32 %v2721, 0.17677669
      %v2805 = vmul.f32 %v2725, 0.17677669
      %v2806 = vmul.f32 %v2727, 0.17677669
      %v2807 = vmul.f32 %v2731, 0.17677669
      %v2808 = vmul.f32 %v2733, 0.17677669
      %v2809 = vmul.f32 %v2737, 0.17677669
      %v2810 = vmul.f32 %v2739, 0.17677669
      %v2811 = vmul.f32 %v2743, 0.17677669
      %v2812 = vmul.f32 %v2745, 0.17677669
      %v2813 = vmul.f32 %v2749, 0.17677669
      %v2814 = vmul.f32 %v2751, 0.17677669
      %v2815 = vmul.f32 %v2755, 0.17677669
      %v2816 = vmul.f32 %v2757, 0.17677669
      %v2817 = vmul.f32 %v2761, 0.17677669
      %v2818 = vmul.f32 %v2763, 0.17677669
      %v2819 = vmul.f32 %v2767, 0.17677669
      %v2820 = vmul.f32 %v2769, 0.17677669
      %v2821 = vsel %vm1658, %v2772, -inf
      %v2822 = vmax.f32 %v2771, %v2821
      %2823 = vmax.xlane.f32.xlu0 %v2822
      %v2824 = vpop.xlane.xlu0 %2823
      %v2825 = vsel %vm1658, %v2774, -inf
      %v2826 = vmax.f32 %v2773, %v2825
      %2827 = vmax.xlane.f32.xlu0 %v2826
      %v2828 = vpop.xlane.xlu0 %2827
      %v2829 = vsel %vm1658, %v2776, -inf
      %v2830 = vmax.f32 %v2775, %v2829
      %2831 = vmax.xlane.f32.xlu0 %v2830
      %v2832 = vpop.xlane.xlu0 %2831
      %v2833 = vsel %vm1658, %v2778, -inf
      %v2834 = vmax.f32 %v2777, %v2833
      %2835 = vmax.xlane.f32.xlu0 %v2834
      %v2836 = vpop.xlane.xlu0 %2835
      %v2837 = vsel %vm1658, %v2780, -inf
      %v2838 = vmax.f32 %v2779, %v2837
      %2839 = vmax.xlane.f32.xlu0 %v2838
      %v2840 = vpop.xlane.xlu0 %2839
      %v2841 = vsel %vm1658, %v2782, -inf
      %v2842 = vmax.f32 %v2781, %v2841
      %2843 = vmax.xlane.f32.xlu0 %v2842
      %v2844 = vpop.xlane.xlu0 %2843
      %v2845 = vsel %vm1658, %v2784, -inf
      %v2846 = vmax.f32 %v2783, %v2845
      %2847 = vmax.xlane.f32.xlu0 %v2846
      %v2848 = vpop.xlane.xlu0 %2847
      %v2849 = vsel %vm1658, %v2786, -inf
      %v2850 = vmax.f32 %v2785, %v2849
      %2851 = vmax.xlane.f32.xlu0 %v2850
      %v2852 = vpop.xlane.xlu0 %2851
      %v2853 = vsel %vm1658, %v2788, -inf
      %v2854 = vmax.f32 %v2787, %v2853
      %2855 = vmax.xlane.f32.xlu0 %v2854
      %v2856 = vpop.xlane.xlu0 %2855
      %v2857 = vsel %vm1658, %v2790, -inf
      %v2858 = vmax.f32 %v2789, %v2857
      %2859 = vmax.xlane.f32.xlu0 %v2858
      %v2860 = vpop.xlane.xlu0 %2859
      %v2861 = vsel %vm1658, %v2792, -inf
      %v2862 = vmax.f32 %v2791, %v2861
      %2863 = vmax.xlane.f32.xlu0 %v2862
      %v2864 = vpop.xlane.xlu0 %2863
      %v2865 = vsel %vm1658, %v2794, -inf
      %v2866 = vmax.f32 %v2793, %v2865
      %2867 = vmax.xlane.f32.xlu0 %v2866
      %v2868 = vpop.xlane.xlu0 %2867
      %v2869 = vsel %vm1658, %v2796, -inf
      %v2870 = vmax.f32 %v2795, %v2869
      %2871 = vmax.xlane.f32.xlu0 %v2870
      %v2872 = vpop.xlane.xlu0 %2871
      %v2873 = vsel %vm1658, %v2798, -inf
      %v2874 = vmax.f32 %v2797, %v2873
      %2875 = vmax.xlane.f32.xlu0 %v2874
      %v2876 = vpop.xlane.xlu0 %2875
      %v2877 = vsel %vm1658, %v2800, -inf
      %v2878 = vmax.f32 %v2799, %v2877
      %2879 = vmax.xlane.f32.xlu0 %v2878
      %v2880 = vpop.xlane.xlu0 %2879
      %v2881 = vsel %vm1658, %v2802, -inf
      %v2882 = vmax.f32 %v2801, %v2881
      %2883 = vmax.xlane.f32.xlu0 %v2882
      %v2884 = vpop.xlane.xlu0 %2883
      %v2885 = vsel %vm1658, %v2804, -inf
      %v2886 = vmax.f32 %v2803, %v2885
      %2887 = vmax.xlane.f32.xlu0 %v2886
      %v2888 = vpop.xlane.xlu0 %2887
      %v2889 = vsel %vm1658, %v2806, -inf
      %v2890 = vmax.f32 %v2805, %v2889
      %2891 = vmax.xlane.f32.xlu0 %v2890
      %v2892 = vpop.xlane.xlu0 %2891
      %v2893 = vsel %vm1658, %v2808, -inf
      %v2894 = vmax.f32 %v2807, %v2893
      %2895 = vmax.xlane.f32.xlu0 %v2894
      %v2896 = vpop.xlane.xlu0 %2895
      %v2897 = vsel %vm1658, %v2810, -inf
      %v2898 = vmax.f32 %v2809, %v2897
      %2899 = vmax.xlane.f32.xlu0 %v2898
      %v2900 = vpop.xlane.xlu0 %2899
      %v2901 = vsel %vm1658, %v2812, -inf
      %v2902 = vmax.f32 %v2811, %v2901
      %2903 = vmax.xlane.f32.xlu0 %v2902
      %v2904 = vpop.xlane.xlu0 %2903
      %v2905 = vsel %vm1658, %v2814, -inf
      %v2906 = vmax.f32 %v2813, %v2905
      %2907 = vmax.xlane.f32.xlu0 %v2906
      %v2908 = vpop.xlane.xlu0 %2907
      %v2909 = vsel %vm1658, %v2816, -inf
      %v2910 = vmax.f32 %v2815, %v2909
      %2911 = vmax.xlane.f32.xlu0 %v2910
      %v2912 = vpop.xlane.xlu0 %2911
      %v2913 = vsel %vm1658, %v2818, -inf
      %v2914 = vmax.f32 %v2817, %v2913
      %2915 = vmax.xlane.f32.xlu0 %v2914
      %v2916 = vpop.xlane.xlu0 %2915
      %v2917 = vsel %vm1755, %v2819, -inf
      %v2918 = vsel %vm1757, %v2820, -inf
      %v2919 = vmax.f32 %v2917, %v2918
      %2920 = vmax.xlane.f32.xlu0 %v2919
      %v2921 = vpop.xlane.xlu0 %2920
      %v2922 = vsub.f32 %v2771, %v2824
      %v2923 = vsub.f32 %v2772, %v2824
      %v2924 = vsub.f32 %v2773, %v2828
      %v2925 = vsub.f32 %v2774, %v2828
      %v2926 = vsub.f32 %v2775, %v2832
      %v2927 = vsub.f32 %v2776, %v2832
      %v2928 = vsub.f32 %v2777, %v2836
      %v2929 = vsub.f32 %v2778, %v2836
      %v2930 = vsub.f32 %v2779, %v2840
      %v2931 = vsub.f32 %v2780, %v2840
      %v2932 = vsub.f32 %v2781, %v2844
      %v2933 = vsub.f32 %v2782, %v2844
      %v2934 = vsub.f32 %v2783, %v2848
      %v2935 = vsub.f32 %v2784, %v2848
      %v2936 = vsub.f32 %v2785, %v2852
      %v2937 = vsub.f32 %v2786, %v2852
      %v2938 = vsub.f32 %v2787, %v2856
      %v2939 = vsub.f32 %v2788, %v2856
      %v2940 = vsub.f32 %v2789, %v2860
      %v2941 = vsub.f32 %v2790, %v2860
      %v2942 = vsub.f32 %v2791, %v2864
      %v2943 = vsub.f32 %v2792, %v2864
      %v2944 = vsub.f32 %v2793, %v2868
      %v2945 = vsub.f32 %v2794, %v2868
      %v2946 = vsub.f32 %v2795, %v2872
      %v2947 = vsub.f32 %v2796, %v2872
      %v2948 = vsub.f32 %v2797, %v2876
      %v2949 = vsub.f32 %v2798, %v2876
      %v2950 = vsub.f32 %v2799, %v2880
      %v2951 = vsub.f32 %v2800, %v2880
      %v2952 = vsub.f32 %v2801, %v2884
      %v2953 = vsub.f32 %v2802, %v2884
      %v2954 = vsub.f32 %v2803, %v2888
      %v2955 = vsub.f32 %v2804, %v2888
      %v2956 = vsub.f32 %v2805, %v2892
      %v2957 = vsub.f32 %v2806, %v2892
      %v2958 = vsub.f32 %v2807, %v2896
      %v2959 = vsub.f32 %v2808, %v2896
      %v2960 = vsub.f32 %v2809, %v2900
      %v2961 = vsub.f32 %v2810, %v2900
      %v2962 = vsub.f32 %v2811, %v2904
      %v2963 = vsub.f32 %v2812, %v2904
      %v2964 = vsub.f32 %v2813, %v2908
      %v2965 = vsub.f32 %v2814, %v2908
      %v2966 = vsub.f32 %v2815, %v2912
      %v2967 = vsub.f32 %v2816, %v2912
      %v2968 = vsub.f32 %v2817, %v2916
      %v2969 = vsub.f32 %v2818, %v2916
      %v2970 = vsub.f32 %v2819, %v2921
      %v2971 = vsub.f32 %v2820, %v2921
      %v2972 = vmul.f32 %v2922, 1.442695
      %v2973 = vpow.pop %v2972
      %v2974 = vmul.f32 %v2923, 1.442695
      %v2975 = vpow.pop %v2974
      %v2976 = vmul.f32 %v2924, 1.442695
      %v2977 = vpow.pop %v2976
      %v2978 = vmul.f32 %v2925, 1.442695
      %v2979 = vpow.pop %v2978
      %v2980 = vmul.f32 %v2926, 1.442695
      %v2981 = vpow.pop %v2980
      %v2982 = vmul.f32 %v2927, 1.442695
      %v2983 = vpow.pop %v2982
      %v2984 = vmul.f32 %v2928, 1.442695
      %v2985 = vpow.pop %v2984
      %v2986 = vmul.f32 %v2929, 1.442695
      %v2987 = vpow.pop %v2986
      %v2988 = vmul.f32 %v2930, 1.442695
      %v2989 = vpow.pop %v2988
      %v2990 = vmul.f32 %v2931, 1.442695
      %v2991 = vpow.pop %v2990
      %v2992 = vmul.f32 %v2932, 1.442695
      %v2993 = vpow.pop %v2992
      %v2994 = vmul.f32 %v2933, 1.442695
      %v2995 = vpow.pop %v2994
      %v2996 = vmul.f32 %v2934, 1.442695
      %v2997 = vpow.pop %v2996
      %v2998 = vmul.f32 %v2935, 1.442695
      %v2999 = vpow.pop %v2998
      %v3000 = vmul.f32 %v2936, 1.442695
      %v3001 = vpow.pop %v3000
      %v3002 = vmul.f32 %v2937, 1.442695
      %v3003 = vpow.pop %v3002
      %v3004 = vmul.f32 %v2938, 1.442695
      %v3005 = vpow.pop %v3004
      %v3006 = vmul.f32 %v2939, 1.442695
      %v3007 = vpow.pop %v3006
      %v3008 = vmul.f32 %v2940, 1.442695
      %v3009 = vpow.pop %v3008
      %v3010 = vmul.f32 %v2941, 1.442695
      %v3011 = vpow.pop %v3010
      %v3012 = vmul.f32 %v2942, 1.442695
      %v3013 = vpow.pop %v3012
      %v3014 = vmul.f32 %v2943, 1.442695
      %v3015 = vpow.pop %v3014
      %v3016 = vmul.f32 %v2944, 1.442695
      %v3017 = vpow.pop %v3016
      %v3018 = vmul.f32 %v2945, 1.442695
      %v3019 = vpow.pop %v3018
      %v3020 = vmul.f32 %v2946, 1.442695
      %v3021 = vpow.pop %v3020
      %v3022 = vmul.f32 %v2947, 1.442695
      %v3023 = vpow.pop %v3022
      %v3024 = vmul.f32 %v2948, 1.442695
      %v3025 = vpow.pop %v3024
      %v3026 = vmul.f32 %v2949, 1.442695
      %v3027 = vpow.pop %v3026
      %v3028 = vmul.f32 %v2950, 1.442695
      %v3029 = vpow.pop %v3028
      %v3030 = vmul.f32 %v2951, 1.442695
      %v3031 = vpow.pop %v3030
      %v3032 = vmul.f32 %v2952, 1.442695
      %v3033 = vpow.pop %v3032
      %v3034 = vmul.f32 %v2953, 1.442695
      %v3035 = vpow.pop %v3034
      %v3036 = vmul.f32 %v2954, 1.442695
      %v3037 = vpow.pop %v3036
      %v3038 = vmul.f32 %v2955, 1.442695
      %v3039 = vpow.pop %v3038
      %v3040 = vmul.f32 %v2956, 1.442695
      %v3041 = vpow.pop %v3040
      %v3042 = vmul.f32 %v2957, 1.442695
      %v3043 = vpow.pop %v3042
      %v3044 = vmul.f32 %v2958, 1.442695
      %v3045 = vpow.pop %v3044
      %v3046 = vmul.f32 %v2959, 1.442695
      %v3047 = vpow.pop %v3046
      %v3048 = vmul.f32 %v2960, 1.442695
      %v3049 = vpow.pop %v3048
      %v3050 = vmul.f32 %v2961, 1.442695
      %v3051 = vpow.pop %v3050
      %v3052 = vmul.f32 %v2962, 1.442695
      %v3053 = vpow.pop %v3052
      %v3054 = vmul.f32 %v2963, 1.442695
      %v3055 = vpow.pop %v3054
      %v3056 = vmul.f32 %v2964, 1.442695
      %v3057 = vpow.pop %v3056
      %v3058 = vmul.f32 %v2965, 1.442695
      %v3059 = vpow.pop %v3058
      %v3060 = vmul.f32 %v2966, 1.442695
      %v3061 = vpow.pop %v3060
      %v3062 = vmul.f32 %v2967, 1.442695
      %v3063 = vpow.pop %v3062
      %v3064 = vmul.f32 %v2968, 1.442695
      %v3065 = vpow.pop %v3064
      %v3066 = vmul.f32 %v2969, 1.442695
      %v3067 = vpow.pop %v3066
      %v3068 = vmul.f32 %v2970, 1.442695
      %v3069 = vpow.pop %v3068
      %v3070 = vmul.f32 %v2971, 1.442695
      %v3071 = vpow.pop %v3070
      %v3072 = vsel %vm1658, %v2975, 0.0
      %v3073 = vadd.f32 %v2973, %v3072
      %3074 = vadd.xlane.f32.xlu0 %v3073
      %v3075 = vpop.xlane.xlu0 %3074
      %v3076 = vsel %vm1658, %v2979, 0.0
      %v3077 = vadd.f32 %v2977, %v3076
      %3078 = vadd.xlane.f32.xlu0 %v3077
      %v3079 = vpop.xlane.xlu0 %3078
      %v3080 = vsel %vm1658, %v2983, 0.0
      %v3081 = vadd.f32 %v2981, %v3080
      %3082 = vadd.xlane.f32.xlu0 %v3081
      %v3083 = vpop.xlane.xlu0 %3082
      %v3084 = vsel %vm1658, %v2987, 0.0
      %v3085 = vadd.f32 %v2985, %v3084
      %3086 = vadd.xlane.f32.xlu0 %v3085
      %v3087 = vpop.xlane.xlu0 %3086
      %v3088 = vsel %vm1658, %v2991, 0.0
      %v3089 = vadd.f32 %v2989, %v3088
      %3090 = vadd.xlane.f32.xlu0 %v3089
      %v3091 = vpop.xlane.xlu0 %3090
      %v3092 = vsel %vm1658, %v2995, 0.0
      %v3093 = vadd.f32 %v2993, %v3092
      %3094 = vadd.xlane.f32.xlu0 %v3093
      %v3095 = vpop.xlane.xlu0 %3094
      %v3096 = vsel %vm1658, %v2999, 0.0
      %v3097 = vadd.f32 %v2997, %v3096
      %3098 = vadd.xlane.f32.xlu0 %v3097
      %v3099 = vpop.xlane.xlu0 %3098
      %v3100 = vsel %vm1658, %v3003, 0.0
      %v3101 = vadd.f32 %v3001, %v3100
      %3102 = vadd.xlane.f32.xlu0 %v3101
      %v3103 = vpop.xlane.xlu0 %3102
      %v3104 = vsel %vm1658, %v3007, 0.0
      %v3105 = vadd.f32 %v3005, %v3104
      %3106 = vadd.xlane.f32.xlu0 %v3105
      %v3107 = vpop.xlane.xlu0 %3106
      %v3108 = vsel %vm1658, %v3011, 0.0
      %v3109 = vadd.f32 %v3009, %v3108
      %3110 = vadd.xlane.f32.xlu0 %v3109
      %v3111 = vpop.xlane.xlu0 %3110
      %v3112 = vsel %vm1658, %v3015, 0.0
      %v3113 = vadd.f32 %v3013, %v3112
      %3114 = vadd.xlane.f32.xlu0 %v3113
      %v3115 = vpop.xlane.xlu0 %3114
      %v3116 = vsel %vm1658, %v3019, 0.0
      %v3117 = vadd.f32 %v3017, %v3116
      %3118 = vadd.xlane.f32.xlu0 %v3117
      %v3119 = vpop.xlane.xlu0 %3118
      %v3120 = vsel %vm1658, %v3023, 0.0
      %v3121 = vadd.f32 %v3021, %v3120
      %3122 = vadd.xlane.f32.xlu0 %v3121
      %v3123 = vpop.xlane.xlu0 %3122
      %v3124 = vsel %vm1658, %v3027, 0.0
      %v3125 = vadd.f32 %v3025, %v3124
      %3126 = vadd.xlane.f32.xlu0 %v3125
      %v3127 = vpop.xlane.xlu0 %3126
      %v3128 = vsel %vm1658, %v3031, 0.0
      %v3129 = vadd.f32 %v3029, %v3128
      %3130 = vadd.xlane.f32.xlu0 %v3129
      %v3131 = vpop.xlane.xlu0 %3130
      %v3132 = vsel %vm1658, %v3035, 0.0
      %v3133 = vadd.f32 %v3033, %v3132
      %3134 = vadd.xlane.f32.xlu0 %v3133
      %v3135 = vpop.xlane.xlu0 %3134
      %v3136 = vsel %vm1658, %v3039, 0.0
      %v3137 = vadd.f32 %v3037, %v3136
      %3138 = vadd.xlane.f32.xlu0 %v3137
      %v3139 = vpop.xlane.xlu0 %3138
      %v3140 = vsel %vm1658, %v3043, 0.0
      %v3141 = vadd.f32 %v3041, %v3140
      %3142 = vadd.xlane.f32.xlu0 %v3141
      %v3143 = vpop.xlane.xlu0 %3142
      %v3144 = vsel %vm1658, %v3047, 0.0
      %v3145 = vadd.f32 %v3045, %v3144
      %3146 = vadd.xlane.f32.xlu0 %v3145
      %v3147 = vpop.xlane.xlu0 %3146
      %v3148 = vsel %vm1658, %v3051, 0.0
      %v3149 = vadd.f32 %v3049, %v3148
      %3150 = vadd.xlane.f32.xlu0 %v3149
      %v3151 = vpop.xlane.xlu0 %3150
      %v3152 = vsel %vm1658, %v3055, 0.0
      %v3153 = vadd.f32 %v3053, %v3152
      %3154 = vadd.xlane.f32.xlu0 %v3153
      %v3155 = vpop.xlane.xlu0 %3154
      %v3156 = vsel %vm1658, %v3059, 0.0
      %v3157 = vadd.f32 %v3057, %v3156
      %3158 = vadd.xlane.f32.xlu0 %v3157
      %v3159 = vpop.xlane.xlu0 %3158
      %v3160 = vsel %vm1658, %v3063, 0.0
      %v3161 = vadd.f32 %v3061, %v3160
      %3162 = vadd.xlane.f32.xlu0 %v3161
      %v3163 = vpop.xlane.xlu0 %3162
      %v3164 = vsel %vm1658, %v3067, 0.0
      %v3165 = vadd.f32 %v3065, %v3164
      %3166 = vadd.xlane.f32.xlu0 %v3165
      %v3167 = vpop.xlane.xlu0 %3166
      %v3168 = vsel %vm1755, %v3069, 0.0
      %v3169 = vsel %vm1757, %v3071, 0.0
      %v3170 = vadd.f32 %v3168, %v3169
      %3171 = vadd.xlane.f32.xlu0 %v3170
      %v3172 = vpop.xlane.xlu0 %3171
      %v3173 = vrcp.pop %v3075
      %v3174 = vrcp.pop %v3079
      %v3175 = vrcp.pop %v3083
      %v3176 = vrcp.pop %v3087
      %v3177 = vrcp.pop %v3091
      %v3178 = vrcp.pop %v3095
      %v3179 = vrcp.pop %v3099
      %v3180 = vrcp.pop %v3103
      %v3181 = vrcp.pop %v3107
      %v3182 = vrcp.pop %v3111
      %v3183 = vrcp.pop %v3115
      %v3184 = vrcp.pop %v3119
      %v3185 = vrcp.pop %v3123
      %v3186 = vrcp.pop %v3127
      %v3187 = vrcp.pop %v3131
      %v3188 = vrcp.pop %v3135
      %v3189 = vrcp.pop %v3139
      %v3190 = vrcp.pop %v3143
      %v3191 = vrcp.pop %v3147
      %v3192 = vrcp.pop %v3151
      %v3193 = vrcp.pop %v3155
      %v3194 = vrcp.pop %v3159
      %v3195 = vrcp.pop %v3163
      %v3196 = vrcp.pop %v3167
      %v3197 = vrcp.pop %v3172
      %v3198 = vmul.f32 %v2973, %v3173
      %v3199 = vmul.f32 %v2975, %v3173
      %v3200 = vmul.f32 %v2977, %v3174
      %v3201 = vmul.f32 %v2979, %v3174
      %v3202 = vmul.f32 %v2981, %v3175
      %v3203 = vmul.f32 %v2983, %v3175
      %v3204 = vmul.f32 %v2985, %v3176
      %v3205 = vmul.f32 %v2987, %v3176
      %v3206 = vmul.f32 %v2989, %v3177
      %v3207 = vmul.f32 %v2991, %v3177
      %v3208 = vmul.f32 %v2993, %v3178
      %v3209 = vmul.f32 %v2995, %v3178
      %v3210 = vmul.f32 %v2997, %v3179
      %v3211 = vmul.f32 %v2999, %v3179
      %v3212 = vmul.f32 %v3001, %v3180
      %v3213 = vmul.f32 %v3003, %v3180
      %v3214 = vmul.f32 %v3005, %v3181
      %v3215 = vmul.f32 %v3007, %v3181
      %v3216 = vmul.f32 %v3009, %v3182
      %v3217 = vmul.f32 %v3011, %v3182
      %v3218 = vmul.f32 %v3013, %v3183
      %v3219 = vmul.f32 %v3015, %v3183
      %v3220 = vmul.f32 %v3017, %v3184
      %v3221 = vmul.f32 %v3019, %v3184
      %v3222 = vmul.f32 %v3021, %v3185
      %v3223 = vmul.f32 %v3023, %v3185
      %v3224 = vmul.f32 %v3025, %v3186
      %v3225 = vmul.f32 %v3027, %v3186
      %v3226 = vmul.f32 %v3029, %v3187
      %v3227 = vmul.f32 %v3031, %v3187
      %v3228 = vmul.f32 %v3033, %v3188
      %v3229 = vmul.f32 %v3035, %v3188
      %v3230 = vmul.f32 %v3037, %v3189
      %v3231 = vmul.f32 %v3039, %v3189
      %v3232 = vmul.f32 %v3041, %v3190
      %v3233 = vmul.f32 %v3043, %v3190
      %v3234 = vmul.f32 %v3045, %v3191
      %v3235 = vmul.f32 %v3047, %v3191
      %v3236 = vmul.f32 %v3049, %v3192
      %v3237 = vmul.f32 %v3051, %v3192
      %v3238 = vmul.f32 %v3053, %v3193
      %v3239 = vmul.f32 %v3055, %v3193
      %v3240 = vmul.f32 %v3057, %v3194
      %v3241 = vmul.f32 %v3059, %v3194
      %v3242 = vmul.f32 %v3061, %v3195
      %v3243 = vmul.f32 %v3063, %v3195
      %v3244 = vmul.f32 %v3065, %v3196
      %v3245 = vmul.f32 %v3067, %v3196
      %v3246 = vmul.f32 %v3069, %v3197
      %v3247 = vmul.f32 %v3071, %v3197
      %3272 = vrot.lane.b32.xlu0 %v1071, 96
      %v3273 = vpop.permute.xlu0 %3272
      %3274 = vrot.lane.b32.xlu0 %v1077, 96
      %v3275 = vpop.permute.xlu0 %3274
      %3276 = vrot.lane.b32.xlu0 %v1083, 96
      %v3277 = vpop.permute.xlu0 %3276
      %3278 = vrot.lane.b32.xlu0 %v1089, 96
      %v3279 = vpop.permute.xlu0 %3278
      %3280 = vrot.lane.b32.xlu0 %v1095, 96
      %v3281 = vpop.permute.xlu0 %3280
      %3282 = vrot.lane.b32.xlu0 %v1101, 96
      %v3283 = vpop.permute.xlu0 %3282
      %3284 = vrot.lane.b32.xlu0 %v1107, 96
      %v3285 = vpop.permute.xlu0 %3284
      %3286 = vrot.lane.b32.xlu0 %v1113, 96
      %v3287 = vpop.permute.xlu0 %3286
      %3288 = vrot.lane.b32.xlu0 %v1119, 96
      %v3289 = vpop.permute.xlu0 %3288
      %3290 = vrot.lane.b32.xlu0 %v1125, 96
      %v3291 = vpop.permute.xlu0 %3290
      %3292 = vrot.lane.b32.xlu0 %v1131, 96
      %v3293 = vpop.permute.xlu0 %3292
      %3294 = vrot.lane.b32.xlu0 %v1137, 96
      %v3295 = vpop.permute.xlu0 %3294
      %3296 = vrot.lane.b32.xlu0 %v1143, 96
      %v3297 = vpop.permute.xlu0 %3296
      %3298 = vrot.lane.b32.xlu0 %v1149, 96
      %v3299 = vpop.permute.xlu0 %3298
      %3300 = vrot.lane.b32.xlu0 %v1155, 96
      %v3301 = vpop.permute.xlu0 %3300
      %3302 = vrot.lane.b32.xlu0 %v1161, 96
      %v3303 = vpop.permute.xlu0 %3302
      %3304 = vrot.lane.b32.xlu0 %v1167, 96
      %v3305 = vpop.permute.xlu0 %3304
      %3306 = vrot.lane.b32.xlu0 %v1173, 96
      %v3307 = vpop.permute.xlu0 %3306
      %3308 = vrot.lane.b32.xlu0 %v1179, 96
      %v3309 = vpop.permute.xlu0 %3308
      %3310 = vrot.lane.b32.xlu0 %v1185, 96
      %v3311 = vpop.permute.xlu0 %3310
      %3312 = vrot.lane.b32.xlu0 %v1191, 96
      %v3313 = vpop.permute.xlu0 %3312
      %3314 = vrot.lane.b32.xlu0 %v1197, 96
      %v3315 = vpop.permute.xlu0 %3314
      %3316 = vrot.lane.b32.xlu0 %v1203, 96
      %v3317 = vpop.permute.xlu0 %3316
      %3318 = vrot.lane.b32.xlu0 %v1209, 96
      %v3319 = vpop.permute.xlu0 %3318
      %3320 = vrot.lane.b32.xlu0 %v1215, 96
      %v3321 = vpop.permute.xlu0 %3320
      %v3347 = vsel %vm1658, %v3199, 0
      %v3350 = vsel %vm1658, %v3201, 0
      %v3353 = vsel %vm1658, %v3203, 0
      %v3356 = vsel %vm1658, %v3205, 0
      %v3359 = vsel %vm1658, %v3207, 0
      %v3362 = vsel %vm1658, %v3209, 0
      %v3365 = vsel %vm1658, %v3211, 0
      %v3368 = vsel %vm1658, %v3213, 0
      %v3371 = vsel %vm1658, %v3215, 0
      %v3374 = vsel %vm1658, %v3217, 0
      %v3377 = vsel %vm1658, %v3219, 0
      %v3380 = vsel %vm1658, %v3221, 0
      %v3383 = vsel %vm1658, %v3223, 0
      %v3386 = vsel %vm1658, %v3225, 0
      %v3389 = vsel %vm1658, %v3227, 0
      %v3392 = vsel %vm1658, %v3229, 0
      %v3395 = vsel %vm1658, %v3231, 0
      %v3398 = vsel %vm1658, %v3233, 0
      %v3401 = vsel %vm1658, %v3235, 0
      %v3404 = vsel %vm1658, %v3237, 0
      %v3407 = vsel %vm1658, %v3239, 0
      %v3410 = vsel %vm1658, %v3241, 0
      %v3413 = vsel %vm1658, %v3243, 0
      %v3416 = vsel %vm1658, %v3245, 0
      %v3419 = vsel %vm1658, %v3247, 0
      %v3421 = vsel %vm1755, %v3321, 0
      %3423 = vmatprep.subr.mxu0 0.0
      %3424 = vmatpush1.msra.mxu0 %v3303
      %3425 = vmatprep.subr.mxu0 0.0
      %3426 = vmatpush1.msra.mxu0 %v3301
      %3427 = vmatprep.subr.mxu0 0.0
      %3428 = vmatpush1.msra.mxu0 %v3299
      %3429 = vmatprep.subr.mxu0 0.0
      %3430 = vmatpush1.msra.mxu0 %v3297
      %3431 = vmatprep.subr.mxu0 0.0
      %3432 = vmatpush1.msra.mxu0 %v3295
      %3433 = vmatprep.subr.mxu0 0.0
      %3434 = vmatpush1.msra.mxu0 %v3293
      %3435 = vmatprep.subr.mxu0 0.0
      %3436 = vmatpush1.msra.mxu0 %v3291
      %3437 = vmatprep.subr.mxu0 0.0
      %3438 = vmatpush1.msra.mxu0 %v3289
      %3439 = vmatprep.subr.mxu0 0.0
      %3440 = vmatpush1.msra.mxu0 %v3287
      %3441 = vmatprep.subr.mxu0 0.0
      %3442 = vmatpush1.msra.mxu0 %v3285
      %3443 = vmatprep.subr.mxu0 0.0
      %3444 = vmatpush1.msra.mxu0 %v3283
      %3445 = vmatprep.subr.mxu0 0.0
      %3446 = vmatpush1.msra.mxu0 %v3281
      %3447 = vmatprep.subr.mxu0 0.0
      %3448 = vmatpush1.msra.mxu0 %v3279
      %3449 = vmatprep.subr.mxu0 0.0
      %3450 = vmatpush1.msra.mxu0 %v3277
      %3451 = vmatprep.subr.mxu0 0.0
      %3452 = vmatpush1.msra.mxu0 %v3275
      %3453 = vmatprep.subr.mxu0 0.0
      %3454 = vmatpush1.msra.mxu0 %v3273
      %3455 = vmatprep.subr.mxu0 0.0
      %3456 = vmatpush2.msra.mxu0 0.0
      %3457 = vmatprep.subr.mxu0 0.0
      %3458 = vmatpush2.msra.mxu0 0.0
      %3459 = vmatprep.subr.mxu0 0.0
      %3460 = vmatpush2.msra.mxu0 0.0
      %3461 = vmatprep.subr.mxu0 0.0
      %3462 = vmatpush2.msra.mxu0 0.0
      %3463 = vmatprep.subr.mxu0 0.0
      %3464 = vmatpush2.msra.mxu0 0.0
      %3465 = vmatprep.subr.mxu0 0.0
      %3466 = vmatpush2.msra.mxu0 0.0
      %3467 = vmatprep.subr.mxu0 0.0
      %3468 = vmatpush2.msra.mxu0 0.0
      %3469 = vmatprep.subr.mxu0 0.0
      %3470 = vmatpush2.msra.mxu0 %v3421
      %3471 = vmatprep.subr.mxu0 0.0
      %3472 = vmatpush2.msra.mxu0 %v3319
      %3473 = vmatprep.subr.mxu0 0.0
      %3474 = vmatpush2.msra.mxu0 %v3317
      %3475 = vmatprep.subr.mxu0 0.0
      %3476 = vmatpush2.msra.mxu0 %v3315
      %3477 = vmatprep.subr.mxu0 0.0
      %3478 = vmatpush2.msra.mxu0 %v3313
      %3479 = vmatprep.subr.mxu0 0.0
      %3480 = vmatpush2.msra.mxu0 %v3311
      %3481 = vmatprep.subr.mxu0 0.0
      %3482 = vmatpush2.msra.mxu0 %v3309
      %3483 = vmatprep.subr.mxu0 0.0
      %3484 = vmatpush2.msra.mxu0 %v3307
      %3485 = vmatprep.subr.mxu0 0.0
      %3486 = vmatpush2.msra.mxu0 %v3305
      %3487 = vmatprep.mubr.f32.mxu0 %v3347
      %3488 = vmatmul.mubr.f32.gmra.mxu0 %v3198
      %v3489 = vpop.f32.mrf.mxu0
      %v3490 = vadd.f32 0.0, %v3489
      %v3491 = vpop.f32.mrf.mxu0
      %3492 = vmatprep.mubr.f32.mxu0 %v3350
      %3493 = vmatmul.mubr.f32.gmra.mxu0 %v3200
      %v3494 = vpop.f32.mrf.mxu0
      %v3495 = vadd.f32 0.0, %v3494
      %v3496 = vpop.f32.mrf.mxu0
      %3497 = vmatprep.mubr.f32.mxu0 %v3353
      %3498 = vmatmul.mubr.f32.gmra.mxu0 %v3202
      %v3499 = vpop.f32.mrf.mxu0
      %v3500 = vadd.f32 0.0, %v3499
      %v3501 = vpop.f32.mrf.mxu0
      %3502 = vmatprep.mubr.f32.mxu0 %v3356
      %3503 = vmatmul.mubr.f32.gmra.mxu0 %v3204
      %v3504 = vpop.f32.mrf.mxu0
      %v3505 = vadd.f32 0.0, %v3504
      %v3506 = vpop.f32.mrf.mxu0
      %3507 = vmatprep.mubr.f32.mxu0 %v3359
      %3508 = vmatmul.mubr.f32.gmra.mxu0 %v3206
      %v3509 = vpop.f32.mrf.mxu0
      %v3510 = vadd.f32 0.0, %v3509
      %v3511 = vpop.f32.mrf.mxu0
      %3512 = vmatprep.mubr.f32.mxu0 %v3362
      %3513 = vmatmul.mubr.f32.gmra.mxu0 %v3208
      %v3514 = vpop.f32.mrf.mxu0
      %v3515 = vadd.f32 0.0, %v3514
      %v3516 = vpop.f32.mrf.mxu0
      %3517 = vmatprep.mubr.f32.mxu0 %v3365
      %3518 = vmatmul.mubr.f32.gmra.mxu0 %v3210
      %v3519 = vpop.f32.mrf.mxu0
      %v3520 = vadd.f32 0.0, %v3519
      %v3521 = vpop.f32.mrf.mxu0
      %3522 = vmatprep.mubr.f32.mxu0 %v3368
      %3523 = vmatmul.mubr.f32.gmra.mxu0 %v3212
      %v3524 = vpop.f32.mrf.mxu0
      %v3525 = vadd.f32 0.0, %v3524
      %v3526 = vpop.f32.mrf.mxu0
      %3527 = vmatprep.mubr.f32.mxu0 %v3371
      %3528 = vmatmul.mubr.f32.gmra.mxu0 %v3214
      %v3529 = vpop.f32.mrf.mxu0
      %v3530 = vadd.f32 0.0, %v3529
      %v3531 = vpop.f32.mrf.mxu0
      %3532 = vmatprep.mubr.f32.mxu0 %v3374
      %3533 = vmatmul.mubr.f32.gmra.mxu0 %v3216
      %v3534 = vpop.f32.mrf.mxu0
      %v3535 = vadd.f32 0.0, %v3534
      %v3536 = vpop.f32.mrf.mxu0
      %3537 = vmatprep.mubr.f32.mxu0 %v3377
      %3538 = vmatmul.mubr.f32.gmra.mxu0 %v3218
      %v3539 = vpop.f32.mrf.mxu0
      %v3540 = vadd.f32 0.0, %v3539
      %v3541 = vpop.f32.mrf.mxu0
      %3542 = vmatprep.mubr.f32.mxu0 %v3380
      %3543 = vmatmul.mubr.f32.gmra.mxu0 %v3220
      %v3544 = vpop.f32.mrf.mxu0
      %v3545 = vadd.f32 0.0, %v3544
      %v3546 = vpop.f32.mrf.mxu0
      %3547 = vmatprep.mubr.f32.mxu0 %v3383
      %3548 = vmatmul.mubr.f32.gmra.mxu0 %v3222
      %v3549 = vpop.f32.mrf.mxu0
      %v3550 = vadd.f32 0.0, %v3549
      %v3551 = vpop.f32.mrf.mxu0
      %3552 = vmatprep.mubr.f32.mxu0 %v3386
      %3553 = vmatmul.mubr.f32.gmra.mxu0 %v3224
      %v3554 = vpop.f32.mrf.mxu0
      %v3555 = vadd.f32 0.0, %v3554
      %v3556 = vpop.f32.mrf.mxu0
      %3557 = vmatprep.mubr.f32.mxu0 %v3389
      %3558 = vmatmul.mubr.f32.gmra.mxu0 %v3226
      %v3559 = vpop.f32.mrf.mxu0
      %v3560 = vadd.f32 0.0, %v3559
      %v3561 = vpop.f32.mrf.mxu0
      %3562 = vmatprep.mubr.f32.mxu0 %v3392
      %3563 = vmatmul.mubr.f32.gmra.mxu0 %v3228
      %v3564 = vpop.f32.mrf.mxu0
      %v3565 = vadd.f32 0.0, %v3564
      %v3566 = vpop.f32.mrf.mxu0
      %3567 = vmatprep.mubr.f32.mxu0 %v3395
      %3568 = vmatmul.mubr.f32.gmra.mxu0 %v3230
      %v3569 = vpop.f32.mrf.mxu0
      %v3570 = vadd.f32 0.0, %v3569
      %v3571 = vpop.f32.mrf.mxu0
      %3572 = vmatprep.mubr.f32.mxu0 %v3398
      %3573 = vmatmul.mubr.f32.gmra.mxu0 %v3232
      %v3574 = vpop.f32.mrf.mxu0
      %v3575 = vadd.f32 0.0, %v3574
      %v3576 = vpop.f32.mrf.mxu0
      %3577 = vmatprep.mubr.f32.mxu0 %v3401
      %3578 = vmatmul.mubr.f32.gmra.mxu0 %v3234
      %v3579 = vpop.f32.mrf.mxu0
      %v3580 = vadd.f32 0.0, %v3579
      %v3581 = vpop.f32.mrf.mxu0
      %3582 = vmatprep.mubr.f32.mxu0 %v3404
      %3583 = vmatmul.mubr.f32.gmra.mxu0 %v3236
      %v3584 = vpop.f32.mrf.mxu0
      %v3585 = vadd.f32 0.0, %v3584
      %v3586 = vpop.f32.mrf.mxu0
      %3587 = vmatprep.mubr.f32.mxu0 %v3407
      %3588 = vmatmul.mubr.f32.gmra.mxu0 %v3238
      %v3589 = vpop.f32.mrf.mxu0
      %v3590 = vadd.f32 0.0, %v3589
      %v3591 = vpop.f32.mrf.mxu0
      %3592 = vmatprep.mubr.f32.mxu0 %v3410
      %3593 = vmatmul.mubr.f32.gmra.mxu0 %v3240
      %v3594 = vpop.f32.mrf.mxu0
      %v3595 = vadd.f32 0.0, %v3594
      %v3596 = vpop.f32.mrf.mxu0
      %3597 = vmatprep.mubr.f32.mxu0 %v3413
      %3598 = vmatmul.mubr.f32.gmra.mxu0 %v3242
      %v3599 = vpop.f32.mrf.mxu0
      %v3600 = vadd.f32 0.0, %v3599
      %v3601 = vpop.f32.mrf.mxu0
      %3602 = vmatprep.mubr.f32.mxu0 %v3416
      %3603 = vmatmul.mubr.f32.gmra.mxu0 %v3244
      %v3604 = vpop.f32.mrf.mxu0
      %v3605 = vadd.f32 0.0, %v3604
      %v3606 = vpop.f32.mrf.mxu0
      %3607 = vmatprep.mubr.f32.mxu0 %v3419
      %3608 = vmatmul.mubr.f32.gmra.mxu0 %v3246
      %v3609 = vpop.f32.mrf.mxu0
      %v3610 = vadd.f32 0.0, %v3609
      %v3611 = vpop.f32.mrf.mxu0
      %3612 = vdwg.mxu0
      %3638 = vrot.lane.b32.xlu0 %v3490, 32
      %v3639 = vpop.permute.xlu0 %3638
      %3640 = vrot.lane.b32.xlu0 %v3495, 32
      %v3641 = vpop.permute.xlu0 %3640
      %3642 = vrot.lane.b32.xlu0 %v3500, 32
      %v3643 = vpop.permute.xlu0 %3642
      %3644 = vrot.lane.b32.xlu0 %v3505, 32
      %v3645 = vpop.permute.xlu0 %3644
      %3646 = vrot.lane.b32.xlu0 %v3510, 32
      %v3647 = vpop.permute.xlu0 %3646
      %3648 = vrot.lane.b32.xlu0 %v3515, 32
      %v3649 = vpop.permute.xlu0 %3648
      %3650 = vrot.lane.b32.xlu0 %v3520, 32
      %v3651 = vpop.permute.xlu0 %3650
      %3652 = vrot.lane.b32.xlu0 %v3525, 32
      %v3653 = vpop.permute.xlu0 %3652
      %3654 = vrot.lane.b32.xlu0 %v3530, 32
      %v3655 = vpop.permute.xlu0 %3654
      %3656 = vrot.lane.b32.xlu0 %v3535, 32
      %v3657 = vpop.permute.xlu0 %3656
      %3658 = vrot.lane.b32.xlu0 %v3540, 32
      %v3659 = vpop.permute.xlu0 %3658
      %3660 = vrot.lane.b32.xlu0 %v3545, 32
      %v3661 = vpop.permute.xlu0 %3660
      %3662 = vrot.lane.b32.xlu0 %v3550, 32
      %v3663 = vpop.permute.xlu0 %3662
      %3664 = vrot.lane.b32.xlu0 %v3555, 32
      %v3665 = vpop.permute.xlu0 %3664
      %3666 = vrot.lane.b32.xlu0 %v3560, 32
      %v3667 = vpop.permute.xlu0 %3666
      %3668 = vrot.lane.b32.xlu0 %v3565, 32
      %v3669 = vpop.permute.xlu0 %3668
      %3670 = vrot.lane.b32.xlu0 %v3570, 32
      %v3671 = vpop.permute.xlu0 %3670
      %3672 = vrot.lane.b32.xlu0 %v3575, 32
      %v3673 = vpop.permute.xlu0 %3672
      %3674 = vrot.lane.b32.xlu0 %v3580, 32
      %v3675 = vpop.permute.xlu0 %3674
      %3676 = vrot.lane.b32.xlu0 %v3585, 32
      %v3677 = vpop.permute.xlu0 %3676
      %3678 = vrot.lane.b32.xlu0 %v3590, 32
      %v3679 = vpop.permute.xlu0 %3678
      %3680 = vrot.lane.b32.xlu0 %v3595, 32
      %v3681 = vpop.permute.xlu0 %3680
      %3682 = vrot.lane.b32.xlu0 %v3600, 32
      %v3683 = vpop.permute.xlu0 %3682
      %3684 = vrot.lane.b32.xlu0 %v3605, 32
      %v3685 = vpop.permute.xlu0 %3684
      %3686 = vrot.lane.b32.xlu0 %v3610, 32
      %v3687 = vpop.permute.xlu0 %3686
      %v3713 = vsel %vm1292, %v2233, %v3639
      %v3714 = vsel %vm1292, %v2238, %v3641
      %v3715 = vsel %vm1292, %v2243, %v3643
      %v3716 = vsel %vm1292, %v2248, %v3645
      %v3717 = vsel %vm1292, %v2253, %v3647
      %v3718 = vsel %vm1292, %v2258, %v3649
      %v3719 = vsel %vm1292, %v2263, %v3651
      %v3720 = vsel %vm1292, %v2268, %v3653
      %v3721 = vsel %vm1292, %v2273, %v3655
      %v3722 = vsel %vm1292, %v2278, %v3657
      %v3723 = vsel %vm1292, %v2283, %v3659
      %v3724 = vsel %vm1292, %v2288, %v3661
      %v3725 = vsel %vm1292, %v2293, %v3663
      %v3726 = vsel %vm1292, %v2298, %v3665
      %v3727 = vsel %vm1292, %v2303, %v3667
      %v3728 = vsel %vm1292, %v2308, %v3669
      %v3729 = vsel %vm1292, %v2313, %v3671
      %v3730 = vsel %vm1292, %v2318, %v3673
      %v3731 = vsel %vm1292, %v2323, %v3675
      %v3732 = vsel %vm1292, %v2328, %v3677
      %v3733 = vsel %vm1292, %v2333, %v3679
      %v3734 = vsel %vm1292, %v2338, %v3681
      %v3735 = vsel %vm1292, %v2343, %v3683
      %v3736 = vsel %vm1292, %v2348, %v3685
      %v3737 = vsel %vm1292, %v2353, %v3687
      %v3738 = vld [vmem:[%s2 + $0x88] sm:$0xff]
      %v3739 = vld [vmem:[%s2 + $0x98] sm:$0xff]
      %v3740 = vld [vmem:[%s2 + $0xa8] sm:$0xff]
      %v3741 = vld [vmem:[%s2 + $0xb8] sm:$0xff]
      %v3742 = vld [vmem:[%s2 + $0xc8] sm:$0xff]
      %v3743 = vld [vmem:[%s2 + $0xd8] sm:$0xff]
      %v3744 = vld [vmem:[%s2 + $0xe8] sm:$0xff]
      %v3745 = vld [vmem:[%s2 + $0xf8] sm:$0xff]
      %v3746 = vld [vmem:[%s3 + $0x3] ss:$0 sm:$0xff]
      %v3748 = vsel %vm520, %v3713, 0
      %v3751 = vsel %vm520, %v3714, 0
      %v3754 = vsel %vm520, %v3715, 0
      %v3757 = vsel %vm520, %v3716, 0
      %v3760 = vsel %vm520, %v3717, 0
      %v3763 = vsel %vm520, %v3718, 0
      %v3766 = vsel %vm520, %v3719, 0
      %v3769 = vsel %vm520, %v3720, 0
      %v3772 = vsel %vm520, %v3721, 0
      %v3775 = vsel %vm520, %v3722, 0
      %v3778 = vsel %vm520, %v3723, 0
      %v3781 = vsel %vm520, %v3724, 0
      %v3784 = vsel %vm520, %v3725, 0
      %v3787 = vsel %vm520, %v3726, 0
      %v3790 = vsel %vm520, %v3727, 0
      %v3793 = vsel %vm520, %v3728, 0
      %v3796 = vsel %vm520, %v3729, 0
      %v3799 = vsel %vm520, %v3730, 0
      %v3802 = vsel %vm520, %v3731, 0
      %v3805 = vsel %vm520, %v3732, 0
      %v3808 = vsel %vm520, %v3733, 0
      %v3811 = vsel %vm520, %v3734, 0
      %v3814 = vsel %vm520, %v3735, 0
      %v3817 = vsel %vm520, %v3736, 0
      %v3820 = vsel %vm520, %v3737, 0
      %3822 = vmatprep.subr.mxu0 0.0
      %3823 = vmatpush1.msra.mxu0 0.0
      %3824 = vmatprep.subr.mxu0 0.0
      %3825 = vmatpush1.msra.mxu0 0.0
      %3826 = vmatprep.subr.mxu0 0.0
      %3827 = vmatpush1.msra.mxu0 0.0
      %3828 = vmatprep.subr.mxu0 0.0
      %3829 = vmatpush1.msra.mxu0 0.0
      %3830 = vmatprep.subr.mxu0 0.0
      %3831 = vmatpush1.msra.mxu0 0.0
      %3832 = vmatprep.subr.mxu0 0.0
      %3833 = vmatpush1.msra.mxu0 0.0
      %3834 = vmatprep.subr.mxu0 0.0
      %3835 = vmatpush1.msra.mxu0 0.0
      %3836 = vmatprep.subr.mxu0 0.0
      %3837 = vmatpush1.msra.mxu0 0.0
      %3838 = vmatprep.subr.mxu0 0.0
      %3839 = vmatpush1.msra.mxu0 %v3745
      %3840 = vmatprep.subr.mxu0 0.0
      %3841 = vmatpush1.msra.mxu0 %v3744
      %3842 = vmatprep.subr.mxu0 0.0
      %3843 = vmatpush1.msra.mxu0 %v3743
      %3844 = vmatprep.subr.mxu0 0.0
      %3845 = vmatpush1.msra.mxu0 %v3742
      %3846 = vmatprep.subr.mxu0 0.0
      %3847 = vmatpush1.msra.mxu0 %v3741
      %3848 = vmatprep.subr.mxu0 0.0
      %3849 = vmatpush1.msra.mxu0 %v3740
      %3850 = vmatprep.subr.mxu0 0.0
      %3851 = vmatpush1.msra.mxu0 %v3739
      %3852 = vmatprep.subr.mxu0 0.0
      %3853 = vmatpush1.msra.mxu0 %v3738
      %3854 = vmatprep.subr.mxu0 0.0
      %3855 = vmatpush2.msra.mxu0 0.0
      %3856 = vmatprep.subr.mxu0 0.0
      %3857 = vmatpush2.msra.mxu0 0.0
      %3858 = vmatprep.subr.mxu0 0.0
      %3859 = vmatpush2.msra.mxu0 0.0
      %3860 = vmatprep.subr.mxu0 0.0
      %3861 = vmatpush2.msra.mxu0 0.0
      %3862 = vmatprep.subr.mxu0 0.0
      %3863 = vmatpush2.msra.mxu0 0.0
      %3864 = vmatprep.subr.mxu0 0.0
      %3865 = vmatpush2.msra.mxu0 0.0
      %3866 = vmatprep.subr.mxu0 0.0
      %3867 = vmatpush2.msra.mxu0 0.0
      %3868 = vmatprep.subr.mxu0 0.0
      %3869 = vmatpush2.msra.mxu0 0.0
      %3870 = vmatprep.subr.mxu0 0.0
      %3871 = vmatpush2.msra.mxu0 0.0
      %3872 = vmatprep.subr.mxu0 0.0
      %3873 = vmatpush2.msra.mxu0 0.0
      %3874 = vmatprep.subr.mxu0 0.0
      %3875 = vmatpush2.msra.mxu0 0.0
      %3876 = vmatprep.subr.mxu0 0.0
      %3877 = vmatpush2.msra.mxu0 0.0
      %3878 = vmatprep.subr.mxu0 0.0
      %3879 = vmatpush2.msra.mxu0 0.0
      %3880 = vmatprep.subr.mxu0 0.0
      %3881 = vmatpush2.msra.mxu0 0.0
      %3882 = vmatprep.subr.mxu0 0.0
      %3883 = vmatpush2.msra.mxu0 0.0
      %3884 = vmatprep.subr.mxu0 0.0
      %3885 = vmatpush2.msra.mxu0 0.0
      %3886 = vmatprep.mubr.f32.mxu0 0.0
      %3887 = vmatmul.mubr.f32.gmra.mxu0 %v3748
      %v3888 = vpop.f32.mrf.mxu0
      %v3889 = vadd.f32 %v3746, %v3888
      %v3890 = vpop.f32.mrf.mxu0
      %3891 = vmatprep.mubr.f32.mxu0 0.0
      %3892 = vmatmul.mubr.f32.gmra.mxu0 %v3751
      %v3893 = vpop.f32.mrf.mxu0
      %v3894 = vadd.f32 %v3746, %v3893
      %v3895 = vpop.f32.mrf.mxu0
      %3896 = vmatprep.mubr.f32.mxu0 0.0
      %3897 = vmatmul.mubr.f32.gmra.mxu0 %v3754
      %v3898 = vpop.f32.mrf.mxu0
      %v3899 = vadd.f32 %v3746, %v3898
      %v3900 = vpop.f32.mrf.mxu0
      %3901 = vmatprep.mubr.f32.mxu0 0.0
      %3902 = vmatmul.mubr.f32.gmra.mxu0 %v3757
      %v3903 = vpop.f32.mrf.mxu0
      %v3904 = vadd.f32 %v3746, %v3903
      %v3905 = vpop.f32.mrf.mxu0
      %3906 = vmatprep.mubr.f32.mxu0 0.0
      %3907 = vmatmul.mubr.f32.gmra.mxu0 %v3760
      %v3908 = vpop.f32.mrf.mxu0
      %v3909 = vadd.f32 %v3746, %v3908
      %v3910 = vpop.f32.mrf.mxu0
      %3911 = vmatprep.mubr.f32.mxu0 0.0
      %3912 = vmatmul.mubr.f32.gmra.mxu0 %v3763
      %v3913 = vpop.f32.mrf.mxu0
      %v3914 = vadd.f32 %v3746, %v3913
      %v3915 = vpop.f32.mrf.mxu0
      %3916 = vmatprep.mubr.f32.mxu0 0.0
      %3917 = vmatmul.mubr.f32.gmra.mxu0 %v3766
      %v3918 = vpop.f32.mrf.mxu0
      %v3919 = vadd.f32 %v3746, %v3918
      %v3920 = vpop.f32.mrf.mxu0
      %3921 = vmatprep.mubr.f32.mxu0 0.0
      %3922 = vmatmul.mubr.f32.gmra.mxu0 %v3769
      %v3923 = vpop.f32.mrf.mxu0
      %v3924 = vadd.f32 %v3746, %v3923
      %v3925 = vpop.f32.mrf.mxu0
      %3926 = vmatprep.mubr.f32.mxu0 0.0
      %3927 = vmatmul.mubr.f32.gmra.mxu0 %v3772
      %v3928 = vpop.f32.mrf.mxu0
      %v3929 = vadd.f32 %v3746, %v3928
      %v3930 = vpop.f32.mrf.mxu0
      %3931 = vmatprep.mubr.f32.mxu0 0.0
      %3932 = vmatmul.mubr.f32.gmra.mxu0 %v3775
      %v3933 = vpop.f32.mrf.mxu0
      %v3934 = vadd.f32 %v3746, %v3933
      %v3935 = vpop.f32.mrf.mxu0
      %3936 = vmatprep.mubr.f32.mxu0 0.0
      %3937 = vmatmul.mubr.f32.gmra.mxu0 %v3778
      %v3938 = vpop.f32.mrf.mxu0
      %v3939 = vadd.f32 %v3746, %v3938
      %v3940 = vpop.f32.mrf.mxu0
      %3941 = vmatprep.mubr.f32.mxu0 0.0
      %3942 = vmatmul.mubr.f32.gmra.mxu0 %v3781
      %v3943 = vpop.f32.mrf.mxu0
      %v3944 = vadd.f32 %v3746, %v3943
      %v3945 = vpop.f32.mrf.mxu0
      %3946 = vmatprep.mubr.f32.mxu0 0.0
      %3947 = vmatmul.mubr.f32.gmra.mxu0 %v3784
      %v3948 = vpop.f32.mrf.mxu0
      %v3949 = vadd.f32 %v3746, %v3948
      %v3950 = vpop.f32.mrf.mxu0
      %3951 = vmatprep.mubr.f32.mxu0 0.0
      %3952 = vmatmul.mubr.f32.gmra.mxu0 %v3787
      %v3953 = vpop.f32.mrf.mxu0
      %v3954 = vadd.f32 %v3746, %v3953
      %v3955 = vpop.f32.mrf.mxu0
      %3956 = vmatprep.mubr.f32.mxu0 0.0
      %3957 = vmatmul.mubr.f32.gmra.mxu0 %v3790
      %v3958 = vpop.f32.mrf.mxu0
      %v3959 = vadd.f32 %v3746, %v3958
      %v3960 = vpop.f32.mrf.mxu0
      %3961 = vmatprep.mubr.f32.mxu0 0.0
      %3962 = vmatmul.mubr.f32.gmra.mxu0 %v3793
      %v3963 = vpop.f32.mrf.mxu0
      %v3964 = vadd.f32 %v3746, %v3963
      %v3965 = vpop.f32.mrf.mxu0
      %3966 = vmatprep.mubr.f32.mxu0 0.0
      %3967 = vmatmul.mubr.f32.gmra.mxu0 %v3796
      %v3968 = vpop.f32.mrf.mxu0
      %v3969 = vadd.f32 %v3746, %v3968
      %v3970 = vpop.f32.mrf.mxu0
      %3971 = vmatprep.mubr.f32.mxu0 0.0
      %3972 = vmatmul.mubr.f32.gmra.mxu0 %v3799
      %v3973 = vpop.f32.mrf.mxu0
      %v3974 = vadd.f32 %v3746, %v3973
      %v3975 = vpop.f32.mrf.mxu0
      %3976 = vmatprep.mubr.f32.mxu0 0.0
      %3977 = vmatmul.mubr.f32.gmra.mxu0 %v3802
      %v3978 = vpop.f32.mrf.mxu0
      %v3979 = vadd.f32 %v3746, %v3978
      %v3980 = vpop.f32.mrf.mxu0
      %3981 = vmatprep.mubr.f32.mxu0 0.0
      %3982 = vmatmul.mubr.f32.gmra.mxu0 %v3805
      %v3983 = vpop.f32.mrf.mxu0
      %v3984 = vadd.f32 %v3746, %v3983
      %v3985 = vpop.f32.mrf.mxu0
      %3986 = vmatprep.mubr.f32.mxu0 0.0
      %3987 = vmatmul.mubr.f32.gmra.mxu0 %v3808
      %v3988 = vpop.f32.mrf.mxu0
      %v3989 = vadd.f32 %v3746, %v3988
      %v3990 = vpop.f32.mrf.mxu0
      %3991 = vmatprep.mubr.f32.mxu0 0.0
      %3992 = vmatmul.mubr.f32.gmra.mxu0 %v3811
      %v3993 = vpop.f32.mrf.mxu0
      %v3994 = vadd.f32 %v3746, %v3993
      %v3995 = vpop.f32.mrf.mxu0
      %3996 = vmatprep.mubr.f32.mxu0 0.0
      %3997 = vmatmul.mubr.f32.gmra.mxu0 %v3814
      %v3998 = vpop.f32.mrf.mxu0
      %v3999 = vadd.f32 %v3746, %v3998
      %v4000 = vpop.f32.mrf.mxu0
      %4001 = vmatprep.mubr.f32.mxu0 0.0
      %4002 = vmatmul.mubr.f32.gmra.mxu0 %v3817
      %v4003 = vpop.f32.mrf.mxu0
      %v4004 = vadd.f32 %v3746, %v4003
      %v4005 = vpop.f32.mrf.mxu0
      %4006 = vmatprep.mubr.f32.mxu0 0.0
      %4007 = vmatmul.mubr.f32.gmra.mxu0 %v3820
      %v4008 = vpop.f32.mrf.mxu0
      %v4009 = vadd.f32 %v3746, %v4008
      %v4010 = vpop.f32.mrf.mxu0
      %4011 = vdwg.mxu0
      %v4012 = vadd.f32 %v395, %v3889
      %v4013 = vadd.f32 %v400, %v3894
      %v4014 = vadd.f32 %v405, %v3899
      %v4015 = vadd.f32 %v410, %v3904
      %v4016 = vadd.f32 %v415, %v3909
      %v4017 = vadd.f32 %v420, %v3914
      %v4018 = vadd.f32 %v425, %v3919
      %v4019 = vadd.f32 %v430, %v3924
      %v4020 = vadd.f32 %v435, %v3929
      %v4021 = vadd.f32 %v440, %v3934
      %v4022 = vadd.f32 %v445, %v3939
      %v4023 = vadd.f32 %v450, %v3944
      %v4024 = vadd.f32 %v455, %v3949
      %v4025 = vadd.f32 %v460, %v3954
      %v4026 = vadd.f32 %v465, %v3959
      %v4027 = vadd.f32 %v470, %v3964
      %v4028 = vadd.f32 %v475, %v3969
      %v4029 = vadd.f32 %v480, %v3974
      %v4030 = vadd.f32 %v485, %v3979
      %v4031 = vadd.f32 %v490, %v3984
      %v4032 = vadd.f32 %v495, %v3989
      %v4033 = vadd.f32 %v500, %v3994
      %v4034 = vadd.f32 %v505, %v3999
      %v4035 = vadd.f32 %v510, %v4004
      %v4036 = vadd.f32 %v515, %v4009
      %v4037 = vld [vmem:[%s3 + $0x4] ss:$0 sm:$0xff]
      %v4038 = vld [vmem:[%s3 + $0x5] ss:$0 sm:$0xff]
      %v4039 = vsel %vm520, %v4012, 0.0
      %4040 = vadd.xlane.f32.xlu0 %v4039
      %v4041 = vpop.xlane.xlu0 %4040
      %v4042 = vsel %vm520, %v4013, 0.0
      %4043 = vadd.xlane.f32.xlu0 %v4042
      %v4044 = vpop.xlane.xlu0 %4043
      %v4045 = vsel %vm520, %v4014, 0.0
      %4046 = vadd.xlane.f32.xlu0 %v4045
      %v4047 = vpop.xlane.xlu0 %4046
      %v4048 = vsel %vm520, %v4015, 0.0
      %4049 = vadd.xlane.f32.xlu0 %v4048
      %v4050 = vpop.xlane.xlu0 %4049
      %v4051 = vsel %vm520, %v4016, 0.0
      %4052 = vadd.xlane.f32.xlu0 %v4051
      %v4053 = vpop.xlane.xlu0 %4052
      %v4054 = vsel %vm520, %v4017, 0.0
      %4055 = vadd.xlane.f32.xlu0 %v4054
      %v4056 = vpop.xlane.xlu0 %4055
      %v4057 = vsel %vm520, %v4018, 0.0
      %4058 = vadd.xlane.f32.xlu0 %v4057
      %v4059 = vpop.xlane.xlu0 %4058
      %v4060 = vsel %vm520, %v4019, 0.0
      %4061 = vadd.xlane.f32.xlu0 %v4060
      %v4062 = vpop.xlane.xlu0 %4061
      %v4063 = vsel %vm520, %v4020, 0.0
      %4064 = vadd.xlane.f32.xlu0 %v4063
      %v4065 = vpop.xlane.xlu0 %4064
      %v4066 = vsel %vm520, %v4021, 0.0
      %4067 = vadd.xlane.f32.xlu0 %v4066
      %v4068 = vpop.xlane.xlu0 %4067
      %v4069 = vsel %vm520, %v4022, 0.0
      %4070 = vadd.xlane.f32.xlu0 %v4069
      %v4071 = vpop.xlane.xlu0 %4070
      %v4072 = vsel %vm520, %v4023, 0.0
      %4073 = vadd.xlane.f32.xlu0 %v4072
      %v4074 = vpop.xlane.xlu0 %4073
      %v4075 = vsel %vm520, %v4024, 0.0
      %4076 = vadd.xlane.f32.xlu0 %v4075
      %v4077 = vpop.xlane.xlu0 %4076
      %v4078 = vsel %vm520, %v4025, 0.0
      %4079 = vadd.xlane.f32.xlu0 %v4078
      %v4080 = vpop.xlane.xlu0 %4079
      %v4081 = vsel %vm520, %v4026, 0.0
      %4082 = vadd.xlane.f32.xlu0 %v4081
      %v4083 = vpop.xlane.xlu0 %4082
      %v4084 = vsel %vm520, %v4027, 0.0
      %4085 = vadd.xlane.f32.xlu0 %v4084
      %v4086 = vpop.xlane.xlu0 %4085
      %v4087 = vsel %vm520, %v4028, 0.0
      %4088 = vadd.xlane.f32.xlu0 %v4087
      %v4089 = vpop.xlane.xlu0 %4088
      %v4090 = vsel %vm520, %v4029, 0.0
      %4091 = vadd.xlane.f32.xlu0 %v4090
      %v4092 = vpop.xlane.xlu0 %4091
      %v4093 = vsel %vm520, %v4030, 0.0
      %4094 = vadd.xlane.f32.xlu0 %v4093
      %v4095 = vpop.xlane.xlu0 %4094
      %v4096 = vsel %vm520, %v4031, 0.0
      %4097 = vadd.xlane.f32.xlu0 %v4096
      %v4098 = vpop.xlane.xlu0 %4097
      %v4099 = vsel %vm520, %v4032, 0.0
      %4100 = vadd.xlane.f32.xlu0 %v4099
      %v4101 = vpop.xlane.xlu0 %4100
      %v4102 = vsel %vm520, %v4033, 0.0
      %4103 = vadd.xlane.f32.xlu0 %v4102
      %v4104 = vpop.xlane.xlu0 %4103
      %v4105 = vsel %vm520, %v4034, 0.0
      %4106 = vadd.xlane.f32.xlu0 %v4105
      %v4107 = vpop.xlane.xlu0 %4106
      %v4108 = vsel %vm520, %v4035, 0.0
      %4109 = vadd.xlane.f32.xlu0 %v4108
      %v4110 = vpop.xlane.xlu0 %4109
      %v4111 = vsel %vm593, %v4036, 0.0
      %4112 = vadd.xlane.f32.xlu0 %v4111
      %v4113 = vpop.xlane.xlu0 %4112
      %v4114 = vmul.f32 %v4041, %v597
      %v4115 = vmul.f32 %v4044, %v597
      %v4116 = vmul.f32 %v4047, %v597
      %v4117 = vmul.f32 %v4050, %v597
      %v4118 = vmul.f32 %v4053, %v597
      %v4119 = vmul.f32 %v4056, %v597
      %v4120 = vmul.f32 %v4059, %v597
      %v4121 = vmul.f32 %v4062, %v597
      %v4122 = vmul.f32 %v4065, %v597
      %v4123 = vmul.f32 %v4068, %v597
      %v4124 = vmul.f32 %v4071, %v597
      %v4125 = vmul.f32 %v4074, %v597
      %v4126 = vmul.f32 %v4077, %v597
      %v4127 = vmul.f32 %v4080, %v597
      %v4128 = vmul.f32 %v4083, %v597
      %v4129 = vmul.f32 %v4086, %v597
      %v4130 = vmul.f32 %v4089, %v597
      %v4131 = vmul.f32 %v4092, %v597
      %v4132 = vmul.f32 %v4095, %v597
      %v4133 = vmul.f32 %v4098, %v597
      %v4134 = vmul.f32 %v4101, %v597
      %v4135 = vmul.f32 %v4104, %v597
      %v4136 = vmul.f32 %v4107, %v597
      %v4137 = vmul.f32 %v4110, %v597
      %v4138 = vmul.f32 %v4113, %v597
      %v4139 = vsub.f32 %v4012, %v4114
      %v4140 = vsub.f32 %v4013, %v4115
      %v4141 = vsub.f32 %v4014, %v4116
      %v4142 = vsub.f32 %v4015, %v4117
      %v4143 = vsub.f32 %v4016, %v4118
      %v4144 = vsub.f32 %v4017, %v4119
      %v4145 = vsub.f32 %v4018, %v4120
      %v4146 = vsub.f32 %v4019, %v4121
      %v4147 = vsub.f32 %v4020, %v4122
      %v4148 = vsub.f32 %v4021, %v4123
      %v4149 = vsub.f32 %v4022, %v4124
      %v4150 = vsub.f32 %v4023, %v4125
      %v4151 = vsub.f32 %v4024, %v4126
      %v4152 = vsub.f32 %v4025, %v4127
      %v4153 = vsub.f32 %v4026, %v4128
      %v4154 = vsub.f32 %v4027, %v4129
      %v4155 = vsub.f32 %v4028, %v4130
      %v4156 = vsub.f32 %v4029, %v4131
      %v4157 = vsub.f32 %v4030, %v4132
      %v4158 = vsub.f32 %v4031, %v4133
      %v4159 = vsub.f32 %v4032, %v4134
      %v4160 = vsub.f32 %v4033, %v4135
      %v4161 = vsub.f32 %v4034, %v4136
      %v4162 = vsub.f32 %v4035, %v4137
      %v4163 = vsub.f32 %v4036, %v4138
      %v4164 = vmul.f32 %v4139, %v4139
      %v4165 = vmul.f32 %v4140, %v4140
      %v4166 = vmul.f32 %v4141, %v4141
      %v4167 = vmul.f32 %v4142, %v4142
      %v4168 = vmul.f32 %v4143, %v4143
      %v4169 = vmul.f32 %v4144, %v4144
      %v4170 = vmul.f32 %v4145, %v4145
      %v4171 = vmul.f32 %v4146, %v4146
      %v4172 = vmul.f32 %v4147, %v4147
      %v4173 = vmul.f32 %v4148, %v4148
      %v4174 = vmul.f32 %v4149, %v4149
      %v4175 = vmul.f32 %v4150, %v4150
      %v4176 = vmul.f32 %v4151, %v4151
      %v4177 = vmul.f32 %v4152, %v4152
      %v4178 = vmul.f32 %v4153, %v4153
      %v4179 = vmul.f32 %v4154, %v4154
      %v4180 = vmul.f32 %v4155, %v4155
      %v4181 = vmul.f32 %v4156, %v4156
      %v4182 = vmul.f32 %v4157, %v4157
      %v4183 = vmul.f32 %v4158, %v4158
      %v4184 = vmul.f32 %v4159, %v4159
      %v4185 = vmul.f32 %v4160, %v4160
      %v4186 = vmul.f32 %v4161, %v4161
      %v4187 = vmul.f32 %v4162, %v4162
      %v4188 = vmul.f32 %v4163, %v4163
      %v4189 = vsel %vm520, %v4164, 0.0
      %4190 = vadd.xlane.f32.xlu0 %v4189
      %v4191 = vpop.xlane.xlu0 %4190
      %v4192 = vsel %vm520, %v4165, 0.0
      %4193 = vadd.xlane.f32.xlu0 %v4192
      %v4194 = vpop.xlane.xlu0 %4193
      %v4195 = vsel %vm520, %v4166, 0.0
      %4196 = vadd.xlane.f32.xlu0 %v4195
      %v4197 = vpop.xlane.xlu0 %4196
      %v4198 = vsel %vm520, %v4167, 0.0
      %4199 = vadd.xlane.f32.xlu0 %v4198
      %v4200 = vpop.xlane.xlu0 %4199
      %v4201 = vsel %vm520, %v4168, 0.0
      %4202 = vadd.xlane.f32.xlu0 %v4201
      %v4203 = vpop.xlane.xlu0 %4202
      %v4204 = vsel %vm520, %v4169, 0.0
      %4205 = vadd.xlane.f32.xlu0 %v4204
      %v4206 = vpop.xlane.xlu0 %4205
      %v4207 = vsel %vm520, %v4170, 0.0
      %4208 = vadd.xlane.f32.xlu0 %v4207
      %v4209 = vpop.xlane.xlu0 %4208
      %v4210 = vsel %vm520, %v4171, 0.0
      %4211 = vadd.xlane.f32.xlu0 %v4210
      %v4212 = vpop.xlane.xlu0 %4211
      %v4213 = vsel %vm520, %v4172, 0.0
      %4214 = vadd.xlane.f32.xlu0 %v4213
      %v4215 = vpop.xlane.xlu0 %4214
      %v4216 = vsel %vm520, %v4173, 0.0
      %4217 = vadd.xlane.f32.xlu0 %v4216
      %v4218 = vpop.xlane.xlu0 %4217
      %v4219 = vsel %vm520, %v4174, 0.0
      %4220 = vadd.xlane.f32.xlu0 %v4219
      %v4221 = vpop.xlane.xlu0 %4220
      %v4222 = vsel %vm520, %v4175, 0.0
      %4223 = vadd.xlane.f32.xlu0 %v4222
      %v4224 = vpop.xlane.xlu0 %4223
      %v4225 = vsel %vm520, %v4176, 0.0
      %4226 = vadd.xlane.f32.xlu0 %v4225
      %v4227 = vpop.xlane.xlu0 %4226
      %v4228 = vsel %vm520, %v4177, 0.0
      %4229 = vadd.xlane.f32.xlu0 %v4228
      %v4230 = vpop.xlane.xlu0 %4229
      %v4231 = vsel %vm520, %v4178, 0.0
      %4232 = vadd.xlane.f32.xlu0 %v4231
      %v4233 = vpop.xlane.xlu0 %4232
      %v4234 = vsel %vm520, %v4179, 0.0
      %4235 = vadd.xlane.f32.xlu0 %v4234
      %v4236 = vpop.xlane.xlu0 %4235
      %v4237 = vsel %vm520, %v4180, 0.0
      %4238 = vadd.xlane.f32.xlu0 %v4237
      %v4239 = vpop.xlane.xlu0 %4238
      %v4240 = vsel %vm520, %v4181, 0.0
      %4241 = vadd.xlane.f32.xlu0 %v4240
      %v4242 = vpop.xlane.xlu0 %4241
      %v4243 = vsel %vm520, %v4182, 0.0
      %4244 = vadd.xlane.f32.xlu0 %v4243
      %v4245 = vpop.xlane.xlu0 %4244
      %v4246 = vsel %vm520, %v4183, 0.0
      %4247 = vadd.xlane.f32.xlu0 %v4246
      %v4248 = vpop.xlane.xlu0 %4247
      %v4249 = vsel %vm520, %v4184, 0.0
      %4250 = vadd.xlane.f32.xlu0 %v4249
      %v4251 = vpop.xlane.xlu0 %4250
      %v4252 = vsel %vm520, %v4185, 0.0
      %4253 = vadd.xlane.f32.xlu0 %v4252
      %v4254 = vpop.xlane.xlu0 %4253
      %v4255 = vsel %vm520, %v4186, 0.0
      %4256 = vadd.xlane.f32.xlu0 %v4255
      %v4257 = vpop.xlane.xlu0 %4256
      %v4258 = vsel %vm520, %v4187, 0.0
      %4259 = vadd.xlane.f32.xlu0 %v4258
      %v4260 = vpop.xlane.xlu0 %4259
      %v4261 = vsel %vm593, %v4188, 0.0
      %4262 = vadd.xlane.f32.xlu0 %v4261
      %v4263 = vpop.xlane.xlu0 %4262
      %v4264 = vmul.f32 %v4191, %v597
      %v4265 = vmul.f32 %v4194, %v597
      %v4266 = vmul.f32 %v4197, %v597
      %v4267 = vmul.f32 %v4200, %v597
      %v4268 = vmul.f32 %v4203, %v597
      %v4269 = vmul.f32 %v4206, %v597
      %v4270 = vmul.f32 %v4209, %v597
      %v4271 = vmul.f32 %v4212, %v597
      %v4272 = vmul.f32 %v4215, %v597
      %v4273 = vmul.f32 %v4218, %v597
      %v4274 = vmul.f32 %v4221, %v597
      %v4275 = vmul.f32 %v4224, %v597
      %v4276 = vmul.f32 %v4227, %v597
      %v4277 = vmul.f32 %v4230, %v597
      %v4278 = vmul.f32 %v4233, %v597
      %v4279 = vmul.f32 %v4236, %v597
      %v4280 = vmul.f32 %v4239, %v597
      %v4281 = vmul.f32 %v4242, %v597
      %v4282 = vmul.f32 %v4245, %v597
      %v4283 = vmul.f32 %v4248, %v597
      %v4284 = vmul.f32 %v4251, %v597
      %v4285 = vmul.f32 %v4254, %v597
      %v4286 = vmul.f32 %v4257, %v597
      %v4287 = vmul.f32 %v4260, %v597
      %v4288 = vmul.f32 %v4263, %v597
      %v4289 = vadd.f32 %v4264, 1e-06
      %v4290 = vadd.f32 %v4265, 1e-06
      %v4291 = vadd.f32 %v4266, 1e-06
      %v4292 = vadd.f32 %v4267, 1e-06
      %v4293 = vadd.f32 %v4268, 1e-06
      %v4294 = vadd.f32 %v4269, 1e-06
      %v4295 = vadd.f32 %v4270, 1e-06
      %v4296 = vadd.f32 %v4271, 1e-06
      %v4297 = vadd.f32 %v4272, 1e-06
      %v4298 = vadd.f32 %v4273, 1e-06
      %v4299 = vadd.f32 %v4274, 1e-06
      %v4300 = vadd.f32 %v4275, 1e-06
      %v4301 = vadd.f32 %v4276, 1e-06
      %v4302 = vadd.f32 %v4277, 1e-06
      %v4303 = vadd.f32 %v4278, 1e-06
      %v4304 = vadd.f32 %v4279, 1e-06
      %v4305 = vadd.f32 %v4280, 1e-06
      %v4306 = vadd.f32 %v4281, 1e-06
      %v4307 = vadd.f32 %v4282, 1e-06
      %v4308 = vadd.f32 %v4283, 1e-06
      %v4309 = vadd.f32 %v4284, 1e-06
      %v4310 = vadd.f32 %v4285, 1e-06
      %v4311 = vadd.f32 %v4286, 1e-06
      %v4312 = vadd.f32 %v4287, 1e-06
      %v4313 = vadd.f32 %v4288, 1e-06
      %v4314 = vrsqrt.pop %v4289
      %v4315 = vrsqrt.pop %v4290
      %v4316 = vrsqrt.pop %v4291
      %v4317 = vrsqrt.pop %v4292
      %v4318 = vrsqrt.pop %v4293
      %v4319 = vrsqrt.pop %v4294
      %v4320 = vrsqrt.pop %v4295
      %v4321 = vrsqrt.pop %v4296
      %v4322 = vrsqrt.pop %v4297
      %v4323 = vrsqrt.pop %v4298
      %v4324 = vrsqrt.pop %v4299
      %v4325 = vrsqrt.pop %v4300
      %v4326 = vrsqrt.pop %v4301
      %v4327 = vrsqrt.pop %v4302
      %v4328 = vrsqrt.pop %v4303
      %v4329 = vrsqrt.pop %v4304
      %v4330 = vrsqrt.pop %v4305
      %v4331 = vrsqrt.pop %v4306
      %v4332 = vrsqrt.pop %v4307
      %v4333 = vrsqrt.pop %v4308
      %v4334 = vrsqrt.pop %v4309
      %v4335 = vrsqrt.pop %v4310
      %v4336 = vrsqrt.pop %v4311
      %v4337 = vrsqrt.pop %v4312
      %v4338 = vrsqrt.pop %v4313
      %v4339 = vmul.f32 %v4139, %v4314
      %v4340 = vmul.f32 %v4140, %v4315
      %v4341 = vmul.f32 %v4141, %v4316
      %v4342 = vmul.f32 %v4142, %v4317
      %v4343 = vmul.f32 %v4143, %v4318
      %v4344 = vmul.f32 %v4144, %v4319
      %v4345 = vmul.f32 %v4145, %v4320
      %v4346 = vmul.f32 %v4146, %v4321
      %v4347 = vmul.f32 %v4147, %v4322
      %v4348 = vmul.f32 %v4148, %v4323
      %v4349 = vmul.f32 %v4149, %v4324
      %v4350 = vmul.f32 %v4150, %v4325
      %v4351 = vmul.f32 %v4151, %v4326
      %v4352 = vmul.f32 %v4152, %v4327
      %v4353 = vmul.f32 %v4153, %v4328
      %v4354 = vmul.f32 %v4154, %v4329
      %v4355 = vmul.f32 %v4155, %v4330
      %v4356 = vmul.f32 %v4156, %v4331
      %v4357 = vmul.f32 %v4157, %v4332
      %v4358 = vmul.f32 %v4158, %v4333
      %v4359 = vmul.f32 %v4159, %v4334
      %v4360 = vmul.f32 %v4160, %v4335
      %v4361 = vmul.f32 %v4161, %v4336
      %v4362 = vmul.f32 %v4162, %v4337
      %v4363 = vmul.f32 %v4163, %v4338
      %v4364 = vmul.f32 %v4339, %v4037
      %v4365 = vmul.f32 %v4340, %v4037
      %v4366 = vmul.f32 %v4341, %v4037
      %v4367 = vmul.f32 %v4342, %v4037
      %v4368 = vmul.f32 %v4343, %v4037
      %v4369 = vmul.f32 %v4344, %v4037
      %v4370 = vmul.f32 %v4345, %v4037
      %v4371 = vmul.f32 %v4346, %v4037
      %v4372 = vmul.f32 %v4347, %v4037
      %v4373 = vmul.f32 %v4348, %v4037
      %v4374 = vmul.f32 %v4349, %v4037
      %v4375 = vmul.f32 %v4350, %v4037
      %v4376 = vmul.f32 %v4351, %v4037
      %v4377 = vmul.f32 %v4352, %v4037
      %v4378 = vmul.f32 %v4353, %v4037
      %v4379 = vmul.f32 %v4354, %v4037
      %v4380 = vmul.f32 %v4355, %v4037
      %v4381 = vmul.f32 %v4356, %v4037
      %v4382 = vmul.f32 %v4357, %v4037
      %v4383 = vmul.f32 %v4358, %v4037
      %v4384 = vmul.f32 %v4359, %v4037
      %v4385 = vmul.f32 %v4360, %v4037
      %v4386 = vmul.f32 %v4361, %v4037
      %v4387 = vmul.f32 %v4362, %v4037
      %v4388 = vmul.f32 %v4363, %v4037
      %v4389 = vadd.f32 %v4364, %v4038
      %v4390 = vadd.f32 %v4365, %v4038
      %v4391 = vadd.f32 %v4366, %v4038
      %v4392 = vadd.f32 %v4367, %v4038
      %v4393 = vadd.f32 %v4368, %v4038
      %v4394 = vadd.f32 %v4369, %v4038
      %v4395 = vadd.f32 %v4370, %v4038
      %v4396 = vadd.f32 %v4371, %v4038
      %v4397 = vadd.f32 %v4372, %v4038
      %v4398 = vadd.f32 %v4373, %v4038
      %v4399 = vadd.f32 %v4374, %v4038
      %v4400 = vadd.f32 %v4375, %v4038
      %v4401 = vadd.f32 %v4376, %v4038
      %v4402 = vadd.f32 %v4377, %v4038
      %v4403 = vadd.f32 %v4378, %v4038
      %v4404 = vadd.f32 %v4379, %v4038
      %v4405 = vadd.f32 %v4380, %v4038
      %v4406 = vadd.f32 %v4381, %v4038
      %v4407 = vadd.f32 %v4382, %v4038
      %v4408 = vadd.f32 %v4383, %v4038
      %v4409 = vadd.f32 %v4384, %v4038
      %v4410 = vadd.f32 %v4385, %v4038
      %v4411 = vadd.f32 %v4386, %v4038
      %v4412 = vadd.f32 %v4387, %v4038
      %v4413 = vadd.f32 %v4388, %v4038
      %v4414 = vld [vmem:[%s2 + $0x80] sm:$0xff]
      %v4415 = vld [vmem:[%s2 + $0x90] sm:$0xff]
      %v4416 = vld [vmem:[%s2 + $0xa0] sm:$0xff]
      %v4417 = vld [vmem:[%s2 + $0xb0] sm:$0xff]
      %v4418 = vld [vmem:[%s2 + $0xc0] sm:$0xff]
      %v4419 = vld [vmem:[%s2 + $0xd0] sm:$0xff]
      %v4420 = vld [vmem:[%s2 + $0xe0] sm:$0xff]
      %v4421 = vld [vmem:[%s2 + $0xf0] sm:$0xff]
      %v4422 = vld [vmem:[%s3 + $0x6] ss:$0 sm:$0xff]
      %v4424 = vsel %vm520, %v4389, 0
      %v4427 = vsel %vm520, %v4390, 0
      %v4430 = vsel %vm520, %v4391, 0
      %v4433 = vsel %vm520, %v4392, 0
      %v4436 = vsel %vm520, %v4393, 0
      %v4439 = vsel %vm520, %v4394, 0
      %v4442 = vsel %vm520, %v4395, 0
      %v4445 = vsel %vm520, %v4396, 0
      %v4448 = vsel %vm520, %v4397, 0
      %v4451 = vsel %vm520, %v4398, 0
      %v4454 = vsel %vm520, %v4399, 0
      %v4457 = vsel %vm520, %v4400, 0
      %v4460 = vsel %vm520, %v4401, 0
      %v4463 = vsel %vm520, %v4402, 0
      %v4466 = vsel %vm520, %v4403, 0
      %v4469 = vsel %vm520, %v4404, 0
      %v4472 = vsel %vm520, %v4405, 0
      %v4475 = vsel %vm520, %v4406, 0
      %v4478 = vsel %vm520, %v4407, 0
      %v4481 = vsel %vm520, %v4408, 0
      %v4484 = vsel %vm520, %v4409, 0
      %v4487 = vsel %vm520, %v4410, 0
      %v4490 = vsel %vm520, %v4411, 0
      %v4493 = vsel %vm520, %v4412, 0
      %v4496 = vsel %vm520, %v4413, 0
      %4498 = vmatprep.subr.mxu0 0.0
      %4499 = vmatpush1.msra.mxu0 0.0
      %4500 = vmatprep.subr.mxu0 0.0
      %4501 = vmatpush1.msra.mxu0 0.0
      %4502 = vmatprep.subr.mxu0 0.0
      %4503 = vmatpush1.msra.mxu0 0.0
      %4504 = vmatprep.subr.mxu0 0.0
      %4505 = vmatpush1.msra.mxu0 0.0
      %4506 = vmatprep.subr.mxu0 0.0
      %4507 = vmatpush1.msra.mxu0 0.0
      %4508 = vmatprep.subr.mxu0 0.0
      %4509 = vmatpush1.msra.mxu0 0.0
      %4510 = vmatprep.subr.mxu0 0.0
      %4511 = vmatpush1.msra.mxu0 0.0
      %4512 = vmatprep.subr.mxu0 0.0
      %4513 = vmatpush1.msra.mxu0 0.0
      %4514 = vmatprep.subr.mxu0 0.0
      %4515 = vmatpush1.msra.mxu0 %v4421
      %4516 = vmatprep.subr.mxu0 0.0
      %4517 = vmatpush1.msra.mxu0 %v4420
      %4518 = vmatprep.subr.mxu0 0.0
      %4519 = vmatpush1.msra.mxu0 %v4419
      %4520 = vmatprep.subr.mxu0 0.0
      %4521 = vmatpush1.msra.mxu0 %v4418
      %4522 = vmatprep.subr.mxu0 0.0
      %4523 = vmatpush1.msra.mxu0 %v4417
      %4524 = vmatprep.subr.mxu0 0.0
      %4525 = vmatpush1.msra.mxu0 %v4416
      %4526 = vmatprep.subr.mxu0 0.0
      %4527 = vmatpush1.msra.mxu0 %v4415
      %4528 = vmatprep.subr.mxu0 0.0
      %4529 = vmatpush1.msra.mxu0 %v4414
      %4530 = vmatprep.subr.mxu0 0.0
      %4531 = vmatpush2.msra.mxu0 0.0
      %4532 = vmatprep.subr.mxu0 0.0
      %4533 = vmatpush2.msra.mxu0 0.0
      %4534 = vmatprep.subr.mxu0 0.0
      %4535 = vmatpush2.msra.mxu0 0.0
      %4536 = vmatprep.subr.mxu0 0.0
      %4537 = vmatpush2.msra.mxu0 0.0
      %4538 = vmatprep.subr.mxu0 0.0
      %4539 = vmatpush2.msra.mxu0 0.0
      %4540 = vmatprep.subr.mxu0 0.0
      %4541 = vmatpush2.msra.mxu0 0.0
      %4542 = vmatprep.subr.mxu0 0.0
      %4543 = vmatpush2.msra.mxu0 0.0
      %4544 = vmatprep.subr.mxu0 0.0
      %4545 = vmatpush2.msra.mxu0 0.0
      %4546 = vmatprep.subr.mxu0 0.0
      %4547 = vmatpush2.msra.mxu0 0.0
      %4548 = vmatprep.subr.mxu0 0.0
      %4549 = vmatpush2.msra.mxu0 0.0
      %4550 = vmatprep.subr.mxu0 0.0
      %4551 = vmatpush2.msra.mxu0 0.0
      %4552 = vmatprep.subr.mxu0 0.0
      %4553 = vmatpush2.msra.mxu0 0.0
      %4554 = vmatprep.subr.mxu0 0.0
      %4555 = vmatpush2.msra.mxu0 0.0
      %4556 = vmatprep.subr.mxu0 0.0
      %4557 = vmatpush2.msra.mxu0 0.0
      %4558 = vmatprep.subr.mxu0 0.0
      %4559 = vmatpush2.msra.mxu0 0.0
      %4560 = vmatprep.subr.mxu0 0.0
      %4561 = vmatpush2.msra.mxu0 0.0
      %4562 = vmatprep.mubr.f32.mxu0 0.0
      %4563 = vmatmul.mubr.f32.gmra.mxu0 %v4424
      %v4564 = vpop.f32.mrf.mxu0
      %v4565 = vadd.f32 %v4422, %v4564
      %v4566 = vpop.f32.mrf.mxu0
      %4567 = vmatprep.mubr.f32.mxu0 0.0
      %4568 = vmatmul.mubr.f32.gmra.mxu0 %v4427
      %v4569 = vpop.f32.mrf.mxu0
      %v4570 = vadd.f32 %v4422, %v4569
      %v4571 = vpop.f32.mrf.mxu0
      %4572 = vmatprep.mubr.f32.mxu0 0.0
      %4573 = vmatmul.mubr.f32.gmra.mxu0 %v4430
      %v4574 = vpop.f32.mrf.mxu0
      %v4575 = vadd.f32 %v4422, %v4574
      %v4576 = vpop.f32.mrf.mxu0
      %4577 = vmatprep.mubr.f32.mxu0 0.0
      %4578 = vmatmul.mubr.f32.gmra.mxu0 %v4433
      %v4579 = vpop.f32.mrf.mxu0
      %v4580 = vadd.f32 %v4422, %v4579
      %v4581 = vpop.f32.mrf.mxu0
      %4582 = vmatprep.mubr.f32.mxu0 0.0
      %4583 = vmatmul.mubr.f32.gmra.mxu0 %v4436
      %v4584 = vpop.f32.mrf.mxu0
      %v4585 = vadd.f32 %v4422, %v4584
      %v4586 = vpop.f32.mrf.mxu0
      %4587 = vmatprep.mubr.f32.mxu0 0.0
      %4588 = vmatmul.mubr.f32.gmra.mxu0 %v4439
      %v4589 = vpop.f32.mrf.mxu0
      %v4590 = vadd.f32 %v4422, %v4589
      %v4591 = vpop.f32.mrf.mxu0
      %4592 = vmatprep.mubr.f32.mxu0 0.0
      %4593 = vmatmul.mubr.f32.gmra.mxu0 %v4442
      %v4594 = vpop.f32.mrf.mxu0
      %v4595 = vadd.f32 %v4422, %v4594
      %v4596 = vpop.f32.mrf.mxu0
      %4597 = vmatprep.mubr.f32.mxu0 0.0
      %4598 = vmatmul.mubr.f32.gmra.mxu0 %v4445
      %v4599 = vpop.f32.mrf.mxu0
      %v4600 = vadd.f32 %v4422, %v4599
      %v4601 = vpop.f32.mrf.mxu0
      %4602 = vmatprep.mubr.f32.mxu0 0.0
      %4603 = vmatmul.mubr.f32.gmra.mxu0 %v4448
      %v4604 = vpop.f32.mrf.mxu0
      %v4605 = vadd.f32 %v4422, %v4604
      %v4606 = vpop.f32.mrf.mxu0
      %4607 = vmatprep.mubr.f32.mxu0 0.0
      %4608 = vmatmul.mubr.f32.gmra.mxu0 %v4451
      %v4609 = vpop.f32.mrf.mxu0
      %v4610 = vadd.f32 %v4422, %v4609
      %v4611 = vpop.f32.mrf.mxu0
      %4612 = vmatprep.mubr.f32.mxu0 0.0
      %4613 = vmatmul.mubr.f32.gmra.mxu0 %v4454
      %v4614 = vpop.f32.mrf.mxu0
      %v4615 = vadd.f32 %v4422, %v4614
      %v4616 = vpop.f32.mrf.mxu0
      %4617 = vmatprep.mubr.f32.mxu0 0.0
      %4618 = vmatmul.mubr.f32.gmra.mxu0 %v4457
      %v4619 = vpop.f32.mrf.mxu0
      %v4620 = vadd.f32 %v4422, %v4619
      %v4621 = vpop.f32.mrf.mxu0
      %4622 = vmatprep.mubr.f32.mxu0 0.0
      %4623 = vmatmul.mubr.f32.gmra.mxu0 %v4460
      %v4624 = vpop.f32.mrf.mxu0
      %v4625 = vadd.f32 %v4422, %v4624
      %v4626 = vpop.f32.mrf.mxu0
      %4627 = vmatprep.mubr.f32.mxu0 0.0
      %4628 = vmatmul.mubr.f32.gmra.mxu0 %v4463
      %v4629 = vpop.f32.mrf.mxu0
      %v4630 = vadd.f32 %v4422, %v4629
      %v4631 = vpop.f32.mrf.mxu0
      %4632 = vmatprep.mubr.f32.mxu0 0.0
      %4633 = vmatmul.mubr.f32.gmra.mxu0 %v4466
      %v4634 = vpop.f32.mrf.mxu0
      %v4635 = vadd.f32 %v4422, %v4634
      %v4636 = vpop.f32.mrf.mxu0
      %4637 = vmatprep.mubr.f32.mxu0 0.0
      %4638 = vmatmul.mubr.f32.gmra.mxu0 %v4469
      %v4639 = vpop.f32.mrf.mxu0
      %v4640 = vadd.f32 %v4422, %v4639
      %v4641 = vpop.f32.mrf.mxu0
      %4642 = vmatprep.mubr.f32.mxu0 0.0
      %4643 = vmatmul.mubr.f32.gmra.mxu0 %v4472
      %v4644 = vpop.f32.mrf.mxu0
      %v4645 = vadd.f32 %v4422, %v4644
      %v4646 = vpop.f32.mrf.mxu0
      %4647 = vmatprep.mubr.f32.mxu0 0.0
      %4648 = vmatmul.mubr.f32.gmra.mxu0 %v4475
      %v4649 = vpop.f32.mrf.mxu0
      %v4650 = vadd.f32 %v4422, %v4649
      %v4651 = vpop.f32.mrf.mxu0
      %4652 = vmatprep.mubr.f32.mxu0 0.0
      %4653 = vmatmul.mubr.f32.gmra.mxu0 %v4478
      %v4654 = vpop.f32.mrf.mxu0
      %v4655 = vadd.f32 %v4422, %v4654
      %v4656 = vpop.f32.mrf.mxu0
      %4657 = vmatprep.mubr.f32.mxu0 0.0
      %4658 = vmatmul.mubr.f32.gmra.mxu0 %v4481
      %v4659 = vpop.f32.mrf.mxu0
      %v4660 = vadd.f32 %v4422, %v4659
      %v4661 = vpop.f32.mrf.mxu0
      %4662 = vmatprep.mubr.f32.mxu0 0.0
      %4663 = vmatmul.mubr.f32.gmra.mxu0 %v4484
      %v4664 = vpop.f32.mrf.mxu0
      %v4665 = vadd.f32 %v4422, %v4664
      %v4666 = vpop.f32.mrf.mxu0
      %4667 = vmatprep.mubr.f32.mxu0 0.0
      %4668 = vmatmul.mubr.f32.gmra.mxu0 %v4487
      %v4669 = vpop.f32.mrf.mxu0
      %v4670 = vadd.f32 %v4422, %v4669
      %v4671 = vpop.f32.mrf.mxu0
      %4672 = vmatprep.mubr.f32.mxu0 0.0
      %4673 = vmatmul.mubr.f32.gmra.mxu0 %v4490
      %v4674 = vpop.f32.mrf.mxu0
      %v4675 = vadd.f32 %v4422, %v4674
      %v4676 = vpop.f32.mrf.mxu0
      %4677 = vmatprep.mubr.f32.mxu0 0.0
      %4678 = vmatmul.mubr.f32.gmra.mxu0 %v4493
      %v4679 = vpop.f32.mrf.mxu0
      %v4680 = vadd.f32 %v4422, %v4679
      %v4681 = vpop.f32.mrf.mxu0
      %4682 = vmatprep.mubr.f32.mxu0 0.0
      %4683 = vmatmul.mubr.f32.gmra.mxu0 %v4496
      %v4684 = vpop.f32.mrf.mxu0
      %v4685 = vadd.f32 %v4422, %v4684
      %v4686 = vpop.f32.mrf.mxu0
      %4687 = vdwg.mxu0
      %v4688 = vmul.f32 %v4565, 0.5
      %v4689 = vmul.f32 %v4570, 0.5
      %v4690 = vmul.f32 %v4575, 0.5
      %v4691 = vmul.f32 %v4580, 0.5
      %v4692 = vmul.f32 %v4585, 0.5
      %v4693 = vmul.f32 %v4590, 0.5
      %v4694 = vmul.f32 %v4595, 0.5
      %v4695 = vmul.f32 %v4600, 0.5
      %v4696 = vmul.f32 %v4605, 0.5
      %v4697 = vmul.f32 %v4610, 0.5
      %v4698 = vmul.f32 %v4615, 0.5
      %v4699 = vmul.f32 %v4620, 0.5
      %v4700 = vmul.f32 %v4625, 0.5
      %v4701 = vmul.f32 %v4630, 0.5
      %v4702 = vmul.f32 %v4635, 0.5
      %v4703 = vmul.f32 %v4640, 0.5
      %v4704 = vmul.f32 %v4645, 0.5
      %v4705 = vmul.f32 %v4650, 0.5
      %v4706 = vmul.f32 %v4655, 0.5
      %v4707 = vmul.f32 %v4660, 0.5
      %v4708 = vmul.f32 %v4665, 0.5
      %v4709 = vmul.f32 %v4670, 0.5
      %v4710 = vmul.f32 %v4675, 0.5
      %v4711 = vmul.f32 %v4680, 0.5
      %v4712 = vmul.f32 %v4685, 0.5
      %v4713 = vmul.f32 %v4565, 0.70710677
      %v4714 = vmul.f32 %v4570, 0.70710677
      %v4715 = vmul.f32 %v4575, 0.70710677
      %v4716 = vmul.f32 %v4580, 0.70710677
      %v4717 = vmul.f32 %v4585, 0.70710677
      %v4718 = vmul.f32 %v4590, 0.70710677
      %v4719 = vmul.f32 %v4595, 0.70710677
      %v4720 = vmul.f32 %v4600, 0.70710677
      %v4721 = vmul.f32 %v4605, 0.70710677
      %v4722 = vmul.f32 %v4610, 0.70710677
      %v4723 = vmul.f32 %v4615, 0.70710677
      %v4724 = vmul.f32 %v4620, 0.70710677
      %v4725 = vmul.f32 %v4625, 0.70710677
      %v4726 = vmul.f32 %v4630, 0.70710677
      %v4727 = vmul.f32 %v4635, 0.70710677
      %v4728 = vmul.f32 %v4640, 0.70710677
      %v4729 = vmul.f32 %v4645, 0.70710677
      %v4730 = vmul.f32 %v4650, 0.70710677
      %v4731 = vmul.f32 %v4655, 0.70710677
      %v4732 = vmul.f32 %v4660, 0.70710677
      %v4733 = vmul.f32 %v4665, 0.70710677
      %v4734 = vmul.f32 %v4670, 0.70710677
      %v4735 = vmul.f32 %v4675, 0.70710677
      %v4736 = vmul.f32 %v4680, 0.70710677
      %v4737 = vmul.f32 %v4685, 0.70710677
      %v4738 = vand.u32 2147483647, %v4713
      %v4739 = vand.u32 2147483647, %v4714
      %v4740 = vand.u32 2147483647, %v4715
      %v4741 = vand.u32 2147483647, %v4716
      %v4742 = vand.u32 2147483647, %v4717
      %v4743 = vand.u32 2147483647, %v4718
      %v4744 = vand.u32 2147483647, %v4719
      %v4745 = vand.u32 2147483647, %v4720
      %v4746 = vand.u32 2147483647, %v4721
      %v4747 = vand.u32 2147483647, %v4722
      %v4748 = vand.u32 2147483647, %v4723
      %v4749 = vand.u32 2147483647, %v4724
      %v4750 = vand.u32 2147483647, %v4725
      %v4751 = vand.u32 2147483647, %v4726
      %v4752 = vand.u32 2147483647, %v4727
      %v4753 = vand.u32 2147483647, %v4728
      %v4754 = vand.u32 2147483647, %v4729
      %v4755 = vand.u32 2147483647, %v4730
      %v4756 = vand.u32 2147483647, %v4731
      %v4757 = vand.u32 2147483647, %v4732
      %v4758 = vand.u32 2147483647, %v4733
      %v4759 = vand.u32 2147483647, %v4734
      %v4760 = vand.u32 2147483647, %v4735
      %v4761 = vand.u32 2147483647, %v4736
      %v4762 = vand.u32 2147483647, %v4737
      %v4763 = vmul.f32 %v4738, 0.3275911
      %v4764 = vmul.f32 %v4739, 0.3275911
      %v4765 = vmul.f32 %v4740, 0.3275911
      %v4766 = vmul.f32 %v4741, 0.3275911
      %v4767 = vmul.f32 %v4742, 0.3275911
      %v4768 = vmul.f32 %v4743, 0.3275911
      %v4769 = vmul.f32 %v4744, 0.3275911
      %v4770 = vmul.f32 %v4745, 0.3275911
      %v4771 = vmul.f32 %v4746, 0.3275911
      %v4772 = vmul.f32 %v4747, 0.3275911
      %v4773 = vmul.f32 %v4748, 0.3275911
      %v4774 = vmul.f32 %v4749, 0.3275911
      %v4775 = vmul.f32 %v4750, 0.3275911
      %v4776 = vmul.f32 %v4751, 0.3275911
      %v4777 = vmul.f32 %v4752, 0.3275911
      %v4778 = vmul.f32 %v4753, 0.3275911
      %v4779 = vmul.f32 %v4754, 0.3275911
      %v4780 = vmul.f32 %v4755, 0.3275911
      %v4781 = vmul.f32 %v4756, 0.3275911
      %v4782 = vmul.f32 %v4757, 0.3275911
      %v4783 = vmul.f32 %v4758, 0.3275911
      %v4784 = vmul.f32 %v4759, 0.3275911
      %v4785 = vmul.f32 %v4760, 0.3275911
      %v4786 = vmul.f32 %v4761, 0.3275911
      %v4787 = vmul.f32 %v4762, 0.3275911
      %v4788 = vadd.f32 %v4763, 1.0
      %v4789 = vadd.f32 %v4764, 1.0
      %v4790 = vadd.f32 %v4765, 1.0
      %v4791 = vadd.f32 %v4766, 1.0
      %v4792 = vadd.f32 %v4767, 1.0
      %v4793 = vadd.f32 %v4768, 1.0
      %v4794 = vadd.f32 %v4769, 1.0
      %v4795 = vadd.f32 %v4770, 1.0
      %v4796 = vadd.f32 %v4771, 1.0
      %v4797 = vadd.f32 %v4772, 1.0
      %v4798 = vadd.f32 %v4773, 1.0
      %v4799 = vadd.f32 %v4774, 1.0
      %v4800 = vadd.f32 %v4775, 1.0
      %v4801 = vadd.f32 %v4776, 1.0
      %v4802 = vadd.f32 %v4777, 1.0
      %v4803 = vadd.f32 %v4778, 1.0
      %v4804 = vadd.f32 %v4779, 1.0
      %v4805 = vadd.f32 %v4780, 1.0
      %v4806 = vadd.f32 %v4781, 1.0
      %v4807 = vadd.f32 %v4782, 1.0
      %v4808 = vadd.f32 %v4783, 1.0
      %v4809 = vadd.f32 %v4784, 1.0
      %v4810 = vadd.f32 %v4785, 1.0
      %v4811 = vadd.f32 %v4786, 1.0
      %v4812 = vadd.f32 %v4787, 1.0
      %v4813 = vrcp.pop %v4788
      %v4814 = vrcp.pop %v4789
      %v4815 = vrcp.pop %v4790
      %v4816 = vrcp.pop %v4791
      %v4817 = vrcp.pop %v4792
      %v4818 = vrcp.pop %v4793
      %v4819 = vrcp.pop %v4794
      %v4820 = vrcp.pop %v4795
      %v4821 = vrcp.pop %v4796
      %v4822 = vrcp.pop %v4797
      %v4823 = vrcp.pop %v4798
      %v4824 = vrcp.pop %v4799
      %v4825 = vrcp.pop %v4800
      %v4826 = vrcp.pop %v4801
      %v4827 = vrcp.pop %v4802
      %v4828 = vrcp.pop %v4803
      %v4829 = vrcp.pop %v4804
      %v4830 = vrcp.pop %v4805
      %v4831 = vrcp.pop %v4806
      %v4832 = vrcp.pop %v4807
      %v4833 = vrcp.pop %v4808
      %v4834 = vrcp.pop %v4809
      %v4835 = vrcp.pop %v4810
      %v4836 = vrcp.pop %v4811
      %v4837 = vrcp.pop %v4812
      %v4838 = vmul.f32 %v4813, 1.0614054
      %v4839 = vmul.f32 %v4814, 1.0614054
      %v4840 = vmul.f32 %v4815, 1.0614054
      %v4841 = vmul.f32 %v4816, 1.0614054
      %v4842 = vmul.f32 %v4817, 1.0614054
      %v4843 = vmul.f32 %v4818, 1.0614054
      %v4844 = vmul.f32 %v4819, 1.0614054
      %v4845 = vmul.f32 %v4820, 1.0614054
      %v4846 = vmul.f32 %v4821, 1.0614054
      %v4847 = vmul.f32 %v4822, 1.0614054
      %v4848 = vmul.f32 %v4823, 1.0614054
      %v4849 = vmul.f32 %v4824, 1.0614054
      %v4850 = vmul.f32 %v4825, 1.0614054
      %v4851 = vmul.f32 %v4826, 1.0614054
      %v4852 = vmul.f32 %v4827, 1.0614054
      %v4853 = vmul.f32 %v4828, 1.0614054
      %v4854 = vmul.f32 %v4829, 1.0614054
      %v4855 = vmul.f32 %v4830, 1.0614054
      %v4856 = vmul.f32 %v4831, 1.0614054
      %v4857 = vmul.f32 %v4832, 1.0614054
      %v4858 = vmul.f32 %v4833, 1.0614054
      %v4859 = vmul.f32 %v4834, 1.0614054
      %v4860 = vmul.f32 %v4835, 1.0614054
      %v4861 = vmul.f32 %v4836, 1.0614054
      %v4862 = vmul.f32 %v4837, 1.0614054
      %v4863 = vadd.f32 %v4838, -1.4531521
      %v4864 = vadd.f32 %v4839, -1.4531521
      %v4865 = vadd.f32 %v4840, -1.4531521
      %v4866 = vadd.f32 %v4841, -1.4531521
      %v4867 = vadd.f32 %v4842, -1.4531521
      %v4868 = vadd.f32 %v4843, -1.4531521
      %v4869 = vadd.f32 %v4844, -1.4531521
      %v4870 = vadd.f32 %v4845, -1.4531521
      %v4871 = vadd.f32 %v4846, -1.4531521
      %v4872 = vadd.f32 %v4847, -1.4531521
      %v4873 = vadd.f32 %v4848, -1.4531521
      %v4874 = vadd.f32 %v4849, -1.4531521
      %v4875 = vadd.f32 %v4850, -1.4531521
      %v4876 = vadd.f32 %v4851, -1.4531521
      %v4877 = vadd.f32 %v4852, -1.4531521
      %v4878 = vadd.f32 %v4853, -1.4531521
      %v4879 = vadd.f32 %v4854, -1.4531521
      %v4880 = vadd.f32 %v4855, -1.4531521
      %v4881 = vadd.f32 %v4856, -1.4531521
      %v4882 = vadd.f32 %v4857, -1.4531521
      %v4883 = vadd.f32 %v4858, -1.4531521
      %v4884 = vadd.f32 %v4859, -1.4531521
      %v4885 = vadd.f32 %v4860, -1.4531521
      %v4886 = vadd.f32 %v4861, -1.4531521
      %v4887 = vadd.f32 %v4862, -1.4531521
      %v4888 = vmul.f32 %v4863, %v4813
      %v4889 = vmul.f32 %v4864, %v4814
      %v4890 = vmul.f32 %v4865, %v4815
      %v4891 = vmul.f32 %v4866, %v4816
      %v4892 = vmul.f32 %v4867, %v4817
      %v4893 = vmul.f32 %v4868, %v4818
      %v4894 = vmul.f32 %v4869, %v4819
      %v4895 = vmul.f32 %v4870, %v4820
      %v4896 = vmul.f32 %v4871, %v4821
      %v4897 = vmul.f32 %v4872, %v4822
      %v4898 = vmul.f32 %v4873, %v4823
      %v4899 = vmul.f32 %v4874, %v4824
      %v4900 = vmul.f32 %v4875, %v4825
      %v4901 = vmul.f32 %v4876, %v4826
      %v4902 = vmul.f32 %v4877, %v4827
      %v4903 = vmul.f32 %v4878, %v4828
      %v4904 = vmul.f32 %v4879, %v4829
      %v4905 = vmul.f32 %v4880, %v4830
      %v4906 = vmul.f32 %v4881, %v4831
      %v4907 = vmul.f32 %v4882, %v4832
      %v4908 = vmul.f32 %v4883, %v4833
      %v4909 = vmul.f32 %v4884, %v4834
      %v4910 = vmul.f32 %v4885, %v4835
      %v4911 = vmul.f32 %v4886, %v4836
      %v4912 = vmul.f32 %v4887, %v4837
      %v4913 = vadd.f32 %v4888, 1.4214138
      %v4914 = vadd.f32 %v4889, 1.4214138
      %v4915 = vadd.f32 %v4890, 1.4214138
      %v4916 = vadd.f32 %v4891, 1.4214138
      %v4917 = vadd.f32 %v4892, 1.4214138
      %v4918 = vadd.f32 %v4893, 1.4214138
      %v4919 = vadd.f32 %v4894, 1.4214138
      %v4920 = vadd.f32 %v4895, 1.4214138
      %v4921 = vadd.f32 %v4896, 1.4214138
      %v4922 = vadd.f32 %v4897, 1.4214138
      %v4923 = vadd.f32 %v4898, 1.4214138
      %v4924 = vadd.f32 %v4899, 1.4214138
      %v4925 = vadd.f32 %v4900, 1.4214138
      %v4926 = vadd.f32 %v4901, 1.4214138
      %v4927 = vadd.f32 %v4902, 1.4214138
      %v4928 = vadd.f32 %v4903, 1.4214138
      %v4929 = vadd.f32 %v4904, 1.4214138
      %v4930 = vadd.f32 %v4905, 1.4214138
      %v4931 = vadd.f32 %v4906, 1.4214138
      %v4932 = vadd.f32 %v4907, 1.4214138
      %v4933 = vadd.f32 %v4908, 1.4214138
      %v4934 = vadd.f32 %v4909, 1.4214138
      %v4935 = vadd.f32 %v4910, 1.4214138
      %v4936 = vadd.f32 %v4911, 1.4214138
      %v4937 = vadd.f32 %v4912, 1.4214138
      %v4938 = vmul.f32 %v4913, %v4813
      %v4939 = vmul.f32 %v4914, %v4814
      %v4940 = vmul.f32 %v4915, %v4815
      %v4941 = vmul.f32 %v4916, %v4816
      %v4942 = vmul.f32 %v4917, %v4817
      %v4943 = vmul.f32 %v4918, %v4818
      %v4944 = vmul.f32 %v4919, %v4819
      %v4945 = vmul.f32 %v4920, %v4820
      %v4946 = vmul.f32 %v4921, %v4821
      %v4947 = vmul.f32 %v4922, %v4822
      %v4948 = vmul.f32 %v4923, %v4823
      %v4949 = vmul.f32 %v4924, %v4824
      %v4950 = vmul.f32 %v4925, %v4825
      %v4951 = vmul.f32 %v4926, %v4826
      %v4952 = vmul.f32 %v4927, %v4827
      %v4953 = vmul.f32 %v4928, %v4828
      %v4954 = vmul.f32 %v4929, %v4829
      %v4955 = vmul.f32 %v4930, %v4830
      %v4956 = vmul.f32 %v4931, %v4831
      %v4957 = vmul.f32 %v4932, %v4832
      %v4958 = vmul.f32 %v4933, %v4833
      %v4959 = vmul.f32 %v4934, %v4834
      %v4960 = vmul.f32 %v4935, %v4835
      %v4961 = vmul.f32 %v4936, %v4836
      %v4962 = vmul.f32 %v4937, %v4837
      %v4963 = vadd.f32 %v4938, -0.28449672
      %v4964 = vadd.f32 %v4939, -0.28449672
      %v4965 = vadd.f32 %v4940, -0.28449672
      %v4966 = vadd.f32 %v4941, -0.28449672
      %v4967 = vadd.f32 %v4942, -0.28449672
      %v4968 = vadd.f32 %v4943, -0.28449672
      %v4969 = vadd.f32 %v4944, -0.28449672
      %v4970 = vadd.f32 %v4945, -0.28449672
      %v4971 = vadd.f32 %v4946, -0.28449672
      %v4972 = vadd.f32 %v4947, -0.28449672
      %v4973 = vadd.f32 %v4948, -0.28449672
      %v4974 = vadd.f32 %v4949, -0.28449672
      %v4975 = vadd.f32 %v4950, -0.28449672
      %v4976 = vadd.f32 %v4951, -0.28449672
      %v4977 = vadd.f32 %v4952, -0.28449672
      %v4978 = vadd.f32 %v4953, -0.28449672
      %v4979 = vadd.f32 %v4954, -0.28449672
      %v4980 = vadd.f32 %v4955, -0.28449672
      %v4981 = vadd.f32 %v4956, -0.28449672
      %v4982 = vadd.f32 %v4957, -0.28449672
      %v4983 = vadd.f32 %v4958, -0.28449672
      %v4984 = vadd.f32 %v4959, -0.28449672
      %v4985 = vadd.f32 %v4960, -0.28449672
      %v4986 = vadd.f32 %v4961, -0.28449672
      %v4987 = vadd.f32 %v4962, -0.28449672
      %v4988 = vmul.f32 %v4963, %v4813
      %v4989 = vmul.f32 %v4964, %v4814
      %v4990 = vmul.f32 %v4965, %v4815
      %v4991 = vmul.f32 %v4966, %v4816
      %v4992 = vmul.f32 %v4967, %v4817
      %v4993 = vmul.f32 %v4968, %v4818
      %v4994 = vmul.f32 %v4969, %v4819
      %v4995 = vmul.f32 %v4970, %v4820
      %v4996 = vmul.f32 %v4971, %v4821
      %v4997 = vmul.f32 %v4972, %v4822
      %v4998 = vmul.f32 %v4973, %v4823
      %v4999 = vmul.f32 %v4974, %v4824
      %v5000 = vmul.f32 %v4975, %v4825
      %v5001 = vmul.f32 %v4976, %v4826
      %v5002 = vmul.f32 %v4977, %v4827
      %v5003 = vmul.f32 %v4978, %v4828
      %v5004 = vmul.f32 %v4979, %v4829
      %v5005 = vmul.f32 %v4980, %v4830
      %v5006 = vmul.f32 %v4981, %v4831
      %v5007 = vmul.f32 %v4982, %v4832
      %v5008 = vmul.f32 %v4983, %v4833
      %v5009 = vmul.f32 %v4984, %v4834
      %v5010 = vmul.f32 %v4985, %v4835
      %v5011 = vmul.f32 %v4986, %v4836
      %v5012 = vmul.f32 %v4987, %v4837
      %v5013 = vadd.f32 %v4988, 0.2548296
      %v5014 = vadd.f32 %v4989, 0.2548296
      %v5015 = vadd.f32 %v4990, 0.2548296
      %v5016 = vadd.f32 %v4991, 0.2548296
      %v5017 = vadd.f32 %v4992, 0.2548296
      %v5018 = vadd.f32 %v4993, 0.2548296
      %v5019 = vadd.f32 %v4994, 0.2548296
      %v5020 = vadd.f32 %v4995, 0.2548296
      %v5021 = vadd.f32 %v4996, 0.2548296
      %v5022 = vadd.f32 %v4997, 0.2548296
      %v5023 = vadd.f32 %v4998, 0.2548296
      %v5024 = vadd.f32 %v4999, 0.2548296
      %v5025 = vadd.f32 %v5000, 0.2548296
      %v5026 = vadd.f32 %v5001, 0.2548296
      %v5027 = vadd.f32 %v5002, 0.2548296
      %v5028 = vadd.f32 %v5003, 0.2548296
      %v5029 = vadd.f32 %v5004, 0.2548296
      %v5030 = vadd.f32 %v5005, 0.2548296
      %v5031 = vadd.f32 %v5006, 0.2548296
      %v5032 = vadd.f32 %v5007, 0.2548296
      %v5033 = vadd.f32 %v5008, 0.2548296
      %v5034 = vadd.f32 %v5009, 0.2548296
      %v5035 = vadd.f32 %v5010, 0.2548296
      %v5036 = vadd.f32 %v5011, 0.2548296
      %v5037 = vadd.f32 %v5012, 0.2548296
      %v5038 = vmul.f32 %v5013, %v4813
      %v5039 = vmul.f32 %v5014, %v4814
      %v5040 = vmul.f32 %v5015, %v4815
      %v5041 = vmul.f32 %v5016, %v4816
      %v5042 = vmul.f32 %v5017, %v4817
      %v5043 = vmul.f32 %v5018, %v4818
      %v5044 = vmul.f32 %v5019, %v4819
      %v5045 = vmul.f32 %v5020, %v4820
      %v5046 = vmul.f32 %v5021, %v4821
      %v5047 = vmul.f32 %v5022, %v4822
      %v5048 = vmul.f32 %v5023, %v4823
      %v5049 = vmul.f32 %v5024, %v4824
      %v5050 = vmul.f32 %v5025, %v4825
      %v5051 = vmul.f32 %v5026, %v4826
      %v5052 = vmul.f32 %v5027, %v4827
      %v5053 = vmul.f32 %v5028, %v4828
      %v5054 = vmul.f32 %v5029, %v4829
      %v5055 = vmul.f32 %v5030, %v4830
      %v5056 = vmul.f32 %v5031, %v4831
      %v5057 = vmul.f32 %v5032, %v4832
      %v5058 = vmul.f32 %v5033, %v4833
      %v5059 = vmul.f32 %v5034, %v4834
      %v5060 = vmul.f32 %v5035, %v4835
      %v5061 = vmul.f32 %v5036, %v4836
      %v5062 = vmul.f32 %v5037, %v4837
      %v5063 = vmul.f32 %v4738, %v4738
      %v5064 = vmul.f32 %v4739, %v4739
      %v5065 = vmul.f32 %v4740, %v4740
      %v5066 = vmul.f32 %v4741, %v4741
      %v5067 = vmul.f32 %v4742, %v4742
      %v5068 = vmul.f32 %v4743, %v4743
      %v5069 = vmul.f32 %v4744, %v4744
      %v5070 = vmul.f32 %v4745, %v4745
      %v5071 = vmul.f32 %v4746, %v4746
      %v5072 = vmul.f32 %v4747, %v4747
      %v5073 = vmul.f32 %v4748, %v4748
      %v5074 = vmul.f32 %v4749, %v4749
      %v5075 = vmul.f32 %v4750, %v4750
      %v5076 = vmul.f32 %v4751, %v4751
      %v5077 = vmul.f32 %v4752, %v4752
      %v5078 = vmul.f32 %v4753, %v4753
      %v5079 = vmul.f32 %v4754, %v4754
      %v5080 = vmul.f32 %v4755, %v4755
      %v5081 = vmul.f32 %v4756, %v4756
      %v5082 = vmul.f32 %v4757, %v4757
      %v5083 = vmul.f32 %v4758, %v4758
      %v5084 = vmul.f32 %v4759, %v4759
      %v5085 = vmul.f32 %v4760, %v4760
      %v5086 = vmul.f32 %v4761, %v4761
      %v5087 = vmul.f32 %v4762, %v4762
      %v5088 = vsub.f32 0.0, %v5063
      %v5089 = vsub.f32 0.0, %v5064
      %v5090 = vsub.f32 0.0, %v5065
      %v5091 = vsub.f32 0.0, %v5066
      %v5092 = vsub.f32 0.0, %v5067
      %v5093 = vsub.f32 0.0, %v5068
      %v5094 = vsub.f32 0.0, %v5069
      %v5095 = vsub.f32 0.0, %v5070
      %v5096 = vsub.f32 0.0, %v5071
      %v5097 = vsub.f32 0.0, %v5072
      %v5098 = vsub.f32 0.0, %v5073
      %v5099 = vsub.f32 0.0, %v5074
      %v5100 = vsub.f32 0.0, %v5075
      %v5101 = vsub.f32 0.0, %v5076
      %v5102 = vsub.f32 0.0, %v5077
      %v5103 = vsub.f32 0.0, %v5078
      %v5104 = vsub.f32 0.0, %v5079
      %v5105 = vsub.f32 0.0, %v5080
      %v5106 = vsub.f32 0.0, %v5081
      %v5107 = vsub.f32 0.0, %v5082
      %v5108 = vsub.f32 0.0, %v5083
      %v5109 = vsub.f32 0.0, %v5084
      %v5110 = vsub.f32 0.0, %v5085
      %v5111 = vsub.f32 0.0, %v5086
      %v5112 = vsub.f32 0.0, %v5087
      %v5113 = vmul.f32 %v5088, 1.442695
      %v5114 = vpow.pop %v5113
      %v5115 = vmul.f32 %v5089, 1.442695
      %v5116 = vpow.pop %v5115
      %v5117 = vmul.f32 %v5090, 1.442695
      %v5118 = vpow.pop %v5117
      %v5119 = vmul.f32 %v5091, 1.442695
      %v5120 = vpow.pop %v5119
      %v5121 = vmul.f32 %v5092, 1.442695
      %v5122 = vpow.pop %v5121
      %v5123 = vmul.f32 %v5093, 1.442695
      %v5124 = vpow.pop %v5123
      %v5125 = vmul.f32 %v5094, 1.442695
      %v5126 = vpow.pop %v5125
      %v5127 = vmul.f32 %v5095, 1.442695
      %v5128 = vpow.pop %v5127
      %v5129 = vmul.f32 %v5096, 1.442695
      %v5130 = vpow.pop %v5129
      %v5131 = vmul.f32 %v5097, 1.442695
      %v5132 = vpow.pop %v5131
      %v5133 = vmul.f32 %v5098, 1.442695
      %v5134 = vpow.pop %v5133
      %v5135 = vmul.f32 %v5099, 1.442695
      %v5136 = vpow.pop %v5135
      %v5137 = vmul.f32 %v5100, 1.442695
      %v5138 = vpow.pop %v5137
      %v5139 = vmul.f32 %v5101, 1.442695
      %v5140 = vpow.pop %v5139
      %v5141 = vmul.f32 %v5102, 1.442695
      %v5142 = vpow.pop %v5141
      %v5143 = vmul.f32 %v5103, 1.442695
      %v5144 = vpow.pop %v5143
      %v5145 = vmul.f32 %v5104, 1.442695
      %v5146 = vpow.pop %v5145
      %v5147 = vmul.f32 %v5105, 1.442695
      %v5148 = vpow.pop %v5147
      %v5149 = vmul.f32 %v5106, 1.442695
      %v5150 = vpow.pop %v5149
      %v5151 = vmul.f32 %v5107, 1.442695
      %v5152 = vpow.pop %v5151
      %v5153 = vmul.f32 %v5108, 1.442695
      %v5154 = vpow.pop %v5153
      %v5155 = vmul.f32 %v5109, 1.442695
      %v5156 = vpow.pop %v5155
      %v5157 = vmul.f32 %v5110, 1.442695
      %v5158 = vpow.pop %v5157
      %v5159 = vmul.f32 %v5111, 1.442695
      %v5160 = vpow.pop %v5159
      %v5161 = vmul.f32 %v5112, 1.442695
      %v5162 = vpow.pop %v5161
      %v5163 = vmul.f32 %v5038, %v5114
      %v5164 = vmul.f32 %v5039, %v5116
      %v5165 = vmul.f32 %v5040, %v5118
      %v5166 = vmul.f32 %v5041, %v5120
      %v5167 = vmul.f32 %v5042, %v5122
      %v5168 = vmul.f32 %v5043, %v5124
      %v5169 = vmul.f32 %v5044, %v5126
      %v5170 = vmul.f32 %v5045, %v5128
      %v5171 = vmul.f32 %v5046, %v5130
      %v5172 = vmul.f32 %v5047, %v5132
      %v5173 = vmul.f32 %v5048, %v5134
      %v5174 = vmul.f32 %v5049, %v5136
      %v5175 = vmul.f32 %v5050, %v5138
      %v5176 = vmul.f32 %v5051, %v5140
      %v5177 = vmul.f32 %v5052, %v5142
      %v5178 = vmul.f32 %v5053, %v5144
      %v5179 = vmul.f32 %v5054, %v5146
      %v5180 = vmul.f32 %v5055, %v5148
      %v5181 = vmul.f32 %v5056, %v5150
      %v5182 = vmul.f32 %v5057, %v5152
      %v5183 = vmul.f32 %v5058, %v5154
      %v5184 = vmul.f32 %v5059, %v5156
      %v5185 = vmul.f32 %v5060, %v5158
      %v5186 = vmul.f32 %v5061, %v5160
      %v5187 = vmul.f32 %v5062, %v5162
      %v5188 = vsub.f32 1.0, %v5163
      %v5189 = vsub.f32 1.0, %v5164
      %v5190 = vsub.f32 1.0, %v5165
      %v5191 = vsub.f32 1.0, %v5166
      %v5192 = vsub.f32 1.0, %v5167
      %v5193 = vsub.f32 1.0, %v5168
      %v5194 = vsub.f32 1.0, %v5169
      %v5195 = vsub.f32 1.0, %v5170
      %v5196 = vsub.f32 1.0, %v5171
      %v5197 = vsub.f32 1.0, %v5172
      %v5198 = vsub.f32 1.0, %v5173
      %v5199 = vsub.f32 1.0, %v5174
      %v5200 = vsub.f32 1.0, %v5175
      %v5201 = vsub.f32 1.0, %v5176
      %v5202 = vsub.f32 1.0, %v5177
      %v5203 = vsub.f32 1.0, %v5178
      %v5204 = vsub.f32 1.0, %v5179
      %v5205 = vsub.f32 1.0, %v5180
      %v5206 = vsub.f32 1.0, %v5181
      %v5207 = vsub.f32 1.0, %v5182
      %v5208 = vsub.f32 1.0, %v5183
      %v5209 = vsub.f32 1.0, %v5184
      %v5210 = vsub.f32 1.0, %v5185
      %v5211 = vsub.f32 1.0, %v5186
      %v5212 = vsub.f32 1.0, %v5187
      %vm5213 = vcmp.ge.f32.partialorder %v4713, 0.0
      %vm5214 = vcmp.ge.f32.partialorder %v4714, 0.0
      %vm5215 = vcmp.ge.f32.partialorder %v4715, 0.0
      %vm5216 = vcmp.ge.f32.partialorder %v4716, 0.0
      %vm5217 = vcmp.ge.f32.partialorder %v4717, 0.0
      %vm5218 = vcmp.ge.f32.partialorder %v4718, 0.0
      %vm5219 = vcmp.ge.f32.partialorder %v4719, 0.0
      %vm5220 = vcmp.ge.f32.partialorder %v4720, 0.0
      %vm5221 = vcmp.ge.f32.partialorder %v4721, 0.0
      %vm5222 = vcmp.ge.f32.partialorder %v4722, 0.0
      %vm5223 = vcmp.ge.f32.partialorder %v4723, 0.0
      %vm5224 = vcmp.ge.f32.partialorder %v4724, 0.0
      %vm5225 = vcmp.ge.f32.partialorder %v4725, 0.0
      %vm5226 = vcmp.ge.f32.partialorder %v4726, 0.0
      %vm5227 = vcmp.ge.f32.partialorder %v4727, 0.0
      %vm5228 = vcmp.ge.f32.partialorder %v4728, 0.0
      %vm5229 = vcmp.ge.f32.partialorder %v4729, 0.0
      %vm5230 = vcmp.ge.f32.partialorder %v4730, 0.0
      %vm5231 = vcmp.ge.f32.partialorder %v4731, 0.0
      %vm5232 = vcmp.ge.f32.partialorder %v4732, 0.0
      %vm5233 = vcmp.ge.f32.partialorder %v4733, 0.0
      %vm5234 = vcmp.ge.f32.partialorder %v4734, 0.0
      %vm5235 = vcmp.ge.f32.partialorder %v4735, 0.0
      %vm5236 = vcmp.ge.f32.partialorder %v4736, 0.0
      %vm5237 = vcmp.ge.f32.partialorder %v4737, 0.0
      %v5238 = vsub.f32 0.0, %v5188
      %v5239 = vsub.f32 0.0, %v5189
      %v5240 = vsub.f32 0.0, %v5190
      %v5241 = vsub.f32 0.0, %v5191
      %v5242 = vsub.f32 0.0, %v5192
      %v5243 = vsub.f32 0.0, %v5193
      %v5244 = vsub.f32 0.0, %v5194
      %v5245 = vsub.f32 0.0, %v5195
      %v5246 = vsub.f32 0.0, %v5196
      %v5247 = vsub.f32 0.0, %v5197
      %v5248 = vsub.f32 0.0, %v5198
      %v5249 = vsub.f32 0.0, %v5199
      %v5250 = vsub.f32 0.0, %v5200
      %v5251 = vsub.f32 0.0, %v5201
      %v5252 = vsub.f32 0.0, %v5202
      %v5253 = vsub.f32 0.0, %v5203
      %v5254 = vsub.f32 0.0, %v5204
      %v5255 = vsub.f32 0.0, %v5205
      %v5256 = vsub.f32 0.0, %v5206
      %v5257 = vsub.f32 0.0, %v5207
      %v5258 = vsub.f32 0.0, %v5208
      %v5259 = vsub.f32 0.0, %v5209
      %v5260 = vsub.f32 0.0, %v5210
      %v5261 = vsub.f32 0.0, %v5211
      %v5262 = vsub.f32 0.0, %v5212
      %v5263 = vsel %vm5213, %v5188, %v5238
      %v5264 = vsel %vm5214, %v5189, %v5239
      %v5265 = vsel %vm5215, %v5190, %v5240
      %v5266 = vsel %vm5216, %v5191, %v5241
      %v5267 = vsel %vm5217, %v5192, %v5242
      %v5268 = vsel %vm5218, %v5193, %v5243
      %v5269 = vsel %vm5219, %v5194, %v5244
      %v5270 = vsel %vm5220, %v5195, %v5245
      %v5271 = vsel %vm5221, %v5196, %v5246
      %v5272 = vsel %vm5222, %v5197, %v5247
      %v5273 = vsel %vm5223, %v5198, %v5248
      %v5274 = vsel %vm5224, %v5199, %v5249
      %v5275 = vsel %vm5225, %v5200, %v5250
      %v5276 = vsel %vm5226, %v5201, %v5251
      %v5277 = vsel %vm5227, %v5202, %v5252
      %v5278 = vsel %vm5228, %v5203, %v5253
      %v5279 = vsel %vm5229, %v5204, %v5254
      %v5280 = vsel %vm5230, %v5205, %v5255
      %v5281 = vsel %vm5231, %v5206, %v5256
      %v5282 = vsel %vm5232, %v5207, %v5257
      %v5283 = vsel %vm5233, %v5208, %v5258
      %v5284 = vsel %vm5234, %v5209, %v5259
      %v5285 = vsel %vm5235, %v5210, %v5260
      %v5286 = vsel %vm5236, %v5211, %v5261
      %v5287 = vsel %vm5237, %v5212, %v5262
      %v5288 = vadd.f32 %v5263, 1.0
      %v5289 = vadd.f32 %v5264, 1.0
      %v5290 = vadd.f32 %v5265, 1.0
      %v5291 = vadd.f32 %v5266, 1.0
      %v5292 = vadd.f32 %v5267, 1.0
      %v5293 = vadd.f32 %v5268, 1.0
      %v5294 = vadd.f32 %v5269, 1.0
      %v5295 = vadd.f32 %v5270, 1.0
      %v5296 = vadd.f32 %v5271, 1.0
      %v5297 = vadd.f32 %v5272, 1.0
      %v5298 = vadd.f32 %v5273, 1.0
      %v5299 = vadd.f32 %v5274, 1.0
      %v5300 = vadd.f32 %v5275, 1.0
      %v5301 = vadd.f32 %v5276, 1.0
      %v5302 = vadd.f32 %v5277, 1.0
      %v5303 = vadd.f32 %v5278, 1.0
      %v5304 = vadd.f32 %v5279, 1.0
      %v5305 = vadd.f32 %v5280, 1.0
      %v5306 = vadd.f32 %v5281, 1.0
      %v5307 = vadd.f32 %v5282, 1.0
      %v5308 = vadd.f32 %v5283, 1.0
      %v5309 = vadd.f32 %v5284, 1.0
      %v5310 = vadd.f32 %v5285, 1.0
      %v5311 = vadd.f32 %v5286, 1.0
      %v5312 = vadd.f32 %v5287, 1.0
      %v5313 = vmul.f32 %v4688, %v5288
      %v5314 = vmul.f32 %v4689, %v5289
      %v5315 = vmul.f32 %v4690, %v5290
      %v5316 = vmul.f32 %v4691, %v5291
      %v5317 = vmul.f32 %v4692, %v5292
      %v5318 = vmul.f32 %v4693, %v5293
      %v5319 = vmul.f32 %v4694, %v5294
      %v5320 = vmul.f32 %v4695, %v5295
      %v5321 = vmul.f32 %v4696, %v5296
      %v5322 = vmul.f32 %v4697, %v5297
      %v5323 = vmul.f32 %v4698, %v5298
      %v5324 = vmul.f32 %v4699, %v5299
      %v5325 = vmul.f32 %v4700, %v5300
      %v5326 = vmul.f32 %v4701, %v5301
      %v5327 = vmul.f32 %v4702, %v5302
      %v5328 = vmul.f32 %v4703, %v5303
      %v5329 = vmul.f32 %v4704, %v5304
      %v5330 = vmul.f32 %v4705, %v5305
      %v5331 = vmul.f32 %v4706, %v5306
      %v5332 = vmul.f32 %v4707, %v5307
      %v5333 = vmul.f32 %v4708, %v5308
      %v5334 = vmul.f32 %v4709, %v5309
      %v5335 = vmul.f32 %v4710, %v5310
      %v5336 = vmul.f32 %v4711, %v5311
      %v5337 = vmul.f32 %v4712, %v5312
      %v5338 = vld [vmem:[%s1 + $0x30] sm:$0xff]
      %v5339 = vld [vmem:[%s1 + $0x38] sm:$0xff]
      %v5340 = vld [vmem:[%s1 + $0x40] sm:$0xff]
      %v5341 = vld [vmem:[%s1 + $0x48] sm:$0xff]
      %v5342 = vld [vmem:[%s1 + $0x50] sm:$0xff]
      %v5343 = vld [vmem:[%s1 + $0x58] sm:$0xff]
      %v5344 = vld [vmem:[%s1 + $0x60] sm:$0xff]
      %v5345 = vld [vmem:[%s1 + $0x68] sm:$0xff]
      %v5346 = vld [vmem:[%s1 + $0x70] sm:$0xff]
      %v5347 = vld [vmem:[%s1 + $0x78] sm:$0xff]
      %v5348 = vld [vmem:[%s1 + $0x80] sm:$0xff]
      %v5349 = vld [vmem:[%s1 + $0x88] sm:$0xff]
      %v5350 = vld [vmem:[%s1 + $0x90] sm:$0xff]
      %v5351 = vld [vmem:[%s1 + $0x98] sm:$0xff]
      %v5352 = vld [vmem:[%s1 + $0xa0] sm:$0xff]
      %v5353 = vld [vmem:[%s1 + $0xa8] sm:$0xff]
      %v5354 = vld [vmem:[%s3 + $0x7] ss:$0 sm:$0xff]
      %5355 = vmatprep.subr.mxu0 0.0
      %5356 = vmatpush1.msra.mxu0 %v5353
      %5357 = vmatprep.subr.mxu0 0.0
      %5358 = vmatpush1.msra.mxu0 %v5352
      %5359 = vmatprep.subr.mxu0 0.0
      %5360 = vmatpush1.msra.mxu0 %v5351
      %5361 = vmatprep.subr.mxu0 0.0
      %5362 = vmatpush1.msra.mxu0 %v5350
      %5363 = vmatprep.subr.mxu0 0.0
      %5364 = vmatpush1.msra.mxu0 %v5349
      %5365 = vmatprep.subr.mxu0 0.0
      %5366 = vmatpush1.msra.mxu0 %v5348
      %5367 = vmatprep.subr.mxu0 0.0
      %5368 = vmatpush1.msra.mxu0 %v5347
      %5369 = vmatprep.subr.mxu0 0.0
      %5370 = vmatpush1.msra.mxu0 %v5346
      %5371 = vmatprep.subr.mxu0 0.0
      %5372 = vmatpush1.msra.mxu0 %v5345
      %5373 = vmatprep.subr.mxu0 0.0
      %5374 = vmatpush1.msra.mxu0 %v5344
      %5375 = vmatprep.subr.mxu0 0.0
      %5376 = vmatpush1.msra.mxu0 %v5343
      %5377 = vmatprep.subr.mxu0 0.0
      %5378 = vmatpush1.msra.mxu0 %v5342
      %5379 = vmatprep.subr.mxu0 0.0
      %5380 = vmatpush1.msra.mxu0 %v5341
      %5381 = vmatprep.subr.mxu0 0.0
      %5382 = vmatpush1.msra.mxu0 %v5340
      %5383 = vmatprep.subr.mxu0 0.0
      %5384 = vmatpush1.msra.mxu0 %v5339
      %5385 = vmatprep.subr.mxu0 0.0
      %5386 = vmatpush1.msra.mxu0 %v5338
      %5387 = vmatprep.subr.mxu0 0.0
      %5388 = vmatpush2.msra.mxu0 0.0
      %5389 = vmatprep.subr.mxu0 0.0
      %5390 = vmatpush2.msra.mxu0 0.0
      %5391 = vmatprep.subr.mxu0 0.0
      %5392 = vmatpush2.msra.mxu0 0.0
      %5393 = vmatprep.subr.mxu0 0.0
      %5394 = vmatpush2.msra.mxu0 0.0
      %5395 = vmatprep.subr.mxu0 0.0
      %5396 = vmatpush2.msra.mxu0 0.0
      %5397 = vmatprep.subr.mxu0 0.0
      %5398 = vmatpush2.msra.mxu0 0.0
      %5399 = vmatprep.subr.mxu0 0.0
      %5400 = vmatpush2.msra.mxu0 0.0
      %5401 = vmatprep.subr.mxu0 0.0
      %5402 = vmatpush2.msra.mxu0 0.0
      %5403 = vmatprep.subr.mxu0 0.0
      %5404 = vmatpush2.msra.mxu0 0.0
      %5405 = vmatprep.subr.mxu0 0.0
      %5406 = vmatpush2.msra.mxu0 0.0
      %5407 = vmatprep.subr.mxu0 0.0
      %5408 = vmatpush2.msra.mxu0 0.0
      %5409 = vmatprep.subr.mxu0 0.0
      %5410 = vmatpush2.msra.mxu0 0.0
      %5411 = vmatprep.subr.mxu0 0.0
      %5412 = vmatpush2.msra.mxu0 0.0
      %5413 = vmatprep.subr.mxu0 0.0
      %5414 = vmatpush2.msra.mxu0 0.0
      %5415 = vmatprep.subr.mxu0 0.0
      %5416 = vmatpush2.msra.mxu0 0.0
      %5417 = vmatprep.subr.mxu0 0.0
      %5418 = vmatpush2.msra.mxu0 0.0
      %5419 = vmatprep.mubr.f32.mxu0 0.0
      %5420 = vmatmul.mubr.f32.gmra.mxu0 %v5313
      %v5421 = vpop.f32.mrf.mxu0
      %v5422 = vadd.f32 %v5354, %v5421
      %v5423 = vpop.f32.mrf.mxu0
      %5424 = vmatprep.mubr.f32.mxu0 0.0
      %5425 = vmatmul.mubr.f32.gmra.mxu0 %v5314
      %v5426 = vpop.f32.mrf.mxu0
      %v5427 = vadd.f32 %v5354, %v5426
      %v5428 = vpop.f32.mrf.mxu0
      %5429 = vmatprep.mubr.f32.mxu0 0.0
      %5430 = vmatmul.mubr.f32.gmra.mxu0 %v5315
      %v5431 = vpop.f32.mrf.mxu0
      %v5432 = vadd.f32 %v5354, %v5431
      %v5433 = vpop.f32.mrf.mxu0
      %5434 = vmatprep.mubr.f32.mxu0 0.0
      %5435 = vmatmul.mubr.f32.gmra.mxu0 %v5316
      %v5436 = vpop.f32.mrf.mxu0
      %v5437 = vadd.f32 %v5354, %v5436
      %v5438 = vpop.f32.mrf.mxu0
      %5439 = vmatprep.mubr.f32.mxu0 0.0
      %5440 = vmatmul.mubr.f32.gmra.mxu0 %v5317
      %v5441 = vpop.f32.mrf.mxu0
      %v5442 = vadd.f32 %v5354, %v5441
      %v5443 = vpop.f32.mrf.mxu0
      %5444 = vmatprep.mubr.f32.mxu0 0.0
      %5445 = vmatmul.mubr.f32.gmra.mxu0 %v5318
      %v5446 = vpop.f32.mrf.mxu0
      %v5447 = vadd.f32 %v5354, %v5446
      %v5448 = vpop.f32.mrf.mxu0
      %5449 = vmatprep.mubr.f32.mxu0 0.0
      %5450 = vmatmul.mubr.f32.gmra.mxu0 %v5319
      %v5451 = vpop.f32.mrf.mxu0
      %v5452 = vadd.f32 %v5354, %v5451
      %v5453 = vpop.f32.mrf.mxu0
      %5454 = vmatprep.mubr.f32.mxu0 0.0
      %5455 = vmatmul.mubr.f32.gmra.mxu0 %v5320
      %v5456 = vpop.f32.mrf.mxu0
      %v5457 = vadd.f32 %v5354, %v5456
      %v5458 = vpop.f32.mrf.mxu0
      %5459 = vmatprep.mubr.f32.mxu0 0.0
      %5460 = vmatmul.mubr.f32.gmra.mxu0 %v5321
      %v5461 = vpop.f32.mrf.mxu0
      %v5462 = vadd.f32 %v5354, %v5461
      %v5463 = vpop.f32.mrf.mxu0
      %5464 = vmatprep.mubr.f32.mxu0 0.0
      %5465 = vmatmul.mubr.f32.gmra.mxu0 %v5322
      %v5466 = vpop.f32.mrf.mxu0
      %v5467 = vadd.f32 %v5354, %v5466
      %v5468 = vpop.f32.mrf.mxu0
      %5469 = vmatprep.mubr.f32.mxu0 0.0
      %5470 = vmatmul.mubr.f32.gmra.mxu0 %v5323
      %v5471 = vpop.f32.mrf.mxu0
      %v5472 = vadd.f32 %v5354, %v5471
      %v5473 = vpop.f32.mrf.mxu0
      %5474 = vmatprep.mubr.f32.mxu0 0.0
      %5475 = vmatmul.mubr.f32.gmra.mxu0 %v5324
      %v5476 = vpop.f32.mrf.mxu0
      %v5477 = vadd.f32 %v5354, %v5476
      %v5478 = vpop.f32.mrf.mxu0
      %5479 = vmatprep.mubr.f32.mxu0 0.0
      %5480 = vmatmul.mubr.f32.gmra.mxu0 %v5325
      %v5481 = vpop.f32.mrf.mxu0
      %v5482 = vadd.f32 %v5354, %v5481
      %v5483 = vpop.f32.mrf.mxu0
      %5484 = vmatprep.mubr.f32.mxu0 0.0
      %5485 = vmatmul.mubr.f32.gmra.mxu0 %v5326
      %v5486 = vpop.f32.mrf.mxu0
      %v5487 = vadd.f32 %v5354, %v5486
      %v5488 = vpop.f32.mrf.mxu0
      %5489 = vmatprep.mubr.f32.mxu0 0.0
      %5490 = vmatmul.mubr.f32.gmra.mxu0 %v5327
      %v5491 = vpop.f32.mrf.mxu0
      %v5492 = vadd.f32 %v5354, %v5491
      %v5493 = vpop.f32.mrf.mxu0
      %5494 = vmatprep.mubr.f32.mxu0 0.0
      %5495 = vmatmul.mubr.f32.gmra.mxu0 %v5328
      %v5496 = vpop.f32.mrf.mxu0
      %v5497 = vadd.f32 %v5354, %v5496
      %v5498 = vpop.f32.mrf.mxu0
      %5499 = vmatprep.mubr.f32.mxu0 0.0
      %5500 = vmatmul.mubr.f32.gmra.mxu0 %v5329
      %v5501 = vpop.f32.mrf.mxu0
      %v5502 = vadd.f32 %v5354, %v5501
      %v5503 = vpop.f32.mrf.mxu0
      %5504 = vmatprep.mubr.f32.mxu0 0.0
      %5505 = vmatmul.mubr.f32.gmra.mxu0 %v5330
      %v5506 = vpop.f32.mrf.mxu0
      %v5507 = vadd.f32 %v5354, %v5506
      %v5508 = vpop.f32.mrf.mxu0
      %5509 = vmatprep.mubr.f32.mxu0 0.0
      %5510 = vmatmul.mubr.f32.gmra.mxu0 %v5331
      %v5511 = vpop.f32.mrf.mxu0
      %v5512 = vadd.f32 %v5354, %v5511
      %v5513 = vpop.f32.mrf.mxu0
      %5514 = vmatprep.mubr.f32.mxu0 0.0
      %5515 = vmatmul.mubr.f32.gmra.mxu0 %v5332
      %v5516 = vpop.f32.mrf.mxu0
      %v5517 = vadd.f32 %v5354, %v5516
      %v5518 = vpop.f32.mrf.mxu0
      %5519 = vmatprep.mubr.f32.mxu0 0.0
      %5520 = vmatmul.mubr.f32.gmra.mxu0 %v5333
      %v5521 = vpop.f32.mrf.mxu0
      %v5522 = vadd.f32 %v5354, %v5521
      %v5523 = vpop.f32.mrf.mxu0
      %5524 = vmatprep.mubr.f32.mxu0 0.0
      %5525 = vmatmul.mubr.f32.gmra.mxu0 %v5334
      %v5526 = vpop.f32.mrf.mxu0
      %v5527 = vadd.f32 %v5354, %v5526
      %v5528 = vpop.f32.mrf.mxu0
      %5529 = vmatprep.mubr.f32.mxu0 0.0
      %5530 = vmatmul.mubr.f32.gmra.mxu0 %v5335
      %v5531 = vpop.f32.mrf.mxu0
      %v5532 = vadd.f32 %v5354, %v5531
      %v5533 = vpop.f32.mrf.mxu0
      %5534 = vmatprep.mubr.f32.mxu0 0.0
      %5535 = vmatmul.mubr.f32.gmra.mxu0 %v5336
      %v5536 = vpop.f32.mrf.mxu0
      %v5537 = vadd.f32 %v5354, %v5536
      %v5538 = vpop.f32.mrf.mxu0
      %5539 = vmatprep.mubr.f32.mxu0 0.0
      %5540 = vmatmul.mubr.f32.gmra.mxu0 %v5337
      %v5541 = vpop.f32.mrf.mxu0
      %v5542 = vadd.f32 %v5354, %v5541
      %v5543 = vpop.f32.mrf.mxu0
      %5544 = vdwg.mxu0
      %v5545 = vadd.f32 %v4012, %v5422
      %v5546 = vadd.f32 %v4013, %v5427
      %v5547 = vadd.f32 %v4014, %v5432
      %v5548 = vadd.f32 %v4015, %v5437
      %v5549 = vadd.f32 %v4016, %v5442
      %v5550 = vadd.f32 %v4017, %v5447
      %v5551 = vadd.f32 %v4018, %v5452
      %v5552 = vadd.f32 %v4019, %v5457
      %v5553 = vadd.f32 %v4020, %v5462
      %v5554 = vadd.f32 %v4021, %v5467
      %v5555 = vadd.f32 %v4022, %v5472
      %v5556 = vadd.f32 %v4023, %v5477
      %v5557 = vadd.f32 %v4024, %v5482
      %v5558 = vadd.f32 %v4025, %v5487
      %v5559 = vadd.f32 %v4026, %v5492
      %v5560 = vadd.f32 %v4027, %v5497
      %v5561 = vadd.f32 %v4028, %v5502
      %v5562 = vadd.f32 %v4029, %v5507
      %v5563 = vadd.f32 %v4030, %v5512
      %v5564 = vadd.f32 %v4031, %v5517
      %v5565 = vadd.f32 %v4032, %v5522
      %v5566 = vadd.f32 %v4033, %v5527
      %v5567 = vadd.f32 %v4034, %v5532
      %v5568 = vadd.f32 %v4035, %v5537
      %v5569 = vadd.f32 %v4036, %v5542
      %v5570 = vld [vmem:[%s3 + $0x10] ss:$0 sm:$0xff]
      %v5571 = vld [vmem:[%s3 + $0x11] ss:$0 sm:$0xff]
      %v5572 = vsel %vm520, %v5545, 0.0
      %5573 = vadd.xlane.f32.xlu0 %v5572
      %v5574 = vpop.xlane.xlu0 %5573
      %v5575 = vsel %vm520, %v5546, 0.0
      %5576 = vadd.xlane.f32.xlu0 %v5575
      %v5577 = vpop.xlane.xlu0 %5576
      %v5578 = vsel %vm520, %v5547, 0.0
      %5579 = vadd.xlane.f32.xlu0 %v5578
      %v5580 = vpop.xlane.xlu0 %5579
      %v5581 = vsel %vm520, %v5548, 0.0
      %5582 = vadd.xlane.f32.xlu0 %v5581
      %v5583 = vpop.xlane.xlu0 %5582
      %v5584 = vsel %vm520, %v5549, 0.0
      %5585 = vadd.xlane.f32.xlu0 %v5584
      %v5586 = vpop.xlane.xlu0 %5585
      %v5587 = vsel %vm520, %v5550, 0.0
      %5588 = vadd.xlane.f32.xlu0 %v5587
      %v5589 = vpop.xlane.xlu0 %5588
      %v5590 = vsel %vm520, %v5551, 0.0
      %5591 = vadd.xlane.f32.xlu0 %v5590
      %v5592 = vpop.xlane.xlu0 %5591
      %v5593 = vsel %vm520, %v5552, 0.0
      %5594 = vadd.xlane.f32.xlu0 %v5593
      %v5595 = vpop.xlane.xlu0 %5594
      %v5596 = vsel %vm520, %v5553, 0.0
      %5597 = vadd.xlane.f32.xlu0 %v5596
      %v5598 = vpop.xlane.xlu0 %5597
      %v5599 = vsel %vm520, %v5554, 0.0
      %5600 = vadd.xlane.f32.xlu0 %v5599
      %v5601 = vpop.xlane.xlu0 %5600
      %v5602 = vsel %vm520, %v5555, 0.0
      %5603 = vadd.xlane.f32.xlu0 %v5602
      %v5604 = vpop.xlane.xlu0 %5603
      %v5605 = vsel %vm520, %v5556, 0.0
      %5606 = vadd.xlane.f32.xlu0 %v5605
      %v5607 = vpop.xlane.xlu0 %5606
      %v5608 = vsel %vm520, %v5557, 0.0
      %5609 = vadd.xlane.f32.xlu0 %v5608
      %v5610 = vpop.xlane.xlu0 %5609
      %v5611 = vsel %vm520, %v5558, 0.0
      %5612 = vadd.xlane.f32.xlu0 %v5611
      %v5613 = vpop.xlane.xlu0 %5612
      %v5614 = vsel %vm520, %v5559, 0.0
      %5615 = vadd.xlane.f32.xlu0 %v5614
      %v5616 = vpop.xlane.xlu0 %5615
      %v5617 = vsel %vm520, %v5560, 0.0
      %5618 = vadd.xlane.f32.xlu0 %v5617
      %v5619 = vpop.xlane.xlu0 %5618
      %v5620 = vsel %vm520, %v5561, 0.0
      %5621 = vadd.xlane.f32.xlu0 %v5620
      %v5622 = vpop.xlane.xlu0 %5621
      %v5623 = vsel %vm520, %v5562, 0.0
      %5624 = vadd.xlane.f32.xlu0 %v5623
      %v5625 = vpop.xlane.xlu0 %5624
      %v5626 = vsel %vm520, %v5563, 0.0
      %5627 = vadd.xlane.f32.xlu0 %v5626
      %v5628 = vpop.xlane.xlu0 %5627
      %v5629 = vsel %vm520, %v5564, 0.0
      %5630 = vadd.xlane.f32.xlu0 %v5629
      %v5631 = vpop.xlane.xlu0 %5630
      %v5632 = vsel %vm520, %v5565, 0.0
      %5633 = vadd.xlane.f32.xlu0 %v5632
      %v5634 = vpop.xlane.xlu0 %5633
      %v5635 = vsel %vm520, %v5566, 0.0
      %5636 = vadd.xlane.f32.xlu0 %v5635
      %v5637 = vpop.xlane.xlu0 %5636
      %v5638 = vsel %vm520, %v5567, 0.0
      %5639 = vadd.xlane.f32.xlu0 %v5638
      %v5640 = vpop.xlane.xlu0 %5639
      %v5641 = vsel %vm520, %v5568, 0.0
      %5642 = vadd.xlane.f32.xlu0 %v5641
      %v5643 = vpop.xlane.xlu0 %5642
      %v5644 = vsel %vm593, %v5569, 0.0
      %5645 = vadd.xlane.f32.xlu0 %v5644
      %v5646 = vpop.xlane.xlu0 %5645
      %v5647 = vmul.f32 %v5574, %v597
      %v5648 = vmul.f32 %v5577, %v597
      %v5649 = vmul.f32 %v5580, %v597
      %v5650 = vmul.f32 %v5583, %v597
      %v5651 = vmul.f32 %v5586, %v597
      %v5652 = vmul.f32 %v5589, %v597
      %v5653 = vmul.f32 %v5592, %v597
      %v5654 = vmul.f32 %v5595, %v597
      %v5655 = vmul.f32 %v5598, %v597
      %v5656 = vmul.f32 %v5601, %v597
      %v5657 = vmul.f32 %v5604, %v597
      %v5658 = vmul.f32 %v5607, %v597
      %v5659 = vmul.f32 %v5610, %v597
      %v5660 = vmul.f32 %v5613, %v597
      %v5661 = vmul.f32 %v5616, %v597
      %v5662 = vmul.f32 %v5619, %v597
      %v5663 = vmul.f32 %v5622, %v597
      %v5664 = vmul.f32 %v5625, %v597
      %v5665 = vmul.f32 %v5628, %v597
      %v5666 = vmul.f32 %v5631, %v597
      %v5667 = vmul.f32 %v5634, %v597
      %v5668 = vmul.f32 %v5637, %v597
      %v5669 = vmul.f32 %v5640, %v597
      %v5670 = vmul.f32 %v5643, %v597
      %v5671 = vmul.f32 %v5646, %v597
      %v5672 = vsub.f32 %v5545, %v5647
      %v5673 = vsub.f32 %v5546, %v5648
      %v5674 = vsub.f32 %v5547, %v5649
      %v5675 = vsub.f32 %v5548, %v5650
      %v5676 = vsub.f32 %v5549, %v5651
      %v5677 = vsub.f32 %v5550, %v5652
      %v5678 = vsub.f32 %v5551, %v5653
      %v5679 = vsub.f32 %v5552, %v5654
      %v5680 = vsub.f32 %v5553, %v5655
      %v5681 = vsub.f32 %v5554, %v5656
      %v5682 = vsub.f32 %v5555, %v5657
      %v5683 = vsub.f32 %v5556, %v5658
      %v5684 = vsub.f32 %v5557, %v5659
      %v5685 = vsub.f32 %v5558, %v5660
      %v5686 = vsub.f32 %v5559, %v5661
      %v5687 = vsub.f32 %v5560, %v5662
      %v5688 = vsub.f32 %v5561, %v5663
      %v5689 = vsub.f32 %v5562, %v5664
      %v5690 = vsub.f32 %v5563, %v5665
      %v5691 = vsub.f32 %v5564, %v5666
      %v5692 = vsub.f32 %v5565, %v5667
      %v5693 = vsub.f32 %v5566, %v5668
      %v5694 = vsub.f32 %v5567, %v5669
      %v5695 = vsub.f32 %v5568, %v5670
      %v5696 = vsub.f32 %v5569, %v5671
      %v5697 = vmul.f32 %v5672, %v5672
      %v5698 = vmul.f32 %v5673, %v5673
      %v5699 = vmul.f32 %v5674, %v5674
      %v5700 = vmul.f32 %v5675, %v5675
      %v5701 = vmul.f32 %v5676, %v5676
      %v5702 = vmul.f32 %v5677, %v5677
      %v5703 = vmul.f32 %v5678, %v5678
      %v5704 = vmul.f32 %v5679, %v5679
      %v5705 = vmul.f32 %v5680, %v5680
      %v5706 = vmul.f32 %v5681, %v5681
      %v5707 = vmul.f32 %v5682, %v5682
      %v5708 = vmul.f32 %v5683, %v5683
      %v5709 = vmul.f32 %v5684, %v5684
      %v5710 = vmul.f32 %v5685, %v5685
      %v5711 = vmul.f32 %v5686, %v5686
      %v5712 = vmul.f32 %v5687, %v5687
      %v5713 = vmul.f32 %v5688, %v5688
      %v5714 = vmul.f32 %v5689, %v5689
      %v5715 = vmul.f32 %v5690, %v5690
      %v5716 = vmul.f32 %v5691, %v5691
      %v5717 = vmul.f32 %v5692, %v5692
      %v5718 = vmul.f32 %v5693, %v5693
      %v5719 = vmul.f32 %v5694, %v5694
      %v5720 = vmul.f32 %v5695, %v5695
      %v5721 = vmul.f32 %v5696, %v5696
      %v5722 = vsel %vm520, %v5697, 0.0
      %5723 = vadd.xlane.f32.xlu0 %v5722
      %v5724 = vpop.xlane.xlu0 %5723
      %v5725 = vsel %vm520, %v5698, 0.0
      %5726 = vadd.xlane.f32.xlu0 %v5725
      %v5727 = vpop.xlane.xlu0 %5726
      %v5728 = vsel %vm520, %v5699, 0.0
      %5729 = vadd.xlane.f32.xlu0 %v5728
      %v5730 = vpop.xlane.xlu0 %5729
      %v5731 = vsel %vm520, %v5700, 0.0
      %5732 = vadd.xlane.f32.xlu0 %v5731
      %v5733 = vpop.xlane.xlu0 %5732
      %v5734 = vsel %vm520, %v5701, 0.0
      %5735 = vadd.xlane.f32.xlu0 %v5734
      %v5736 = vpop.xlane.xlu0 %5735
      %v5737 = vsel %vm520, %v5702, 0.0
      %5738 = vadd.xlane.f32.xlu0 %v5737
      %v5739 = vpop.xlane.xlu0 %5738
      %v5740 = vsel %vm520, %v5703, 0.0
      %5741 = vadd.xlane.f32.xlu0 %v5740
      %v5742 = vpop.xlane.xlu0 %5741
      %v5743 = vsel %vm520, %v5704, 0.0
      %5744 = vadd.xlane.f32.xlu0 %v5743
      %v5745 = vpop.xlane.xlu0 %5744
      %v5746 = vsel %vm520, %v5705, 0.0
      %5747 = vadd.xlane.f32.xlu0 %v5746
      %v5748 = vpop.xlane.xlu0 %5747
      %v5749 = vsel %vm520, %v5706, 0.0
      %5750 = vadd.xlane.f32.xlu0 %v5749
      %v5751 = vpop.xlane.xlu0 %5750
      %v5752 = vsel %vm520, %v5707, 0.0
      %5753 = vadd.xlane.f32.xlu0 %v5752
      %v5754 = vpop.xlane.xlu0 %5753
      %v5755 = vsel %vm520, %v5708, 0.0
      %5756 = vadd.xlane.f32.xlu0 %v5755
      %v5757 = vpop.xlane.xlu0 %5756
      %v5758 = vsel %vm520, %v5709, 0.0
      %5759 = vadd.xlane.f32.xlu0 %v5758
      %v5760 = vpop.xlane.xlu0 %5759
      %v5761 = vsel %vm520, %v5710, 0.0
      %5762 = vadd.xlane.f32.xlu0 %v5761
      %v5763 = vpop.xlane.xlu0 %5762
      %v5764 = vsel %vm520, %v5711, 0.0
      %5765 = vadd.xlane.f32.xlu0 %v5764
      %v5766 = vpop.xlane.xlu0 %5765
      %v5767 = vsel %vm520, %v5712, 0.0
      %5768 = vadd.xlane.f32.xlu0 %v5767
      %v5769 = vpop.xlane.xlu0 %5768
      %v5770 = vsel %vm520, %v5713, 0.0
      %5771 = vadd.xlane.f32.xlu0 %v5770
      %v5772 = vpop.xlane.xlu0 %5771
      %v5773 = vsel %vm520, %v5714, 0.0
      %5774 = vadd.xlane.f32.xlu0 %v5773
      %v5775 = vpop.xlane.xlu0 %5774
      %v5776 = vsel %vm520, %v5715, 0.0
      %5777 = vadd.xlane.f32.xlu0 %v5776
      %v5778 = vpop.xlane.xlu0 %5777
      %v5779 = vsel %vm520, %v5716, 0.0
      %5780 = vadd.xlane.f32.xlu0 %v5779
      %v5781 = vpop.xlane.xlu0 %5780
      %v5782 = vsel %vm520, %v5717, 0.0
      %5783 = vadd.xlane.f32.xlu0 %v5782
      %v5784 = vpop.xlane.xlu0 %5783
      %v5785 = vsel %vm520, %v5718, 0.0
      %5786 = vadd.xlane.f32.xlu0 %v5785
      %v5787 = vpop.xlane.xlu0 %5786
      %v5788 = vsel %vm520, %v5719, 0.0
      %5789 = vadd.xlane.f32.xlu0 %v5788
      %v5790 = vpop.xlane.xlu0 %5789
      %v5791 = vsel %vm520, %v5720, 0.0
      %5792 = vadd.xlane.f32.xlu0 %v5791
      %v5793 = vpop.xlane.xlu0 %5792
      %v5794 = vsel %vm593, %v5721, 0.0
      %5795 = vadd.xlane.f32.xlu0 %v5794
      %v5796 = vpop.xlane.xlu0 %5795
      %v5797 = vmul.f32 %v5724, %v597
      %v5798 = vmul.f32 %v5727, %v597
      %v5799 = vmul.f32 %v5730, %v597
      %v5800 = vmul.f32 %v5733, %v597
      %v5801 = vmul.f32 %v5736, %v597
      %v5802 = vmul.f32 %v5739, %v597
      %v5803 = vmul.f32 %v5742, %v597
      %v5804 = vmul.f32 %v5745, %v597
      %v5805 = vmul.f32 %v5748, %v597
      %v5806 = vmul.f32 %v5751, %v597
      %v5807 = vmul.f32 %v5754, %v597
      %v5808 = vmul.f32 %v5757, %v597
      %v5809 = vmul.f32 %v5760, %v597
      %v5810 = vmul.f32 %v5763, %v597
      %v5811 = vmul.f32 %v5766, %v597
      %v5812 = vmul.f32 %v5769, %v597
      %v5813 = vmul.f32 %v5772, %v597
      %v5814 = vmul.f32 %v5775, %v597
      %v5815 = vmul.f32 %v5778, %v597
      %v5816 = vmul.f32 %v5781, %v597
      %v5817 = vmul.f32 %v5784, %v597
      %v5818 = vmul.f32 %v5787, %v597
      %v5819 = vmul.f32 %v5790, %v597
      %v5820 = vmul.f32 %v5793, %v597
      %v5821 = vmul.f32 %v5796, %v597
      %v5822 = vadd.f32 %v5797, 1e-06
      %v5823 = vadd.f32 %v5798, 1e-06
      %v5824 = vadd.f32 %v5799, 1e-06
      %v5825 = vadd.f32 %v5800, 1e-06
      %v5826 = vadd.f32 %v5801, 1e-06
      %v5827 = vadd.f32 %v5802, 1e-06
      %v5828 = vadd.f32 %v5803, 1e-06
      %v5829 = vadd.f32 %v5804, 1e-06
      %v5830 = vadd.f32 %v5805, 1e-06
      %v5831 = vadd.f32 %v5806, 1e-06
      %v5832 = vadd.f32 %v5807, 1e-06
      %v5833 = vadd.f32 %v5808, 1e-06
      %v5834 = vadd.f32 %v5809, 1e-06
      %v5835 = vadd.f32 %v5810, 1e-06
      %v5836 = vadd.f32 %v5811, 1e-06
      %v5837 = vadd.f32 %v5812, 1e-06
      %v5838 = vadd.f32 %v5813, 1e-06
      %v5839 = vadd.f32 %v5814, 1e-06
      %v5840 = vadd.f32 %v5815, 1e-06
      %v5841 = vadd.f32 %v5816, 1e-06
      %v5842 = vadd.f32 %v5817, 1e-06
      %v5843 = vadd.f32 %v5818, 1e-06
      %v5844 = vadd.f32 %v5819, 1e-06
      %v5845 = vadd.f32 %v5820, 1e-06
      %v5846 = vadd.f32 %v5821, 1e-06
      %v5847 = vrsqrt.pop %v5822
      %v5848 = vrsqrt.pop %v5823
      %v5849 = vrsqrt.pop %v5824
      %v5850 = vrsqrt.pop %v5825
      %v5851 = vrsqrt.pop %v5826
      %v5852 = vrsqrt.pop %v5827
      %v5853 = vrsqrt.pop %v5828
      %v5854 = vrsqrt.pop %v5829
      %v5855 = vrsqrt.pop %v5830
      %v5856 = vrsqrt.pop %v5831
      %v5857 = vrsqrt.pop %v5832
      %v5858 = vrsqrt.pop %v5833
      %v5859 = vrsqrt.pop %v5834
      %v5860 = vrsqrt.pop %v5835
      %v5861 = vrsqrt.pop %v5836
      %v5862 = vrsqrt.pop %v5837
      %v5863 = vrsqrt.pop %v5838
      %v5864 = vrsqrt.pop %v5839
      %v5865 = vrsqrt.pop %v5840
      %v5866 = vrsqrt.pop %v5841
      %v5867 = vrsqrt.pop %v5842
      %v5868 = vrsqrt.pop %v5843
      %v5869 = vrsqrt.pop %v5844
      %v5870 = vrsqrt.pop %v5845
      %v5871 = vrsqrt.pop %v5846
      %v5872 = vmul.f32 %v5672, %v5847
      %v5873 = vmul.f32 %v5673, %v5848
      %v5874 = vmul.f32 %v5674, %v5849
      %v5875 = vmul.f32 %v5675, %v5850
      %v5876 = vmul.f32 %v5676, %v5851
      %v5877 = vmul.f32 %v5677, %v5852
      %v5878 = vmul.f32 %v5678, %v5853
      %v5879 = vmul.f32 %v5679, %v5854
      %v5880 = vmul.f32 %v5680, %v5855
      %v5881 = vmul.f32 %v5681, %v5856
      %v5882 = vmul.f32 %v5682, %v5857
      %v5883 = vmul.f32 %v5683, %v5858
      %v5884 = vmul.f32 %v5684, %v5859
      %v5885 = vmul.f32 %v5685, %v5860
      %v5886 = vmul.f32 %v5686, %v5861
      %v5887 = vmul.f32 %v5687, %v5862
      %v5888 = vmul.f32 %v5688, %v5863
      %v5889 = vmul.f32 %v5689, %v5864
      %v5890 = vmul.f32 %v5690, %v5865
      %v5891 = vmul.f32 %v5691, %v5866
      %v5892 = vmul.f32 %v5692, %v5867
      %v5893 = vmul.f32 %v5693, %v5868
      %v5894 = vmul.f32 %v5694, %v5869
      %v5895 = vmul.f32 %v5695, %v5870
      %v5896 = vmul.f32 %v5696, %v5871
      %v5897 = vmul.f32 %v5872, %v5570
      %v5898 = vmul.f32 %v5873, %v5570
      %v5899 = vmul.f32 %v5874, %v5570
      %v5900 = vmul.f32 %v5875, %v5570
      %v5901 = vmul.f32 %v5876, %v5570
      %v5902 = vmul.f32 %v5877, %v5570
      %v5903 = vmul.f32 %v5878, %v5570
      %v5904 = vmul.f32 %v5879, %v5570
      %v5905 = vmul.f32 %v5880, %v5570
      %v5906 = vmul.f32 %v5881, %v5570
      %v5907 = vmul.f32 %v5882, %v5570
      %v5908 = vmul.f32 %v5883, %v5570
      %v5909 = vmul.f32 %v5884, %v5570
      %v5910 = vmul.f32 %v5885, %v5570
      %v5911 = vmul.f32 %v5886, %v5570
      %v5912 = vmul.f32 %v5887, %v5570
      %v5913 = vmul.f32 %v5888, %v5570
      %v5914 = vmul.f32 %v5889, %v5570
      %v5915 = vmul.f32 %v5890, %v5570
      %v5916 = vmul.f32 %v5891, %v5570
      %v5917 = vmul.f32 %v5892, %v5570
      %v5918 = vmul.f32 %v5893, %v5570
      %v5919 = vmul.f32 %v5894, %v5570
      %v5920 = vmul.f32 %v5895, %v5570
      %v5921 = vmul.f32 %v5896, %v5570
      %v5922 = vadd.f32 %v5897, %v5571
      %v5923 = vadd.f32 %v5898, %v5571
      %v5924 = vadd.f32 %v5899, %v5571
      %v5925 = vadd.f32 %v5900, %v5571
      %v5926 = vadd.f32 %v5901, %v5571
      %v5927 = vadd.f32 %v5902, %v5571
      %v5928 = vadd.f32 %v5903, %v5571
      %v5929 = vadd.f32 %v5904, %v5571
      %v5930 = vadd.f32 %v5905, %v5571
      %v5931 = vadd.f32 %v5906, %v5571
      %v5932 = vadd.f32 %v5907, %v5571
      %v5933 = vadd.f32 %v5908, %v5571
      %v5934 = vadd.f32 %v5909, %v5571
      %v5935 = vadd.f32 %v5910, %v5571
      %v5936 = vadd.f32 %v5911, %v5571
      %v5937 = vadd.f32 %v5912, %v5571
      %v5938 = vadd.f32 %v5913, %v5571
      %v5939 = vadd.f32 %v5914, %v5571
      %v5940 = vadd.f32 %v5915, %v5571
      %v5941 = vadd.f32 %v5916, %v5571
      %v5942 = vadd.f32 %v5917, %v5571
      %v5943 = vadd.f32 %v5918, %v5571
      %v5944 = vadd.f32 %v5919, %v5571
      %v5945 = vadd.f32 %v5920, %v5571
      %v5946 = vadd.f32 %v5921, %v5571
      %v5947 = vlaneseq
      %v5948 = vshrl.u32 %v5947, 7
      %v5949 = vsub.s32 4, %v5948
      %v5950 = vrot.slane %v5946, %v5949
      %v5951 = vsub.f32 %v5922, %v5950
      %v5952 = vsub.f32 %v5923, %v5950
      %v5953 = vsub.f32 %v5924, %v5950
      %v5954 = vsub.f32 %v5925, %v5950
      %v5955 = vsub.f32 %v5926, %v5950
      %v5956 = vsub.f32 %v5927, %v5950
      %v5957 = vsub.f32 %v5928, %v5950
      %v5958 = vsub.f32 %v5929, %v5950
      %v5959 = vsub.f32 %v5930, %v5950
      %v5960 = vsub.f32 %v5931, %v5950
      %v5961 = vsub.f32 %v5932, %v5950
      %v5962 = vsub.f32 %v5933, %v5950
      %v5963 = vsub.f32 %v5934, %v5950
      %v5964 = vsub.f32 %v5935, %v5950
      %v5965 = vsub.f32 %v5936, %v5950
      %v5966 = vsub.f32 %v5937, %v5950
      %v5967 = vsub.f32 %v5938, %v5950
      %v5968 = vsub.f32 %v5939, %v5950
      %v5969 = vsub.f32 %v5940, %v5950
      %v5970 = vsub.f32 %v5941, %v5950
      %v5971 = vsub.f32 %v5942, %v5950
      %v5972 = vsub.f32 %v5943, %v5950
      %v5973 = vsub.f32 %v5944, %v5950
      %v5974 = vsub.f32 %v5945, %v5950
      %v5975 = vsub.f32 %v5946, %v5950
      %v5976 = vld [vmem:[%s1 + $0x178] sm:$0xff]
      %v5977 = vld [vmem:[%s1 + $0x180] sm:$0xff]
      %v5978 = vld [vmem:[%s1 + $0x188] sm:$0xff]
      %v5979 = vld [vmem:[%s1 + $0x190] sm:$0xff]
      %v5981 = vsel %vm520, %v5976, 0
      %v5984 = vsel %vm520, %v5977, 0
      %v5987 = vsel %vm520, %v5978, 0
      %v5990 = vsel %vm520, %v5979, 0
      %v5993 = vsel %vm520, %v5951, 0
      %v5996 = vsel %vm520, %v5952, 0
      %v5999 = vsel %vm520, %v5953, 0
      %v6002 = vsel %vm520, %v5954, 0
      %v6005 = vsel %vm520, %v5955, 0
      %v6008 = vsel %vm520, %v5956, 0
      %v6011 = vsel %vm520, %v5957, 0
      %v6014 = vsel %vm520, %v5958, 0
      %v6017 = vsel %vm520, %v5959, 0
      %v6020 = vsel %vm520, %v5960, 0
      %v6023 = vsel %vm520, %v5961, 0
      %v6026 = vsel %vm520, %v5962, 0
      %v6029 = vsel %vm520, %v5963, 0
      %v6032 = vsel %vm520, %v5964, 0
      %v6035 = vsel %vm520, %v5965, 0
      %v6038 = vsel %vm520, %v5966, 0
      %v6041 = vsel %vm520, %v5967, 0
      %v6044 = vsel %vm520, %v5968, 0
      %v6047 = vsel %vm520, %v5969, 0
      %v6050 = vsel %vm520, %v5970, 0
      %v6053 = vsel %vm520, %v5971, 0
      %v6056 = vsel %vm520, %v5972, 0
      %v6059 = vsel %vm520, %v5973, 0
      %v6062 = vsel %vm520, %v5974, 0
      %v6065 = vsel %vm520, %v5975, 0
      %6067 = vmatprep.subr.mxu0 0.0
      %6068 = vmatpush1.xpose.msra.mxu0 %v6038
      %6069 = vmatprep.subr.mxu0 0.0
      %6070 = vmatpush1.xpose.msra.mxu0 %v6035
      %6071 = vmatprep.subr.mxu0 0.0
      %6072 = vmatpush1.xpose.msra.mxu0 %v6032
      %6073 = vmatprep.subr.mxu0 0.0
      %6074 = vmatpush1.xpose.msra.mxu0 %v6029
      %6075 = vmatprep.subr.mxu0 0.0
      %6076 = vmatpush1.xpose.msra.mxu0 %v6026
      %6077 = vmatprep.subr.mxu0 0.0
      %6078 = vmatpush1.xpose.msra.mxu0 %v6023
      %6079 = vmatprep.subr.mxu0 0.0
      %6080 = vmatpush1.xpose.msra.mxu0 %v6020
      %6081 = vmatprep.subr.mxu0 0.0
      %6082 = vmatpush1.xpose.msra.mxu0 %v6017
      %6083 = vmatprep.subr.mxu0 0.0
      %6084 = vmatpush1.xpose.msra.mxu0 %v6014
      %6085 = vmatprep.subr.mxu0 0.0
      %6086 = vmatpush1.xpose.msra.mxu0 %v6011
      %6087 = vmatprep.subr.mxu0 0.0
      %6088 = vmatpush1.xpose.msra.mxu0 %v6008
      %6089 = vmatprep.subr.mxu0 0.0
      %6090 = vmatpush1.xpose.msra.mxu0 %v6005
      %6091 = vmatprep.subr.mxu0 0.0
      %6092 = vmatpush1.xpose.msra.mxu0 %v6002
      %6093 = vmatprep.subr.mxu0 0.0
      %6094 = vmatpush1.xpose.msra.mxu0 %v5999
      %6095 = vmatprep.subr.mxu0 0.0
      %6096 = vmatpush1.xpose.msra.mxu0 %v5996
      %6097 = vmatprep.subr.mxu0 0.0
      %6098 = vmatpush1.xpose.msra.mxu0 %v5993
      %6099 = vmatprep.subr.mxu0 0.0
      %6100 = vmatpush2.xpose.msra.mxu0 0.0
      %6101 = vmatprep.subr.mxu0 0.0
      %6102 = vmatpush2.xpose.msra.mxu0 0.0
      %6103 = vmatprep.subr.mxu0 0.0
      %6104 = vmatpush2.xpose.msra.mxu0 0.0
      %6105 = vmatprep.subr.mxu0 0.0
      %6106 = vmatpush2.xpose.msra.mxu0 0.0
      %6107 = vmatprep.subr.mxu0 0.0
      %6108 = vmatpush2.xpose.msra.mxu0 0.0
      %6109 = vmatprep.subr.mxu0 0.0
      %6110 = vmatpush2.xpose.msra.mxu0 0.0
      %6111 = vmatprep.subr.mxu0 0.0
      %6112 = vmatpush2.xpose.msra.mxu0 0.0
      %6113 = vmatprep.subr.mxu0 0.0
      %6114 = vmatpush2.xpose.msra.mxu0 %v6065
      %6115 = vmatprep.subr.mxu0 0.0
      %6116 = vmatpush2.xpose.msra.mxu0 %v6062
      %6117 = vmatprep.subr.mxu0 0.0
      %6118 = vmatpush2.xpose.msra.mxu0 %v6059
      %6119 = vmatprep.subr.mxu0 0.0
      %6120 = vmatpush2.xpose.msra.mxu0 %v6056
      %6121 = vmatprep.subr.mxu0 0.0
      %6122 = vmatpush2.xpose.msra.mxu0 %v6053
      %6123 = vmatprep.subr.mxu0 0.0
      %6124 = vmatpush2.xpose.msra.mxu0 %v6050
      %6125 = vmatprep.subr.mxu0 0.0
      %6126 = vmatpush2.xpose.msra.mxu0 %v6047
      %6127 = vmatprep.subr.mxu0 0.0
      %6128 = vmatpush2.xpose.msra.mxu0 %v6044
      %6129 = vmatprep.subr.mxu0 0.0
      %6130 = vmatpush2.xpose.msra.mxu0 %v6041
      %6131 = vmatprep.mubr.f32.mxu0 0.0
      %6132 = vmatmul.mubr.f32.gmra.mxu0 %v5981
      %v6133 = vpop.f32.mrf.mxu0
      %v6134 = vadd.f32 0.0, %v6133
      %v6135 = vpop.f32.mrf.mxu0
      %v6136 = vadd.f32 0.0, %v6135
      %6137 = vmatprep.mubr.f32.mxu0 0.0
      %6138 = vmatmul.mubr.f32.gmra.mxu0 %v5984
      %v6139 = vpop.f32.mrf.mxu0
      %v6140 = vadd.f32 0.0, %v6139
      %v6141 = vpop.f32.mrf.mxu0
      %v6142 = vadd.f32 0.0, %v6141
      %6143 = vmatprep.mubr.f32.mxu0 0.0
      %6144 = vmatmul.mubr.f32.gmra.mxu0 %v5987
      %v6145 = vpop.f32.mrf.mxu0
      %v6146 = vadd.f32 0.0, %v6145
      %v6147 = vpop.f32.mrf.mxu0
      %v6148 = vadd.f32 0.0, %v6147
      %6149 = vmatprep.mubr.f32.mxu0 0.0
      %6150 = vmatmul.mubr.f32.gmra.mxu0 %v5990
      %v6151 = vpop.f32.mrf.mxu0
      %v6152 = vadd.f32 0.0, %v6151
      %v6153 = vpop.f32.mrf.mxu0
      %v6154 = vadd.f32 0.0, %v6153
      %6155 = vdwg.mxu0
      %v6156 = vmul.f32 %v5951, %v5951
      %v6157 = vmul.f32 %v5952, %v5952
      %v6158 = vmul.f32 %v5953, %v5953
      %v6159 = vmul.f32 %v5954, %v5954
      %v6160 = vmul.f32 %v5955, %v5955
      %v6161 = vmul.f32 %v5956, %v5956
      %v6162 = vmul.f32 %v5957, %v5957
      %v6163 = vmul.f32 %v5958, %v5958
      %v6164 = vmul.f32 %v5959, %v5959
      %v6165 = vmul.f32 %v5960, %v5960
      %v6166 = vmul.f32 %v5961, %v5961
      %v6167 = vmul.f32 %v5962, %v5962
      %v6168 = vmul.f32 %v5963, %v5963
      %v6169 = vmul.f32 %v5964, %v5964
      %v6170 = vmul.f32 %v5965, %v5965
      %v6171 = vmul.f32 %v5966, %v5966
      %v6172 = vmul.f32 %v5967, %v5967
      %v6173 = vmul.f32 %v5968, %v5968
      %v6174 = vmul.f32 %v5969, %v5969
      %v6175 = vmul.f32 %v5970, %v5970
      %v6176 = vmul.f32 %v5971, %v5971
      %v6177 = vmul.f32 %v5972, %v5972
      %v6178 = vmul.f32 %v5973, %v5973
      %v6179 = vmul.f32 %v5974, %v5974
      %v6180 = vmul.f32 %v5975, %v5975
      %v6182 = vsel %vm520, 1.0, 0
      %v6185 = vsel %vm520, %v6156, 0
      %v6188 = vsel %vm520, %v6157, 0
      %v6191 = vsel %vm520, %v6158, 0
      %v6194 = vsel %vm520, %v6159, 0
      %v6197 = vsel %vm520, %v6160, 0
      %v6200 = vsel %vm520, %v6161, 0
      %v6203 = vsel %vm520, %v6162, 0
      %v6206 = vsel %vm520, %v6163, 0
      %v6209 = vsel %vm520, %v6164, 0
      %v6212 = vsel %vm520, %v6165, 0
      %v6215 = vsel %vm520, %v6166, 0
      %v6218 = vsel %vm520, %v6167, 0
      %v6221 = vsel %vm520, %v6168, 0
      %v6224 = vsel %vm520, %v6169, 0
      %v6227 = vsel %vm520, %v6170, 0
      %v6230 = vsel %vm520, %v6171, 0
      %v6233 = vsel %vm520, %v6172, 0
      %v6236 = vsel %vm520, %v6173, 0
      %v6239 = vsel %vm520, %v6174, 0
      %v6242 = vsel %vm520, %v6175, 0
      %v6245 = vsel %vm520, %v6176, 0
      %v6248 = vsel %vm520, %v6177, 0
      %v6251 = vsel %vm520, %v6178, 0
      %v6254 = vsel %vm520, %v6179, 0
      %v6257 = vsel %vm520, %v6180, 0
      %6259 = vmatprep.subr.mxu0 0.0
      %6260 = vmatpush1.xpose.msra.mxu0 %v6230
      %6261 = vmatprep.subr.mxu0 0.0
      %6262 = vmatpush1.xpose.msra.mxu0 %v6227
      %6263 = vmatprep.subr.mxu0 0.0
      %6264 = vmatpush1.xpose.msra.mxu0 %v6224
      %6265 = vmatprep.subr.mxu0 0.0
      %6266 = vmatpush1.xpose.msra.mxu0 %v6221
      %6267 = vmatprep.subr.mxu0 0.0
      %6268 = vmatpush1.xpose.msra.mxu0 %v6218
      %6269 = vmatprep.subr.mxu0 0.0
      %6270 = vmatpush1.xpose.msra.mxu0 %v6215
      %6271 = vmatprep.subr.mxu0 0.0
      %6272 = vmatpush1.xpose.msra.mxu0 %v6212
      %6273 = vmatprep.subr.mxu0 0.0
      %6274 = vmatpush1.xpose.msra.mxu0 %v6209
      %6275 = vmatprep.subr.mxu0 0.0
      %6276 = vmatpush1.xpose.msra.mxu0 %v6206
      %6277 = vmatprep.subr.mxu0 0.0
      %6278 = vmatpush1.xpose.msra.mxu0 %v6203
      %6279 = vmatprep.subr.mxu0 0.0
      %6280 = vmatpush1.xpose.msra.mxu0 %v6200
      %6281 = vmatprep.subr.mxu0 0.0
      %6282 = vmatpush1.xpose.msra.mxu0 %v6197
      %6283 = vmatprep.subr.mxu0 0.0
      %6284 = vmatpush1.xpose.msra.mxu0 %v6194
      %6285 = vmatprep.subr.mxu0 0.0
      %6286 = vmatpush1.xpose.msra.mxu0 %v6191
      %6287 = vmatprep.subr.mxu0 0.0
      %6288 = vmatpush1.xpose.msra.mxu0 %v6188
      %6289 = vmatprep.subr.mxu0 0.0
      %6290 = vmatpush1.xpose.msra.mxu0 %v6185
      %6291 = vmatprep.subr.mxu0 0.0
      %6292 = vmatpush2.xpose.msra.mxu0 0.0
      %6293 = vmatprep.subr.mxu0 0.0
      %6294 = vmatpush2.xpose.msra.mxu0 0.0
      %6295 = vmatprep.subr.mxu0 0.0
      %6296 = vmatpush2.xpose.msra.mxu0 0.0
      %6297 = vmatprep.subr.mxu0 0.0
      %6298 = vmatpush2.xpose.msra.mxu0 0.0
      %6299 = vmatprep.subr.mxu0 0.0
      %6300 = vmatpush2.xpose.msra.mxu0 0.0
      %6301 = vmatprep.subr.mxu0 0.0
      %6302 = vmatpush2.xpose.msra.mxu0 0.0
      %6303 = vmatprep.subr.mxu0 0.0
      %6304 = vmatpush2.xpose.msra.mxu0 0.0
      %6305 = vmatprep.subr.mxu0 0.0
      %6306 = vmatpush2.xpose.msra.mxu0 %v6257
      %6307 = vmatprep.subr.mxu0 0.0
      %6308 = vmatpush2.xpose.msra.mxu0 %v6254
      %6309 = vmatprep.subr.mxu0 0.0
      %6310 = vmatpush2.xpose.msra.mxu0 %v6251
      %6311 = vmatprep.subr.mxu0 0.0
      %6312 = vmatpush2.xpose.msra.mxu0 %v6248
      %6313 = vmatprep.subr.mxu0 0.0
      %6314 = vmatpush2.xpose.msra.mxu0 %v6245
      %6315 = vmatprep.subr.mxu0 0.0
      %6316 = vmatpush2.xpose.msra.mxu0 %v6242
      %6317 = vmatprep.subr.mxu0 0.0
      %6318 = vmatpush2.xpose.msra.mxu0 %v6239
      %6319 = vmatprep.subr.mxu0 0.0
      %6320 = vmatpush2.xpose.msra.mxu0 %v6236
      %6321 = vmatprep.subr.mxu0 0.0
      %6322 = vmatpush2.xpose.msra.mxu0 %v6233
      %6323 = vmatprep.mubr.f32.mxu0 0.0
      %6324 = vmatmul.mubr.f32.gmra.mxu0 %v6182
      %v6325 = vpop.f32.mrf.mxu0
      %v6326 = vadd.f32 0.0, %v6325
      %v6327 = vpop.f32.mrf.mxu0
      %v6328 = vadd.f32 0.0, %v6327
      %6329 = vdwg.mxu0
      %v6330 = vmax.f32 %v6326, 1e-24
      %v6331 = vmax.f32 %v6328, 1e-24
      %v6332 = vrsqrt.pop %v6330
      %v6333 = vrsqrt.pop %v6331
      %v6334 = vlaneseq
      %v6335 = vshrl.u32 %v6334, 7
      %v6336 = vsub.s32 0, %v6335
      %v6337 = vrot.slane %v6332, %v6336
      %v6338 = vlaneseq
      %v6339 = vshrl.u32 %v6338, 7
      %v6340 = vsub.s32 0, %v6339
      %v6341 = vrot.slane %v6333, %v6340
      %v6342 = vmul.f32 %v6134, %v6337
      %v6343 = vmul.f32 %v6136, %v6341
      %v6344 = vmul.f32 %v6140, %v6337
      %v6345 = vmul.f32 %v6142, %v6341
      %v6346 = vmul.f32 %v6146, %v6337
      %v6347 = vmul.f32 %v6148, %v6341
      %v6348 = vmul.f32 %v6152, %v6337
      %v6349 = vmul.f32 %v6154, %v6341
      %v6350 = vlaneseq
      %v6351 = vand.u32 %v6350, 127
      %v6352 = vadd.s32 %v6351, 128
      %vm6353 = vcmp.ge.s32.totalorder %v6351, 14
      %vm6354 = vcmp.ge.s32.totalorder %v6352, 14
      %v6355 = vsel %vm6353, 1, 0
      %v6356 = vsel %vm6354, 1, 0
      %vm6357 = vcmp.ge.s32.totalorder %v6351, 28
      %vm6358 = vcmp.ge.s32.totalorder %v6352, 28
      %v6359 = vsel %vm6357, 1, 0
      %v6360 = vsel %vm6358, 1, 0
      %v6361 = vadd.s32 %v6355, %v6359
      %v6362 = vadd.s32 %v6356, %v6360
      %vm6363 = vcmp.ge.s32.totalorder %v6351, 42
      %vm6364 = vcmp.ge.s32.totalorder %v6352, 42
      %v6365 = vsel %vm6363, 1, 0
      %v6366 = vsel %vm6364, 1, 0
      %v6367 = vadd.s32 %v6361, %v6365
      %v6368 = vadd.s32 %v6362, %v6366
      %vm6369 = vcmp.ge.s32.totalorder %v6351, 56
      %vm6370 = vcmp.ge.s32.totalorder %v6352, 56
      %v6371 = vsel %vm6369, 1, 0
      %v6372 = vsel %vm6370, 1, 0
      %v6373 = vadd.s32 %v6367, %v6371
      %v6374 = vadd.s32 %v6368, %v6372
      %vm6375 = vcmp.ge.s32.totalorder %v6351, 70
      %vm6376 = vcmp.ge.s32.totalorder %v6352, 70
      %v6377 = vsel %vm6375, 1, 0
      %v6378 = vsel %vm6376, 1, 0
      %v6379 = vadd.s32 %v6373, %v6377
      %v6380 = vadd.s32 %v6374, %v6378
      %vm6381 = vcmp.ge.s32.totalorder %v6351, 84
      %vm6382 = vcmp.ge.s32.totalorder %v6352, 84
      %v6383 = vsel %vm6381, 1, 0
      %v6384 = vsel %vm6382, 1, 0
      %v6385 = vadd.s32 %v6379, %v6383
      %v6386 = vadd.s32 %v6380, %v6384
      %vm6387 = vcmp.ge.s32.totalorder %v6351, 98
      %vm6388 = vcmp.ge.s32.totalorder %v6352, 98
      %v6389 = vsel %vm6387, 1, 0
      %v6390 = vsel %vm6388, 1, 0
      %v6391 = vadd.s32 %v6385, %v6389
      %v6392 = vadd.s32 %v6386, %v6390
      %vm6393 = vcmp.ge.s32.totalorder %v6351, 112
      %vm6394 = vcmp.ge.s32.totalorder %v6352, 112
      %v6395 = vsel %vm6393, 1, 0
      %v6396 = vsel %vm6394, 1, 0
      %v6397 = vadd.s32 %v6391, %v6395
      %v6398 = vadd.s32 %v6392, %v6396
      %vm6399 = vcmp.ge.s32.totalorder %v6351, 126
      %vm6400 = vcmp.ge.s32.totalorder %v6352, 126
      %v6401 = vsel %vm6399, 1, 0
      %v6402 = vsel %vm6400, 1, 0
      %v6403 = vadd.s32 %v6397, %v6401
      %v6404 = vadd.s32 %v6398, %v6402
      %vm6405 = vcmp.ge.s32.totalorder %v6351, 140
      %vm6406 = vcmp.ge.s32.totalorder %v6352, 140
      %v6407 = vsel %vm6405, 1, 0
      %v6408 = vsel %vm6406, 1, 0
      %v6409 = vadd.s32 %v6403, %v6407
      %v6410 = vadd.s32 %v6404, %v6408
      %vm6411 = vcmp.ge.s32.totalorder %v6351, 154
      %vm6412 = vcmp.ge.s32.totalorder %v6352, 154
      %v6413 = vsel %vm6411, 1, 0
      %v6414 = vsel %vm6412, 1, 0
      %v6415 = vadd.s32 %v6409, %v6413
      %v6416 = vadd.s32 %v6410, %v6414
      %vm6417 = vcmp.ge.s32.totalorder %v6351, 168
      %vm6418 = vcmp.ge.s32.totalorder %v6352, 168
      %v6419 = vsel %vm6417, 1, 0
      %v6420 = vsel %vm6418, 1, 0
      %v6421 = vadd.s32 %v6415, %v6419
      %v6422 = vadd.s32 %v6416, %v6420
      %vm6423 = vcmp.ge.s32.totalorder %v6351, 182
      %vm6424 = vcmp.ge.s32.totalorder %v6352, 182
      %v6425 = vsel %vm6423, 1, 0
      %v6426 = vsel %vm6424, 1, 0
      %v6427 = vadd.s32 %v6421, %v6425
      %v6428 = vadd.s32 %v6422, %v6426
      %v6429 = vmul.u32 %v6427, 14
      %v6430 = vmul.u32 %v6428, 14
      %v6431 = vsub.s32 %v6351, %v6429
      %v6432 = vsub.s32 %v6352, %v6430
      %v6433 = vcvt.s32.f32 %v6351
      %v6434 = vcvt.s32.f32 %v6352
      %vm6435 = vcmask 556032
      %v6436 = vsel %vm6435, %v6343, -inf
      %v6437 = vmax.f32 %v6342, %v6436
      %6438 = vmax.xlane.f32.xlu0 %v6437
      %v6439 = vpop.xlane.xlu0 %6438
      %vm6440 = vcmp.eq.f32.partialorder %v6342, %v6439
      %vm6441 = vcmp.eq.f32.partialorder %v6343, %v6439
      %v6442 = vsel %vm6440, %v6433, 196.0
      %v6443 = vsel %vm6441, %v6434, 196.0
      %v6444 = vsel %vm6435, %v6443, inf
      %v6445 = vmin.f32 %v6442, %v6444
      %6446 = vmin.xlane.f32.xlu0 %v6445
      %v6447 = vpop.xlane.xlu0 %6446
      %v6448 = vcvt.f32.s32.to.zero.pseudo %v6447
      %v6449 = vsel %vm6435, %v6345, -inf
      %v6450 = vmax.f32 %v6344, %v6449
      %6451 = vmax.xlane.f32.xlu0 %v6450
      %v6452 = vpop.xlane.xlu0 %6451
      %vm6453 = vcmp.eq.f32.partialorder %v6344, %v6452
      %vm6454 = vcmp.eq.f32.partialorder %v6345, %v6452
      %v6455 = vsel %vm6453, %v6433, 196.0
      %v6456 = vsel %vm6454, %v6434, 196.0
      %v6457 = vsel %vm6435, %v6456, inf
      %v6458 = vmin.f32 %v6455, %v6457
      %6459 = vmin.xlane.f32.xlu0 %v6458
      %v6460 = vpop.xlane.xlu0 %6459
      %v6461 = vcvt.f32.s32.to.zero.pseudo %v6460
      %v6462 = vsel %vm6435, %v6347, -inf
      %v6463 = vmax.f32 %v6346, %v6462
      %6464 = vmax.xlane.f32.xlu0 %v6463
      %v6465 = vpop.xlane.xlu0 %6464
      %vm6466 = vcmp.eq.f32.partialorder %v6346, %v6465
      %vm6467 = vcmp.eq.f32.partialorder %v6347, %v6465
      %v6468 = vsel %vm6466, %v6433, 196.0
      %v6469 = vsel %vm6467, %v6434, 196.0
      %v6470 = vsel %vm6435, %v6469, inf
      %v6471 = vmin.f32 %v6468, %v6470
      %6472 = vmin.xlane.f32.xlu0 %v6471
      %v6473 = vpop.xlane.xlu0 %6472
      %v6474 = vcvt.f32.s32.to.zero.pseudo %v6473
      %v6475 = vsel %vm6435, %v6349, -inf
      %v6476 = vmax.f32 %v6348, %v6475
      %6477 = vmax.xlane.f32.xlu0 %v6476
      %v6478 = vpop.xlane.xlu0 %6477
      %vm6479 = vcmp.eq.f32.partialorder %v6348, %v6478
      %vm6480 = vcmp.eq.f32.partialorder %v6349, %v6478
      %v6481 = vsel %vm6479, %v6433, 196.0
      %v6482 = vsel %vm6480, %v6434, 196.0
      %v6483 = vsel %vm6435, %v6482, inf
      %v6484 = vmin.f32 %v6481, %v6483
      %6485 = vmin.xlane.f32.xlu0 %v6484
      %v6486 = vpop.xlane.xlu0 %6485
      %v6487 = vcvt.f32.s32.to.zero.pseudo %v6486
      %v6488 = vmax.f32 %v6439, %v6452
      %v6489 = vmax.f32 %v6488, %v6465
      %v6490 = vmax.f32 %v6489, %v6478
      %vm6491 = vcmp.eq.f32.partialorder %v6439, %v6490
      %v6492 = vsel %vm6491, %v6448, 0
      %vm6493 = vmxor %vm6491, 1
      %v6494 = vsel %vm6491, %v6490, 0.0
      %v6495 = vadd.f32 %v6494, 0.0
      %vm6496 = vcmp.eq.f32.partialorder %v6452, %v6490
      %vm6497 = vmand %vm6496, %vm6493
      %vm6498 = vmor %vm6491, %vm6497
      %v6499 = vsel %vm6497, %v6461, 0
      %v6500 = vadd.s32 %v6492, %v6499
      %vm6501 = vmxor %vm6497, 1
      %v6502 = vsel %vm6497, %v6490, 0.0
      %v6503 = vadd.f32 %v6502, 0.0
      %vm6504 = vcmp.eq.f32.partialorder %v6465, %v6490
      %vm6505 = vmxor %vm6498, 1
      %vm6506 = vmand %vm6504, %vm6505
      %vm6507 = vmor %vm6498, %vm6506
      %v6508 = vsel %vm6506, %v6474, 0
      %v6509 = vadd.s32 %v6500, %v6508
      %vm6510 = vmxor %vm6506, 1
      %v6511 = vsel %vm6506, %v6490, 0.0
      %v6512 = vadd.f32 %v6511, 0.0
      %vm6513 = vcmp.eq.f32.partialorder %v6478, %v6490
      %vm6514 = vmxor %vm6507, 1
      %vm6515 = vmand %vm6513, %vm6514
      %v6516 = vsel %vm6515, %v6487, 0
      %v6517 = vadd.s32 %v6509, %v6516
      %vm6518 = vmxor %vm6515, 1
      %v6519 = vsel %vm6515, %v6490, 0.0
      %v6520 = vadd.f32 %v6519, 0.0
      %vm6521 = vcmp.ge.s32.totalorder %v6517, 14
      %v6522 = vsel %vm6521, 1, 0
      %vm6523 = vcmp.ge.s32.totalorder %v6517, 28
      %v6524 = vsel %vm6523, 1, 0
      %v6525 = vadd.s32 %v6522, %v6524
      %vm6526 = vcmp.ge.s32.totalorder %v6517, 42
      %v6527 = vsel %vm6526, 1, 0
      %v6528 = vadd.s32 %v6525, %v6527
      %vm6529 = vcmp.ge.s32.totalorder %v6517, 56
      %v6530 = vsel %vm6529, 1, 0
      %v6531 = vadd.s32 %v6528, %v6530
      %vm6532 = vcmp.ge.s32.totalorder %v6517, 70
      %v6533 = vsel %vm6532, 1, 0
      %v6534 = vadd.s32 %v6531, %v6533
      %vm6535 = vcmp.ge.s32.totalorder %v6517, 84
      %v6536 = vsel %vm6535, 1, 0
      %v6537 = vadd.s32 %v6534, %v6536
      %vm6538 = vcmp.ge.s32.totalorder %v6517, 98
      %v6539 = vsel %vm6538, 1, 0
      %v6540 = vadd.s32 %v6537, %v6539
      %vm6541 = vcmp.ge.s32.totalorder %v6517, 112
      %v6542 = vsel %vm6541, 1, 0
      %v6543 = vadd.s32 %v6540, %v6542
      %vm6544 = vcmp.ge.s32.totalorder %v6517, 126
      %v6545 = vsel %vm6544, 1, 0
      %v6546 = vadd.s32 %v6543, %v6545
      %vm6547 = vcmp.ge.s32.totalorder %v6517, 140
      %v6548 = vsel %vm6547, 1, 0
      %v6549 = vadd.s32 %v6546, %v6548
      %vm6550 = vcmp.ge.s32.totalorder %v6517, 154
      %v6551 = vsel %vm6550, 1, 0
      %v6552 = vadd.s32 %v6549, %v6551
      %vm6553 = vcmp.ge.s32.totalorder %v6517, 168
      %v6554 = vsel %vm6553, 1, 0
      %v6555 = vadd.s32 %v6552, %v6554
      %vm6556 = vcmp.ge.s32.totalorder %v6517, 182
      %v6557 = vsel %vm6556, 1, 0
      %v6558 = vadd.s32 %v6555, %v6557
      %v6559 = vmul.u32 %v6558, 14
      %v6560 = vsub.s32 %v6517, %v6559
      %v6561 = vsub.s32 %v6427, %v6558
      %v6562 = vsub.s32 %v6428, %v6558
      %vm6563 = vcmp.lt.s32.totalorder %v6561, 0
      %v6564 = vsub.s32 0, %v6561
      %v6565 = vsel %vm6563, %v6564, %v6561
      %vm6566 = vcmp.lt.s32.totalorder %v6562, 0
      %v6567 = vsub.s32 0, %v6562
      %v6568 = vsel %vm6566, %v6567, %v6562
      %vm6569 = vcmp.le.s32.totalorder %v6565, 3
      %vm6570 = vcmp.le.s32.totalorder %v6568, 3
      %v6571 = vsub.s32 %v6431, %v6560
      %v6572 = vsub.s32 %v6432, %v6560
      %vm6573 = vcmp.lt.s32.totalorder %v6571, 0
      %v6574 = vsub.s32 0, %v6571
      %v6575 = vsel %vm6573, %v6574, %v6571
      %vm6576 = vcmp.lt.s32.totalorder %v6572, 0
      %v6577 = vsub.s32 0, %v6572
      %v6578 = vsel %vm6576, %v6577, %v6572
      %vm6579 = vcmp.le.s32.totalorder %v6575, 3
      %vm6580 = vcmp.le.s32.totalorder %v6578, 3
      %vm6581 = vmand %vm6569, %vm6579
      %vm6582 = vmand %vm6570, %vm6580
      %vm6583 = vcmp.ne.s32.totalorder %v6351, %v6517
      %vm6584 = vcmp.ne.s32.totalorder %v6352, %v6517
      %vm6585 = vmand %vm6583, %vm6581
      %vm6586 = vmand %vm6584, %vm6582
      %v6587 = vsel %vm6493, 1, 0
      %vm6588 = vcmp.eq.s32.totalorder %v6587, 1
      %vm6589 = vmand %vm6585, %vm6588
      %vm6590 = vmand %vm6586, %vm6588
      %v6591 = vsub.f32 %v6342, 100000.0
      %v6592 = vsub.f32 %v6343, 100000.0
      %v6593 = vsel %vm6589, %v6342, %v6591
      %v6594 = vsel %vm6590, %v6343, %v6592
      %v6595 = vsel %vm6435, %v6594, -inf
      %v6596 = vmax.f32 %v6593, %v6595
      %6597 = vmax.xlane.f32.xlu0 %v6596
      %v6598 = vpop.xlane.xlu0 %6597
      %vm6599 = vcmp.eq.f32.partialorder %v6593, %v6598
      %vm6600 = vcmp.eq.f32.partialorder %v6594, %v6598
      %v6601 = vsel %vm6599, %v6433, 196.0
      %v6602 = vsel %vm6600, %v6434, 196.0
      %v6603 = vsel %vm6435, %v6602, inf
      %v6604 = vmin.f32 %v6601, %v6603
      %6605 = vmin.xlane.f32.xlu0 %v6604
      %v6606 = vpop.xlane.xlu0 %6605
      %v6607 = vcvt.f32.s32.to.zero.pseudo %v6606
      %v6608 = vsel %vm6501, 1, 0
      %vm6609 = vcmp.eq.s32.totalorder %v6608, 1
      %vm6610 = vmand %vm6585, %vm6609
      %vm6611 = vmand %vm6586, %vm6609
      %v6612 = vsub.f32 %v6344, 100000.0
      %v6613 = vsub.f32 %v6345, 100000.0
      %v6614 = vsel %vm6610, %v6344, %v6612
      %v6615 = vsel %vm6611, %v6345, %v6613
      %v6616 = vsel %vm6435, %v6615, -inf
      %v6617 = vmax.f32 %v6614, %v6616
      %6618 = vmax.xlane.f32.xlu0 %v6617
      %v6619 = vpop.xlane.xlu0 %6618
      %vm6620 = vcmp.eq.f32.partialorder %v6614, %v6619
      %vm6621 = vcmp.eq.f32.partialorder %v6615, %v6619
      %v6622 = vsel %vm6620, %v6433, 196.0
      %v6623 = vsel %vm6621, %v6434, 196.0
      %v6624 = vsel %vm6435, %v6623, inf
      %v6625 = vmin.f32 %v6622, %v6624
      %6626 = vmin.xlane.f32.xlu0 %v6625
      %v6627 = vpop.xlane.xlu0 %6626
      %v6628 = vcvt.f32.s32.to.zero.pseudo %v6627
      %v6629 = vsel %vm6510, 1, 0
      %vm6630 = vcmp.eq.s32.totalorder %v6629, 1
      %vm6631 = vmand %vm6585, %vm6630
      %vm6632 = vmand %vm6586, %vm6630
      %v6633 = vsub.f32 %v6346, 100000.0
      %v6634 = vsub.f32 %v6347, 100000.0
      %v6635 = vsel %vm6631, %v6346, %v6633
      %v6636 = vsel %vm6632, %v6347, %v6634
      %v6637 = vsel %vm6435, %v6636, -inf
      %v6638 = vmax.f32 %v6635, %v6637
      %6639 = vmax.xlane.f32.xlu0 %v6638
      %v6640 = vpop.xlane.xlu0 %6639
      %vm6641 = vcmp.eq.f32.partialorder %v6635, %v6640
      %vm6642 = vcmp.eq.f32.partialorder %v6636, %v6640
      %v6643 = vsel %vm6641, %v6433, 196.0
      %v6644 = vsel %vm6642, %v6434, 196.0
      %v6645 = vsel %vm6435, %v6644, inf
      %v6646 = vmin.f32 %v6643, %v6645
      %6647 = vmin.xlane.f32.xlu0 %v6646
      %v6648 = vpop.xlane.xlu0 %6647
      %v6649 = vcvt.f32.s32.to.zero.pseudo %v6648
      %v6650 = vsel %vm6518, 1, 0
      %vm6651 = vcmp.eq.s32.totalorder %v6650, 1
      %vm6652 = vmand %vm6585, %vm6651
      %vm6653 = vmand %vm6586, %vm6651
      %v6654 = vsub.f32 %v6348, 100000.0
      %v6655 = vsub.f32 %v6349, 100000.0
      %v6656 = vsel %vm6652, %v6348, %v6654
      %v6657 = vsel %vm6653, %v6349, %v6655
      %v6658 = vsel %vm6435, %v6657, -inf
      %v6659 = vmax.f32 %v6656, %v6658
      %6660 = vmax.xlane.f32.xlu0 %v6659
      %v6661 = vpop.xlane.xlu0 %6660
      %vm6662 = vcmp.eq.f32.partialorder %v6656, %v6661
      %vm6663 = vcmp.eq.f32.partialorder %v6657, %v6661
      %v6664 = vsel %vm6662, %v6433, 196.0
      %v6665 = vsel %vm6663, %v6434, 196.0
      %v6666 = vsel %vm6435, %v6665, inf
      %v6667 = vmin.f32 %v6664, %v6666
      %6668 = vmin.xlane.f32.xlu0 %v6667
      %v6669 = vpop.xlane.xlu0 %6668
      %v6670 = vcvt.f32.s32.to.zero.pseudo %v6669
      %v6671 = vmax.f32 %v6598, %v6619
      %v6672 = vmax.f32 %v6671, %v6640
      %v6673 = vmax.f32 %v6672, %v6661
      %vm6674 = vcmp.eq.f32.partialorder %v6598, %v6673
      %v6675 = vsel %vm6674, %v6607, 0
      %vm6676 = vmxor %vm6674, 1
      %vm6677 = vmand %vm6493, %vm6676
      %v6678 = vsel %vm6674, %v6673, 0.0
      %v6679 = vadd.f32 %v6495, %v6678
      %vm6680 = vcmp.eq.f32.partialorder %v6619, %v6673
      %vm6681 = vmand %vm6680, %vm6676
      %vm6682 = vmor %vm6674, %vm6681
      %v6683 = vsel %vm6681, %v6628, 0
      %v6684 = vadd.s32 %v6675, %v6683
      %vm6685 = vmxor %vm6681, 1
      %vm6686 = vmand %vm6501, %vm6685
      %v6687 = vsel %vm6681, %v6673, 0.0
      %v6688 = vadd.f32 %v6503, %v6687
      %vm6689 = vcmp.eq.f32.partialorder %v6640, %v6673
      %vm6690 = vmxor %vm6682, 1
      %vm6691 = vmand %vm6689, %vm6690
      %vm6692 = vmor %vm6682, %vm6691
      %v6693 = vsel %vm6691, %v6649, 0
      %v6694 = vadd.s32 %v6684, %v6693
      %vm6695 = vmxor %vm6691, 1
      %vm6696 = vmand %vm6510, %vm6695
      %v6697 = vsel %vm6691, %v6673, 0.0
      %v6698 = vadd.f32 %v6512, %v6697
      %vm6699 = vcmp.eq.f32.partialorder %v6661, %v6673
      %vm6700 = vmxor %vm6692, 1
      %vm6701 = vmand %vm6699, %vm6700
      %v6702 = vsel %vm6701, %v6670, 0
      %v6703 = vadd.s32 %v6694, %v6702
      %vm6704 = vmxor %vm6701, 1
      %vm6705 = vmand %vm6518, %vm6704
      %v6706 = vsel %vm6701, %v6673, 0.0
      %v6707 = vadd.f32 %v6520, %v6706
      %vm6708 = vcmp.ge.s32.totalorder %v6703, 14
      %v6709 = vsel %vm6708, 1, 0
      %vm6710 = vcmp.ge.s32.totalorder %v6703, 28
      %v6711 = vsel %vm6710, 1, 0
      %v6712 = vadd.s32 %v6709, %v6711
      %vm6713 = vcmp.ge.s32.totalorder %v6703, 42
      %v6714 = vsel %vm6713, 1, 0
      %v6715 = vadd.s32 %v6712, %v6714
      %vm6716 = vcmp.ge.s32.totalorder %v6703, 56
      %v6717 = vsel %vm6716, 1, 0
      %v6718 = vadd.s32 %v6715, %v6717
      %vm6719 = vcmp.ge.s32.totalorder %v6703, 70
      %v6720 = vsel %vm6719, 1, 0
      %v6721 = vadd.s32 %v6718, %v6720
      %vm6722 = vcmp.ge.s32.totalorder %v6703, 84
      %v6723 = vsel %vm6722, 1, 0
      %v6724 = vadd.s32 %v6721, %v6723
      %vm6725 = vcmp.ge.s32.totalorder %v6703, 98
      %v6726 = vsel %vm6725, 1, 0
      %v6727 = vadd.s32 %v6724, %v6726
      %vm6728 = vcmp.ge.s32.totalorder %v6703, 112
      %v6729 = vsel %vm6728, 1, 0
      %v6730 = vadd.s32 %v6727, %v6729
      %vm6731 = vcmp.ge.s32.totalorder %v6703, 126
      %v6732 = vsel %vm6731, 1, 0
      %v6733 = vadd.s32 %v6730, %v6732
      %vm6734 = vcmp.ge.s32.totalorder %v6703, 140
      %v6735 = vsel %vm6734, 1, 0
      %v6736 = vadd.s32 %v6733, %v6735
      %vm6737 = vcmp.ge.s32.totalorder %v6703, 154
      %v6738 = vsel %vm6737, 1, 0
      %v6739 = vadd.s32 %v6736, %v6738
      %vm6740 = vcmp.ge.s32.totalorder %v6703, 168
      %v6741 = vsel %vm6740, 1, 0
      %v6742 = vadd.s32 %v6739, %v6741
      %vm6743 = vcmp.ge.s32.totalorder %v6703, 182
      %v6744 = vsel %vm6743, 1, 0
      %v6745 = vadd.s32 %v6742, %v6744
      %v6746 = vmul.u32 %v6745, 14
      %v6747 = vsub.s32 %v6703, %v6746
      %v6748 = vsub.s32 %v6427, %v6745
      %v6749 = vsub.s32 %v6428, %v6745
      %vm6750 = vcmp.lt.s32.totalorder %v6748, 0
      %v6751 = vsub.s32 0, %v6748
      %v6752 = vsel %vm6750, %v6751, %v6748
      %vm6753 = vcmp.lt.s32.totalorder %v6749, 0
      %v6754 = vsub.s32 0, %v6749
      %v6755 = vsel %vm6753, %v6754, %v6749
      %vm6756 = vcmp.le.s32.totalorder %v6752, 3
      %vm6757 = vcmp.le.s32.totalorder %v6755, 3
      %v6758 = vsub.s32 %v6431, %v6747
      %v6759 = vsub.s32 %v6432, %v6747
      %vm6760 = vcmp.lt.s32.totalorder %v6758, 0
      %v6761 = vsub.s32 0, %v6758
      %v6762 = vsel %vm6760, %v6761, %v6758
      %vm6763 = vcmp.lt.s32.totalorder %v6759, 0
      %v6764 = vsub.s32 0, %v6759
      %v6765 = vsel %vm6763, %v6764, %v6759
      %vm6766 = vcmp.le.s32.totalorder %v6762, 3
      %vm6767 = vcmp.le.s32.totalorder %v6765, 3
      %vm6768 = vmand %vm6756, %vm6766
      %vm6769 = vmand %vm6757, %vm6767
      %vm6770 = vcmp.ne.s32.totalorder %v6351, %v6703
      %vm6771 = vcmp.ne.s32.totalorder %v6352, %v6703
      %vm6772 = vmand %vm6583, %vm6770
      %vm6773 = vmand %vm6584, %vm6771
      %vm6774 = vmand %vm6772, %vm6768
      %vm6775 = vmand %vm6773, %vm6769
      %v6776 = vsel %vm6677, 1, 0
      %vm6777 = vcmp.eq.s32.totalorder %v6776, 1
      %vm6778 = vmand %vm6774, %vm6777
      %vm6779 = vmand %vm6775, %vm6777
      %v6780 = vsel %vm6778, %v6342, %v6591
      %v6781 = vsel %vm6779, %v6343, %v6592
      %v6782 = vsel %vm6435, %v6781, -inf
      %v6783 = vmax.f32 %v6780, %v6782
      %6784 = vmax.xlane.f32.xlu0 %v6783
      %v6785 = vpop.xlane.xlu0 %6784
      %vm6786 = vcmp.eq.f32.partialorder %v6780, %v6785
      %vm6787 = vcmp.eq.f32.partialorder %v6781, %v6785
      %v6788 = vsel %vm6786, %v6433, 196.0
      %v6789 = vsel %vm6787, %v6434, 196.0
      %v6790 = vsel %vm6435, %v6789, inf
      %v6791 = vmin.f32 %v6788, %v6790
      %6792 = vmin.xlane.f32.xlu0 %v6791
      %v6793 = vpop.xlane.xlu0 %6792
      %v6794 = vcvt.f32.s32.to.zero.pseudo %v6793
      %v6795 = vsel %vm6686, 1, 0
      %vm6796 = vcmp.eq.s32.totalorder %v6795, 1
      %vm6797 = vmand %vm6774, %vm6796
      %vm6798 = vmand %vm6775, %vm6796
      %v6799 = vsel %vm6797, %v6344, %v6612
      %v6800 = vsel %vm6798, %v6345, %v6613
      %v6801 = vsel %vm6435, %v6800, -inf
      %v6802 = vmax.f32 %v6799, %v6801
      %6803 = vmax.xlane.f32.xlu0 %v6802
      %v6804 = vpop.xlane.xlu0 %6803
      %vm6805 = vcmp.eq.f32.partialorder %v6799, %v6804
      %vm6806 = vcmp.eq.f32.partialorder %v6800, %v6804
      %v6807 = vsel %vm6805, %v6433, 196.0
      %v6808 = vsel %vm6806, %v6434, 196.0
      %v6809 = vsel %vm6435, %v6808, inf
      %v6810 = vmin.f32 %v6807, %v6809
      %6811 = vmin.xlane.f32.xlu0 %v6810
      %v6812 = vpop.xlane.xlu0 %6811
      %v6813 = vcvt.f32.s32.to.zero.pseudo %v6812
      %v6814 = vsel %vm6696, 1, 0
      %vm6815 = vcmp.eq.s32.totalorder %v6814, 1
      %vm6816 = vmand %vm6774, %vm6815
      %vm6817 = vmand %vm6775, %vm6815
      %v6818 = vsel %vm6816, %v6346, %v6633
      %v6819 = vsel %vm6817, %v6347, %v6634
      %v6820 = vsel %vm6435, %v6819, -inf
      %v6821 = vmax.f32 %v6818, %v6820
      %6822 = vmax.xlane.f32.xlu0 %v6821
      %v6823 = vpop.xlane.xlu0 %6822
      %vm6824 = vcmp.eq.f32.partialorder %v6818, %v6823
      %vm6825 = vcmp.eq.f32.partialorder %v6819, %v6823
      %v6826 = vsel %vm6824, %v6433, 196.0
      %v6827 = vsel %vm6825, %v6434, 196.0
      %v6828 = vsel %vm6435, %v6827, inf
      %v6829 = vmin.f32 %v6826, %v6828
      %6830 = vmin.xlane.f32.xlu0 %v6829
      %v6831 = vpop.xlane.xlu0 %6830
      %v6832 = vcvt.f32.s32.to.zero.pseudo %v6831
      %v6833 = vsel %vm6705, 1, 0
      %vm6834 = vcmp.eq.s32.totalorder %v6833, 1
      %vm6835 = vmand %vm6774, %vm6834
      %vm6836 = vmand %vm6775, %vm6834
      %v6837 = vsel %vm6835, %v6348, %v6654
      %v6838 = vsel %vm6836, %v6349, %v6655
      %v6839 = vsel %vm6435, %v6838, -inf
      %v6840 = vmax.f32 %v6837, %v6839
      %6841 = vmax.xlane.f32.xlu0 %v6840
      %v6842 = vpop.xlane.xlu0 %6841
      %vm6843 = vcmp.eq.f32.partialorder %v6837, %v6842
      %vm6844 = vcmp.eq.f32.partialorder %v6838, %v6842
      %v6845 = vsel %vm6843, %v6433, 196.0
      %v6846 = vsel %vm6844, %v6434, 196.0
      %v6847 = vsel %vm6435, %v6846, inf
      %v6848 = vmin.f32 %v6845, %v6847
      %6849 = vmin.xlane.f32.xlu0 %v6848
      %v6850 = vpop.xlane.xlu0 %6849
      %v6851 = vcvt.f32.s32.to.zero.pseudo %v6850
      %v6852 = vmax.f32 %v6785, %v6804
      %v6853 = vmax.f32 %v6852, %v6823
      %v6854 = vmax.f32 %v6853, %v6842
      %vm6855 = vcmp.eq.f32.partialorder %v6785, %v6854
      %v6856 = vsel %vm6855, %v6794, 0
      %vm6857 = vmxor %vm6855, 1
      %vm6858 = vmand %vm6677, %vm6857
      %v6859 = vsel %vm6855, %v6854, 0.0
      %v6860 = vadd.f32 %v6679, %v6859
      %vm6861 = vcmp.eq.f32.partialorder %v6804, %v6854
      %vm6862 = vmand %vm6861, %vm6857
      %vm6863 = vmor %vm6855, %vm6862
      %v6864 = vsel %vm6862, %v6813, 0
      %v6865 = vadd.s32 %v6856, %v6864
      %vm6866 = vmxor %vm6862, 1
      %vm6867 = vmand %vm6686, %vm6866
      %v6868 = vsel %vm6862, %v6854, 0.0
      %v6869 = vadd.f32 %v6688, %v6868
      %vm6870 = vcmp.eq.f32.partialorder %v6823, %v6854
      %vm6871 = vmxor %vm6863, 1
      %vm6872 = vmand %vm6870, %vm6871
      %vm6873 = vmor %vm6863, %vm6872
      %v6874 = vsel %vm6872, %v6832, 0
      %v6875 = vadd.s32 %v6865, %v6874
      %vm6876 = vmxor %vm6872, 1
      %vm6877 = vmand %vm6696, %vm6876
      %v6878 = vsel %vm6872, %v6854, 0.0
      %v6879 = vadd.f32 %v6698, %v6878
      %vm6880 = vcmp.eq.f32.partialorder %v6842, %v6854
      %vm6881 = vmxor %vm6873, 1
      %vm6882 = vmand %vm6880, %vm6881
      %v6883 = vsel %vm6882, %v6851, 0
      %v6884 = vadd.s32 %v6875, %v6883
      %vm6885 = vmxor %vm6882, 1
      %vm6886 = vmand %vm6705, %vm6885
      %v6887 = vsel %vm6882, %v6854, 0.0
      %v6888 = vadd.f32 %v6707, %v6887
      %vm6889 = vcmp.ge.s32.totalorder %v6884, 14
      %v6890 = vsel %vm6889, 1, 0
      %vm6891 = vcmp.ge.s32.totalorder %v6884, 28
      %v6892 = vsel %vm6891, 1, 0
      %v6893 = vadd.s32 %v6890, %v6892
      %vm6894 = vcmp.ge.s32.totalorder %v6884, 42
      %v6895 = vsel %vm6894, 1, 0
      %v6896 = vadd.s32 %v6893, %v6895
      %vm6897 = vcmp.ge.s32.totalorder %v6884, 56
      %v6898 = vsel %vm6897, 1, 0
      %v6899 = vadd.s32 %v6896, %v6898
      %vm6900 = vcmp.ge.s32.totalorder %v6884, 70
      %v6901 = vsel %vm6900, 1, 0
      %v6902 = vadd.s32 %v6899, %v6901
      %vm6903 = vcmp.ge.s32.totalorder %v6884, 84
      %v6904 = vsel %vm6903, 1, 0
      %v6905 = vadd.s32 %v6902, %v6904
      %vm6906 = vcmp.ge.s32.totalorder %v6884, 98
      %v6907 = vsel %vm6906, 1, 0
      %v6908 = vadd.s32 %v6905, %v6907
      %vm6909 = vcmp.ge.s32.totalorder %v6884, 112
      %v6910 = vsel %vm6909, 1, 0
      %v6911 = vadd.s32 %v6908, %v6910
      %vm6912 = vcmp.ge.s32.totalorder %v6884, 126
      %v6913 = vsel %vm6912, 1, 0
      %v6914 = vadd.s32 %v6911, %v6913
      %vm6915 = vcmp.ge.s32.totalorder %v6884, 140
      %v6916 = vsel %vm6915, 1, 0
      %v6917 = vadd.s32 %v6914, %v6916
      %vm6918 = vcmp.ge.s32.totalorder %v6884, 154
      %v6919 = vsel %vm6918, 1, 0
      %v6920 = vadd.s32 %v6917, %v6919
      %vm6921 = vcmp.ge.s32.totalorder %v6884, 168
      %v6922 = vsel %vm6921, 1, 0
      %v6923 = vadd.s32 %v6920, %v6922
      %vm6924 = vcmp.ge.s32.totalorder %v6884, 182
      %v6925 = vsel %vm6924, 1, 0
      %v6926 = vadd.s32 %v6923, %v6925
      %v6927 = vmul.u32 %v6926, 14
      %v6928 = vsub.s32 %v6884, %v6927
      %v6929 = vsub.s32 %v6427, %v6926
      %v6930 = vsub.s32 %v6428, %v6926
      %vm6931 = vcmp.lt.s32.totalorder %v6929, 0
      %v6932 = vsub.s32 0, %v6929
      %v6933 = vsel %vm6931, %v6932, %v6929
      %vm6934 = vcmp.lt.s32.totalorder %v6930, 0
      %v6935 = vsub.s32 0, %v6930
      %v6936 = vsel %vm6934, %v6935, %v6930
      %vm6937 = vcmp.le.s32.totalorder %v6933, 3
      %vm6938 = vcmp.le.s32.totalorder %v6936, 3
      %v6939 = vsub.s32 %v6431, %v6928
      %v6940 = vsub.s32 %v6432, %v6928
      %vm6941 = vcmp.lt.s32.totalorder %v6939, 0
      %v6942 = vsub.s32 0, %v6939
      %v6943 = vsel %vm6941, %v6942, %v6939
      %vm6944 = vcmp.lt.s32.totalorder %v6940, 0
      %v6945 = vsub.s32 0, %v6940
      %v6946 = vsel %vm6944, %v6945, %v6940
      %vm6947 = vcmp.le.s32.totalorder %v6943, 3
      %vm6948 = vcmp.le.s32.totalorder %v6946, 3
      %vm6949 = vmand %vm6937, %vm6947
      %vm6950 = vmand %vm6938, %vm6948
      %vm6951 = vcmp.ne.s32.totalorder %v6351, %v6884
      %vm6952 = vcmp.ne.s32.totalorder %v6352, %v6884
      %vm6953 = vmand %vm6772, %vm6951
      %vm6954 = vmand %vm6773, %vm6952
      %vm6955 = vmand %vm6953, %vm6949
      %vm6956 = vmand %vm6954, %vm6950
      %v6957 = vsel %vm6858, 1, 0
      %vm6958 = vcmp.eq.s32.totalorder %v6957, 1
      %vm6959 = vmand %vm6955, %vm6958
      %vm6960 = vmand %vm6956, %vm6958
      %v6961 = vsel %vm6959, %v6342, %v6591
      %v6962 = vsel %vm6960, %v6343, %v6592
      %v6963 = vsel %vm6435, %v6962, -inf
      %v6964 = vmax.f32 %v6961, %v6963
      %6965 = vmax.xlane.f32.xlu0 %v6964
      %v6966 = vpop.xlane.xlu0 %6965
      %v6967 = vsel %vm6867, 1, 0
      %vm6968 = vcmp.eq.s32.totalorder %v6967, 1
      %vm6969 = vmand %vm6955, %vm6968
      %vm6970 = vmand %vm6956, %vm6968
      %v6971 = vsel %vm6969, %v6344, %v6612
      %v6972 = vsel %vm6970, %v6345, %v6613
      %v6973 = vsel %vm6435, %v6972, -inf
      %v6974 = vmax.f32 %v6971, %v6973
      %6975 = vmax.xlane.f32.xlu0 %v6974
      %v6976 = vpop.xlane.xlu0 %6975
      %v6977 = vsel %vm6877, 1, 0
      %vm6978 = vcmp.eq.s32.totalorder %v6977, 1
      %vm6979 = vmand %vm6955, %vm6978
      %vm6980 = vmand %vm6956, %vm6978
      %v6981 = vsel %vm6979, %v6346, %v6633
      %v6982 = vsel %vm6980, %v6347, %v6634
      %v6983 = vsel %vm6435, %v6982, -inf
      %v6984 = vmax.f32 %v6981, %v6983
      %6985 = vmax.xlane.f32.xlu0 %v6984
      %v6986 = vpop.xlane.xlu0 %6985
      %v6987 = vsel %vm6886, 1, 0
      %vm6988 = vcmp.eq.s32.totalorder %v6987, 1
      %vm6989 = vmand %vm6955, %vm6988
      %vm6990 = vmand %vm6956, %vm6988
      %v6991 = vsel %vm6989, %v6348, %v6654
      %v6992 = vsel %vm6990, %v6349, %v6655
      %v6993 = vsel %vm6435, %v6992, -inf
      %v6994 = vmax.f32 %v6991, %v6993
      %6995 = vmax.xlane.f32.xlu0 %v6994
      %v6996 = vpop.xlane.xlu0 %6995
      %v6997 = vmax.f32 %v6966, %v6976
      %v6998 = vmax.f32 %v6997, %v6986
      %v6999 = vmax.f32 %v6998, %v6996
      %vm7000 = vcmp.eq.f32.partialorder %v6966, %v6999
      %v7001 = vsel %vm7000, %v6999, 0.0
      %v7002 = vadd.f32 %v6860, %v7001
      %vm7003 = vcmp.eq.f32.partialorder %v6976, %v6999
      %vm7004 = vmxor %vm7000, 1
      %vm7005 = vmand %vm7003, %vm7004
      %vm7006 = vmor %vm7000, %vm7005
      %v7007 = vsel %vm7005, %v6999, 0.0
      %v7008 = vadd.f32 %v6869, %v7007
      %vm7009 = vcmp.eq.f32.partialorder %v6986, %v6999
      %vm7010 = vmxor %vm7006, 1
      %vm7011 = vmand %vm7009, %vm7010
      %vm7012 = vmor %vm7006, %vm7011
      %v7013 = vsel %vm7011, %v6999, 0.0
      %v7014 = vadd.f32 %v6879, %v7013
      %vm7015 = vcmp.eq.f32.partialorder %v6996, %v6999
      %vm7016 = vmxor %vm7012, 1
      %vm7017 = vmand %vm7015, %vm7016
      %v7018 = vsel %vm7017, %v6999, 0.0
      %v7019 = vadd.f32 %v6888, %v7018
      %vm7020 = vcmp.eq.s32.totalorder %v6351, 0
      %v7021 = vsel %vm7020, %v7002, 0.0
      %v7022 = vadd.f32 %v7021, 0.0
      %vm7023 = vcmp.eq.s32.totalorder %v6351, 1
      %v7024 = vsel %vm7023, %v7008, 0.0
      %v7025 = vadd.f32 %v7022, %v7024
      %vm7026 = vcmp.eq.s32.totalorder %v6351, 2
      %v7027 = vsel %vm7026, %v7014, 0.0
      %v7028 = vadd.f32 %v7025, %v7027
      %vm7029 = vcmp.eq.s32.totalorder %v6351, 3
      %v7030 = vsel %vm7029, %v7019, 0.0
      %v7031 = vadd.f32 %v7028, %v7030
      %v7032 = vld [vmem:[%s1 + $0x198] sm:$0xff]
      %v7033 = vsub.f32 0.0, %v7032
      %v7034 = vmul.f32 %v7033, 1.442695
      %v7035 = vpow.pop %v7034
      %v7036 = vadd.f32 %v7035, 1.0
      %v7037 = vrcp.pop %v7036
      %vm7038 = vcmask 31744
      %v7039 = vsel %vm7038, %v7037, 0.0
      %7040 = vadd.xlane.f32.xlu0 %v7039
      %v7041 = vpop.xlane.xlu0 %7040
      %v7042 = vadd.f32 %v7041, 1e-10
      %v7043 = vmul.f32 %v7037, 4.0
      %v7044 = vrcp.pop %v7042
      %v7045 = vmul.f32 %v7043, %v7044
      %v7046 = vmul.f32 %v7031, %v7045
      %v7047 = vsel %vm7038, %v7046, 0.0
      %7048 = vadd.xlane.f32.xlu0 %v7047
      %v7049 = vpop.xlane.xlu0 %7048
      %v7050 = vld [vmem:[%s1 + $0x1a0] sm:$0xff]
      %v7051 = vmul.f32 %v7050, %v7049
      %v7052 = vsel %vm7038, %v7051, 0.0
      %v7053 = vrot.slane %v7052, 4
      %v7054 = vadd.f32 %v7052, %v7053
      %v7055 = vrot.slane %v7054, 2
      %v7056 = vadd.f32 %v7054, %v7055
      %v7057 = vrot.slane %v7056, 1
      %v7058 = vadd.f32 %v7056, %v7057
      %v7059 = vsub.f32 4.0, %v7049
      %7061 = vrot.lane.b32.xlu0 %v7058, 5
      %v7062 = vpop.permute.xlu0 %7061
      %v7064 = vsel %vm7038, %v7031, %v7059
      %vm7065 = vcmask 39936
      %v7066 = vsel %vm7065, %v7064, %v7062
      %vm7067 = vcmask 72704
      %v7068 = vsel %vm7067, %v7066, 0.0
      %7069 = vst [vmem:[%s195] sm:$0xff] %v7068
      %p7070 = scmp.lt.s32.totalorder %s15, 1
      %s7071 = scalar_select %p7070, %s15, 1
      %s7072 = smul.addr %s7071, 8
      %s7073 = scalar_lea.vmem %s4, %s7072
      // Predicated region
      $region37: #{ppnet_forward.1} parent=35 // pred_check
        %p7074 = pneg %p122
      $region38: #{ppnet_forward.1} parent=35 // pred_check_branch
        %7076 = sbr.rel (%p7074) target = $region40
      $region39: #{ppnet_forward.1} parent=35 // pred_region
        _
      $region40: #{ppnet_forward.1} parent=35 // pred_fallthru
        _
    $region36: #{ppnet_forward.1} parent=5 // pred_fallthru
      _
    %p7077 = scmp.le.s32.totalorder 2, %s10
    // Predicated region
    $region41: #{ppnet_forward.1} parent=5 // pred_check
      %p7078 = pneg %p7077
    $region42: #{ppnet_forward.1} parent=5 // pred_check_branch
      %7080 = sbr.rel (%p7078) target = $region44
    $region43: #{ppnet_forward.1} parent=5 // pred_region
      %s7081 = ssub.s32 %s10, 2
      // Predicated region
      $region45: #{ppnet_forward.1} parent=43 // pred_check
        %p7082 = pneg %p128
      $region46: #{ppnet_forward.1} parent=43 // pred_check_branch
        %7084 = sbr.rel (%p7082) target = $region48
      $region47: #{ppnet_forward.1} parent=43 // pred_region
        %p7085 = scmp.lt.s32.totalorder %s16, 1
        %s7086 = scalar_select %p7085, %s16, 1
        %s7087 = smul.addr %s7086, 8
        %s7088 = scalar_lea.vmem %s4, %s7087
      $region48: #{ppnet_forward.1} parent=43 // pred_fallthru
        _
    $region44: #{ppnet_forward.1} parent=5 // pred_fallthru
      _
  $region6: #{ppnet_forward.1} parent=0 // loop_footer
    %s14 = sadd.s32 1, %s10
  $region7: #{ppnet_forward.1} parent=0 // loop_footer_branch
    %9 = sbr.rel target = $region3
  $region8: #{ppnet_forward.1} parent=0 // loop_exit
    _

</llo_original>
